<compile_context>
chip_gen: v7x
topology: tpu7x:2x2x1
jax: 0.10.0
libtpu: 0.0.40
codegen_flags: <defaults>
</compile_context>

<pallas_src>
import functools
import math

import jax
import jax.numpy as jnp
from jax import lax
from jax.experimental import pallas as pl
from jax.experimental.pallas import tpu as pltpu

GN_GROUPS = 4
GN_EPS = 1e-5


def _round_up(x, m):
    return ((x + m - 1) // m) * m


# ----------------------------------------------------------------------- GroupNorm (+SiLU) kernel
def _gn_silu_kernel(x_ref, g_ref, b_ref, sel2_ref, selt_ref, o_ref, *, G, denom, eps, apply_silu):
    x = x_ref[0].astype(jnp.float32)                                 # (T, C)
    # single matmul for both statistics: [x | x*x] @ blockdiag(sel, sel) -> (T, 2G)
    x2 = jnp.concatenate([x, x * x], axis=-1)
    stats = jnp.sum(jnp.dot(x2, sel2_ref[...], preferred_element_type=jnp.float32),
                    axis=0, keepdims=True)                           # (1, 2G)
    mean_g = stats[:, :G] / denom
    var_g = jnp.maximum(stats[:, G:] / denom - mean_g * mean_g, 0.0)  # guard cancellation
    mr = jnp.dot(jnp.concatenate([mean_g, lax.rsqrt(var_g + eps)], axis=0),
                 selt_ref[...], preferred_element_type=jnp.float32)   # (2, C)
    y = (x - mr[0:1, :]) * mr[1:2, :] * g_ref[...] + b_ref[...]
    if apply_silu:
        y = y * jax.nn.sigmoid(y)
    o_ref[0] = y.astype(o_ref.dtype)


def group_norm(x, gn_pack, apply_silu):
    """x: [B, T, C] bf16 -> [B, T, C] bf16.  PyTorch GroupNorm(GN_GROUPS, C) (+ optional SiLU)."""
    B, T, C = x.shape
    gamma, beta, sel2, selt = gn_pack
    G = GN_GROUPS
    kernel = functools.partial(_gn_silu_kernel, G=G, denom=float(T * (C // G)),
                               eps=GN_EPS, apply_silu=apply_silu)
    return pl.pallas_call(
        kernel,
        out_shape=jax.ShapeDtypeStruct((B, T, C), jnp.bfloat16),
        grid=(B,),
        in_specs=[
            pl.BlockSpec((1, T, C), lambda i: (i, 0, 0)),
            pl.BlockSpec((1, C), lambda i: (0, 0)),
            pl.BlockSpec((1, C), lambda i: (0, 0)),
            pl.BlockSpec((2 * C, 2 * G), lambda i: (0, 0)),
            pl.BlockSpec((G, C), lambda i: (0, 0)),
        ],
        out_specs=pl.BlockSpec((1, T, C), lambda i: (i, 0, 0)),
        compiler_params=pltpu.CompilerParams(dimension_semantics=("parallel",)),
    )(x, gamma, beta, sel2, selt)


# ----------------------------------------------------------------------- fused 3x3 conv kernel
def _conv3x3_kernel(x_ref, w_ref, b_ref, *rest, H, W, Cin, mode):
    o_ref, acc_ref = rest[-2], rest[-1]
    xv = x_ref[0]                                                    # (H+2, W+2, Cin) bf16
    # 3 tap GEMMs (one per kernel row), K = 3*Cin, accumulated in f32 VMEM scratch.
    for ky in range(3):
        patch = jnp.concatenate([xv[ky:ky + H, kx:kx + W, :] for kx in range(3)],
                                axis=-1).reshape(H * W, 3 * Cin)
        contrib = jnp.dot(patch, w_ref[3 * Cin * ky:3 * Cin * (ky + 1), :],
                          preferred_element_type=jnp.float32)
        if ky == 0:
            acc_ref[...] = contrib
        else:
            acc_ref[...] += contrib
    y = acc_ref[...] + b_ref[...]
    if mode == "emb":                                                # fused timestep-emb GEMM
        emb_ref, ew_ref, eb_ref = rest[0], rest[1], rest[2]
        e = emb_ref[0]                                               # (1, Ed) f32
        e = (e * jax.nn.sigmoid(e)).astype(jnp.bfloat16)             # SiLU(timestep emb)
        y = y + jnp.dot(e, ew_ref[...], preferred_element_type=jnp.float32) + eb_ref[...]
    elif mode == "skip":                                             # fused 1x1 skip GEMM
        sx_ref, sw_ref, sb_ref = rest[0], rest[1], rest[2]
        y = y + jnp.dot(sx_ref[0], sw_ref[...],
                        preferred_element_type=jnp.float32) + sb_ref[...]
    o_ref[0] = y.astype(o_ref.dtype)


def conv3x3(x, w_pack, b_pack, cout, mode="plain", extra=()):
    """NHWC 3x3 conv, padding=1, fused epilogue.  x: [B,H,W,Cin] bf16 -> [B,H,W,cout] bf16.
    mode="emb":  extra = (emb [B,1,Ed] f32, emb_w [Ed,Np] bf16, emb_b [1,Np] f32)
    mode="skip": extra = (sx [B,T,Cs] bf16, skip_w [Cs,Np] bf16, skip_b [1,Np] f32)"""
    B, H, W, Cin = x.shape
    T = H * W
    Np = w_pack.shape[1]
    tn = 256 if Np % 256 == 0 else 128
    xp = jnp.pad(x, ((0, 0), (1, 1), (1, 1), (0, 0)))

    in_specs = [
        pl.BlockSpec((1, H + 2, W + 2, Cin), lambda b, n: (b, 0, 0, 0)),
        pl.BlockSpec((9 * Cin, tn), lambda b, n: (0, n)),
        pl.BlockSpec((1, tn), lambda b, n: (0, n)),
    ]
    args = [xp, w_pack, b_pack]
    if mode == "emb":
        emb, emb_w, emb_b = extra
        ed = emb.shape[-1]
        in_specs += [pl.BlockSpec((1, 1, ed), lambda b, n: (b, 0, 0)),
                     pl.BlockSpec((ed, tn), lambda b, n: (0, n)),
                     pl.BlockSpec((1, tn), lambda b, n: (0, n))]
        args += [emb, emb_w, emb_b]
    elif mode == "skip":
        sx, sw, sb = extra
        cs = sx.shape[-1]
        in_specs += [pl.BlockSpec((1, T, cs), lambda b, n: (b, 0, 0)),
                     pl.BlockSpec((cs, tn), lambda b, n: (0, n)),
                     pl.BlockSpec((1, tn), lambda b, n: (0, n))]
        args += [sx, sw, sb]

    out = pl.pallas_call(
        functools.partial(_conv3x3_kernel, H=H, W=W, Cin=Cin, mode=mode),
        out_shape=jax.ShapeDtypeStruct((B, T, Np), jnp.bfloat16),
        grid=(B, Np // tn),
        in_specs=in_specs,
        out_specs=pl.BlockSpec((1, T, tn), lambda b, n: (b, 0, n)),
        scratch_shapes=[pltpu.VMEM((T, tn), jnp.float32)],
        compiler_params=pltpu.CompilerParams(dimension_semantics=("parallel", "parallel")),
    )(*args)
    return out[:, :, :cout].reshape(B, H, W, cout)


# ------------------------------------------------------- fused nearest-2x upsample + 3x3 up-conv
def _upconv3x3_kernel(x_ref, we_ref, wo_ref, b_ref, o_ref, *, H, W, Cin):
    xp = x_ref[0]                                                    # (H+2, W+2, Cin) bf16, padded
    H2 = 2 * H
    # Row duplication in VMEM only: uh[i, j] == xp[(i+1)//2, j]  (2x rows, still zero-padded).
    uh = jnp.broadcast_to(xp[:, None, :, :], (H + 2, 2, W + 2, Cin))
    uh = uh.reshape(2 * H + 4, W + 2, Cin)[1:2 * H + 3]              # (2H+2, W+2, Cin)
    # Column duplication is folded into the weights per output-column parity (w_even / w_odd).
    for dj, w_ref_p in ((0, we_ref), (1, wo_ref)):
        taps = []
        for ky in range(3):
            taps.append(uh[ky:ky + H2, dj:dj + W, :])
            taps.append(uh[ky:ky + H2, dj + 1:dj + 1 + W, :])
        patch = jnp.concatenate(taps, axis=-1).reshape(H2 * W, 6 * Cin)
        y = jnp.dot(patch, w_ref_p[...], preferred_element_type=jnp.float32) + b_ref[...]
        o_ref[0, dj] = y.astype(o_ref.dtype)


def upconv3x3_2x(x, we_pack, wo_pack, b_pack, cout):
    """Fused nearest-2x upsample + 3x3 conv.  x: [B,H,W,Cin] bf16 -> [B,2H,2W,cout] bf16.
    The 4x upsampled map never hits HBM; parity-major output is re-interleaved outside."""
    B, H, W, Cin = x.shape
    Np = we_pack.shape[1]
    tn = 256 if Np % 256 == 0 else 128
    T2 = 2 * H * W
    xp = jnp.pad(x, ((0, 0), (1, 1), (1, 1), (0, 0)))
    out = pl.pallas_call(
        functools.partial(_upconv3x3_kernel, H=H, W=W, Cin=Cin),
        out_shape=jax.ShapeDtypeStruct((B, 2, T2, Np), jnp.bfloat16),
        grid=(B, Np // tn),
        in_specs=[
            pl.BlockSpec((1, H + 2, W + 2, Cin), lambda b, n: (b, 0, 0, 0)),
            pl.BlockSpec((6 * Cin, tn), lambda b, n: (0, n)),
            pl.BlockSpec((6 * Cin, tn), lambda b, n: (0, n)),
            pl.BlockSpec((1, tn), lambda b, n: (0, n)),
        ],
        out_specs=pl.BlockSpec((1, 2, T2, tn), lambda b, n: (b, 0, 0, n)),
        compiler_params=pltpu.CompilerParams(dimension_semantics=("parallel", "parallel")),
    )(xp, we_pack, wo_pack, b_pack)
    y = out[:, :, :, :cout].reshape(B, 2, 2 * H, W, cout)
    return jnp.transpose(y, (0, 2, 3, 1, 4)).reshape(B, 2 * H, 2 * W, cout)


# ------------------------------------------------------------ fused AttentionBlock (per batch)
def _attn_block_kernel(x_ref, g_ref, b_ref, sel2_ref, selt_ref, qw_ref, qb_ref, pw_ref, pb_ref,
                       o_ref, *, num_heads, dh, G, denom, eps, scale):
    x = x_ref[0].astype(jnp.float32)                                 # (T, C) residual + GN input
    C = num_heads * dh
    # GroupNorm (no SiLU)
    x2 = jnp.concatenate([x, x * x], axis=-1)
    stats = jnp.sum(jnp.dot(x2, sel2_ref[...], preferred_element_type=jnp.float32),
                    axis=0, keepdims=True)
    mean_g = stats[:, :G] / denom
    var_g = jnp.maximum(stats[:, G:] / denom - mean_g * mean_g, 0.0)
    mr = jnp.dot(jnp.concatenate([mean_g, lax.rsqrt(var_g + eps)], axis=0),
                 selt_ref[...], preferred_element_type=jnp.float32)
    h = (x - mr[0:1, :]) * mr[1:2, :] * g_ref[...] + b_ref[...]
    # qkv projection
    qkv = jnp.dot(h.astype(jnp.bfloat16), qw_ref[...],
                  preferred_element_type=jnp.float32) + qb_ref[...]  # (T, 3C)
    # per-head softmax attention, proj GEMM accumulated per head (no lane concat), + residual
    acc = x + pb_ref[...]
    for hh in range(num_heads):
        q = qkv[:, hh * dh:(hh + 1) * dh].astype(jnp.bfloat16)
        k = qkv[:, C + hh * dh:C + (hh + 1) * dh].astype(jnp.bfloat16)
        v = qkv[:, 2 * C + hh * dh:2 * C + (hh + 1) * dh].astype(jnp.bfloat16)
        s = lax.dot_general(q, k, (((1,), (1,)), ((), ())),
                            preferred_element_type=jnp.float32) * scale       # (T, T)
        s = s - jnp.max(s, axis=-1, keepdims=True)
        p = jnp.exp(s)
        p = p * pl.reciprocal(jnp.sum(p, axis=-1, keepdims=True), approx=True)
        oh = jnp.dot(p.astype(jnp.bfloat16), v, preferred_element_type=jnp.float32)
        acc = acc + jnp.dot(oh.astype(jnp.bfloat16), pw_ref[hh * dh:(hh + 1) * dh, :],
                            preferred_element_type=jnp.float32)
    o_ref[0] = acc.astype(o_ref.dtype)


def attention_block(x, pk, num_heads):
    """Fused AttentionBlock (GN + qkv + attention + proj + residual).  x: [B,T,C] bf16."""
    B, T, C = x.shape
    G = GN_GROUPS
    dh = C // num_heads
    kernel = functools.partial(_attn_block_kernel, num_heads=num_heads, dh=dh, G=G,
                               denom=float(T * (C // G)), eps=GN_EPS,
                               scale=1.0 / math.sqrt(dh))
    return pl.pallas_call(
        kernel,
        out_shape=jax.ShapeDtypeStruct((B, T, C), jnp.bfloat16),
        grid=(B,),
        in_specs=[
            pl.BlockSpec((1, T, C), lambda i: (i, 0, 0)),
            pl.BlockSpec((1, C), lambda i: (0, 0)),
            pl.BlockSpec((1, C), lambda i: (0, 0)),
            pl.BlockSpec((2 * C, 2 * G), lambda i: (0, 0)),
            pl.BlockSpec((G, C), lambda i: (0, 0)),
            pl.BlockSpec((C, 3 * C), lambda i: (0, 0)),
            pl.BlockSpec((1, 3 * C), lambda i: (0, 0)),
            pl.BlockSpec((C, C), lambda i: (0, 0)),
            pl.BlockSpec((1, C), lambda i: (0, 0)),
        ],
        out_specs=pl.BlockSpec((1, T, C), lambda i: (i, 0, 0)),
        compiler_params=pltpu.CompilerParams(dimension_semantics=("parallel",)),
    )(x, pk["norm_g"], pk["norm_b"], pk["sel2"], pk["selt"],
      pk["qkv_w"], pk["qkv_b"], pk["proj_w"], pk["proj_b"])


# ----------------------------------------------------------------------------- module forward
def res_block(pk, x, emb, cout):
    """x: [B,H,W,Cin] bf16 (post skip-concat) -> [B,H,W,cout] bf16."""
    B, H, W, Cin = x.shape
    T = H * W
    h = group_norm(x.reshape(B, T, Cin), pk["gn1"], apply_silu=True).reshape(B, H, W, Cin)
    h = conv3x3(h, pk["conv1_w"], pk["conv1_b"], cout, mode="emb",
                extra=(emb, pk["emb_w"], pk["emb_b"]))
    h = group_norm(h.reshape(B, T, cout), pk["gn2"], apply_silu=True).reshape(B, H, W, cout)
    return conv3x3(h, pk["conv2_w"], pk["conv2_b"], cout, mode="skip",
                   extra=(x.reshape(B, T, Cin), pk["skip_w"], pk["skip_b"]))


def unet_decoder_block_forward(packed, x, timestep_emb, skip_features, num_heads, out_channels):
    """x / skips NCHW f32 (PyTorch layout); result NCHW f32.  Internals: NHWC, bf16 streaming."""
    feat = jnp.transpose(x, (0, 2, 3, 1)).astype(jnp.bfloat16)
    skips = [jnp.transpose(s, (0, 2, 3, 1)).astype(jnp.bfloat16) for s in skip_features]
    emb = timestep_emb.astype(jnp.float32)[:, None, :]               # [B, 1, Ed]
    for i, pk in enumerate(packed["res"]):
        feat = jnp.concatenate([feat, skips[i]], axis=-1)
        feat = res_block(pk, feat, emb, out_channels)
        if packed["attn"]:
            B, H, W, C = feat.shape
            feat = attention_block(feat.reshape(B, H * W, C), packed["attn"][i],
                                   num_heads).reshape(B, H, W, C)
    if "up_we" in packed:
        feat = upconv3x3_2x(feat, packed["up_we"], packed["up_wo"], packed["up_b"], out_channels)
    return jnp.transpose(feat, (0, 3, 1, 2)).astype(jnp.float32)


# ----------------------------------------------------------------------------- parameters
def _init(key, shape, scale=0.05):
    return scale * jax.random.normal(key, shape, dtype=jnp.float32)


def init_params(key, in_channels, skip_channels, emb_dim, out_channels,
                n_res_blocks, use_attention, use_upsample):
    """Canonical PyTorch-layout f32 parameters."""
    params = {"res": [], "attn": []}
    keys = iter(jax.random.split(key, 256))
    for i in range(n_res_blocks):
        cin = (in_channels if i == 0 else out_channels) + skip_channels[i]
        params["res"].append({
            "gn1_g": jnp.ones((cin,), jnp.float32), "gn1_b": jnp.zeros((cin,), jnp.float32),
            "conv1_w": _init(next(keys), (out_channels, cin, 3, 3)),
            "conv1_b": _init(next(keys), (out_channels,)),
            "emb_w": _init(next(keys), (emb_dim, out_channels)),
            "emb_b": _init(next(keys), (out_channels,)),
            "gn2_g": jnp.ones((out_channels,), jnp.float32),
            "gn2_b": jnp.zeros((out_channels,), jnp.float32),
            "conv2_w": _init(next(keys), (out_channels, out_channels, 3, 3)),
            "conv2_b": _init(next(keys), (out_channels,)),
            "skip_w": _init(next(keys), (cin, out_channels)),
            "skip_b": _init(next(keys), (out_channels,)),
        })
        if use_attention:
            params["attn"].append({
                "norm_g": jnp.ones((out_channels,), jnp.float32),
                "norm_b": jnp.zeros((out_channels,), jnp.float32),
                "qkv_w": _init(next(keys), (out_channels, 3 * out_channels)),
                "qkv_b": _init(next(keys), (3 * out_channels,)),
                "proj_w": _init(next(keys), (out_channels, out_channels)),
                "proj_b": _init(next(keys), (out_channels,)),
            })
    if use_upsample:
        params["up_w"] = _init(next(keys), (out_channels, out_channels, 3, 3))
        params["up_b"] = _init(next(keys), (out_channels,))
    return params


def _gn_pack(gamma, beta):
    C = gamma.shape[0]
    G = GN_GROUPS
    cg = C // G
    sel = (jnp.arange(C)[:, None] // cg == jnp.arange(G)[None, :]).astype(jnp.float32)
    sel2 = jnp.zeros((2 * C, 2 * G), jnp.float32).at[:C, :G].set(sel).at[C:, G:].set(sel)
    return (gamma.reshape(1, C).astype(jnp.float32),
            beta.reshape(1, C).astype(jnp.float32), sel2, sel.T)


def _pack_conv_w(w, npad):
    cout, cin = w.shape[0], w.shape[1]
    wt = jnp.transpose(w, (2, 3, 1, 0)).reshape(9 * cin, cout)       # rows ordered (ky, kx, cin)
    return jnp.pad(wt, ((0, 0), (0, npad - cout))).astype(jnp.bfloat16)


def _pack_mat(w, npad):
    return jnp.pad(w, ((0, 0), (0, npad - w.shape[1]))).astype(jnp.bfloat16)


def _pack_bias(b, npad):
    return jnp.pad(b.astype(jnp.float32), (0, npad - b.shape[0])).reshape(1, npad)


def _pack_upconv_w(w, npad):
    wt = jnp.transpose(w, (2, 3, 1, 0))                              # (ky, kx, cin, cout)
    cin, cout = wt.shape[2], wt.shape[3]
    # output-column-parity folding of the nearest-2x upsample into the weights
    we = jnp.stack([wt[:, 0], wt[:, 1] + wt[:, 2]], axis=1).reshape(6 * cin, cout)
    wo = jnp.stack([wt[:, 0] + wt[:, 1], wt[:, 2]], axis=1).reshape(6 * cin, cout)
    pad = lambda a: jnp.pad(a, ((0, 0), (0, npad - cout))).astype(jnp.bfloat16)
    return pad(we), pad(wo)


def pack_params(params, out_channels):
    """One-time weight repacking (layout transpose, lane padding, bf16 cast, GN selectors)."""
    npad = _round_up(out_channels, 128)
    packed = {"res": [], "attn": []}
    for p in params["res"]:
        packed["res"].append({
            "gn1": _gn_pack(p["gn1_g"], p["gn1_b"]),
            "gn2": _gn_pack(p["gn2_g"], p["gn2_b"]),
            "conv1_w": _pack_conv_w(p["conv1_w"], npad),
            "conv1_b": _pack_bias(p["conv1_b"], npad),
            "emb_w": _pack_mat(p["emb_w"], npad),
            "emb_b": _pack_bias(p["emb_b"], npad),
            "conv2_w": _pack_conv_w(p["conv2_w"], npad),
            "conv2_b": _pack_bias(p["conv2_b"], npad),
            "skip_w": _pack_mat(p["skip_w"], npad),
            "skip_b": _pack_bias(p["skip_b"], npad),
        })
    for p in params["attn"]:
        C = out_channels
        g, b, sel2, selt = _gn_pack(p["norm_g"], p["norm_b"])
        packed["attn"].append({
            "norm_g": g, "norm_b": b, "sel2": sel2, "selt": selt,
            "qkv_w": p["qkv_w"].astype(jnp.bfloat16),
            "qkv_b": p["qkv_b"].reshape(1, 3 * C).astype(jnp.float32),
            "proj_w": p["proj_w"].astype(jnp.bfloat16),
            "proj_b": p["proj_b"].reshape(1, C).astype(jnp.float32),
        })
    if "up_w" in params:
        packed["up_we"], packed["up_wo"] = _pack_upconv_w(params["up_w"], npad)
        packed["up_b"] = _pack_bias(params["up_b"], npad)
    return packed


# ----------------------------------------------------------------------------- pure-JAX reference
def _ref_group_norm(x, gamma, beta, silu):
    B, C, H, W = x.shape
    G = GN_GROUPS
    xg = x.reshape(B, G, C // G, H, W)
    mean = xg.mean(axis=(2, 3, 4), keepdims=True)
    var = ((xg - mean) ** 2).mean(axis=(2, 3, 4), keepdims=True)
    y = ((xg - mean) / jnp.sqrt(var + GN_EPS)).reshape(B, C, H, W)
    y = y * gamma[None, :, None, None] + beta[None, :, None, None]
    return y * jax.nn.sigmoid(y) if silu else y


def _ref_conv3x3(x, w, b):
    y = lax.conv_general_dilated(x, w, (1, 1), ((1, 1), (1, 1)),
                                 dimension_numbers=("NCHW", "OIHW", "NCHW"))
    return y + b[None, :, None, None]


def forward_reference(params, x, timestep_emb, skip_features, num_heads):
    feat = x
    for i, p in enumerate(params["res"]):
        feat = jnp.concatenate([feat, skip_features[i]], axis=1)
        h = _ref_conv3x3(_ref_group_norm(feat, p["gn1_g"], p["gn1_b"], True),
                         p["conv1_w"], p["conv1_b"])
        emb_out = jax.nn.silu(timestep_emb) @ p["emb_w"] + p["emb_b"]
        h = h + emb_out[:, :, None, None]
        h = _ref_conv3x3(_ref_group_norm(h, p["gn2_g"], p["gn2_b"], True),
                         p["conv2_w"], p["conv2_b"])
        skip = jnp.einsum("bihw,io->bohw", feat, p["skip_w"]) + p["skip_b"][None, :, None, None]
        feat = h + skip
        if params["attn"]:
            pa = params["attn"][i]
            B, C, H, W = feat.shape
            T = H * W
            dh = C // num_heads
            hn = _ref_group_norm(feat, pa["norm_g"], pa["norm_b"], False)
            hf = hn.reshape(B, C, T).transpose(0, 2, 1)
            qkv = hf @ pa["qkv_w"] + pa["qkv_b"]
            outs = []
            for hh in range(num_heads):
                q = qkv[:, :, hh * dh:(hh + 1) * dh]
                k = qkv[:, :, C + hh * dh:C + (hh + 1) * dh]
                v = qkv[:, :, 2 * C + hh * dh:2 * C + (hh + 1) * dh]
                s = jnp.einsum("btd,bsd->bts", q, k) / math.sqrt(dh)
                outs.append(jnp.einsum("bts,bsd->btd", jax.nn.softmax(s, axis=-1), v))
            o = jnp.concatenate(outs, axis=-1) @ pa["proj_w"] + pa["proj_b"]
            feat = feat + o.transpose(0, 2, 1).reshape(B, C, H, W)
    if "up_w" in params:
        feat = jnp.repeat(jnp.repeat(feat, 2, axis=2), 2, axis=3)
        feat = _ref_conv3x3(feat, params["up_w"], params["up_b"])
    return feat


# ----------------------------------------------------------------------------- main
if __name__ == "__main__":
    B, Cin, H, W = 2, 8, 8, 8
    skip_chs = [8, 8]
    emb_dim = 16
    Cout = 8
    n_res = 2
    num_heads = 2

    key = jax.random.PRNGKey(0)
    k1, k2, k3, k4, kp = jax.random.split(key, 5)
    x = jax.random.normal(k1, (B, Cin, H, W), jnp.float32)
    t_emb = jax.random.normal(k2, (B, emb_dim), jnp.float32)
    skips = [
        jax.random.normal(k3, (B, skip_chs[0], H, W), jnp.float32),
        jax.random.normal(k4, (B, skip_chs[1], H, W), jnp.float32),
    ]
    params = init_params(kp, Cin, skip_chs, emb_dim, Cout, n_res,
                         use_attention=True, use_upsample=True)
    packed = pack_params(params, Cout)                               # packed ONCE, reused per call

    fwd = jax.jit(functools.partial(unet_decoder_block_forward,
                                    num_heads=num_heads, out_channels=Cout))
    out = jax.block_until_ready(fwd(packed, x, t_emb, skips))

    ref = forward_reference(params, x, t_emb, skips, num_heads)
    assert out.shape == (B, Cout, 2 * H, 2 * W), out.shape
    assert bool(jnp.all(jnp.isfinite(out)))
    max_err = float(jnp.max(jnp.abs(out - ref)))
    assert bool(jnp.allclose(out, ref, atol=5e-2, rtol=5e-2)), max_err
    print("KERNEL_OK")
</pallas_src>

<mosaic_0001>
module attributes {stable_mosaic.version = 11 : i64} {
  func.func @_conv3x3_kernel(%arg0: i32, %arg1: i32, %arg2: memref<1x10x10x16xbf16, #tpu.memory_space<vmem>>, %arg3: memref<144x128xbf16, #tpu.memory_space<vmem>>, %arg4: memref<1x128xf32, #tpu.memory_space<vmem>>, %arg5: memref<1x1x16xf32, #tpu.memory_space<vmem>>, %arg6: memref<16x128xbf16, #tpu.memory_space<vmem>>, %arg7: memref<1x128xf32, #tpu.memory_space<vmem>>, %arg8: memref<1x64x128xbf16, #tpu.memory_space<vmem>>, %arg9: memref<64x128xf32, #tpu.memory_space<vmem>>) attributes {dimension_semantics = [#tpu.dimension_semantics<parallel>, #tpu.dimension_semantics<parallel>], iteration_bounds = array<i64: 2, 1>, scalar_prefetch = 0 : i64, scratch_operands = 1 : i64, tpu.core_type = #tpu.core_type<tc>, window_params = [{transform_indices = @transform_0, window_bounds = array<i64: 1, 10, 10, 16>}, {transform_indices = @transform_1, window_bounds = array<i64: 144, 128>}, {transform_indices = @transform_2, window_bounds = array<i64: 1, 128>}, {transform_indices = @transform_3, window_bounds = array<i64: 1, 1, 16>}, {transform_indices = @transform_4, window_bounds = array<i64: 16, 128>}, {transform_indices = @transform_5, window_bounds = array<i64: 1, 128>}, {transform_indices = @transform_6, window_bounds = array<i64: 1, 64, 128>}]} {
    %c0 = arith.constant 0 : index
    %c0_0 = arith.constant 0 : index
    %c0_1 = arith.constant 0 : index
    %c0_2 = arith.constant 0 : index
    %0 = vector.load %arg2[%c0, %c0_0, %c0_1, %c0_2] : memref<1x10x10x16xbf16, #tpu.memory_space<vmem>>, vector<1x10x10x16xbf16>
    %1 = vector.shape_cast %0 : vector<1x10x10x16xbf16> to vector<10x10x16xbf16>
    %2 = vector.extract_strided_slice %1 {offsets = [0, 0, 0], sizes = [8, 8, 16], strides = [1, 1, 1]} : vector<10x10x16xbf16> to vector<8x8x16xbf16>
    %3 = vector.extract_strided_slice %1 {offsets = [0, 1, 0], sizes = [8, 8, 16], strides = [1, 1, 1]} : vector<10x10x16xbf16> to vector<8x8x16xbf16>
    %4 = vector.extract_strided_slice %1 {offsets = [0, 2, 0], sizes = [8, 8, 16], strides = [1, 1, 1]} : vector<10x10x16xbf16> to vector<8x8x16xbf16>
    %5 = tpu.concatenate %2, %3, %4 in 2 : vector<8x8x16xbf16>, vector<8x8x16xbf16>, vector<8x8x16xbf16> -> vector<8x8x48xbf16>
    %6 = vector.shape_cast %5 : vector<8x8x48xbf16> to vector<64x48xbf16>
    %c0_3 = arith.constant 0 : index
    %c0_4 = arith.constant 0 : index
    %7 = vector.load %arg3[%c0_3, %c0_4] : memref<144x128xbf16, #tpu.memory_space<vmem>>, vector<48x128xbf16>
    %cst = arith.constant dense<0.000000e+00> : vector<64x128xf32>
    %8 = tpu.matmul %6, %7, %cst {dimension_numbers = #tpu.dot_dimension_numbers<[1], [0], [0], [1], [0, 0, 1, 1], [], []>} : vector<64x48xbf16>, vector<48x128xbf16>, vector<64x128xf32> -> vector<64x128xf32>
    %c0_5 = arith.constant 0 : index
    %c0_6 = arith.constant 0 : index
    %9 = vector.load %arg9[%c0_5, %c0_6] : memref<64x128xf32, #tpu.memory_space<vmem>>, vector<64x128xf32>
    tpu.vector_store %arg9[%c0_5, %c0_6], %8 {strides = array<i32>} : memref<64x128xf32, #tpu.memory_space<vmem>>, vector<64x128xf32>,
    %10 = vector.extract_strided_slice %1 {offsets = [1, 0, 0], sizes = [8, 8, 16], strides = [1, 1, 1]} : vector<10x10x16xbf16> to vector<8x8x16xbf16>
    %11 = vector.extract_strided_slice %1 {offsets = [1, 1, 0], sizes = [8, 8, 16], strides = [1, 1, 1]} : vector<10x10x16xbf16> to vector<8x8x16xbf16>
    %12 = vector.extract_strided_slice %1 {offsets = [1, 2, 0], sizes = [8, 8, 16], strides = [1, 1, 1]} : vector<10x10x16xbf16> to vector<8x8x16xbf16>
    %13 = tpu.concatenate %10, %11, %12 in 2 : vector<8x8x16xbf16>, vector<8x8x16xbf16>, vector<8x8x16xbf16> -> vector<8x8x48xbf16>
    %14 = vector.shape_cast %13 : vector<8x8x48xbf16> to vector<64x48xbf16>
    %c48 = arith.constant 48 : index
    %c0_7 = arith.constant 0 : index
    %15 = vector.load %arg3[%c48, %c0_7] : memref<144x128xbf16, #tpu.memory_space<vmem>>, vector<48x128xbf16>
    %cst_8 = arith.constant dense<0.000000e+00> : vector<64x128xf32>
    %16 = tpu.matmul %14, %15, %cst_8 {dimension_numbers = #tpu.dot_dimension_numbers<[1], [0], [0], [1], [0, 0, 1, 1], [], []>} : vector<64x48xbf16>, vector<48x128xbf16>, vector<64x128xf32> -> vector<64x128xf32>
    %c0_9 = arith.constant 0 : index
    %c0_10 = arith.constant 0 : index
    %17 = vector.load %arg9[%c0_9, %c0_10] : memref<64x128xf32, #tpu.memory_space<vmem>>, vector<64x128xf32>
    %18 = arith.addf %17, %16 : vector<64x128xf32>
    %c0_11 = arith.constant 0 : index
    %c0_12 = arith.constant 0 : index
    %19 = vector.load %arg9[%c0_11, %c0_12] : memref<64x128xf32, #tpu.memory_space<vmem>>, vector<64x128xf32>
    tpu.vector_store %arg9[%c0_11, %c0_12], %18 {strides = array<i32>} : memref<64x128xf32, #tpu.memory_space<vmem>>, vector<64x128xf32>,
    %20 = vector.extract_strided_slice %1 {offsets = [2, 0, 0], sizes = [8, 8, 16], strides = [1, 1, 1]} : vector<10x10x16xbf16> to vector<8x8x16xbf16>
    %21 = vector.extract_strided_slice %1 {offsets = [2, 1, 0], sizes = [8, 8, 16], strides = [1, 1, 1]} : vector<10x10x16xbf16> to vector<8x8x16xbf16>
    %22 = vector.extract_strided_slice %1 {offsets = [2, 2, 0], sizes = [8, 8, 16], strides = [1, 1, 1]} : vector<10x10x16xbf16> to vector<8x8x16xbf16>
    %23 = tpu.concatenate %20, %21, %22 in 2 : vector<8x8x16xbf16>, vector<8x8x16xbf16>, vector<8x8x16xbf16> -> vector<8x8x48xbf16>
    %24 = vector.shape_cast %23 : vector<8x8x48xbf16> to vector<64x48xbf16>
    %c96 = arith.constant 96 : index
    %c0_13 = arith.constant 0 : index
    %25 = vector.load %arg3[%c96, %c0_13] : memref<144x128xbf16, #tpu.memory_space<vmem>>, vector<48x128xbf16>
    %cst_14 = arith.constant dense<0.000000e+00> : vector<64x128xf32>
    %26 = tpu.matmul %24, %25, %cst_14 {dimension_numbers = #tpu.dot_dimension_numbers<[1], [0], [0], [1], [0, 0, 1, 1], [], []>} : vector<64x48xbf16>, vector<48x128xbf16>, vector<64x128xf32> -> vector<64x128xf32>
    %c0_15 = arith.constant 0 : index
    %c0_16 = arith.constant 0 : index
    %27 = vector.load %arg9[%c0_15, %c0_16] : memref<64x128xf32, #tpu.memory_space<vmem>>, vector<64x128xf32>
    %28 = arith.addf %27, %26 : vector<64x128xf32>
    %c0_17 = arith.constant 0 : index
    %c0_18 = arith.constant 0 : index
    %29 = vector.load %arg9[%c0_17, %c0_18] : memref<64x128xf32, #tpu.memory_space<vmem>>, vector<64x128xf32>
    tpu.vector_store %arg9[%c0_17, %c0_18], %28 {strides = array<i32>} : memref<64x128xf32, #tpu.memory_space<vmem>>, vector<64x128xf32>,
    %c0_19 = arith.constant 0 : index
    %c0_20 = arith.constant 0 : index
    %30 = vector.load %arg9[%c0_19, %c0_20] : memref<64x128xf32, #tpu.memory_space<vmem>>, vector<64x128xf32>
    %c0_21 = arith.constant 0 : index
    %c0_22 = arith.constant 0 : index
    %31 = vector.load %arg4[%c0_21, %c0_22] : memref<1x128xf32, #tpu.memory_space<vmem>>, vector<1x128xf32>
    %32 = vector.broadcast %31 : vector<1x128xf32> to vector<64x128xf32>
    %33 = arith.addf %30, %32 : vector<64x128xf32>
    %c0_23 = arith.constant 0 : index
    %c0_24 = arith.constant 0 : index
    %c0_25 = arith.constant 0 : index
    %34 = vector.load %arg5[%c0_23, %c0_24, %c0_25] : memref<1x1x16xf32, #tpu.memory_space<vmem>>, vector<1x1x16xf32>
    %35 = vector.shape_cast %34 : vector<1x1x16xf32> to vector<1x16xf32>
    %36 = arith.negf %35 : vector<1x16xf32>
    %37 = math.exp %36 : vector<1x16xf32>
    %cst_26 = arith.constant 1.000000e+00 : f32
    %38 = vector.broadcast %cst_26 : f32 to vector<1x16xf32>
    %39 = arith.addf %38, %37 : vector<1x16xf32>
    %40 = arith.divf %38, %39 : vector<1x16xf32>
    %41 = arith.mulf %35, %40 : vector<1x16xf32>
    %42 = arith.truncf %41 : vector<1x16xf32> to vector<1x16xbf16>
    %c0_27 = arith.constant 0 : index
    %c0_28 = arith.constant 0 : index
    %43 = vector.load %arg6[%c0_27, %c0_28] : memref<16x128xbf16, #tpu.memory_space<vmem>>, vector<16x128xbf16>
    %cst_29 = arith.constant dense<0.000000e+00> : vector<1x128xf32>
    %44 = tpu.matmul %42, %43, %cst_29 {dimension_numbers = #tpu.dot_dimension_numbers<[1], [0], [0], [1], [0, 0, 1, 1], [], []>} : vector<1x16xbf16>, vector<16x128xbf16>, vector<1x128xf32> -> vector<1x128xf32>
    %45 = vector.broadcast %44 : vector<1x128xf32> to vector<64x128xf32>
    %46 = arith.addf %33, %45 : vector<64x128xf32>
    %c0_30 = arith.constant 0 : index
    %c0_31 = arith.constant 0 : index
    %47 = vector.load %arg7[%c0_30, %c0_31] : memref<1x128xf32, #tpu.memory_space<vmem>>, vector<1x128xf32>
    %48 = vector.broadcast %47 : vector<1x128xf32> to vector<64x128xf32>
    %49 = arith.addf %46, %48 : vector<64x128xf32>
    %50 = arith.truncf %49 : vector<64x128xf32> to vector<64x128xbf16>
    %c0_32 = arith.constant 0 : index
    %c0_33 = arith.constant 0 : index
    %c0_34 = arith.constant 0 : index
    %51 = vector.load %arg8[%c0_32, %c0_33, %c0_34] : memref<1x64x128xbf16, #tpu.memory_space<vmem>>, vector<1x64x128xbf16>
    %52 = vector.shape_cast %51 : vector<1x64x128xbf16> to vector<64x128xbf16>
    %53 = vector.shape_cast %50 : vector<64x128xbf16> to vector<1x64x128xbf16>
    tpu.vector_store %arg8[%c0_32, %c0_33, %c0_34], %53 {strides = array<i32>} : memref<1x64x128xbf16, #tpu.memory_space<vmem>>, vector<1x64x128xbf16>,
    return
  }
  func.func @transform_0(%arg0: i32, %arg1: i32) -> (i32, i32, i32, i32) {
    %c0_i32 = arith.constant 0 : i32
    %c0_i32_0 = arith.constant 0 : i32
    %c0_i32_1 = arith.constant 0 : i32
    %c0_i32_2 = arith.constant 0 : i32
    return %arg0, %c0_i32, %c0_i32_0, %c0_i32_1 : i32, i32, i32, i32
  }
  func.func @transform_1(%arg0: i32, %arg1: i32) -> (i32, i32) {
    %c0_i32 = arith.constant 0 : i32
    %c0_i32_0 = arith.constant 0 : i32
    return %c0_i32, %arg1 : i32, i32
  }
  func.func @transform_2(%arg0: i32, %arg1: i32) -> (i32, i32) {
    %c0_i32 = arith.constant 0 : i32
    %c0_i32_0 = arith.constant 0 : i32
    return %c0_i32, %arg1 : i32, i32
  }
  func.func @transform_3(%arg0: i32, %arg1: i32) -> (i32, i32, i32) {
    %c0_i32 = arith.constant 0 : i32
    %c0_i32_0 = arith.constant 0 : i32
    %c0_i32_1 = arith.constant 0 : i32
    return %arg0, %c0_i32, %c0_i32_0 : i32, i32, i32
  }
  func.func @transform_4(%arg0: i32, %arg1: i32) -> (i32, i32) {
    %c0_i32 = arith.constant 0 : i32
    %c0_i32_0 = arith.constant 0 : i32
    return %c0_i32, %arg1 : i32, i32
  }
  func.func @transform_5(%arg0: i32, %arg1: i32) -> (i32, i32) {
    %c0_i32 = arith.constant 0 : i32
    %c0_i32_0 = arith.constant 0 : i32
    return %c0_i32, %arg1 : i32, i32
  }
  func.func @transform_6(%arg0: i32, %arg1: i32) -> (i32, i32, i32) {
    %c0_i32 = arith.constant 0 : i32
    %c0_i32_0 = arith.constant 0 : i32
    return %arg0, %c0_i32, %arg1 : i32, i32, i32
  }
}

module attributes {stable_mosaic.version = 11 : i64} {
  func.func @_gn_silu_kernel(%arg0: i32, %arg1: memref<1x64x16xbf16, #tpu.memory_space<vmem>>, %arg2: memref<1x16xf32, #tpu.memory_space<vmem>>, %arg3: memref<1x16xf32, #tpu.memory_space<vmem>>, %arg4: memref<32x8xf32, #tpu.memory_space<vmem>>, %arg5: memref<4x16xf32, #tpu.memory_space<vmem>>, %arg6: memref<1x64x16xbf16, #tpu.memory_space<vmem>>) attributes {dimension_semantics = [#tpu.dimension_semantics<parallel>], iteration_bounds = array<i64: 2>, scalar_prefetch = 0 : i64, scratch_operands = 0 : i64, tpu.core_type = #tpu.core_type<tc>, window_params = [{transform_indices = @transform_0, window_bounds = array<i64: 1, 64, 16>}, {pipeline_mode = #tpu.pipeline_mode<synchronous>, transform_indices = @transform_1, window_bounds = array<i64: 1, 16>}, {pipeline_mode = #tpu.pipeline_mode<synchronous>, transform_indices = @transform_2, window_bounds = array<i64: 1, 16>}, {pipeline_mode = #tpu.pipeline_mode<synchronous>, transform_indices = @transform_3, window_bounds = array<i64: 32, 8>}, {pipeline_mode = #tpu.pipeline_mode<synchronous>, transform_indices = @transform_4, window_bounds = array<i64: 4, 16>}, {transform_indices = @transform_5, window_bounds = array<i64: 1, 64, 16>}]} {
    %c0 = arith.constant 0 : index
    %c0_0 = arith.constant 0 : index
    %c0_1 = arith.constant 0 : index
    %0 = vector.load %arg1[%c0, %c0_0, %c0_1] : memref<1x64x16xbf16, #tpu.memory_space<vmem>>, vector<1x64x16xbf16>
    %1 = vector.shape_cast %0 : vector<1x64x16xbf16> to vector<64x16xbf16>
    %2 = arith.extf %1 : vector<64x16xbf16> to vector<64x16xf32>
    %3 = arith.mulf %2, %2 : vector<64x16xf32>
    %4 = tpu.concatenate %2, %3 in 1 : vector<64x16xf32>, vector<64x16xf32> -> vector<64x32xf32>
    %c0_2 = arith.constant 0 : index
    %c0_3 = arith.constant 0 : index
    %5 = vector.load %arg4[%c0_2, %c0_3] : memref<32x8xf32, #tpu.memory_space<vmem>>, vector<32x8xf32>
    %cst = arith.constant dense<0.000000e+00> : vector<64x8xf32>
    %6 = tpu.matmul %4, %5, %cst {dimension_numbers = #tpu.dot_dimension_numbers<[1], [0], [0], [1], [0, 0, 1, 1], [], []>} : vector<64x32xf32>, vector<32x8xf32>, vector<64x8xf32> -> vector<64x8xf32>
    %cst_4 = arith.constant dense<0.000000e+00> : vector<8xf32>
    %7 = vector.multi_reduction <add>, %6, %cst_4 [0] : vector<64x8xf32> to vector<8xf32>
    %8 = vector.shape_cast %7 : vector<8xf32> to vector<1x8xf32>
    %9 = vector.extract_strided_slice %8 {offsets = [0, 0], sizes = [1, 4], strides = [1, 1]} : vector<1x8xf32> to vector<1x4xf32>
    %cst_5 = arith.constant 2.560000e+02 : f32
    %10 = vector.broadcast %cst_5 : f32 to vector<1x4xf32>
    %11 = arith.divf %9, %10 : vector<1x4xf32>
    %12 = vector.extract_strided_slice %8 {offsets = [0, 4], sizes = [1, 4], strides = [1, 1]} : vector<1x8xf32> to vector<1x4xf32>
    %cst_6 = arith.constant 2.560000e+02 : f32
    %13 = vector.broadcast %cst_6 : f32 to vector<1x4xf32>
    %14 = arith.divf %12, %13 : vector<1x4xf32>
    %15 = arith.mulf %11, %11 : vector<1x4xf32>
    %16 = arith.subf %14, %15 : vector<1x4xf32>
    %cst_7 = arith.constant 0.000000e+00 : f32
    %17 = vector.broadcast %cst_7 : f32 to vector<1x4xf32>
    %18 = arith.maximumf %16, %17 : vector<1x4xf32>
    %cst_8 = arith.constant 9.99999974E-6 : f32
    %19 = vector.broadcast %cst_8 : f32 to vector<1x4xf32>
    %20 = arith.addf %18, %19 : vector<1x4xf32>
    %21 = math.rsqrt %20 : vector<1x4xf32>
    %22 = tpu.concatenate %11, %21 in 0 : vector<1x4xf32>, vector<1x4xf32> -> vector<2x4xf32>
    %c0_9 = arith.constant 0 : index
    %c0_10 = arith.constant 0 : index
    %23 = vector.load %arg5[%c0_9, %c0_10] : memref<4x16xf32, #tpu.memory_space<vmem>>, vector<4x16xf32>
    %cst_11 = arith.constant dense<0.000000e+00> : vector<2x16xf32>
    %24 = tpu.matmul %22, %23, %cst_11 {dimension_numbers = #tpu.dot_dimension_numbers<[1], [0], [0], [1], [0, 0, 1, 1], [], []>} : vector<2x4xf32>, vector<4x16xf32>, vector<2x16xf32> -> vector<2x16xf32>
    %25 = vector.extract_strided_slice %24 {offsets = [0, 0], sizes = [1, 16], strides = [1, 1]} : vector<2x16xf32> to vector<1x16xf32>
    %26 = vector.broadcast %25 : vector<1x16xf32> to vector<64x16xf32>
    %27 = arith.subf %2, %26 : vector<64x16xf32>
    %28 = vector.extract_strided_slice %24 {offsets = [1, 0], sizes = [1, 16], strides = [1, 1]} : vector<2x16xf32> to vector<1x16xf32>
    %29 = vector.broadcast %28 : vector<1x16xf32> to vector<64x16xf32>
    %30 = arith.mulf %27, %29 : vector<64x16xf32>
    %c0_12 = arith.constant 0 : index
    %c0_13 = arith.constant 0 : index
    %31 = vector.load %arg2[%c0_12, %c0_13] : memref<1x16xf32, #tpu.memory_space<vmem>>, vector<1x16xf32>
    %32 = vector.broadcast %31 : vector<1x16xf32> to vector<64x16xf32>
    %33 = arith.mulf %30, %32 : vector<64x16xf32>
    %c0_14 = arith.constant 0 : index
    %c0_15 = arith.constant 0 : index
    %34 = vector.load %arg3[%c0_14, %c0_15] : memref<1x16xf32, #tpu.memory_space<vmem>>, vector<1x16xf32>
    %35 = vector.broadcast %34 : vector<1x16xf32> to vector<64x16xf32>
    %36 = arith.addf %33, %35 : vector<64x16xf32>
    %37 = arith.negf %36 : vector<64x16xf32>
    %38 = math.exp %37 : vector<64x16xf32>
    %cst_16 = arith.constant 1.000000e+00 : f32
    %39 = vector.broadcast %cst_16 : f32 to vector<64x16xf32>
    %40 = arith.addf %39, %38 : vector<64x16xf32>
    %41 = arith.divf %39, %40 : vector<64x16xf32>
    %42 = arith.mulf %36, %41 : vector<64x16xf32>
    %43 = arith.truncf %42 : vector<64x16xf32> to vector<64x16xbf16>
    %c0_17 = arith.constant 0 : index
    %c0_18 = arith.constant 0 : index
    %c0_19 = arith.constant 0 : index
    %44 = vector.load %arg6[%c0_17, %c0_18, %c0_19] : memref<1x64x16xbf16, #tpu.memory_space<vmem>>, vector<1x64x16xbf16>
    %45 = vector.shape_cast %44 : vector<1x64x16xbf16> to vector<64x16xbf16>
    %46 = vector.shape_cast %43 : vector<64x16xbf16> to vector<1x64x16xbf16>
    tpu.vector_store %arg6[%c0_17, %c0_18, %c0_19], %46 {strides = array<i32>} : memref<1x64x16xbf16, #tpu.memory_space<vmem>>, vector<1x64x16xbf16>,
    return
  }
  func.func @transform_0(%arg0: i32) -> (i32, i32, i32) {
    %c0_i32 = arith.constant 0 : i32
    %c0_i32_0 = arith.constant 0 : i32
    %c0_i32_1 = arith.constant 0 : i32
    return %arg0, %c0_i32, %c0_i32_0 : i32, i32, i32
  }
  func.func @transform_1(%arg0: i32) -> (i32, i32) {
    %c0_i32 = arith.constant 0 : i32
    %c0_i32_0 = arith.constant 0 : i32
    %c0_i32_1 = arith.constant 0 : i32
    return %c0_i32, %c0_i32_0 : i32, i32
  }
  func.func @transform_2(%arg0: i32) -> (i32, i32) {
    %c0_i32 = arith.constant 0 : i32
    %c0_i32_0 = arith.constant 0 : i32
    %c0_i32_1 = arith.constant 0 : i32
    return %c0_i32, %c0_i32_0 : i32, i32
  }
  func.func @transform_3(%arg0: i32) -> (i32, i32) {
    %c0_i32 = arith.constant 0 : i32
    %c0_i32_0 = arith.constant 0 : i32
    %c0_i32_1 = arith.constant 0 : i32
    return %c0_i32, %c0_i32_0 : i32, i32
  }
  func.func @transform_4(%arg0: i32) -> (i32, i32) {
    %c0_i32 = arith.constant 0 : i32
    %c0_i32_0 = arith.constant 0 : i32
    %c0_i32_1 = arith.constant 0 : i32
    return %c0_i32, %c0_i32_0 : i32, i32
  }
  func.func @transform_5(%arg0: i32) -> (i32, i32, i32) {
    %c0_i32 = arith.constant 0 : i32
    %c0_i32_0 = arith.constant 0 : i32
    %c0_i32_1 = arith.constant 0 : i32
    return %arg0, %c0_i32, %c0_i32_0 : i32, i32, i32
  }
}

module attributes {stable_mosaic.version = 11 : i64} {
  func.func @_conv3x3_kernel(%arg0: i32, %arg1: i32, %arg2: memref<1x10x10x8xbf16, #tpu.memory_space<vmem>>, %arg3: memref<72x128xbf16, #tpu.memory_space<vmem>>, %arg4: memref<1x128xf32, #tpu.memory_space<vmem>>, %arg5: memref<1x64x16xbf16, #tpu.memory_space<vmem>>, %arg6: memref<16x128xbf16, #tpu.memory_space<vmem>>, %arg7: memref<1x128xf32, #tpu.memory_space<vmem>>, %arg8: memref<1x64x128xbf16, #tpu.memory_space<vmem>>, %arg9: memref<64x128xf32, #tpu.memory_space<vmem>>) attributes {dimension_semantics = [#tpu.dimension_semantics<parallel>, #tpu.dimension_semantics<parallel>], iteration_bounds = array<i64: 2, 1>, scalar_prefetch = 0 : i64, scratch_operands = 1 : i64, tpu.core_type = #tpu.core_type<tc>, window_params = [{transform_indices = @transform_0, window_bounds = array<i64: 1, 10, 10, 8>}, {transform_indices = @transform_1, window_bounds = array<i64: 72, 128>}, {transform_indices = @transform_2, window_bounds = array<i64: 1, 128>}, {transform_indices = @transform_3, window_bounds = array<i64: 1, 64, 16>}, {transform_indices = @transform_4, window_bounds = array<i64: 16, 128>}, {transform_indices = @transform_5, window_bounds = array<i64: 1, 128>}, {transform_indices = @transform_6, window_bounds = array<i64: 1, 64, 128>}]} {
    %c0 = arith.constant 0 : index
    %c0_0 = arith.constant 0 : index
    %c0_1 = arith.constant 0 : index
    %c0_2 = arith.constant 0 : index
    %0 = vector.load %arg2[%c0, %c0_0, %c0_1, %c0_2] : memref<1x10x10x8xbf16, #tpu.memory_space<vmem>>, vector<1x10x10x8xbf16>
    %1 = vector.shape_cast %0 : vector<1x10x10x8xbf16> to vector<10x10x8xbf16>
    %2 = vector.extract_strided_slice %1 {offsets = [0, 0, 0], sizes = [8, 8, 8], strides = [1, 1, 1]} : vector<10x10x8xbf16> to vector<8x8x8xbf16>
    %3 = vector.extract_strided_slice %1 {offsets = [0, 1, 0], sizes = [8, 8, 8], strides = [1, 1, 1]} : vector<10x10x8xbf16> to vector<8x8x8xbf16>
    %4 = vector.extract_strided_slice %1 {offsets = [0, 2, 0], sizes = [8, 8, 8], strides = [1, 1, 1]} : vector<10x10x8xbf16> to vector<8x8x8xbf16>
    %5 = tpu.concatenate %2, %3, %4 in 2 : vector<8x8x8xbf16>, vector<8x8x8xbf16>, vector<8x8x8xbf16> -> vector<8x8x24xbf16>
    %6 = vector.shape_cast %5 : vector<8x8x24xbf16> to vector<64x24xbf16>
    %c0_3 = arith.constant 0 : index
    %c0_4 = arith.constant 0 : index
    %7 = vector.load %arg3[%c0_3, %c0_4] : memref<72x128xbf16, #tpu.memory_space<vmem>>, vector<24x128xbf16>
    %cst = arith.constant dense<0.000000e+00> : vector<64x128xf32>
    %8 = tpu.matmul %6, %7, %cst {dimension_numbers = #tpu.dot_dimension_numbers<[1], [0], [0], [1], [0, 0, 1, 1], [], []>} : vector<64x24xbf16>, vector<24x128xbf16>, vector<64x128xf32> -> vector<64x128xf32>
    %c0_5 = arith.constant 0 : index
    %c0_6 = arith.constant 0 : index
    %9 = vector.load %arg9[%c0_5, %c0_6] : memref<64x128xf32, #tpu.memory_space<vmem>>, vector<64x128xf32>
    tpu.vector_store %arg9[%c0_5, %c0_6], %8 {strides = array<i32>} : memref<64x128xf32, #tpu.memory_space<vmem>>, vector<64x128xf32>,
    %10 = vector.extract_strided_slice %1 {offsets = [1, 0, 0], sizes = [8, 8, 8], strides = [1, 1, 1]} : vector<10x10x8xbf16> to vector<8x8x8xbf16>
    %11 = vector.extract_strided_slice %1 {offsets = [1, 1, 0], sizes = [8, 8, 8], strides = [1, 1, 1]} : vector<10x10x8xbf16> to vector<8x8x8xbf16>
    %12 = vector.extract_strided_slice %1 {offsets = [1, 2, 0], sizes = [8, 8, 8], strides = [1, 1, 1]} : vector<10x10x8xbf16> to vector<8x8x8xbf16>
    %13 = tpu.concatenate %10, %11, %12 in 2 : vector<8x8x8xbf16>, vector<8x8x8xbf16>, vector<8x8x8xbf16> -> vector<8x8x24xbf16>
    %14 = vector.shape_cast %13 : vector<8x8x24xbf16> to vector<64x24xbf16>
    %c24 = arith.constant 24 : index
    %c0_7 = arith.constant 0 : index
    %15 = vector.load %arg3[%c24, %c0_7] : memref<72x128xbf16, #tpu.memory_space<vmem>>, vector<24x128xbf16>
    %cst_8 = arith.constant dense<0.000000e+00> : vector<64x128xf32>
    %16 = tpu.matmul %14, %15, %cst_8 {dimension_numbers = #tpu.dot_dimension_numbers<[1], [0], [0], [1], [0, 0, 1, 1], [], []>} : vector<64x24xbf16>, vector<24x128xbf16>, vector<64x128xf32> -> vector<64x128xf32>
    %c0_9 = arith.constant 0 : index
    %c0_10 = arith.constant 0 : index
    %17 = vector.load %arg9[%c0_9, %c0_10] : memref<64x128xf32, #tpu.memory_space<vmem>>, vector<64x128xf32>
    %18 = arith.addf %17, %16 : vector<64x128xf32>
    %c0_11 = arith.constant 0 : index
    %c0_12 = arith.constant 0 : index
    %19 = vector.load %arg9[%c0_11, %c0_12] : memref<64x128xf32, #tpu.memory_space<vmem>>, vector<64x128xf32>
    tpu.vector_store %arg9[%c0_11, %c0_12], %18 {strides = array<i32>} : memref<64x128xf32, #tpu.memory_space<vmem>>, vector<64x128xf32>,
    %20 = vector.extract_strided_slice %1 {offsets = [2, 0, 0], sizes = [8, 8, 8], strides = [1, 1, 1]} : vector<10x10x8xbf16> to vector<8x8x8xbf16>
    %21 = vector.extract_strided_slice %1 {offsets = [2, 1, 0], sizes = [8, 8, 8], strides = [1, 1, 1]} : vector<10x10x8xbf16> to vector<8x8x8xbf16>
    %22 = vector.extract_strided_slice %1 {offsets = [2, 2, 0], sizes = [8, 8, 8], strides = [1, 1, 1]} : vector<10x10x8xbf16> to vector<8x8x8xbf16>
    %23 = tpu.concatenate %20, %21, %22 in 2 : vector<8x8x8xbf16>, vector<8x8x8xbf16>, vector<8x8x8xbf16> -> vector<8x8x24xbf16>
    %24 = vector.shape_cast %23 : vector<8x8x24xbf16> to vector<64x24xbf16>
    %c48 = arith.constant 48 : index
    %c0_13 = arith.constant 0 : index
    %25 = vector.load %arg3[%c48, %c0_13] : memref<72x128xbf16, #tpu.memory_space<vmem>>, vector<24x128xbf16>
    %cst_14 = arith.constant dense<0.000000e+00> : vector<64x128xf32>
    %26 = tpu.matmul %24, %25, %cst_14 {dimension_numbers = #tpu.dot_dimension_numbers<[1], [0], [0], [1], [0, 0, 1, 1], [], []>} : vector<64x24xbf16>, vector<24x128xbf16>, vector<64x128xf32> -> vector<64x128xf32>
    %c0_15 = arith.constant 0 : index
    %c0_16 = arith.constant 0 : index
    %27 = vector.load %arg9[%c0_15, %c0_16] : memref<64x128xf32, #tpu.memory_space<vmem>>, vector<64x128xf32>
    %28 = arith.addf %27, %26 : vector<64x128xf32>
    %c0_17 = arith.constant 0 : index
    %c0_18 = arith.constant 0 : index
    %29 = vector.load %arg9[%c0_17, %c0_18] : memref<64x128xf32, #tpu.memory_space<vmem>>, vector<64x128xf32>
    tpu.vector_store %arg9[%c0_17, %c0_18], %28 {strides = array<i32>} : memref<64x128xf32, #tpu.memory_space<vmem>>, vector<64x128xf32>,
    %c0_19 = arith.constant 0 : index
    %c0_20 = arith.constant 0 : index
    %30 = vector.load %arg9[%c0_19, %c0_20] : memref<64x128xf32, #tpu.memory_space<vmem>>, vector<64x128xf32>
    %c0_21 = arith.constant 0 : index
    %c0_22 = arith.constant 0 : index
    %31 = vector.load %arg4[%c0_21, %c0_22] : memref<1x128xf32, #tpu.memory_space<vmem>>, vector<1x128xf32>
    %32 = vector.broadcast %31 : vector<1x128xf32> to vector<64x128xf32>
    %33 = arith.addf %30, %32 : vector<64x128xf32>
    %c0_23 = arith.constant 0 : index
    %c0_24 = arith.constant 0 : index
    %c0_25 = arith.constant 0 : index
    %34 = vector.load %arg5[%c0_23, %c0_24, %c0_25] : memref<1x64x16xbf16, #tpu.memory_space<vmem>>, vector<1x64x16xbf16>
    %35 = vector.shape_cast %34 : vector<1x64x16xbf16> to vector<64x16xbf16>
    %c0_26 = arith.constant 0 : index
    %c0_27 = arith.constant 0 : index
    %36 = vector.load %arg6[%c0_26, %c0_27] : memref<16x128xbf16, #tpu.memory_space<vmem>>, vector<16x128xbf16>
    %cst_28 = arith.constant dense<0.000000e+00> : vector<64x128xf32>
    %37 = tpu.matmul %35, %36, %cst_28 {dimension_numbers = #tpu.dot_dimension_numbers<[1], [0], [0], [1], [0, 0, 1, 1], [], []>} : vector<64x16xbf16>, vector<16x128xbf16>, vector<64x128xf32> -> vector<64x128xf32>
    %38 = arith.addf %33, %37 : vector<64x128xf32>
    %c0_29 = arith.constant 0 : index
    %c0_30 = arith.constant 0 : index
    %39 = vector.load %arg7[%c0_29, %c0_30] : memref<1x128xf32, #tpu.memory_space<vmem>>, vector<1x128xf32>
    %40 = vector.broadcast %39 : vector<1x128xf32> to vector<64x128xf32>
    %41 = arith.addf %38, %40 : vector<64x128xf32>
    %42 = arith.truncf %41 : vector<64x128xf32> to vector<64x128xbf16>
    %c0_31 = arith.constant 0 : index
    %c0_32 = arith.constant 0 : index
    %c0_33 = arith.constant 0 : index
    %43 = vector.load %arg8[%c0_31, %c0_32, %c0_33] : memref<1x64x128xbf16, #tpu.memory_space<vmem>>, vector<1x64x128xbf16>
    %44 = vector.shape_cast %43 : vector<1x64x128xbf16> to vector<64x128xbf16>
    %45 = vector.shape_cast %42 : vector<64x128xbf16> to vector<1x64x128xbf16>
    tpu.vector_store %arg8[%c0_31, %c0_32, %c0_33], %45 {strides = array<i32>} : memref<1x64x128xbf16, #tpu.memory_space<vmem>>, vector<1x64x128xbf16>,
    return
  }
  func.func @transform_0(%arg0: i32, %arg1: i32) -> (i32, i32, i32, i32) {
    %c0_i32 = arith.constant 0 : i32
    %c0_i32_0 = arith.constant 0 : i32
    %c0_i32_1 = arith.constant 0 : i32
    %c0_i32_2 = arith.constant 0 : i32
    return %arg0, %c0_i32, %c0_i32_0, %c0_i32_1 : i32, i32, i32, i32
  }
  func.func @transform_1(%arg0: i32, %arg1: i32) -> (i32, i32) {
    %c0_i32 = arith.constant 0 : i32
    %c0_i32_0 = arith.constant 0 : i32
    return %c0_i32, %arg1 : i32, i32
  }
  func.func @transform_2(%arg0: i32, %arg1: i32) -> (i32, i32) {
    %c0_i32 = arith.constant 0 : i32
    %c0_i32_0 = arith.constant 0 : i32
    return %c0_i32, %arg1 : i32, i32
  }
  func.func @transform_3(%arg0: i32, %arg1: i32) -> (i32, i32, i32) {
    %c0_i32 = arith.constant 0 : i32
    %c0_i32_0 = arith.constant 0 : i32
    %c0_i32_1 = arith.constant 0 : i32
    return %arg0, %c0_i32, %c0_i32_0 : i32, i32, i32
  }
  func.func @transform_4(%arg0: i32, %arg1: i32) -> (i32, i32) {
    %c0_i32 = arith.constant 0 : i32
    %c0_i32_0 = arith.constant 0 : i32
    return %c0_i32, %arg1 : i32, i32
  }
  func.func @transform_5(%arg0: i32, %arg1: i32) -> (i32, i32) {
    %c0_i32 = arith.constant 0 : i32
    %c0_i32_0 = arith.constant 0 : i32
    return %c0_i32, %arg1 : i32, i32
  }
  func.func @transform_6(%arg0: i32, %arg1: i32) -> (i32, i32, i32) {
    %c0_i32 = arith.constant 0 : i32
    %c0_i32_0 = arith.constant 0 : i32
    return %arg0, %c0_i32, %arg1 : i32, i32, i32
  }
}

module attributes {stable_mosaic.version = 11 : i64} {
  func.func @_gn_silu_kernel(%arg0: i32, %arg1: memref<1x64x8xbf16, #tpu.memory_space<vmem>>, %arg2: memref<1x8xf32, #tpu.memory_space<vmem>>, %arg3: memref<1x8xf32, #tpu.memory_space<vmem>>, %arg4: memref<16x8xf32, #tpu.memory_space<vmem>>, %arg5: memref<4x8xf32, #tpu.memory_space<vmem>>, %arg6: memref<1x64x8xbf16, #tpu.memory_space<vmem>>) attributes {dimension_semantics = [#tpu.dimension_semantics<parallel>], iteration_bounds = array<i64: 2>, scalar_prefetch = 0 : i64, scratch_operands = 0 : i64, tpu.core_type = #tpu.core_type<tc>, window_params = [{transform_indices = @transform_0, window_bounds = array<i64: 1, 64, 8>}, {pipeline_mode = #tpu.pipeline_mode<synchronous>, transform_indices = @transform_1, window_bounds = array<i64: 1, 8>}, {pipeline_mode = #tpu.pipeline_mode<synchronous>, transform_indices = @transform_2, window_bounds = array<i64: 1, 8>}, {pipeline_mode = #tpu.pipeline_mode<synchronous>, transform_indices = @transform_3, window_bounds = array<i64: 16, 8>}, {pipeline_mode = #tpu.pipeline_mode<synchronous>, transform_indices = @transform_4, window_bounds = array<i64: 4, 8>}, {transform_indices = @transform_5, window_bounds = array<i64: 1, 64, 8>}]} {
    %c0 = arith.constant 0 : index
    %c0_0 = arith.constant 0 : index
    %c0_1 = arith.constant 0 : index
    %0 = vector.load %arg1[%c0, %c0_0, %c0_1] : memref<1x64x8xbf16, #tpu.memory_space<vmem>>, vector<1x64x8xbf16>
    %1 = vector.shape_cast %0 : vector<1x64x8xbf16> to vector<64x8xbf16>
    %2 = arith.extf %1 : vector<64x8xbf16> to vector<64x8xf32>
    %3 = arith.mulf %2, %2 : vector<64x8xf32>
    %4 = tpu.concatenate %2, %3 in 1 : vector<64x8xf32>, vector<64x8xf32> -> vector<64x16xf32>
    %c0_2 = arith.constant 0 : index
    %c0_3 = arith.constant 0 : index
    %5 = vector.load %arg4[%c0_2, %c0_3] : memref<16x8xf32, #tpu.memory_space<vmem>>, vector<16x8xf32>
    %cst = arith.constant dense<0.000000e+00> : vector<64x8xf32>
    %6 = tpu.matmul %4, %5, %cst {dimension_numbers = #tpu.dot_dimension_numbers<[1], [0], [0], [1], [0, 0, 1, 1], [], []>} : vector<64x16xf32>, vector<16x8xf32>, vector<64x8xf32> -> vector<64x8xf32>
    %cst_4 = arith.constant dense<0.000000e+00> : vector<8xf32>
    %7 = vector.multi_reduction <add>, %6, %cst_4 [0] : vector<64x8xf32> to vector<8xf32>
    %8 = vector.shape_cast %7 : vector<8xf32> to vector<1x8xf32>
    %9 = vector.extract_strided_slice %8 {offsets = [0, 0], sizes = [1, 4], strides = [1, 1]} : vector<1x8xf32> to vector<1x4xf32>
    %cst_5 = arith.constant 1.280000e+02 : f32
    %10 = vector.broadcast %cst_5 : f32 to vector<1x4xf32>
    %11 = arith.divf %9, %10 : vector<1x4xf32>
    %12 = vector.extract_strided_slice %8 {offsets = [0, 4], sizes = [1, 4], strides = [1, 1]} : vector<1x8xf32> to vector<1x4xf32>
    %cst_6 = arith.constant 1.280000e+02 : f32
    %13 = vector.broadcast %cst_6 : f32 to vector<1x4xf32>
    %14 = arith.divf %12, %13 : vector<1x4xf32>
    %15 = arith.mulf %11, %11 : vector<1x4xf32>
    %16 = arith.subf %14, %15 : vector<1x4xf32>
    %cst_7 = arith.constant 0.000000e+00 : f32
    %17 = vector.broadcast %cst_7 : f32 to vector<1x4xf32>
    %18 = arith.maximumf %16, %17 : vector<1x4xf32>
    %cst_8 = arith.constant 9.99999974E-6 : f32
    %19 = vector.broadcast %cst_8 : f32 to vector<1x4xf32>
    %20 = arith.addf %18, %19 : vector<1x4xf32>
    %21 = math.rsqrt %20 : vector<1x4xf32>
    %22 = tpu.concatenate %11, %21 in 0 : vector<1x4xf32>, vector<1x4xf32> -> vector<2x4xf32>
    %c0_9 = arith.constant 0 : index
    %c0_10 = arith.constant 0 : index
    %23 = vector.load %arg5[%c0_9, %c0_10] : memref<4x8xf32, #tpu.memory_space<vmem>>, vector<4x8xf32>
    %cst_11 = arith.constant dense<0.000000e+00> : vector<2x8xf32>
    %24 = tpu.matmul %22, %23, %cst_11 {dimension_numbers = #tpu.dot_dimension_numbers<[1], [0], [0], [1], [0, 0, 1, 1], [], []>} : vector<2x4xf32>, vector<4x8xf32>, vector<2x8xf32> -> vector<2x8xf32>
    %25 = vector.extract_strided_slice %24 {offsets = [0, 0], sizes = [1, 8], strides = [1, 1]} : vector<2x8xf32> to vector<1x8xf32>
    %26 = vector.broadcast %25 : vector<1x8xf32> to vector<64x8xf32>
    %27 = arith.subf %2, %26 : vector<64x8xf32>
    %28 = vector.extract_strided_slice %24 {offsets = [1, 0], sizes = [1, 8], strides = [1, 1]} : vector<2x8xf32> to vector<1x8xf32>
    %29 = vector.broadcast %28 : vector<1x8xf32> to vector<64x8xf32>
    %30 = arith.mulf %27, %29 : vector<64x8xf32>
    %c0_12 = arith.constant 0 : index
    %c0_13 = arith.constant 0 : index
    %31 = vector.load %arg2[%c0_12, %c0_13] : memref<1x8xf32, #tpu.memory_space<vmem>>, vector<1x8xf32>
    %32 = vector.broadcast %31 : vector<1x8xf32> to vector<64x8xf32>
    %33 = arith.mulf %30, %32 : vector<64x8xf32>
    %c0_14 = arith.constant 0 : index
    %c0_15 = arith.constant 0 : index
    %34 = vector.load %arg3[%c0_14, %c0_15] : memref<1x8xf32, #tpu.memory_space<vmem>>, vector<1x8xf32>
    %35 = vector.broadcast %34 : vector<1x8xf32> to vector<64x8xf32>
    %36 = arith.addf %33, %35 : vector<64x8xf32>
    %37 = arith.negf %36 : vector<64x8xf32>
    %38 = math.exp %37 : vector<64x8xf32>
    %cst_16 = arith.constant 1.000000e+00 : f32
    %39 = vector.broadcast %cst_16 : f32 to vector<64x8xf32>
    %40 = arith.addf %39, %38 : vector<64x8xf32>
    %41 = arith.divf %39, %40 : vector<64x8xf32>
    %42 = arith.mulf %36, %41 : vector<64x8xf32>
    %43 = arith.truncf %42 : vector<64x8xf32> to vector<64x8xbf16>
    %c0_17 = arith.constant 0 : index
    %c0_18 = arith.constant 0 : index
    %c0_19 = arith.constant 0 : index
    %44 = vector.load %arg6[%c0_17, %c0_18, %c0_19] : memref<1x64x8xbf16, #tpu.memory_space<vmem>>, vector<1x64x8xbf16>
    %45 = vector.shape_cast %44 : vector<1x64x8xbf16> to vector<64x8xbf16>
    %46 = vector.shape_cast %43 : vector<64x8xbf16> to vector<1x64x8xbf16>
    tpu.vector_store %arg6[%c0_17, %c0_18, %c0_19], %46 {strides = array<i32>} : memref<1x64x8xbf16, #tpu.memory_space<vmem>>, vector<1x64x8xbf16>,
    return
  }
  func.func @transform_0(%arg0: i32) -> (i32, i32, i32) {
    %c0_i32 = arith.constant 0 : i32
    %c0_i32_0 = arith.constant 0 : i32
    %c0_i32_1 = arith.constant 0 : i32
    return %arg0, %c0_i32, %c0_i32_0 : i32, i32, i32
  }
  func.func @transform_1(%arg0: i32) -> (i32, i32) {
    %c0_i32 = arith.constant 0 : i32
    %c0_i32_0 = arith.constant 0 : i32
    %c0_i32_1 = arith.constant 0 : i32
    return %c0_i32, %c0_i32_0 : i32, i32
  }
  func.func @transform_2(%arg0: i32) -> (i32, i32) {
    %c0_i32 = arith.constant 0 : i32
    %c0_i32_0 = arith.constant 0 : i32
    %c0_i32_1 = arith.constant 0 : i32
    return %c0_i32, %c0_i32_0 : i32, i32
  }
  func.func @transform_3(%arg0: i32) -> (i32, i32) {
    %c0_i32 = arith.constant 0 : i32
    %c0_i32_0 = arith.constant 0 : i32
    %c0_i32_1 = arith.constant 0 : i32
    return %c0_i32, %c0_i32_0 : i32, i32
  }
  func.func @transform_4(%arg0: i32) -> (i32, i32) {
    %c0_i32 = arith.constant 0 : i32
    %c0_i32_0 = arith.constant 0 : i32
    %c0_i32_1 = arith.constant 0 : i32
    return %c0_i32, %c0_i32_0 : i32, i32
  }
  func.func @transform_5(%arg0: i32) -> (i32, i32, i32) {
    %c0_i32 = arith.constant 0 : i32
    %c0_i32_0 = arith.constant 0 : i32
    %c0_i32_1 = arith.constant 0 : i32
    return %arg0, %c0_i32, %c0_i32_0 : i32, i32, i32
  }
}

module attributes {stable_mosaic.version = 11 : i64} {
  func.func @_upconv3x3_kernel(%arg0: i32, %arg1: i32, %arg2: memref<1x10x10x8xbf16, #tpu.memory_space<vmem>>, %arg3: memref<48x128xbf16, #tpu.memory_space<vmem>>, %arg4: memref<48x128xbf16, #tpu.memory_space<vmem>>, %arg5: memref<1x128xf32, #tpu.memory_space<vmem>>, %arg6: memref<1x2x128x128xbf16, #tpu.memory_space<vmem>>) attributes {dimension_semantics = [#tpu.dimension_semantics<parallel>, #tpu.dimension_semantics<parallel>], iteration_bounds = array<i64: 2, 1>, scalar_prefetch = 0 : i64, scratch_operands = 0 : i64, tpu.core_type = #tpu.core_type<tc>, window_params = [{transform_indices = @transform_0, window_bounds = array<i64: 1, 10, 10, 8>}, {transform_indices = @transform_1, window_bounds = array<i64: 48, 128>}, {transform_indices = @transform_2, window_bounds = array<i64: 48, 128>}, {transform_indices = @transform_3, window_bounds = array<i64: 1, 128>}, {transform_indices = @transform_4, window_bounds = array<i64: 1, 2, 128, 128>}]} {
    %c0 = arith.constant 0 : index
    %c0_0 = arith.constant 0 : index
    %c0_1 = arith.constant 0 : index
    %c0_2 = arith.constant 0 : index
    %0 = vector.load %arg2[%c0, %c0_0, %c0_1, %c0_2] : memref<1x10x10x8xbf16, #tpu.memory_space<vmem>>, vector<1x10x10x8xbf16>
    %1 = vector.shape_cast %0 : vector<1x10x10x8xbf16> to vector<10x10x8xbf16>
    %2 = vector.shape_cast %1 : vector<10x10x8xbf16> to vector<10x1x10x8xbf16>
    %3 = vector.shape_cast %2 : vector<10x1x10x8xbf16> to vector<10x1x10x8xbf16>
    %4 = vector.broadcast %3 : vector<10x1x10x8xbf16> to vector<10x2x10x8xbf16>
    %5 = vector.shape_cast %4 : vector<10x2x10x8xbf16> to vector<20x10x8xbf16>
    %6 = vector.extract_strided_slice %5 {offsets = [1, 0, 0], sizes = [18, 10, 8], strides = [1, 1, 1]} : vector<20x10x8xbf16> to vector<18x10x8xbf16>
    %7 = vector.extract_strided_slice %6 {offsets = [0, 0, 0], sizes = [16, 8, 8], strides = [1, 1, 1]} : vector<18x10x8xbf16> to vector<16x8x8xbf16>
    %8 = vector.extract_strided_slice %6 {offsets = [0, 1, 0], sizes = [16, 8, 8], strides = [1, 1, 1]} : vector<18x10x8xbf16> to vector<16x8x8xbf16>
    %9 = vector.extract_strided_slice %6 {offsets = [1, 0, 0], sizes = [16, 8, 8], strides = [1, 1, 1]} : vector<18x10x8xbf16> to vector<16x8x8xbf16>
    %10 = vector.extract_strided_slice %6 {offsets = [1, 1, 0], sizes = [16, 8, 8], strides = [1, 1, 1]} : vector<18x10x8xbf16> to vector<16x8x8xbf16>
    %11 = vector.extract_strided_slice %6 {offsets = [2, 0, 0], sizes = [16, 8, 8], strides = [1, 1, 1]} : vector<18x10x8xbf16> to vector<16x8x8xbf16>
    %12 = vector.extract_strided_slice %6 {offsets = [2, 1, 0], sizes = [16, 8, 8], strides = [1, 1, 1]} : vector<18x10x8xbf16> to vector<16x8x8xbf16>
    %13 = tpu.concatenate %7, %8, %9, %10, %11, %12 in 2 : vector<16x8x8xbf16>, vector<16x8x8xbf16>, vector<16x8x8xbf16>, vector<16x8x8xbf16>, vector<16x8x8xbf16>, vector<16x8x8xbf16> -> vector<16x8x48xbf16>
    %14 = vector.shape_cast %13 : vector<16x8x48xbf16> to vector<128x48xbf16>
    %c0_3 = arith.constant 0 : index
    %c0_4 = arith.constant 0 : index
    %15 = vector.load %arg3[%c0_3, %c0_4] : memref<48x128xbf16, #tpu.memory_space<vmem>>, vector<48x128xbf16>
    %cst = arith.constant dense<0.000000e+00> : vector<128x128xf32>
    %16 = tpu.matmul %14, %15, %cst {dimension_numbers = #tpu.dot_dimension_numbers<[1], [0], [0], [1], [0, 0, 1, 1], [], []>} : vector<128x48xbf16>, vector<48x128xbf16>, vector<128x128xf32> -> vector<128x128xf32>
    %c0_5 = arith.constant 0 : index
    %c0_6 = arith.constant 0 : index
    %17 = vector.load %arg5[%c0_5, %c0_6] : memref<1x128xf32, #tpu.memory_space<vmem>>, vector<1x128xf32>
    %18 = vector.broadcast %17 : vector<1x128xf32> to vector<128x128xf32>
    %19 = arith.addf %16, %18 : vector<128x128xf32>
    %20 = arith.truncf %19 : vector<128x128xf32> to vector<128x128xbf16>
    %c0_7 = arith.constant 0 : index
    %c0_8 = arith.constant 0 : index
    %c0_9 = arith.constant 0 : index
    %c0_10 = arith.constant 0 : index
    %21 = vector.load %arg6[%c0_7, %c0_8, %c0_9, %c0_10] : memref<1x2x128x128xbf16, #tpu.memory_space<vmem>>, vector<1x1x128x128xbf16>
    %22 = vector.shape_cast %21 : vector<1x1x128x128xbf16> to vector<128x128xbf16>
    %23 = vector.shape_cast %20 : vector<128x128xbf16> to vector<1x1x128x128xbf16>
    tpu.vector_store %arg6[%c0_7, %c0_8, %c0_9, %c0_10], %23 {strides = array<i32>} : memref<1x2x128x128xbf16, #tpu.memory_space<vmem>>, vector<1x1x128x128xbf16>,
    %24 = vector.extract_strided_slice %6 {offsets = [0, 1, 0], sizes = [16, 8, 8], strides = [1, 1, 1]} : vector<18x10x8xbf16> to vector<16x8x8xbf16>
    %25 = vector.extract_strided_slice %6 {offsets = [0, 2, 0], sizes = [16, 8, 8], strides = [1, 1, 1]} : vector<18x10x8xbf16> to vector<16x8x8xbf16>
    %26 = vector.extract_strided_slice %6 {offsets = [1, 1, 0], sizes = [16, 8, 8], strides = [1, 1, 1]} : vector<18x10x8xbf16> to vector<16x8x8xbf16>
    %27 = vector.extract_strided_slice %6 {offsets = [1, 2, 0], sizes = [16, 8, 8], strides = [1, 1, 1]} : vector<18x10x8xbf16> to vector<16x8x8xbf16>
    %28 = vector.extract_strided_slice %6 {offsets = [2, 1, 0], sizes = [16, 8, 8], strides = [1, 1, 1]} : vector<18x10x8xbf16> to vector<16x8x8xbf16>
    %29 = vector.extract_strided_slice %6 {offsets = [2, 2, 0], sizes = [16, 8, 8], strides = [1, 1, 1]} : vector<18x10x8xbf16> to vector<16x8x8xbf16>
    %30 = tpu.concatenate %24, %25, %26, %27, %28, %29 in 2 : vector<16x8x8xbf16>, vector<16x8x8xbf16>, vector<16x8x8xbf16>, vector<16x8x8xbf16>, vector<16x8x8xbf16>, vector<16x8x8xbf16> -> vector<16x8x48xbf16>
    %31 = vector.shape_cast %30 : vector<16x8x48xbf16> to vector<128x48xbf16>
    %c0_11 = arith.constant 0 : index
    %c0_12 = arith.constant 0 : index
    %32 = vector.load %arg4[%c0_11, %c0_12] : memref<48x128xbf16, #tpu.memory_space<vmem>>, vector<48x128xbf16>
    %cst_13 = arith.constant dense<0.000000e+00> : vector<128x128xf32>
    %33 = tpu.matmul %31, %32, %cst_13 {dimension_numbers = #tpu.dot_dimension_numbers<[1], [0], [0], [1], [0, 0, 1, 1], [], []>} : vector<128x48xbf16>, vector<48x128xbf16>, vector<128x128xf32> -> vector<128x128xf32>
    %c0_14 = arith.constant 0 : index
    %c0_15 = arith.constant 0 : index
    %34 = vector.load %arg5[%c0_14, %c0_15] : memref<1x128xf32, #tpu.memory_space<vmem>>, vector<1x128xf32>
    %35 = vector.broadcast %34 : vector<1x128xf32> to vector<128x128xf32>
    %36 = arith.addf %33, %35 : vector<128x128xf32>
    %37 = arith.truncf %36 : vector<128x128xf32> to vector<128x128xbf16>
    %c0_16 = arith.constant 0 : index
    %c1 = arith.constant 1 : index
    %c0_17 = arith.constant 0 : index
    %c0_18 = arith.constant 0 : index
    %38 = vector.load %arg6[%c0_16, %c1, %c0_17, %c0_18] : memref<1x2x128x128xbf16, #tpu.memory_space<vmem>>, vector<1x1x128x128xbf16>
    %39 = vector.shape_cast %38 : vector<1x1x128x128xbf16> to vector<128x128xbf16>
    %40 = vector.shape_cast %37 : vector<128x128xbf16> to vector<1x1x128x128xbf16>
    tpu.vector_store %arg6[%c0_16, %c1, %c0_17, %c0_18], %40 {strides = array<i32>} : memref<1x2x128x128xbf16, #tpu.memory_space<vmem>>, vector<1x1x128x128xbf16>,
    return
  }
  func.func @transform_0(%arg0: i32, %arg1: i32) -> (i32, i32, i32, i32) {
    %c0_i32 = arith.constant 0 : i32
    %c0_i32_0 = arith.constant 0 : i32
    %c0_i32_1 = arith.constant 0 : i32
    %c0_i32_2 = arith.constant 0 : i32
    return %arg0, %c0_i32, %c0_i32_0, %c0_i32_1 : i32, i32, i32, i32
  }
  func.func @transform_1(%arg0: i32, %arg1: i32) -> (i32, i32) {
    %c0_i32 = arith.constant 0 : i32
    %c0_i32_0 = arith.constant 0 : i32
    return %c0_i32, %arg1 : i32, i32
  }
  func.func @transform_2(%arg0: i32, %arg1: i32) -> (i32, i32) {
    %c0_i32 = arith.constant 0 : i32
    %c0_i32_0 = arith.constant 0 : i32
    return %c0_i32, %arg1 : i32, i32
  }
  func.func @transform_3(%arg0: i32, %arg1: i32) -> (i32, i32) {
    %c0_i32 = arith.constant 0 : i32
    %c0_i32_0 = arith.constant 0 : i32
    return %c0_i32, %arg1 : i32, i32
  }
  func.func @transform_4(%arg0: i32, %arg1: i32) -> (i32, i32, i32, i32) {
    %c0_i32 = arith.constant 0 : i32
    %c0_i32_0 = arith.constant 0 : i32
    %c0_i32_1 = arith.constant 0 : i32
    return %arg0, %c0_i32, %c0_i32_0, %arg1 : i32, i32, i32, i32
  }
}

module attributes {stable_mosaic.version = 11 : i64} {
  func.func @_attn_block_kernel(%arg0: i32, %arg1: memref<1x64x8xbf16, #tpu.memory_space<vmem>>, %arg2: memref<1x8xf32, #tpu.memory_space<vmem>>, %arg3: memref<1x8xf32, #tpu.memory_space<vmem>>, %arg4: memref<16x8xf32, #tpu.memory_space<vmem>>, %arg5: memref<4x8xf32, #tpu.memory_space<vmem>>, %arg6: memref<8x24xbf16, #tpu.memory_space<vmem>>, %arg7: memref<1x24xf32, #tpu.memory_space<vmem>>, %arg8: memref<8x8xbf16, #tpu.memory_space<vmem>>, %arg9: memref<1x8xf32, #tpu.memory_space<vmem>>, %arg10: memref<1x64x8xbf16, #tpu.memory_space<vmem>>) attributes {dimension_semantics = [#tpu.dimension_semantics<parallel>], iteration_bounds = array<i64: 2>, scalar_prefetch = 0 : i64, scratch_operands = 0 : i64, tpu.core_type = #tpu.core_type<tc>, window_params = [{transform_indices = @transform_0, window_bounds = array<i64: 1, 64, 8>}, {pipeline_mode = #tpu.pipeline_mode<synchronous>, transform_indices = @transform_1, window_bounds = array<i64: 1, 8>}, {pipeline_mode = #tpu.pipeline_mode<synchronous>, transform_indices = @transform_2, window_bounds = array<i64: 1, 8>}, {pipeline_mode = #tpu.pipeline_mode<synchronous>, transform_indices = @transform_3, window_bounds = array<i64: 16, 8>}, {pipeline_mode = #tpu.pipeline_mode<synchronous>, transform_indices = @transform_4, window_bounds = array<i64: 4, 8>}, {pipeline_mode = #tpu.pipeline_mode<synchronous>, transform_indices = @transform_5, window_bounds = array<i64: 8, 24>}, {pipeline_mode = #tpu.pipeline_mode<synchronous>, transform_indices = @transform_6, window_bounds = array<i64: 1, 24>}, {pipeline_mode = #tpu.pipeline_mode<synchronous>, transform_indices = @transform_7, window_bounds = array<i64: 8, 8>}, {pipeline_mode = #tpu.pipeline_mode<synchronous>, transform_indices = @transform_8, window_bounds = array<i64: 1, 8>}, {transform_indices = @transform_9, window_bounds = array<i64: 1, 64, 8>}]} {
    %c0 = arith.constant 0 : index
    %c0_0 = arith.constant 0 : index
    %c0_1 = arith.constant 0 : index
    %0 = vector.load %arg1[%c0, %c0_0, %c0_1] : memref<1x64x8xbf16, #tpu.memory_space<vmem>>, vector<1x64x8xbf16>
    %1 = vector.shape_cast %0 : vector<1x64x8xbf16> to vector<64x8xbf16>
    %2 = arith.extf %1 : vector<64x8xbf16> to vector<64x8xf32>
    %3 = arith.mulf %2, %2 : vector<64x8xf32>
    %4 = tpu.concatenate %2, %3 in 1 : vector<64x8xf32>, vector<64x8xf32> -> vector<64x16xf32>
    %c0_2 = arith.constant 0 : index
    %c0_3 = arith.constant 0 : index
    %5 = vector.load %arg4[%c0_2, %c0_3] : memref<16x8xf32, #tpu.memory_space<vmem>>, vector<16x8xf32>
    %cst = arith.constant dense<0.000000e+00> : vector<64x8xf32>
    %6 = tpu.matmul %4, %5, %cst {dimension_numbers = #tpu.dot_dimension_numbers<[1], [0], [0], [1], [0, 0, 1, 1], [], []>} : vector<64x16xf32>, vector<16x8xf32>, vector<64x8xf32> -> vector<64x8xf32>
    %cst_4 = arith.constant dense<0.000000e+00> : vector<8xf32>
    %7 = vector.multi_reduction <add>, %6, %cst_4 [0] : vector<64x8xf32> to vector<8xf32>
    %8 = vector.shape_cast %7 : vector<8xf32> to vector<1x8xf32>
    %9 = vector.extract_strided_slice %8 {offsets = [0, 0], sizes = [1, 4], strides = [1, 1]} : vector<1x8xf32> to vector<1x4xf32>
    %cst_5 = arith.constant 1.280000e+02 : f32
    %10 = vector.broadcast %cst_5 : f32 to vector<1x4xf32>
    %11 = arith.divf %9, %10 : vector<1x4xf32>
    %12 = vector.extract_strided_slice %8 {offsets = [0, 4], sizes = [1, 4], strides = [1, 1]} : vector<1x8xf32> to vector<1x4xf32>
    %cst_6 = arith.constant 1.280000e+02 : f32
    %13 = vector.broadcast %cst_6 : f32 to vector<1x4xf32>
    %14 = arith.divf %12, %13 : vector<1x4xf32>
    %15 = arith.mulf %11, %11 : vector<1x4xf32>
    %16 = arith.subf %14, %15 : vector<1x4xf32>
    %cst_7 = arith.constant 0.000000e+00 : f32
    %17 = vector.broadcast %cst_7 : f32 to vector<1x4xf32>
    %18 = arith.maximumf %16, %17 : vector<1x4xf32>
    %cst_8 = arith.constant 9.99999974E-6 : f32
    %19 = vector.broadcast %cst_8 : f32 to vector<1x4xf32>
    %20 = arith.addf %18, %19 : vector<1x4xf32>
    %21 = math.rsqrt %20 : vector<1x4xf32>
    %22 = tpu.concatenate %11, %21 in 0 : vector<1x4xf32>, vector<1x4xf32> -> vector<2x4xf32>
    %c0_9 = arith.constant 0 : index
    %c0_10 = arith.constant 0 : index
    %23 = vector.load %arg5[%c0_9, %c0_10] : memref<4x8xf32, #tpu.memory_space<vmem>>, vector<4x8xf32>
    %cst_11 = arith.constant dense<0.000000e+00> : vector<2x8xf32>
    %24 = tpu.matmul %22, %23, %cst_11 {dimension_numbers = #tpu.dot_dimension_numbers<[1], [0], [0], [1], [0, 0, 1, 1], [], []>} : vector<2x4xf32>, vector<4x8xf32>, vector<2x8xf32> -> vector<2x8xf32>
    %25 = vector.extract_strided_slice %24 {offsets = [0, 0], sizes = [1, 8], strides = [1, 1]} : vector<2x8xf32> to vector<1x8xf32>
    %26 = vector.broadcast %25 : vector<1x8xf32> to vector<64x8xf32>
    %27 = arith.subf %2, %26 : vector<64x8xf32>
    %28 = vector.extract_strided_slice %24 {offsets = [1, 0], sizes = [1, 8], strides = [1, 1]} : vector<2x8xf32> to vector<1x8xf32>
    %29 = vector.broadcast %28 : vector<1x8xf32> to vector<64x8xf32>
    %30 = arith.mulf %27, %29 : vector<64x8xf32>
    %c0_12 = arith.constant 0 : index
    %c0_13 = arith.constant 0 : index
    %31 = vector.load %arg2[%c0_12, %c0_13] : memref<1x8xf32, #tpu.memory_space<vmem>>, vector<1x8xf32>
    %32 = vector.broadcast %31 : vector<1x8xf32> to vector<64x8xf32>
    %33 = arith.mulf %30, %32 : vector<64x8xf32>
    %c0_14 = arith.constant 0 : index
    %c0_15 = arith.constant 0 : index
    %34 = vector.load %arg3[%c0_14, %c0_15] : memref<1x8xf32, #tpu.memory_space<vmem>>, vector<1x8xf32>
    %35 = vector.broadcast %34 : vector<1x8xf32> to vector<64x8xf32>
    %36 = arith.addf %33, %35 : vector<64x8xf32>
    %37 = arith.truncf %36 : vector<64x8xf32> to vector<64x8xbf16>
    %c0_16 = arith.constant 0 : index
    %c0_17 = arith.constant 0 : index
    %38 = vector.load %arg6[%c0_16, %c0_17] : memref<8x24xbf16, #tpu.memory_space<vmem>>, vector<8x24xbf16>
    %cst_18 = arith.constant dense<0.000000e+00> : vector<64x24xf32>
    %39 = tpu.matmul %37, %38, %cst_18 {dimension_numbers = #tpu.dot_dimension_numbers<[1], [0], [0], [1], [0, 0, 1, 1], [], []>} : vector<64x8xbf16>, vector<8x24xbf16>, vector<64x24xf32> -> vector<64x24xf32>
    %c0_19 = arith.constant 0 : index
    %c0_20 = arith.constant 0 : index
    %40 = vector.load %arg7[%c0_19, %c0_20] : memref<1x24xf32, #tpu.memory_space<vmem>>, vector<1x24xf32>
    %41 = vector.broadcast %40 : vector<1x24xf32> to vector<64x24xf32>
    %42 = arith.addf %39, %41 : vector<64x24xf32>
    %c0_21 = arith.constant 0 : index
    %c0_22 = arith.constant 0 : index
    %43 = vector.load %arg9[%c0_21, %c0_22] : memref<1x8xf32, #tpu.memory_space<vmem>>, vector<1x8xf32>
    %44 = vector.broadcast %43 : vector<1x8xf32> to vector<64x8xf32>
    %45 = arith.addf %2, %44 : vector<64x8xf32>
    %46 = vector.extract_strided_slice %42 {offsets = [0, 0], sizes = [64, 4], strides = [1, 1]} : vector<64x24xf32> to vector<64x4xf32>
    %47 = arith.truncf %46 : vector<64x4xf32> to vector<64x4xbf16>
    %48 = vector.extract_strided_slice %42 {offsets = [0, 8], sizes = [64, 4], strides = [1, 1]} : vector<64x24xf32> to vector<64x4xf32>
    %49 = arith.truncf %48 : vector<64x4xf32> to vector<64x4xbf16>
    %50 = vector.extract_strided_slice %42 {offsets = [0, 16], sizes = [64, 4], strides = [1, 1]} : vector<64x24xf32> to vector<64x4xf32>
    %51 = arith.truncf %50 : vector<64x4xf32> to vector<64x4xbf16>
    %cst_23 = arith.constant dense<0.000000e+00> : vector<64x64xf32>
    %52 = tpu.matmul %47, %49, %cst_23 {dimension_numbers = #tpu.dot_dimension_numbers<[1], [1], [0], [0], [0, 0, 1, 0], [], []>} : vector<64x4xbf16>, vector<64x4xbf16>, vector<64x64xf32> -> vector<64x64xf32>
    %cst_24 = arith.constant 5.000000e-01 : f32
    %53 = vector.broadcast %cst_24 : f32 to vector<64x64xf32>
    %54 = arith.mulf %52, %53 : vector<64x64xf32>
    %cst_25 = arith.constant dense<0xFF800000> : vector<64xf32>
    %55 = vector.multi_reduction <maximumf>, %54, %cst_25 [1] : vector<64x64xf32> to vector<64xf32>
    %56 = vector.shape_cast %55 : vector<64xf32> to vector<64x1xf32>
    %57 = vector.broadcast %56 : vector<64x1xf32> to vector<64x64xf32>
    %58 = arith.subf %54, %57 : vector<64x64xf32>
    %59 = math.exp %58 : vector<64x64xf32>
    %cst_26 = arith.constant dense<0.000000e+00> : vector<64xf32>
    %60 = vector.multi_reduction <add>, %59, %cst_26 [1] : vector<64x64xf32> to vector<64xf32>
    %61 = vector.shape_cast %60 : vector<64xf32> to vector<64x1xf32>
    %62 = tpu.reciprocal %61 {approx = true} : vector<64x1xf32> -> vector<64x1xf32>
    %63 = vector.broadcast %62 : vector<64x1xf32> to vector<64x64xf32>
    %64 = arith.mulf %59, %63 : vector<64x64xf32>
    %65 = arith.truncf %64 : vector<64x64xf32> to vector<64x64xbf16>
    %cst_27 = arith.constant dense<0.000000e+00> : vector<64x4xf32>
    %66 = tpu.matmul %65, %51, %cst_27 {dimension_numbers = #tpu.dot_dimension_numbers<[1], [0], [0], [1], [0, 0, 1, 1], [], []>} : vector<64x64xbf16>, vector<64x4xbf16>, vector<64x4xf32> -> vector<64x4xf32>
    %67 = arith.truncf %66 : vector<64x4xf32> to vector<64x4xbf16>
    %c0_28 = arith.constant 0 : index
    %c0_29 = arith.constant 0 : index
    %68 = vector.load %arg8[%c0_28, %c0_29] : memref<8x8xbf16, #tpu.memory_space<vmem>>, vector<4x8xbf16>
    %cst_30 = arith.constant dense<0.000000e+00> : vector<64x8xf32>
    %69 = tpu.matmul %67, %68, %cst_30 {dimension_numbers = #tpu.dot_dimension_numbers<[1], [0], [0], [1], [0, 0, 1, 1], [], []>} : vector<64x4xbf16>, vector<4x8xbf16>, vector<64x8xf32> -> vector<64x8xf32>
    %70 = arith.addf %45, %69 : vector<64x8xf32>
    %71 = vector.extract_strided_slice %42 {offsets = [0, 4], sizes = [64, 4], strides = [1, 1]} : vector<64x24xf32> to vector<64x4xf32>
    %72 = arith.truncf %71 : vector<64x4xf32> to vector<64x4xbf16>
    %73 = vector.extract_strided_slice %42 {offsets = [0, 12], sizes = [64, 4], strides = [1, 1]} : vector<64x24xf32> to vector<64x4xf32>
    %74 = arith.truncf %73 : vector<64x4xf32> to vector<64x4xbf16>
    %75 = vector.extract_strided_slice %42 {offsets = [0, 20], sizes = [64, 4], strides = [1, 1]} : vector<64x24xf32> to vector<64x4xf32>
    %76 = arith.truncf %75 : vector<64x4xf32> to vector<64x4xbf16>
    %cst_31 = arith.constant dense<0.000000e+00> : vector<64x64xf32>
    %77 = tpu.matmul %72, %74, %cst_31 {dimension_numbers = #tpu.dot_dimension_numbers<[1], [1], [0], [0], [0, 0, 1, 0], [], []>} : vector<64x4xbf16>, vector<64x4xbf16>, vector<64x64xf32> -> vector<64x64xf32>
    %cst_32 = arith.constant 5.000000e-01 : f32
    %78 = vector.broadcast %cst_32 : f32 to vector<64x64xf32>
    %79 = arith.mulf %77, %78 : vector<64x64xf32>
    %cst_33 = arith.constant dense<0xFF800000> : vector<64xf32>
    %80 = vector.multi_reduction <maximumf>, %79, %cst_33 [1] : vector<64x64xf32> to vector<64xf32>
    %81 = vector.shape_cast %80 : vector<64xf32> to vector<64x1xf32>
    %82 = vector.broadcast %81 : vector<64x1xf32> to vector<64x64xf32>
    %83 = arith.subf %79, %82 : vector<64x64xf32>
    %84 = math.exp %83 : vector<64x64xf32>
    %cst_34 = arith.constant dense<0.000000e+00> : vector<64xf32>
    %85 = vector.multi_reduction <add>, %84, %cst_34 [1] : vector<64x64xf32> to vector<64xf32>
    %86 = vector.shape_cast %85 : vector<64xf32> to vector<64x1xf32>
    %87 = tpu.reciprocal %86 {approx = true} : vector<64x1xf32> -> vector<64x1xf32>
    %88 = vector.broadcast %87 : vector<64x1xf32> to vector<64x64xf32>
    %89 = arith.mulf %84, %88 : vector<64x64xf32>
    %90 = arith.truncf %89 : vector<64x64xf32> to vector<64x64xbf16>
    %cst_35 = arith.constant dense<0.000000e+00> : vector<64x4xf32>
    %91 = tpu.matmul %90, %76, %cst_35 {dimension_numbers = #tpu.dot_dimension_numbers<[1], [0], [0], [1], [0, 0, 1, 1], [], []>} : vector<64x64xbf16>, vector<64x4xbf16>, vector<64x4xf32> -> vector<64x4xf32>
    %92 = arith.truncf %91 : vector<64x4xf32> to vector<64x4xbf16>
    %c4 = arith.constant 4 : index
    %c0_36 = arith.constant 0 : index
    %93 = vector.load %arg8[%c4, %c0_36] : memref<8x8xbf16, #tpu.memory_space<vmem>>, vector<4x8xbf16>
    %cst_37 = arith.constant dense<0.000000e+00> : vector<64x8xf32>
    %94 = tpu.matmul %92, %93, %cst_37 {dimension_numbers = #tpu.dot_dimension_numbers<[1], [0], [0], [1], [0, 0, 1, 1], [], []>} : vector<64x4xbf16>, vector<4x8xbf16>, vector<64x8xf32> -> vector<64x8xf32>
    %95 = arith.addf %70, %94 : vector<64x8xf32>
    %96 = arith.truncf %95 : vector<64x8xf32> to vector<64x8xbf16>
    %c0_38 = arith.constant 0 : index
    %c0_39 = arith.constant 0 : index
    %c0_40 = arith.constant 0 : index
    %97 = vector.load %arg10[%c0_38, %c0_39, %c0_40] : memref<1x64x8xbf16, #tpu.memory_space<vmem>>, vector<1x64x8xbf16>
    %98 = vector.shape_cast %97 : vector<1x64x8xbf16> to vector<64x8xbf16>
    %99 = vector.shape_cast %96 : vector<64x8xbf16> to vector<1x64x8xbf16>
    tpu.vector_store %arg10[%c0_38, %c0_39, %c0_40], %99 {strides = array<i32>} : memref<1x64x8xbf16, #tpu.memory_space<vmem>>, vector<1x64x8xbf16>,
    return
  }
  func.func @transform_0(%arg0: i32) -> (i32, i32, i32) {
    %c0_i32 = arith.constant 0 : i32
    %c0_i32_0 = arith.constant 0 : i32
    %c0_i32_1 = arith.constant 0 : i32
    return %arg0, %c0_i32, %c0_i32_0 : i32, i32, i32
  }
  func.func @transform_1(%arg0: i32) -> (i32, i32) {
    %c0_i32 = arith.constant 0 : i32
    %c0_i32_0 = arith.constant 0 : i32
    %c0_i32_1 = arith.constant 0 : i32
    return %c0_i32, %c0_i32_0 : i32, i32
  }
  func.func @transform_2(%arg0: i32) -> (i32, i32) {
    %c0_i32 = arith.constant 0 : i32
    %c0_i32_0 = arith.constant 0 : i32
    %c0_i32_1 = arith.constant 0 : i32
    return %c0_i32, %c0_i32_0 : i32, i32
  }
  func.func @transform_3(%arg0: i32) -> (i32, i32) {
    %c0_i32 = arith.constant 0 : i32
    %c0_i32_0 = arith.constant 0 : i32
    %c0_i32_1 = arith.constant 0 : i32
    return %c0_i32, %c0_i32_0 : i32, i32
  }
  func.func @transform_4(%arg0: i32) -> (i32, i32) {
    %c0_i32 = arith.constant 0 : i32
    %c0_i32_0 = arith.constant 0 : i32
    %c0_i32_1 = arith.constant 0 : i32
    return %c0_i32, %c0_i32_0 : i32, i32
  }
  func.func @transform_5(%arg0: i32) -> (i32, i32) {
    %c0_i32 = arith.constant 0 : i32
    %c0_i32_0 = arith.constant 0 : i32
    %c0_i32_1 = arith.constant 0 : i32
    return %c0_i32, %c0_i32_0 : i32, i32
  }
  func.func @transform_6(%arg0: i32) -> (i32, i32) {
    %c0_i32 = arith.constant 0 : i32
    %c0_i32_0 = arith.constant 0 : i32
    %c0_i32_1 = arith.constant 0 : i32
    return %c0_i32, %c0_i32_0 : i32, i32
  }
  func.func @transform_7(%arg0: i32) -> (i32, i32) {
    %c0_i32 = arith.constant 0 : i32
    %c0_i32_0 = arith.constant 0 : i32
    %c0_i32_1 = arith.constant 0 : i32
    return %c0_i32, %c0_i32_0 : i32, i32
  }
  func.func @transform_8(%arg0: i32) -> (i32, i32) {
    %c0_i32 = arith.constant 0 : i32
    %c0_i32_0 = arith.constant 0 : i32
    %c0_i32_1 = arith.constant 0 : i32
    return %c0_i32, %c0_i32_0 : i32, i32
  }
  func.func @transform_9(%arg0: i32) -> (i32, i32, i32) {
    %c0_i32 = arith.constant 0 : i32
    %c0_i32_0 = arith.constant 0 : i32
    %c0_i32_1 = arith.constant 0 : i32
    return %arg0, %c0_i32, %c0_i32_0 : i32, i32, i32
  }
}

</mosaic_0001>

<llo_original>
// kernel: unet_decoder_block_forward.13
$region0: #{unet_decoder_block_forward.13}
  #allocation0 [shape = 'u32[]', space=smem, size = 0x4, offset = 0x4, fixed_abs, tag = 'smem constant byte address 0x4 - core index']
  #allocation1 [shape = 'u32[144,128]{1,0:T(1,128)}', space=vmem, size = 0x12000, scoped, tag = 'internal scratch']
  %s0 = inlined_call_operand.vmem [shape: bf16[2,64,8], index: 0, kind: input, shape index: {}]
  %s1 = inlined_call_operand.vmem [shape: f32[1,8], index: 1, kind: input, shape index: {}]
  %s2 = inlined_call_operand.vmem [shape: f32[1,8], index: 2, kind: input, shape index: {}]
  %s3 = inlined_call_operand.vmem [shape: f32[16,8], index: 3, kind: input, shape index: {}]
  %s4 = inlined_call_operand.vmem [shape: f32[4,8], index: 4, kind: input, shape index: {}]
  %s5 = inlined_call_operand.vmem [shape: bf16[2,64,8], index: 5, kind: output, shape index: {}]
  %s6 = sld [smem:[#allocation0]]
  $region53: #{unet_decoder_block_forward.13} parent=0
    _
  %s8 = ssub.s32 1, %s6
  %s9 = scalar_select 0, %s8, %s6
  loop: start=0, step=1, limit=4
  $region2: #{unet_decoder_block_forward.13} parent=0 // loop_pre_header
    _
  $region3: #{unet_decoder_block_forward.13} parent=0 // loop_header
    %s11 = sphi 0, %s15
    %p12 = scmp.ge.s32.totalorder %s11, 4
    %s21 = sphi 0, %s23
    %s24 = sphi 0, %s21
    %s25 = sphi 0, %s24
    %s41 = sphi 0, %s25
    %s45 = sphi 0, %s45
    %s47 = sphi 0, %s45
    %s48 = sphi 0, %s47
    %s62 = sphi 0, %s48
    %s66 = sphi 0, %s66
    %s68 = sphi 0, %s66
    %s69 = sphi 0, %s68
    %s83 = sphi 0, %s69
    %s87 = sphi 0, %s87
    %s89 = sphi 0, %s87
    %s90 = sphi 0, %s89
    %s104 = sphi 0, %s90
    %s108 = sphi 0, %s108
    %s110 = sphi 0, %s108
    %s111 = sphi 0, %s110
    %s125 = sphi 0, %s111
    %s131 = sphi 0, %s133
    %s134 = sphi 0, %s131
    %s135 = sphi 0, %s134
    %s151 = sphi 0, %s135
  $region4: #{unet_decoder_block_forward.13} parent=0 // loop_header_branch
    %14 = sbr.rel (%p12) target = $region8
  $region5: #{unet_decoder_block_forward.13} parent=0 // loop_body
    %s16 = ssub.s32 %s11, 1
    %s17 = ssub.s32 %s11, 2
    %s18 = sadd.s32 %s11, 1
    %s19 = ssub.s32 %s11, %s18
    %p20 = scmp.eq.s32.totalorder %s19, 0
    %s22 = sadd.s32 %s21, 1
    %s23 = scalar_select %p20, %s21, %s22
    %p26 = pneg %p20
    %p27 = scmp.eq.s32.totalorder %s11, 1
    %p28 = por %p26, %p27
    %p29 = scmp.ne.s32.totalorder %s21, %s24
    %p30 = scmp.eq.s32.totalorder %s11, 0
    %p31 = por %p29, %p30
    %p32 = scmp.ne.s32.totalorder %s21, %s24
    %p33 = scmp.eq.s32.totalorder %s16, 1
    %p34 = por %p32, %p33
    %p35 = scmp.ne.s32.totalorder %s24, %s25
    %p36 = scmp.eq.s32.totalorder %s16, 0
    %p37 = por %p35, %p36
    %p38 = scmp.ne.s32.totalorder %s24, %s25
    %p39 = scmp.eq.s32.totalorder %s17, 1
    %p40 = por %p38, %p39
    %p42 = scmp.ne.s32.totalorder %s25, %s41
    %p43 = scmp.eq.s32.totalorder %s17, 0
    %p44 = por %p42, %p43
    %s46 = sadd.s32 %s45, 1
    %p49 = scmp.eq.s32.totalorder %s11, 1
    %p50 = scmp.ne.s32.totalorder %s45, %s47
    %p51 = scmp.eq.s32.totalorder %s11, 0
    %p52 = por %p50, %p51
    %p53 = scmp.ne.s32.totalorder %s45, %s47
    %p54 = scmp.eq.s32.totalorder %s16, 1
    %p55 = por %p53, %p54
    %p56 = scmp.ne.s32.totalorder %s47, %s48
    %p57 = scmp.eq.s32.totalorder %s16, 0
    %p58 = por %p56, %p57
    %p59 = scmp.ne.s32.totalorder %s47, %s48
    %p60 = scmp.eq.s32.totalorder %s17, 1
    %p61 = por %p59, %p60
    %p63 = scmp.ne.s32.totalorder %s48, %s62
    %p64 = scmp.eq.s32.totalorder %s17, 0
    %p65 = por %p63, %p64
    %s67 = sadd.s32 %s66, 1
    %p70 = scmp.eq.s32.totalorder %s11, 1
    %p71 = scmp.ne.s32.totalorder %s66, %s68
    %p72 = scmp.eq.s32.totalorder %s11, 0
    %p73 = por %p71, %p72
    %p74 = scmp.ne.s32.totalorder %s66, %s68
    %p75 = scmp.eq.s32.totalorder %s16, 1
    %p76 = por %p74, %p75
    %p77 = scmp.ne.s32.totalorder %s68, %s69
    %p78 = scmp.eq.s32.totalorder %s16, 0
    %p79 = por %p77, %p78
    %p80 = scmp.ne.s32.totalorder %s68, %s69
    %p81 = scmp.eq.s32.totalorder %s17, 1
    %p82 = por %p80, %p81
    %p84 = scmp.ne.s32.totalorder %s69, %s83
    %p85 = scmp.eq.s32.totalorder %s17, 0
    %p86 = por %p84, %p85
    %s88 = sadd.s32 %s87, 1
    %p91 = scmp.eq.s32.totalorder %s11, 1
    %p92 = scmp.ne.s32.totalorder %s87, %s89
    %p93 = scmp.eq.s32.totalorder %s11, 0
    %p94 = por %p92, %p93
    %p95 = scmp.ne.s32.totalorder %s87, %s89
    %p96 = scmp.eq.s32.totalorder %s16, 1
    %p97 = por %p95, %p96
    %p98 = scmp.ne.s32.totalorder %s89, %s90
    %p99 = scmp.eq.s32.totalorder %s16, 0
    %p100 = por %p98, %p99
    %p101 = scmp.ne.s32.totalorder %s89, %s90
    %p102 = scmp.eq.s32.totalorder %s17, 1
    %p103 = por %p101, %p102
    %p105 = scmp.ne.s32.totalorder %s90, %s104
    %p106 = scmp.eq.s32.totalorder %s17, 0
    %p107 = por %p105, %p106
    %s109 = sadd.s32 %s108, 1
    %p112 = scmp.eq.s32.totalorder %s11, 1
    %p113 = scmp.ne.s32.totalorder %s108, %s110
    %p114 = scmp.eq.s32.totalorder %s11, 0
    %p115 = por %p113, %p114
    %p116 = scmp.ne.s32.totalorder %s108, %s110
    %p117 = scmp.eq.s32.totalorder %s16, 1
    %p118 = por %p116, %p117
    %p119 = scmp.ne.s32.totalorder %s110, %s111
    %p120 = scmp.eq.s32.totalorder %s16, 0
    %p121 = por %p119, %p120
    %p122 = scmp.ne.s32.totalorder %s110, %s111
    %p123 = scmp.eq.s32.totalorder %s17, 1
    %p124 = por %p122, %p123
    %p126 = scmp.ne.s32.totalorder %s111, %s125
    %p127 = scmp.eq.s32.totalorder %s17, 0
    %p128 = por %p126, %p127
    %s129 = ssub.s32 %s11, %s18
    %p130 = scmp.eq.s32.totalorder %s129, 0
    %s132 = sadd.s32 %s131, 1
    %s133 = scalar_select %p130, %s131, %s132
    %p136 = pneg %p130
    %p137 = scmp.eq.s32.totalorder %s11, 1
    %p138 = por %p136, %p137
    %p139 = scmp.ne.s32.totalorder %s131, %s134
    %p140 = scmp.eq.s32.totalorder %s11, 0
    %p141 = por %p139, %p140
    %p142 = scmp.ne.s32.totalorder %s131, %s134
    %p143 = scmp.eq.s32.totalorder %s16, 1
    %p144 = por %p142, %p143
    %p145 = scmp.ne.s32.totalorder %s134, %s135
    %p146 = scmp.eq.s32.totalorder %s16, 0
    %p147 = por %p145, %p146
    %p148 = scmp.ne.s32.totalorder %s134, %s135
    %p149 = scmp.eq.s32.totalorder %s17, 1
    %p150 = por %p148, %p149
    %p152 = scmp.ne.s32.totalorder %s135, %s151
    %p153 = scmp.eq.s32.totalorder %s17, 0
    %p154 = por %p152, %p153
    %p155 = scmp.le.s32.totalorder 1, %s11
    %p156 = scmp.lt.s32.totalorder %s11, 3
    %p157 = pnand %p155, %p156
    %p158 = pneg %p157
    // Predicated region
    $region9: #{unet_decoder_block_forward.13} parent=5 // pred_check
      _
    $region10: #{unet_decoder_block_forward.13} parent=5 // pred_check_branch
      %160 = sbr.rel (%p157) target = $region12
    $region11: #{unet_decoder_block_forward.13} parent=5 // pred_region
      %s161 = ssub.s32 %s11, 1
      // Predicated region
      $region13: #{unet_decoder_block_forward.13} parent=11 // pred_check
        %p162 = pneg %p58
      $region14: #{unet_decoder_block_forward.13} parent=11 // pred_check_branch
        %164 = sbr.rel (%p162) target = $region16
      $region15: #{unet_decoder_block_forward.13} parent=11 // pred_region
        _
      $region16: #{unet_decoder_block_forward.13} parent=11 // pred_fallthru
        _
      // Predicated region
      $region17: #{unet_decoder_block_forward.13} parent=11 // pred_check
        %p165 = pneg %p79
      $region18: #{unet_decoder_block_forward.13} parent=11 // pred_check_branch
        %167 = sbr.rel (%p165) target = $region20
      $region19: #{unet_decoder_block_forward.13} parent=11 // pred_region
        _
      $region20: #{unet_decoder_block_forward.13} parent=11 // pred_fallthru
        _
      // Predicated region
      $region21: #{unet_decoder_block_forward.13} parent=11 // pred_check
        %p168 = pneg %p100
      $region22: #{unet_decoder_block_forward.13} parent=11 // pred_check_branch
        %170 = sbr.rel (%p168) target = $region24
      $region23: #{unet_decoder_block_forward.13} parent=11 // pred_region
        _
      $region24: #{unet_decoder_block_forward.13} parent=11 // pred_fallthru
        _
      // Predicated region
      $region25: #{unet_decoder_block_forward.13} parent=11 // pred_check
        %p171 = pneg %p121
      $region26: #{unet_decoder_block_forward.13} parent=11 // pred_check_branch
        %173 = sbr.rel (%p171) target = $region28
      $region27: #{unet_decoder_block_forward.13} parent=11 // pred_region
        _
      $region28: #{unet_decoder_block_forward.13} parent=11 // pred_fallthru
        _
    $region12: #{unet_decoder_block_forward.13} parent=5 // pred_fallthru
      _
    %p174 = scmp.lt.s32.totalorder %s11, 2
    // Predicated region
    $region29: #{unet_decoder_block_forward.13} parent=5 // pred_check
      %p175 = pneg %p174
    $region30: #{unet_decoder_block_forward.13} parent=5 // pred_check_branch
      %177 = sbr.rel (%p175) target = $region32
    $region31: #{unet_decoder_block_forward.13} parent=5 // pred_region
      // Predicated region
      $region33: #{unet_decoder_block_forward.13} parent=31 // pred_check
        %p178 = pneg %p31
      $region34: #{unet_decoder_block_forward.13} parent=31 // pred_check_branch
        %180 = sbr.rel (%p178) target = $region36
      $region35: #{unet_decoder_block_forward.13} parent=31 // pred_region
        %p181 = scmp.lt.s32.totalorder %s11, 1
        %s182 = scalar_select %p181, %s11, 1
        %s183 = smul.addr %s182, 8
        %s184 = smul.addr %s183, 4
        %s185 = scalar_lea.vmem %s0, %s184
      $region36: #{unet_decoder_block_forward.13} parent=31 // pred_fallthru
        _
    $region32: #{unet_decoder_block_forward.13} parent=5 // pred_fallthru
      _
    %p186 = scmp.le.s32.totalorder 1, %s11
    %p187 = scmp.lt.s32.totalorder %s11, 3
    %p188 = pnand %p186, %p187
    %p189 = pneg %p188
    // Predicated region
    $region37: #{unet_decoder_block_forward.13} parent=5 // pred_check
      _
    $region38: #{unet_decoder_block_forward.13} parent=5 // pred_check_branch
      %191 = sbr.rel (%p188) target = $region40
    $region39: #{unet_decoder_block_forward.13} parent=5 // pred_region
      %s192 = ssub.s32 %s11, 1
      %p193 = scmp.lt.s32.totalorder %s16, 1
      %s194 = scalar_select %p193, %s16, 1
      %s195 = smul.addr %s194, 8
      %s196 = smul.addr %s195, 4
      %s197 = scalar_lea.vmem %s0, %s196
      %p198 = pneg %p37
      %p199 = pneg %p34
      %p200 = pneg %p58
      %p201 = pneg %p55
      %p202 = pneg %p79
      %p203 = pneg %p76
      %p204 = pneg %p100
      %p205 = pneg %p97
      %p206 = pneg %p121
      %p207 = pneg %p118
      %p208 = pneg %p147
      %p209 = pneg %p144
      %p210 = scmp.lt.s32.totalorder %s16, 1
      %s211 = scalar_select %p210, %s16, 1
      %s212 = smul.addr %s211, 8
      %s213 = smul.addr %s212, 4
      %s214 = scalar_lea.vmem %s5, %s213
      %p215 = scmp.lt.s32.totalorder %s16, 1
      %s216 = scalar_select %p215, %s16, 1
      %s217 = smul.addr %s216, 8
      %s218 = smul.addr %s217, 4
      %s219 = scalar_lea.vmem %s0, %s218
      %p220 = scmp.lt.s32.totalorder %s16, 1
      %s221 = scalar_select %p220, %s16, 1
      %s222 = smul.addr %s221, 8
      %s223 = smul.addr %s222, 4
      %s224 = scalar_lea.vmem %s5, %s223
      %v225 = vld [vmem:[%s219] sm:$0xf]
      %v226 = vld [vmem:[%s219 + $0x4] sm:$0xf]
      %v227 = vld [vmem:[%s219 + $0x8] sm:$0xf]
      %v228 = vld [vmem:[%s219 + $0xc] sm:$0xf]
      %v229 = vld [vmem:[%s219 + $0x10] sm:$0xf]
      %v230 = vld [vmem:[%s219 + $0x14] sm:$0xf]
      %v231 = vld [vmem:[%s219 + $0x18] sm:$0xf]
      %v232 = vld [vmem:[%s219 + $0x1c] sm:$0xf]
      %v233 = vunpack.c.l.bf16 %v225
      %v234 = vunpack.c.l.bf16 %v226
      %v235 = vunpack.c.l.bf16 %v227
      %v236 = vunpack.c.l.bf16 %v228
      %v237 = vunpack.c.l.bf16 %v229
      %v238 = vunpack.c.l.bf16 %v230
      %v239 = vunpack.c.l.bf16 %v231
      %v240 = vunpack.c.l.bf16 %v232
      %v241 = vmul.f32 %v233, %v233
      %v242 = vmul.f32 %v234, %v234
      %v243 = vmul.f32 %v235, %v235
      %v244 = vmul.f32 %v236, %v236
      %v245 = vmul.f32 %v237, %v237
      %v246 = vmul.f32 %v238, %v238
      %v247 = vmul.f32 %v239, %v239
      %v248 = vmul.f32 %v240, %v240
      %257 = vrot.lane.b32.xlu0 %v241, 8
      %v258 = vpop.permute.xlu0 %257
      %259 = vrot.lane.b32.xlu0 %v242, 8
      %v260 = vpop.permute.xlu0 %259
      %261 = vrot.lane.b32.xlu0 %v243, 8
      %v262 = vpop.permute.xlu0 %261
      %263 = vrot.lane.b32.xlu0 %v244, 8
      %v264 = vpop.permute.xlu0 %263
      %265 = vrot.lane.b32.xlu0 %v245, 8
      %v266 = vpop.permute.xlu0 %265
      %267 = vrot.lane.b32.xlu0 %v246, 8
      %v268 = vpop.permute.xlu0 %267
      %269 = vrot.lane.b32.xlu0 %v247, 8
      %v270 = vpop.permute.xlu0 %269
      %271 = vrot.lane.b32.xlu0 %v248, 8
      %v272 = vpop.permute.xlu0 %271
      %vm281 = vcmask 64512
      %v282 = vsel %vm281, %v233, %v258
      %v283 = vsel %vm281, %v234, %v260
      %v284 = vsel %vm281, %v235, %v262
      %v285 = vsel %vm281, %v236, %v264
      %v286 = vsel %vm281, %v237, %v266
      %v287 = vsel %vm281, %v238, %v268
      %v288 = vsel %vm281, %v239, %v270
      %v289 = vsel %vm281, %v240, %v272
      %v290 = vld [vmem:[%s3] sm:$0xff]
      %v291 = vld [vmem:[%s3 + $0x8] sm:$0xff]
      %vm292 = vcmask 130048
      %v294 = vsel %vm292, %v282, 0
      %v297 = vsel %vm292, %v283, 0
      %v300 = vsel %vm292, %v284, 0
      %v303 = vsel %vm292, %v285, 0
      %v306 = vsel %vm292, %v286, 0
      %v309 = vsel %vm292, %v287, 0
      %v312 = vsel %vm292, %v288, 0
      %v315 = vsel %vm292, %v289, 0
      %317 = vmatprep.subr.mxu0 0.0
      %318 = vmatpush1.msra.mxu0 %v290
      %319 = vmatprep.subr.mxu0 0.0
      %320 = vmatpush1.msra.mxu0 %v291
      %321 = vmatprep.subr.mxu0 0.0
      %322 = vmatpush1.msra.mxu0 0.0
      %323 = vmatprep.subr.mxu0 0.0
      %324 = vmatpush1.msra.mxu0 0.0
      %325 = vmatprep.subr.mxu0 0.0
      %326 = vmatpush1.msra.mxu0 0.0
      %327 = vmatprep.subr.mxu0 0.0
      %328 = vmatpush1.msra.mxu0 0.0
      %329 = vmatprep.subr.mxu0 0.0
      %330 = vmatpush1.msra.mxu0 0.0
      %331 = vmatprep.subr.mxu0 0.0
      %332 = vmatpush1.msra.mxu0 0.0
      %333 = vmatprep.subr.mxu0 0.0
      %334 = vmatpush1.msra.mxu0 0.0
      %335 = vmatprep.subr.mxu0 0.0
      %336 = vmatpush1.msra.mxu0 0.0
      %337 = vmatprep.subr.mxu0 0.0
      %338 = vmatpush1.msra.mxu0 0.0
      %339 = vmatprep.subr.mxu0 0.0
      %340 = vmatpush1.msra.mxu0 0.0
      %341 = vmatprep.subr.mxu0 0.0
      %342 = vmatpush1.msra.mxu0 0.0
      %343 = vmatprep.subr.mxu0 0.0
      %344 = vmatpush1.msra.mxu0 0.0
      %345 = vmatprep.subr.mxu0 0.0
      %346 = vmatpush1.msra.mxu0 0.0
      %347 = vmatprep.subr.mxu0 0.0
      %348 = vmatpush1.msra.mxu0 0.0
      %349 = vmatprep.subr.mxu0 0.0
      %350 = vmatpush1.msra.mxu0 0.0
      %351 = vmatprep.subr.mxu0 0.0
      %352 = vmatpush1.msra.mxu0 0.0
      %353 = vmatprep.subr.mxu0 0.0
      %354 = vmatpush1.msra.mxu0 0.0
      %355 = vmatprep.subr.mxu0 0.0
      %356 = vmatpush1.msra.mxu0 0.0
      %357 = vmatprep.subr.mxu0 0.0
      %358 = vmatpush1.msra.mxu0 0.0
      %359 = vmatprep.subr.mxu0 0.0
      %360 = vmatpush1.msra.mxu0 0.0
      %361 = vmatprep.subr.mxu0 0.0
      %362 = vmatpush1.msra.mxu0 0.0
      %363 = vmatprep.subr.mxu0 0.0
      %364 = vmatpush1.msra.mxu0 0.0
      %365 = vmatprep.subr.mxu0 0.0
      %366 = vmatpush1.msra.mxu0 0.0
      %367 = vmatprep.subr.mxu0 0.0
      %368 = vmatpush1.msra.mxu0 0.0
      %369 = vmatprep.subr.mxu0 0.0
      %370 = vmatpush1.msra.mxu0 0.0
      %371 = vmatprep.subr.mxu0 0.0
      %372 = vmatpush1.msra.mxu0 0.0
      %373 = vmatprep.subr.mxu0 0.0
      %374 = vmatpush1.msra.mxu0 0.0
      %375 = vmatprep.subr.mxu0 0.0
      %376 = vmatpush1.msra.mxu0 0.0
      %377 = vmatprep.subr.mxu0 0.0
      %378 = vmatpush1.msra.mxu0 0.0
      %379 = vmatprep.subr.mxu0 0.0
      %380 = vmatpush1.msra.mxu0 0.0
      %381 = vmatprep.mubr.f32.mxu0 0.0
      %382 = vmatmul.mubr.f32.gmra.mrb[0].mxu0 %v294
      %v383 = vpop.f32.mrb[0].mxu0
      %v384 = vadd.f32 0.0, %v383
      %v385 = vpop.f32.mrb[0].mxu0
      %386 = vmatprep.mubr.f32.mxu0 0.0
      %387 = vmatmul.mubr.f32.gmra.mrb[0].mxu0 %v297
      %v388 = vpop.f32.mrb[0].mxu0
      %v389 = vadd.f32 0.0, %v388
      %v390 = vpop.f32.mrb[0].mxu0
      %391 = vmatprep.mubr.f32.mxu0 0.0
      %392 = vmatmul.mubr.f32.gmra.mrb[0].mxu0 %v300
      %v393 = vpop.f32.mrb[0].mxu0
      %v394 = vadd.f32 0.0, %v393
      %v395 = vpop.f32.mrb[0].mxu0
      %396 = vmatprep.mubr.f32.mxu0 0.0
      %397 = vmatmul.mubr.f32.gmra.mrb[0].mxu0 %v303
      %v398 = vpop.f32.mrb[0].mxu0
      %v399 = vadd.f32 0.0, %v398
      %v400 = vpop.f32.mrb[0].mxu0
      %401 = vmatprep.mubr.f32.mxu0 0.0
      %402 = vmatmul.mubr.f32.gmra.mrb[0].mxu0 %v306
      %v403 = vpop.f32.mrb[0].mxu0
      %v404 = vadd.f32 0.0, %v403
      %v405 = vpop.f32.mrb[0].mxu0
      %406 = vmatprep.mubr.f32.mxu0 0.0
      %407 = vmatmul.mubr.f32.gmra.mrb[0].mxu0 %v309
      %v408 = vpop.f32.mrb[0].mxu0
      %v409 = vadd.f32 0.0, %v408
      %v410 = vpop.f32.mrb[0].mxu0
      %411 = vmatprep.mubr.f32.mxu0 0.0
      %412 = vmatmul.mubr.f32.gmra.mrb[0].mxu0 %v312
      %v413 = vpop.f32.mrb[0].mxu0
      %v414 = vadd.f32 0.0, %v413
      %v415 = vpop.f32.mrb[0].mxu0
      %416 = vmatprep.mubr.f32.mxu0 0.0
      %417 = vmatmul.mubr.f32.gmra.mrb[0].mxu0 %v315
      %v418 = vpop.f32.mrb[0].mxu0
      %v419 = vadd.f32 0.0, %v418
      %v420 = vpop.f32.mrb[0].mxu0
      %421 = vdwg.mxu0
      %v422 = vsel %vm281, %v384, 0.0
      %v423 = vsel %vm281, %v389, 0.0
      %v424 = vadd.f32 %v422, %v423
      %v425 = vsel %vm281, %v394, 0.0
      %v426 = vadd.f32 %v424, %v425
      %v427 = vsel %vm281, %v399, 0.0
      %v428 = vadd.f32 %v426, %v427
      %v429 = vsel %vm281, %v404, 0.0
      %v430 = vadd.f32 %v428, %v429
      %v431 = vsel %vm281, %v409, 0.0
      %v432 = vadd.f32 %v430, %v431
      %v433 = vsel %vm281, %v414, 0.0
      %v434 = vadd.f32 %v432, %v433
      %v435 = vsel %vm281, %v419, 0.0
      %v436 = vadd.f32 %v434, %v435
      %v437 = vrot.slane %v436, 4
      %v438 = vadd.f32 %v436, %v437
      %v439 = vrot.slane %v438, 2
      %v440 = vadd.f32 %v438, %v439
      %v441 = vrot.slane %v440, 1
      %v442 = vadd.f32 %v440, %v441
      %v443 = vrcp.pop 128.0
      %v444 = vmul.f32 %v442, %v443
      %v445 = vmul.f32 %v444, %v444
      %447 = vrot.lane.b32.xlu0 %v445, 4
      %v448 = vpop.permute.xlu0 %447
      %v450 = vsub.f32 %v444, %v448
      %v451 = vmax.f32 %v450, 0.0
      %v452 = vadd.f32 %v451, 1e-05
      %v453 = vrsqrt.pop %v452
      %v455 = vrot.slane %v453, 7
      %456 = vrot.lane.b32.xlu0 %v455, 124
      %v457 = vpop.permute.xlu0 %456
      %vm459 = vcmask 1040384
      %v460 = vsel %vm459, %v444, %v457
      %v461 = vld [vmem:[%s4] sm:$0xf]
      %vm462 = vcmask 31744
      %v464 = vsel %vm462, %v460, 0
      %vm466 = vcmask 1043456
      %v468 = vsel %vm466, %v461, 0
      %470 = vmatprep.subr.mxu0 0.0
      %471 = vmatpush1.msra.mxu0 %v468
      %472 = vmatprep.subr.mxu0 0.0
      %473 = vmatpush1.msra.mxu0 0.0
      %474 = vmatprep.subr.mxu0 0.0
      %475 = vmatpush1.msra.mxu0 0.0
      %476 = vmatprep.subr.mxu0 0.0
      %477 = vmatpush1.msra.mxu0 0.0
      %478 = vmatprep.subr.mxu0 0.0
      %479 = vmatpush1.msra.mxu0 0.0
      %480 = vmatprep.subr.mxu0 0.0
      %481 = vmatpush1.msra.mxu0 0.0
      %482 = vmatprep.subr.mxu0 0.0
      %483 = vmatpush1.msra.mxu0 0.0
      %484 = vmatprep.subr.mxu0 0.0
      %485 = vmatpush1.msra.mxu0 0.0
      %486 = vmatprep.subr.mxu0 0.0
      %487 = vmatpush1.msra.mxu0 0.0
      %488 = vmatprep.subr.mxu0 0.0
      %489 = vmatpush1.msra.mxu0 0.0
      %490 = vmatprep.subr.mxu0 0.0
      %491 = vmatpush1.msra.mxu0 0.0
      %492 = vmatprep.subr.mxu0 0.0
      %493 = vmatpush1.msra.mxu0 0.0
      %494 = vmatprep.subr.mxu0 0.0
      %495 = vmatpush1.msra.mxu0 0.0
      %496 = vmatprep.subr.mxu0 0.0
      %497 = vmatpush1.msra.mxu0 0.0
      %498 = vmatprep.subr.mxu0 0.0
      %499 = vmatpush1.msra.mxu0 0.0
      %500 = vmatprep.subr.mxu0 0.0
      %501 = vmatpush1.msra.mxu0 0.0
      %502 = vmatprep.subr.mxu0 0.0
      %503 = vmatpush1.msra.mxu0 0.0
      %504 = vmatprep.subr.mxu0 0.0
      %505 = vmatpush1.msra.mxu0 0.0
      %506 = vmatprep.subr.mxu0 0.0
      %507 = vmatpush1.msra.mxu0 0.0
      %508 = vmatprep.subr.mxu0 0.0
      %509 = vmatpush1.msra.mxu0 0.0
      %510 = vmatprep.subr.mxu0 0.0
      %511 = vmatpush1.msra.mxu0 0.0
      %512 = vmatprep.subr.mxu0 0.0
      %513 = vmatpush1.msra.mxu0 0.0
      %514 = vmatprep.subr.mxu0 0.0
      %515 = vmatpush1.msra.mxu0 0.0
      %516 = vmatprep.subr.mxu0 0.0
      %517 = vmatpush1.msra.mxu0 0.0
      %518 = vmatprep.subr.mxu0 0.0
      %519 = vmatpush1.msra.mxu0 0.0
      %520 = vmatprep.subr.mxu0 0.0
      %521 = vmatpush1.msra.mxu0 0.0
      %522 = vmatprep.subr.mxu0 0.0
      %523 = vmatpush1.msra.mxu0 0.0
      %524 = vmatprep.subr.mxu0 0.0
      %525 = vmatpush1.msra.mxu0 0.0
      %526 = vmatprep.subr.mxu0 0.0
      %527 = vmatpush1.msra.mxu0 0.0
      %528 = vmatprep.subr.mxu0 0.0
      %529 = vmatpush1.msra.mxu0 0.0
      %530 = vmatprep.subr.mxu0 0.0
      %531 = vmatpush1.msra.mxu0 0.0
      %532 = vmatprep.subr.mxu0 0.0
      %533 = vmatpush1.msra.mxu0 0.0
      %534 = vmatprep.mubr.f32.mxu0 0.0
      %535 = vmatmul.mubr.f32.gmra.mrb[0].mxu0 %v464
      %v536 = vpop.f32.mrb[0].mxu0
      %v537 = vadd.f32 0.0, %v536
      %v538 = vpop.f32.mrb[0].mxu0
      %539 = vdwg.mxu0
      %v540 = vlaneseq
      %v541 = vshrl.u32 %v540, 7
      %v542 = vsub.s32 0, %v541
      %v543 = vrot.slane %v537, %v542
      %v544 = vsub.f32 %v233, %v543
      %v545 = vsub.f32 %v234, %v543
      %v546 = vsub.f32 %v235, %v543
      %v547 = vsub.f32 %v236, %v543
      %v548 = vsub.f32 %v237, %v543
      %v549 = vsub.f32 %v238, %v543
      %v550 = vsub.f32 %v239, %v543
      %v551 = vsub.f32 %v240, %v543
      %v552 = vlaneseq
      %v553 = vshrl.u32 %v552, 7
      %v554 = vsub.s32 1, %v553
      %v555 = vrot.slane %v537, %v554
      %v556 = vmul.f32 %v544, %v555
      %v557 = vmul.f32 %v545, %v555
      %v558 = vmul.f32 %v546, %v555
      %v559 = vmul.f32 %v547, %v555
      %v560 = vmul.f32 %v548, %v555
      %v561 = vmul.f32 %v549, %v555
      %v562 = vmul.f32 %v550, %v555
      %v563 = vmul.f32 %v551, %v555
      %v564 = vld [vmem:[%s1] sm:$0x1]
      %v566 = vlaneseq
      %v567 = vshrl.u32 %v566, 7
      %v568 = vsub.s32 0, %v567
      %v569 = vrot.slane %v564, %v568
      %v571 = vmul.f32 %v556, %v569
      %v572 = vmul.f32 %v557, %v569
      %v573 = vmul.f32 %v558, %v569
      %v574 = vmul.f32 %v559, %v569
      %v575 = vmul.f32 %v560, %v569
      %v576 = vmul.f32 %v561, %v569
      %v577 = vmul.f32 %v562, %v569
      %v578 = vmul.f32 %v563, %v569
      %v579 = vld [vmem:[%s2] sm:$0x1]
      %v581 = vlaneseq
      %v582 = vshrl.u32 %v581, 7
      %v583 = vsub.s32 0, %v582
      %v584 = vrot.slane %v579, %v583
      %v586 = vadd.f32 %v571, %v584
      %v587 = vadd.f32 %v572, %v584
      %v588 = vadd.f32 %v573, %v584
      %v589 = vadd.f32 %v574, %v584
      %v590 = vadd.f32 %v575, %v584
      %v591 = vadd.f32 %v576, %v584
      %v592 = vadd.f32 %v577, %v584
      %v593 = vadd.f32 %v578, %v584
      %v594 = vxor.u32 %v586, 2147483648
      %v595 = vxor.u32 %v587, 2147483648
      %v596 = vxor.u32 %v588, 2147483648
      %v597 = vxor.u32 %v589, 2147483648
      %v598 = vxor.u32 %v590, 2147483648
      %v599 = vxor.u32 %v591, 2147483648
      %v600 = vxor.u32 %v592, 2147483648
      %v601 = vxor.u32 %v593, 2147483648
      %v602 = vmul.f32 %v594, 1.442695
      %v603 = vpow.pop %v602
      %v604 = vmul.f32 %v595, 1.442695
      %v605 = vpow.pop %v604
      %v606 = vmul.f32 %v596, 1.442695
      %v607 = vpow.pop %v606
      %v608 = vmul.f32 %v597, 1.442695
      %v609 = vpow.pop %v608
      %v610 = vmul.f32 %v598, 1.442695
      %v611 = vpow.pop %v610
      %v612 = vmul.f32 %v599, 1.442695
      %v613 = vpow.pop %v612
      %v614 = vmul.f32 %v600, 1.442695
      %v615 = vpow.pop %v614
      %v616 = vmul.f32 %v601, 1.442695
      %v617 = vpow.pop %v616
      %v618 = vadd.f32 %v603, 1.0
      %v619 = vadd.f32 %v605, 1.0
      %v620 = vadd.f32 %v607, 1.0
      %v621 = vadd.f32 %v609, 1.0
      %v622 = vadd.f32 %v611, 1.0
      %v623 = vadd.f32 %v613, 1.0
      %v624 = vadd.f32 %v615, 1.0
      %v625 = vadd.f32 %v617, 1.0
      %v626 = vrcp.pop %v618
      %v627 = vmul.f32 1.0, %v626
      %v628 = vrcp.pop %v619
      %v629 = vmul.f32 1.0, %v628
      %v630 = vrcp.pop %v620
      %v631 = vmul.f32 1.0, %v630
      %v632 = vrcp.pop %v621
      %v633 = vmul.f32 1.0, %v632
      %v634 = vrcp.pop %v622
      %v635 = vmul.f32 1.0, %v634
      %v636 = vrcp.pop %v623
      %v637 = vmul.f32 1.0, %v636
      %v638 = vrcp.pop %v624
      %v639 = vmul.f32 1.0, %v638
      %v640 = vrcp.pop %v625
      %v641 = vmul.f32 1.0, %v640
      %v642 = vmul.f32 %v586, %v627
      %v643 = vmul.f32 %v587, %v629
      %v644 = vmul.f32 %v588, %v631
      %v645 = vmul.f32 %v589, %v633
      %v646 = vmul.f32 %v590, %v635
      %v647 = vmul.f32 %v591, %v637
      %v648 = vmul.f32 %v592, %v639
      %v649 = vmul.f32 %v593, %v641
      %v650 = vpack.c.bf16 %v643, %v642
      %v651 = vpack.c.bf16 %v645, %v644
      %v652 = vpack.c.bf16 %v647, %v646
      %v653 = vpack.c.bf16 %v649, %v648
      %v658 = vunpack.c.l.b16 %v650
      %v659 = vunpack.c.h.b16 %v650
      %v660 = vunpack.c.l.b16 %v651
      %v661 = vunpack.c.h.b16 %v651
      %v662 = vunpack.c.l.b16 %v652
      %v663 = vunpack.c.h.b16 %v652
      %v664 = vunpack.c.l.b16 %v653
      %v665 = vunpack.c.h.b16 %v653
      %v666 = vpack.c.b16 %v658, %v658
      %v667 = vpack.c.b16 %v659, %v659
      %v668 = vpack.c.b16 %v660, %v660
      %v669 = vpack.c.b16 %v661, %v661
      %v670 = vpack.c.b16 %v662, %v662
      %v671 = vpack.c.b16 %v663, %v663
      %v672 = vpack.c.b16 %v664, %v664
      %v673 = vpack.c.b16 %v665, %v665
      %vm682 = vcmask 60416
      %683 = vst.msk [vmem:[%s224] sm:$0xf] %vm682, %v666
      %684 = vst.msk [vmem:[%s224 + $0x4] sm:$0xf] %vm682, %v667
      %685 = vst.msk [vmem:[%s224 + $0x8] sm:$0xf] %vm682, %v668
      %686 = vst.msk [vmem:[%s224 + $0xc] sm:$0xf] %vm682, %v669
      %687 = vst.msk [vmem:[%s224 + $0x10] sm:$0xf] %vm682, %v670
      %688 = vst.msk [vmem:[%s224 + $0x14] sm:$0xf] %vm682, %v671
      %689 = vst.msk [vmem:[%s224 + $0x18] sm:$0xf] %vm682, %v672
      %690 = vst.msk [vmem:[%s224 + $0x1c] sm:$0xf] %vm682, %v673
      %p691 = scmp.lt.s32.totalorder %s16, 1
      %s692 = scalar_select %p691, %s16, 1
      %s693 = smul.addr %s692, 8
      %s694 = smul.addr %s693, 4
      %s695 = scalar_lea.vmem %s5, %s694
      // Predicated region
      $region41: #{unet_decoder_block_forward.13} parent=39 // pred_check
        %p696 = pneg %p144
      $region42: #{unet_decoder_block_forward.13} parent=39 // pred_check_branch
        %698 = sbr.rel (%p696) target = $region44
      $region43: #{unet_decoder_block_forward.13} parent=39 // pred_region
        _
      $region44: #{unet_decoder_block_forward.13} parent=39 // pred_fallthru
        _
    $region40: #{unet_decoder_block_forward.13} parent=5 // pred_fallthru
      _
    %p699 = scmp.le.s32.totalorder 2, %s11
    // Predicated region
    $region45: #{unet_decoder_block_forward.13} parent=5 // pred_check
      %p700 = pneg %p699
    $region46: #{unet_decoder_block_forward.13} parent=5 // pred_check_branch
      %702 = sbr.rel (%p700) target = $region48
    $region47: #{unet_decoder_block_forward.13} parent=5 // pred_region
      %s703 = ssub.s32 %s11, 2
      // Predicated region
      $region49: #{unet_decoder_block_forward.13} parent=47 // pred_check
        %p704 = pneg %p150
      $region50: #{unet_decoder_block_forward.13} parent=47 // pred_check_branch
        %706 = sbr.rel (%p704) target = $region52
      $region51: #{unet_decoder_block_forward.13} parent=47 // pred_region
        %p707 = scmp.lt.s32.totalorder %s17, 1
        %s708 = scalar_select %p707, %s17, 1
        %s709 = smul.addr %s708, 8
        %s710 = smul.addr %s709, 4
        %s711 = scalar_lea.vmem %s5, %s710
      $region52: #{unet_decoder_block_forward.13} parent=47 // pred_fallthru
        _
    $region48: #{unet_decoder_block_forward.13} parent=5 // pred_fallthru
      _
  $region6: #{unet_decoder_block_forward.13} parent=0 // loop_footer
    %s15 = sadd.s32 1, %s11
  $region7: #{unet_decoder_block_forward.13} parent=0 // loop_footer_branch
    %10 = sbr.rel target = $region3
  $region8: #{unet_decoder_block_forward.13} parent=0 // loop_exit
    _

// kernel: unet_decoder_block_forward.11
$region0: #{unet_decoder_block_forward.11}
  #allocation0 [shape = 'u32[]', space=smem, size = 0x4, offset = 0x4, fixed_abs, tag = 'smem constant byte address 0x4 - core index']
  #allocation1 [shape = 'u32[144,128]{1,0:T(1,128)}', space=vmem, size = 0x12000, scoped, tag = 'internal scratch']
  %s0 = inlined_call_operand.vmem [shape: bf16[2,64,16], index: 0, kind: input, shape index: {}]
  %s1 = inlined_call_operand.vmem [shape: f32[1,16], index: 1, kind: input, shape index: {}]
  %s2 = inlined_call_operand.vmem [shape: f32[1,16], index: 2, kind: input, shape index: {}]
  %s3 = inlined_call_operand.vmem [shape: f32[32,8], index: 3, kind: input, shape index: {}]
  %s4 = inlined_call_operand.vmem [shape: f32[4,16], index: 4, kind: input, shape index: {}]
  %s5 = inlined_call_operand.vmem [shape: bf16[2,64,16], index: 5, kind: output, shape index: {}]
  %s6 = sld [smem:[#allocation0]]
  $region53: #{unet_decoder_block_forward.11} parent=0
    _
  %s8 = ssub.s32 1, %s6
  %s9 = scalar_select 0, %s8, %s6
  loop: start=0, step=1, limit=4
  $region2: #{unet_decoder_block_forward.11} parent=0 // loop_pre_header
    _
  $region3: #{unet_decoder_block_forward.11} parent=0 // loop_header
    %s11 = sphi 0, %s15
    %p12 = scmp.ge.s32.totalorder %s11, 4
    %s21 = sphi 0, %s23
    %s24 = sphi 0, %s21
    %s25 = sphi 0, %s24
    %s41 = sphi 0, %s25
    %s45 = sphi 0, %s45
    %s47 = sphi 0, %s45
    %s48 = sphi 0, %s47
    %s62 = sphi 0, %s48
    %s66 = sphi 0, %s66
    %s68 = sphi 0, %s66
    %s69 = sphi 0, %s68
    %s83 = sphi 0, %s69
    %s87 = sphi 0, %s87
    %s89 = sphi 0, %s87
    %s90 = sphi 0, %s89
    %s104 = sphi 0, %s90
    %s108 = sphi 0, %s108
    %s110 = sphi 0, %s108
    %s111 = sphi 0, %s110
    %s125 = sphi 0, %s111
    %s131 = sphi 0, %s133
    %s134 = sphi 0, %s131
    %s135 = sphi 0, %s134
    %s151 = sphi 0, %s135
  $region4: #{unet_decoder_block_forward.11} parent=0 // loop_header_branch
    %14 = sbr.rel (%p12) target = $region8
  $region5: #{unet_decoder_block_forward.11} parent=0 // loop_body
    %s16 = ssub.s32 %s11, 1
    %s17 = ssub.s32 %s11, 2
    %s18 = sadd.s32 %s11, 1
    %s19 = ssub.s32 %s11, %s18
    %p20 = scmp.eq.s32.totalorder %s19, 0
    %s22 = sadd.s32 %s21, 1
    %s23 = scalar_select %p20, %s21, %s22
    %p26 = pneg %p20
    %p27 = scmp.eq.s32.totalorder %s11, 1
    %p28 = por %p26, %p27
    %p29 = scmp.ne.s32.totalorder %s21, %s24
    %p30 = scmp.eq.s32.totalorder %s11, 0
    %p31 = por %p29, %p30
    %p32 = scmp.ne.s32.totalorder %s21, %s24
    %p33 = scmp.eq.s32.totalorder %s16, 1
    %p34 = por %p32, %p33
    %p35 = scmp.ne.s32.totalorder %s24, %s25
    %p36 = scmp.eq.s32.totalorder %s16, 0
    %p37 = por %p35, %p36
    %p38 = scmp.ne.s32.totalorder %s24, %s25
    %p39 = scmp.eq.s32.totalorder %s17, 1
    %p40 = por %p38, %p39
    %p42 = scmp.ne.s32.totalorder %s25, %s41
    %p43 = scmp.eq.s32.totalorder %s17, 0
    %p44 = por %p42, %p43
    %s46 = sadd.s32 %s45, 1
    %p49 = scmp.eq.s32.totalorder %s11, 1
    %p50 = scmp.ne.s32.totalorder %s45, %s47
    %p51 = scmp.eq.s32.totalorder %s11, 0
    %p52 = por %p50, %p51
    %p53 = scmp.ne.s32.totalorder %s45, %s47
    %p54 = scmp.eq.s32.totalorder %s16, 1
    %p55 = por %p53, %p54
    %p56 = scmp.ne.s32.totalorder %s47, %s48
    %p57 = scmp.eq.s32.totalorder %s16, 0
    %p58 = por %p56, %p57
    %p59 = scmp.ne.s32.totalorder %s47, %s48
    %p60 = scmp.eq.s32.totalorder %s17, 1
    %p61 = por %p59, %p60
    %p63 = scmp.ne.s32.totalorder %s48, %s62
    %p64 = scmp.eq.s32.totalorder %s17, 0
    %p65 = por %p63, %p64
    %s67 = sadd.s32 %s66, 1
    %p70 = scmp.eq.s32.totalorder %s11, 1
    %p71 = scmp.ne.s32.totalorder %s66, %s68
    %p72 = scmp.eq.s32.totalorder %s11, 0
    %p73 = por %p71, %p72
    %p74 = scmp.ne.s32.totalorder %s66, %s68
    %p75 = scmp.eq.s32.totalorder %s16, 1
    %p76 = por %p74, %p75
    %p77 = scmp.ne.s32.totalorder %s68, %s69
    %p78 = scmp.eq.s32.totalorder %s16, 0
    %p79 = por %p77, %p78
    %p80 = scmp.ne.s32.totalorder %s68, %s69
    %p81 = scmp.eq.s32.totalorder %s17, 1
    %p82 = por %p80, %p81
    %p84 = scmp.ne.s32.totalorder %s69, %s83
    %p85 = scmp.eq.s32.totalorder %s17, 0
    %p86 = por %p84, %p85
    %s88 = sadd.s32 %s87, 1
    %p91 = scmp.eq.s32.totalorder %s11, 1
    %p92 = scmp.ne.s32.totalorder %s87, %s89
    %p93 = scmp.eq.s32.totalorder %s11, 0
    %p94 = por %p92, %p93
    %p95 = scmp.ne.s32.totalorder %s87, %s89
    %p96 = scmp.eq.s32.totalorder %s16, 1
    %p97 = por %p95, %p96
    %p98 = scmp.ne.s32.totalorder %s89, %s90
    %p99 = scmp.eq.s32.totalorder %s16, 0
    %p100 = por %p98, %p99
    %p101 = scmp.ne.s32.totalorder %s89, %s90
    %p102 = scmp.eq.s32.totalorder %s17, 1
    %p103 = por %p101, %p102
    %p105 = scmp.ne.s32.totalorder %s90, %s104
    %p106 = scmp.eq.s32.totalorder %s17, 0
    %p107 = por %p105, %p106
    %s109 = sadd.s32 %s108, 1
    %p112 = scmp.eq.s32.totalorder %s11, 1
    %p113 = scmp.ne.s32.totalorder %s108, %s110
    %p114 = scmp.eq.s32.totalorder %s11, 0
    %p115 = por %p113, %p114
    %p116 = scmp.ne.s32.totalorder %s108, %s110
    %p117 = scmp.eq.s32.totalorder %s16, 1
    %p118 = por %p116, %p117
    %p119 = scmp.ne.s32.totalorder %s110, %s111
    %p120 = scmp.eq.s32.totalorder %s16, 0
    %p121 = por %p119, %p120
    %p122 = scmp.ne.s32.totalorder %s110, %s111
    %p123 = scmp.eq.s32.totalorder %s17, 1
    %p124 = por %p122, %p123
    %p126 = scmp.ne.s32.totalorder %s111, %s125
    %p127 = scmp.eq.s32.totalorder %s17, 0
    %p128 = por %p126, %p127
    %s129 = ssub.s32 %s11, %s18
    %p130 = scmp.eq.s32.totalorder %s129, 0
    %s132 = sadd.s32 %s131, 1
    %s133 = scalar_select %p130, %s131, %s132
    %p136 = pneg %p130
    %p137 = scmp.eq.s32.totalorder %s11, 1
    %p138 = por %p136, %p137
    %p139 = scmp.ne.s32.totalorder %s131, %s134
    %p140 = scmp.eq.s32.totalorder %s11, 0
    %p141 = por %p139, %p140
    %p142 = scmp.ne.s32.totalorder %s131, %s134
    %p143 = scmp.eq.s32.totalorder %s16, 1
    %p144 = por %p142, %p143
    %p145 = scmp.ne.s32.totalorder %s134, %s135
    %p146 = scmp.eq.s32.totalorder %s16, 0
    %p147 = por %p145, %p146
    %p148 = scmp.ne.s32.totalorder %s134, %s135
    %p149 = scmp.eq.s32.totalorder %s17, 1
    %p150 = por %p148, %p149
    %p152 = scmp.ne.s32.totalorder %s135, %s151
    %p153 = scmp.eq.s32.totalorder %s17, 0
    %p154 = por %p152, %p153
    %p155 = scmp.le.s32.totalorder 1, %s11
    %p156 = scmp.lt.s32.totalorder %s11, 3
    %p157 = pnand %p155, %p156
    %p158 = pneg %p157
    // Predicated region
    $region9: #{unet_decoder_block_forward.11} parent=5 // pred_check
      _
    $region10: #{unet_decoder_block_forward.11} parent=5 // pred_check_branch
      %160 = sbr.rel (%p157) target = $region12
    $region11: #{unet_decoder_block_forward.11} parent=5 // pred_region
      %s161 = ssub.s32 %s11, 1
      // Predicated region
      $region13: #{unet_decoder_block_forward.11} parent=11 // pred_check
        %p162 = pneg %p58
      $region14: #{unet_decoder_block_forward.11} parent=11 // pred_check_branch
        %164 = sbr.rel (%p162) target = $region16
      $region15: #{unet_decoder_block_forward.11} parent=11 // pred_region
        _
      $region16: #{unet_decoder_block_forward.11} parent=11 // pred_fallthru
        _
      // Predicated region
      $region17: #{unet_decoder_block_forward.11} parent=11 // pred_check
        %p165 = pneg %p79
      $region18: #{unet_decoder_block_forward.11} parent=11 // pred_check_branch
        %167 = sbr.rel (%p165) target = $region20
      $region19: #{unet_decoder_block_forward.11} parent=11 // pred_region
        _
      $region20: #{unet_decoder_block_forward.11} parent=11 // pred_fallthru
        _
      // Predicated region
      $region21: #{unet_decoder_block_forward.11} parent=11 // pred_check
        %p168 = pneg %p100
      $region22: #{unet_decoder_block_forward.11} parent=11 // pred_check_branch
        %170 = sbr.rel (%p168) target = $region24
      $region23: #{unet_decoder_block_forward.11} parent=11 // pred_region
        _
      $region24: #{unet_decoder_block_forward.11} parent=11 // pred_fallthru
        _
      // Predicated region
      $region25: #{unet_decoder_block_forward.11} parent=11 // pred_check
        %p171 = pneg %p121
      $region26: #{unet_decoder_block_forward.11} parent=11 // pred_check_branch
        %173 = sbr.rel (%p171) target = $region28
      $region27: #{unet_decoder_block_forward.11} parent=11 // pred_region
        _
      $region28: #{unet_decoder_block_forward.11} parent=11 // pred_fallthru
        _
    $region12: #{unet_decoder_block_forward.11} parent=5 // pred_fallthru
      _
    %p174 = scmp.lt.s32.totalorder %s11, 2
    // Predicated region
    $region29: #{unet_decoder_block_forward.11} parent=5 // pred_check
      %p175 = pneg %p174
    $region30: #{unet_decoder_block_forward.11} parent=5 // pred_check_branch
      %177 = sbr.rel (%p175) target = $region32
    $region31: #{unet_decoder_block_forward.11} parent=5 // pred_region
      // Predicated region
      $region33: #{unet_decoder_block_forward.11} parent=31 // pred_check
        %p178 = pneg %p31
      $region34: #{unet_decoder_block_forward.11} parent=31 // pred_check_branch
        %180 = sbr.rel (%p178) target = $region36
      $region35: #{unet_decoder_block_forward.11} parent=31 // pred_region
        %p181 = scmp.lt.s32.totalorder %s11, 1
        %s182 = scalar_select %p181, %s11, 1
        %s183 = smul.addr %s182, 8
        %s184 = smul.addr %s183, 4
        %s185 = scalar_lea.vmem %s0, %s184
      $region36: #{unet_decoder_block_forward.11} parent=31 // pred_fallthru
        _
    $region32: #{unet_decoder_block_forward.11} parent=5 // pred_fallthru
      _
    %p186 = scmp.le.s32.totalorder 1, %s11
    %p187 = scmp.lt.s32.totalorder %s11, 3
    %p188 = pnand %p186, %p187
    %p189 = pneg %p188
    // Predicated region
    $region37: #{unet_decoder_block_forward.11} parent=5 // pred_check
      _
    $region38: #{unet_decoder_block_forward.11} parent=5 // pred_check_branch
      %191 = sbr.rel (%p188) target = $region40
    $region39: #{unet_decoder_block_forward.11} parent=5 // pred_region
      %s192 = ssub.s32 %s11, 1
      %p193 = scmp.lt.s32.totalorder %s16, 1
      %s194 = scalar_select %p193, %s16, 1
      %s195 = smul.addr %s194, 8
      %s196 = smul.addr %s195, 4
      %s197 = scalar_lea.vmem %s0, %s196
      %p198 = pneg %p37
      %p199 = pneg %p34
      %p200 = pneg %p58
      %p201 = pneg %p55
      %p202 = pneg %p79
      %p203 = pneg %p76
      %p204 = pneg %p100
      %p205 = pneg %p97
      %p206 = pneg %p121
      %p207 = pneg %p118
      %p208 = pneg %p147
      %p209 = pneg %p144
      %p210 = scmp.lt.s32.totalorder %s16, 1
      %s211 = scalar_select %p210, %s16, 1
      %s212 = smul.addr %s211, 8
      %s213 = smul.addr %s212, 4
      %s214 = scalar_lea.vmem %s5, %s213
      %p215 = scmp.lt.s32.totalorder %s16, 1
      %s216 = scalar_select %p215, %s16, 1
      %s217 = smul.addr %s216, 8
      %s218 = smul.addr %s217, 4
      %s219 = scalar_lea.vmem %s0, %s218
      %p220 = scmp.lt.s32.totalorder %s16, 1
      %s221 = scalar_select %p220, %s16, 1
      %s222 = smul.addr %s221, 8
      %s223 = smul.addr %s222, 4
      %s224 = scalar_lea.vmem %s5, %s223
      %v225 = vld [vmem:[%s219] sm:$0xf]
      %v226 = vld [vmem:[%s219 + $0x4] sm:$0xf]
      %v227 = vld [vmem:[%s219 + $0x8] sm:$0xf]
      %v228 = vld [vmem:[%s219 + $0xc] sm:$0xf]
      %v229 = vld [vmem:[%s219 + $0x10] sm:$0xf]
      %v230 = vld [vmem:[%s219 + $0x14] sm:$0xf]
      %v231 = vld [vmem:[%s219 + $0x18] sm:$0xf]
      %v232 = vld [vmem:[%s219 + $0x1c] sm:$0xf]
      %v233 = vunpack.c.l.bf16 %v225
      %v234 = vunpack.c.l.bf16 %v226
      %v235 = vunpack.c.l.bf16 %v227
      %v236 = vunpack.c.l.bf16 %v228
      %v237 = vunpack.c.l.bf16 %v229
      %v238 = vunpack.c.l.bf16 %v230
      %v239 = vunpack.c.l.bf16 %v231
      %v240 = vunpack.c.l.bf16 %v232
      %v241 = vmul.f32 %v233, %v233
      %v242 = vmul.f32 %v234, %v234
      %v243 = vmul.f32 %v235, %v235
      %v244 = vmul.f32 %v236, %v236
      %v245 = vmul.f32 %v237, %v237
      %v246 = vmul.f32 %v238, %v238
      %v247 = vmul.f32 %v239, %v239
      %v248 = vmul.f32 %v240, %v240
      %257 = vrot.lane.b32.xlu0 %v241, 16
      %v258 = vpop.permute.xlu0 %257
      %259 = vrot.lane.b32.xlu0 %v242, 16
      %v260 = vpop.permute.xlu0 %259
      %261 = vrot.lane.b32.xlu0 %v243, 16
      %v262 = vpop.permute.xlu0 %261
      %263 = vrot.lane.b32.xlu0 %v244, 16
      %v264 = vpop.permute.xlu0 %263
      %265 = vrot.lane.b32.xlu0 %v245, 16
      %v266 = vpop.permute.xlu0 %265
      %267 = vrot.lane.b32.xlu0 %v246, 16
      %v268 = vpop.permute.xlu0 %267
      %269 = vrot.lane.b32.xlu0 %v247, 16
      %v270 = vpop.permute.xlu0 %269
      %271 = vrot.lane.b32.xlu0 %v248, 16
      %v272 = vpop.permute.xlu0 %271
      %vm281 = vcmask 130048
      %v282 = vsel %vm281, %v233, %v258
      %v283 = vsel %vm281, %v234, %v260
      %v284 = vsel %vm281, %v235, %v262
      %v285 = vsel %vm281, %v236, %v264
      %v286 = vsel %vm281, %v237, %v266
      %v287 = vsel %vm281, %v238, %v268
      %v288 = vsel %vm281, %v239, %v270
      %v289 = vsel %vm281, %v240, %v272
      %v290 = vld [vmem:[%s3] sm:$0xff]
      %v291 = vld [vmem:[%s3 + $0x8] sm:$0xff]
      %v292 = vld [vmem:[%s3 + $0x10] sm:$0xff]
      %v293 = vld [vmem:[%s3 + $0x18] sm:$0xff]
      %vm294 = vcmask 261120
      %v296 = vsel %vm294, %v282, 0
      %v299 = vsel %vm294, %v283, 0
      %v302 = vsel %vm294, %v284, 0
      %v305 = vsel %vm294, %v285, 0
      %v308 = vsel %vm294, %v286, 0
      %v311 = vsel %vm294, %v287, 0
      %v314 = vsel %vm294, %v288, 0
      %v317 = vsel %vm294, %v289, 0
      %319 = vmatprep.subr.mxu0 0.0
      %320 = vmatpush1.msra.mxu0 %v290
      %321 = vmatprep.subr.mxu0 0.0
      %322 = vmatpush1.msra.mxu0 %v291
      %323 = vmatprep.subr.mxu0 0.0
      %324 = vmatpush1.msra.mxu0 %v292
      %325 = vmatprep.subr.mxu0 0.0
      %326 = vmatpush1.msra.mxu0 %v293
      %327 = vmatprep.subr.mxu0 0.0
      %328 = vmatpush1.msra.mxu0 0.0
      %329 = vmatprep.subr.mxu0 0.0
      %330 = vmatpush1.msra.mxu0 0.0
      %331 = vmatprep.subr.mxu0 0.0
      %332 = vmatpush1.msra.mxu0 0.0
      %333 = vmatprep.subr.mxu0 0.0
      %334 = vmatpush1.msra.mxu0 0.0
      %335 = vmatprep.subr.mxu0 0.0
      %336 = vmatpush1.msra.mxu0 0.0
      %337 = vmatprep.subr.mxu0 0.0
      %338 = vmatpush1.msra.mxu0 0.0
      %339 = vmatprep.subr.mxu0 0.0
      %340 = vmatpush1.msra.mxu0 0.0
      %341 = vmatprep.subr.mxu0 0.0
      %342 = vmatpush1.msra.mxu0 0.0
      %343 = vmatprep.subr.mxu0 0.0
      %344 = vmatpush1.msra.mxu0 0.0
      %345 = vmatprep.subr.mxu0 0.0
      %346 = vmatpush1.msra.mxu0 0.0
      %347 = vmatprep.subr.mxu0 0.0
      %348 = vmatpush1.msra.mxu0 0.0
      %349 = vmatprep.subr.mxu0 0.0
      %350 = vmatpush1.msra.mxu0 0.0
      %351 = vmatprep.subr.mxu0 0.0
      %352 = vmatpush1.msra.mxu0 0.0
      %353 = vmatprep.subr.mxu0 0.0
      %354 = vmatpush1.msra.mxu0 0.0
      %355 = vmatprep.subr.mxu0 0.0
      %356 = vmatpush1.msra.mxu0 0.0
      %357 = vmatprep.subr.mxu0 0.0
      %358 = vmatpush1.msra.mxu0 0.0
      %359 = vmatprep.subr.mxu0 0.0
      %360 = vmatpush1.msra.mxu0 0.0
      %361 = vmatprep.subr.mxu0 0.0
      %362 = vmatpush1.msra.mxu0 0.0
      %363 = vmatprep.subr.mxu0 0.0
      %364 = vmatpush1.msra.mxu0 0.0
      %365 = vmatprep.subr.mxu0 0.0
      %366 = vmatpush1.msra.mxu0 0.0
      %367 = vmatprep.subr.mxu0 0.0
      %368 = vmatpush1.msra.mxu0 0.0
      %369 = vmatprep.subr.mxu0 0.0
      %370 = vmatpush1.msra.mxu0 0.0
      %371 = vmatprep.subr.mxu0 0.0
      %372 = vmatpush1.msra.mxu0 0.0
      %373 = vmatprep.subr.mxu0 0.0
      %374 = vmatpush1.msra.mxu0 0.0
      %375 = vmatprep.subr.mxu0 0.0
      %376 = vmatpush1.msra.mxu0 0.0
      %377 = vmatprep.subr.mxu0 0.0
      %378 = vmatpush1.msra.mxu0 0.0
      %379 = vmatprep.subr.mxu0 0.0
      %380 = vmatpush1.msra.mxu0 0.0
      %381 = vmatprep.subr.mxu0 0.0
      %382 = vmatpush1.msra.mxu0 0.0
      %383 = vmatprep.mubr.f32.mxu0 0.0
      %384 = vmatmul.mubr.f32.gmra.mrb[0].mxu0 %v296
      %v385 = vpop.f32.mrb[0].mxu0
      %v386 = vadd.f32 0.0, %v385
      %v387 = vpop.f32.mrb[0].mxu0
      %388 = vmatprep.mubr.f32.mxu0 0.0
      %389 = vmatmul.mubr.f32.gmra.mrb[0].mxu0 %v299
      %v390 = vpop.f32.mrb[0].mxu0
      %v391 = vadd.f32 0.0, %v390
      %v392 = vpop.f32.mrb[0].mxu0
      %393 = vmatprep.mubr.f32.mxu0 0.0
      %394 = vmatmul.mubr.f32.gmra.mrb[0].mxu0 %v302
      %v395 = vpop.f32.mrb[0].mxu0
      %v396 = vadd.f32 0.0, %v395
      %v397 = vpop.f32.mrb[0].mxu0
      %398 = vmatprep.mubr.f32.mxu0 0.0
      %399 = vmatmul.mubr.f32.gmra.mrb[0].mxu0 %v305
      %v400 = vpop.f32.mrb[0].mxu0
      %v401 = vadd.f32 0.0, %v400
      %v402 = vpop.f32.mrb[0].mxu0
      %403 = vmatprep.mubr.f32.mxu0 0.0
      %404 = vmatmul.mubr.f32.gmra.mrb[0].mxu0 %v308
      %v405 = vpop.f32.mrb[0].mxu0
      %v406 = vadd.f32 0.0, %v405
      %v407 = vpop.f32.mrb[0].mxu0
      %408 = vmatprep.mubr.f32.mxu0 0.0
      %409 = vmatmul.mubr.f32.gmra.mrb[0].mxu0 %v311
      %v410 = vpop.f32.mrb[0].mxu0
      %v411 = vadd.f32 0.0, %v410
      %v412 = vpop.f32.mrb[0].mxu0
      %413 = vmatprep.mubr.f32.mxu0 0.0
      %414 = vmatmul.mubr.f32.gmra.mrb[0].mxu0 %v314
      %v415 = vpop.f32.mrb[0].mxu0
      %v416 = vadd.f32 0.0, %v415
      %v417 = vpop.f32.mrb[0].mxu0
      %418 = vmatprep.mubr.f32.mxu0 0.0
      %419 = vmatmul.mubr.f32.gmra.mrb[0].mxu0 %v317
      %v420 = vpop.f32.mrb[0].mxu0
      %v421 = vadd.f32 0.0, %v420
      %v422 = vpop.f32.mrb[0].mxu0
      %423 = vdwg.mxu0
      %vm424 = vcmask 64512
      %v425 = vsel %vm424, %v386, 0.0
      %v426 = vsel %vm424, %v391, 0.0
      %v427 = vadd.f32 %v425, %v426
      %v428 = vsel %vm424, %v396, 0.0
      %v429 = vadd.f32 %v427, %v428
      %v430 = vsel %vm424, %v401, 0.0
      %v431 = vadd.f32 %v429, %v430
      %v432 = vsel %vm424, %v406, 0.0
      %v433 = vadd.f32 %v431, %v432
      %v434 = vsel %vm424, %v411, 0.0
      %v435 = vadd.f32 %v433, %v434
      %v436 = vsel %vm424, %v416, 0.0
      %v437 = vadd.f32 %v435, %v436
      %v438 = vsel %vm424, %v421, 0.0
      %v439 = vadd.f32 %v437, %v438
      %v440 = vrot.slane %v439, 4
      %v441 = vadd.f32 %v439, %v440
      %v442 = vrot.slane %v441, 2
      %v443 = vadd.f32 %v441, %v442
      %v444 = vrot.slane %v443, 1
      %v445 = vadd.f32 %v443, %v444
      %v446 = vrcp.pop 256.0
      %v447 = vmul.f32 %v445, %v446
      %v448 = vmul.f32 %v447, %v447
      %450 = vrot.lane.b32.xlu0 %v448, 4
      %v451 = vpop.permute.xlu0 %450
      %v453 = vsub.f32 %v447, %v451
      %v454 = vmax.f32 %v453, 0.0
      %v455 = vadd.f32 %v454, 1e-05
      %v456 = vrsqrt.pop %v455
      %v458 = vrot.slane %v456, 7
      %459 = vrot.lane.b32.xlu0 %v458, 124
      %v460 = vpop.permute.xlu0 %459
      %vm462 = vcmask 1040384
      %v463 = vsel %vm462, %v447, %v460
      %v464 = vld [vmem:[%s4] sm:$0xf]
      %vm465 = vcmask 31744
      %v467 = vsel %vm465, %v463, 0
      %vm469 = vcmask 1043456
      %v471 = vsel %vm469, %v464, 0
      %473 = vmatprep.subr.mxu0 0.0
      %474 = vmatpush1.msra.mxu0 %v471
      %475 = vmatprep.subr.mxu0 0.0
      %476 = vmatpush1.msra.mxu0 0.0
      %477 = vmatprep.subr.mxu0 0.0
      %478 = vmatpush1.msra.mxu0 0.0
      %479 = vmatprep.subr.mxu0 0.0
      %480 = vmatpush1.msra.mxu0 0.0
      %481 = vmatprep.subr.mxu0 0.0
      %482 = vmatpush1.msra.mxu0 0.0
      %483 = vmatprep.subr.mxu0 0.0
      %484 = vmatpush1.msra.mxu0 0.0
      %485 = vmatprep.subr.mxu0 0.0
      %486 = vmatpush1.msra.mxu0 0.0
      %487 = vmatprep.subr.mxu0 0.0
      %488 = vmatpush1.msra.mxu0 0.0
      %489 = vmatprep.subr.mxu0 0.0
      %490 = vmatpush1.msra.mxu0 0.0
      %491 = vmatprep.subr.mxu0 0.0
      %492 = vmatpush1.msra.mxu0 0.0
      %493 = vmatprep.subr.mxu0 0.0
      %494 = vmatpush1.msra.mxu0 0.0
      %495 = vmatprep.subr.mxu0 0.0
      %496 = vmatpush1.msra.mxu0 0.0
      %497 = vmatprep.subr.mxu0 0.0
      %498 = vmatpush1.msra.mxu0 0.0
      %499 = vmatprep.subr.mxu0 0.0
      %500 = vmatpush1.msra.mxu0 0.0
      %501 = vmatprep.subr.mxu0 0.0
      %502 = vmatpush1.msra.mxu0 0.0
      %503 = vmatprep.subr.mxu0 0.0
      %504 = vmatpush1.msra.mxu0 0.0
      %505 = vmatprep.subr.mxu0 0.0
      %506 = vmatpush1.msra.mxu0 0.0
      %507 = vmatprep.subr.mxu0 0.0
      %508 = vmatpush1.msra.mxu0 0.0
      %509 = vmatprep.subr.mxu0 0.0
      %510 = vmatpush1.msra.mxu0 0.0
      %511 = vmatprep.subr.mxu0 0.0
      %512 = vmatpush1.msra.mxu0 0.0
      %513 = vmatprep.subr.mxu0 0.0
      %514 = vmatpush1.msra.mxu0 0.0
      %515 = vmatprep.subr.mxu0 0.0
      %516 = vmatpush1.msra.mxu0 0.0
      %517 = vmatprep.subr.mxu0 0.0
      %518 = vmatpush1.msra.mxu0 0.0
      %519 = vmatprep.subr.mxu0 0.0
      %520 = vmatpush1.msra.mxu0 0.0
      %521 = vmatprep.subr.mxu0 0.0
      %522 = vmatpush1.msra.mxu0 0.0
      %523 = vmatprep.subr.mxu0 0.0
      %524 = vmatpush1.msra.mxu0 0.0
      %525 = vmatprep.subr.mxu0 0.0
      %526 = vmatpush1.msra.mxu0 0.0
      %527 = vmatprep.subr.mxu0 0.0
      %528 = vmatpush1.msra.mxu0 0.0
      %529 = vmatprep.subr.mxu0 0.0
      %530 = vmatpush1.msra.mxu0 0.0
      %531 = vmatprep.subr.mxu0 0.0
      %532 = vmatpush1.msra.mxu0 0.0
      %533 = vmatprep.subr.mxu0 0.0
      %534 = vmatpush1.msra.mxu0 0.0
      %535 = vmatprep.subr.mxu0 0.0
      %536 = vmatpush1.msra.mxu0 0.0
      %537 = vmatprep.mubr.f32.mxu0 0.0
      %538 = vmatmul.mubr.f32.gmra.mrb[0].mxu0 %v467
      %v539 = vpop.f32.mrb[0].mxu0
      %v540 = vadd.f32 0.0, %v539
      %v541 = vpop.f32.mrb[0].mxu0
      %542 = vdwg.mxu0
      %v543 = vlaneseq
      %v544 = vshrl.u32 %v543, 7
      %v545 = vsub.s32 0, %v544
      %v546 = vrot.slane %v540, %v545
      %v547 = vsub.f32 %v233, %v546
      %v548 = vsub.f32 %v234, %v546
      %v549 = vsub.f32 %v235, %v546
      %v550 = vsub.f32 %v236, %v546
      %v551 = vsub.f32 %v237, %v546
      %v552 = vsub.f32 %v238, %v546
      %v553 = vsub.f32 %v239, %v546
      %v554 = vsub.f32 %v240, %v546
      %v555 = vlaneseq
      %v556 = vshrl.u32 %v555, 7
      %v557 = vsub.s32 1, %v556
      %v558 = vrot.slane %v540, %v557
      %v559 = vmul.f32 %v547, %v558
      %v560 = vmul.f32 %v548, %v558
      %v561 = vmul.f32 %v549, %v558
      %v562 = vmul.f32 %v550, %v558
      %v563 = vmul.f32 %v551, %v558
      %v564 = vmul.f32 %v552, %v558
      %v565 = vmul.f32 %v553, %v558
      %v566 = vmul.f32 %v554, %v558
      %v567 = vld [vmem:[%s1] sm:$0x1]
      %v569 = vlaneseq
      %v570 = vshrl.u32 %v569, 7
      %v571 = vsub.s32 0, %v570
      %v572 = vrot.slane %v567, %v571
      %v574 = vmul.f32 %v559, %v572
      %v575 = vmul.f32 %v560, %v572
      %v576 = vmul.f32 %v561, %v572
      %v577 = vmul.f32 %v562, %v572
      %v578 = vmul.f32 %v563, %v572
      %v579 = vmul.f32 %v564, %v572
      %v580 = vmul.f32 %v565, %v572
      %v581 = vmul.f32 %v566, %v572
      %v582 = vld [vmem:[%s2] sm:$0x1]
      %v584 = vlaneseq
      %v585 = vshrl.u32 %v584, 7
      %v586 = vsub.s32 0, %v585
      %v587 = vrot.slane %v582, %v586
      %v589 = vadd.f32 %v574, %v587
      %v590 = vadd.f32 %v575, %v587
      %v591 = vadd.f32 %v576, %v587
      %v592 = vadd.f32 %v577, %v587
      %v593 = vadd.f32 %v578, %v587
      %v594 = vadd.f32 %v579, %v587
      %v595 = vadd.f32 %v580, %v587
      %v596 = vadd.f32 %v581, %v587
      %v597 = vxor.u32 %v589, 2147483648
      %v598 = vxor.u32 %v590, 2147483648
      %v599 = vxor.u32 %v591, 2147483648
      %v600 = vxor.u32 %v592, 2147483648
      %v601 = vxor.u32 %v593, 2147483648
      %v602 = vxor.u32 %v594, 2147483648
      %v603 = vxor.u32 %v595, 2147483648
      %v604 = vxor.u32 %v596, 2147483648
      %v605 = vmul.f32 %v597, 1.442695
      %v606 = vpow.pop %v605
      %v607 = vmul.f32 %v598, 1.442695
      %v608 = vpow.pop %v607
      %v609 = vmul.f32 %v599, 1.442695
      %v610 = vpow.pop %v609
      %v611 = vmul.f32 %v600, 1.442695
      %v612 = vpow.pop %v611
      %v613 = vmul.f32 %v601, 1.442695
      %v614 = vpow.pop %v613
      %v615 = vmul.f32 %v602, 1.442695
      %v616 = vpow.pop %v615
      %v617 = vmul.f32 %v603, 1.442695
      %v618 = vpow.pop %v617
      %v619 = vmul.f32 %v604, 1.442695
      %v620 = vpow.pop %v619
      %v621 = vadd.f32 %v606, 1.0
      %v622 = vadd.f32 %v608, 1.0
      %v623 = vadd.f32 %v610, 1.0
      %v624 = vadd.f32 %v612, 1.0
      %v625 = vadd.f32 %v614, 1.0
      %v626 = vadd.f32 %v616, 1.0
      %v627 = vadd.f32 %v618, 1.0
      %v628 = vadd.f32 %v620, 1.0
      %v629 = vrcp.pop %v621
      %v630 = vmul.f32 1.0, %v629
      %v631 = vrcp.pop %v622
      %v632 = vmul.f32 1.0, %v631
      %v633 = vrcp.pop %v623
      %v634 = vmul.f32 1.0, %v633
      %v635 = vrcp.pop %v624
      %v636 = vmul.f32 1.0, %v635
      %v637 = vrcp.pop %v625
      %v638 = vmul.f32 1.0, %v637
      %v639 = vrcp.pop %v626
      %v640 = vmul.f32 1.0, %v639
      %v641 = vrcp.pop %v627
      %v642 = vmul.f32 1.0, %v641
      %v643 = vrcp.pop %v628
      %v644 = vmul.f32 1.0, %v643
      %v645 = vmul.f32 %v589, %v630
      %v646 = vmul.f32 %v590, %v632
      %v647 = vmul.f32 %v591, %v634
      %v648 = vmul.f32 %v592, %v636
      %v649 = vmul.f32 %v593, %v638
      %v650 = vmul.f32 %v594, %v640
      %v651 = vmul.f32 %v595, %v642
      %v652 = vmul.f32 %v596, %v644
      %v653 = vpack.c.bf16 %v646, %v645
      %v654 = vpack.c.bf16 %v648, %v647
      %v655 = vpack.c.bf16 %v650, %v649
      %v656 = vpack.c.bf16 %v652, %v651
      %v661 = vunpack.c.l.b16 %v653
      %v662 = vunpack.c.h.b16 %v653
      %v663 = vunpack.c.l.b16 %v654
      %v664 = vunpack.c.h.b16 %v654
      %v665 = vunpack.c.l.b16 %v655
      %v666 = vunpack.c.h.b16 %v655
      %v667 = vunpack.c.l.b16 %v656
      %v668 = vunpack.c.h.b16 %v656
      %v669 = vpack.c.b16 %v661, %v661
      %v670 = vpack.c.b16 %v662, %v662
      %v671 = vpack.c.b16 %v663, %v663
      %v672 = vpack.c.b16 %v664, %v664
      %v673 = vpack.c.b16 %v665, %v665
      %v674 = vpack.c.b16 %v666, %v666
      %v675 = vpack.c.b16 %v667, %v667
      %v676 = vpack.c.b16 %v668, %v668
      %vm685 = vcmask 125952
      %686 = vst.msk [vmem:[%s224] sm:$0xf] %vm685, %v669
      %687 = vst.msk [vmem:[%s224 + $0x4] sm:$0xf] %vm685, %v670
      %688 = vst.msk [vmem:[%s224 + $0x8] sm:$0xf] %vm685, %v671
      %689 = vst.msk [vmem:[%s224 + $0xc] sm:$0xf] %vm685, %v672
      %690 = vst.msk [vmem:[%s224 + $0x10] sm:$0xf] %vm685, %v673
      %691 = vst.msk [vmem:[%s224 + $0x14] sm:$0xf] %vm685, %v674
      %692 = vst.msk [vmem:[%s224 + $0x18] sm:$0xf] %vm685, %v675
      %693 = vst.msk [vmem:[%s224 + $0x1c] sm:$0xf] %vm685, %v676
      %p694 = scmp.lt.s32.totalorder %s16, 1
      %s695 = scalar_select %p694, %s16, 1
      %s696 = smul.addr %s695, 8
      %s697 = smul.addr %s696, 4
      %s698 = scalar_lea.vmem %s5, %s697
      // Predicated region
      $region41: #{unet_decoder_block_forward.11} parent=39 // pred_check
        %p699 = pneg %p144
      $region42: #{unet_decoder_block_forward.11} parent=39 // pred_check_branch
        %701 = sbr.rel (%p699) target = $region44
      $region43: #{unet_decoder_block_forward.11} parent=39 // pred_region
        _
      $region44: #{unet_decoder_block_forward.11} parent=39 // pred_fallthru
        _
    $region40: #{unet_decoder_block_forward.11} parent=5 // pred_fallthru
      _
    %p702 = scmp.le.s32.totalorder 2, %s11
    // Predicated region
    $region45: #{unet_decoder_block_forward.11} parent=5 // pred_check
      %p703 = pneg %p702
    $region46: #{unet_decoder_block_forward.11} parent=5 // pred_check_branch
      %705 = sbr.rel (%p703) target = $region48
    $region47: #{unet_decoder_block_forward.11} parent=5 // pred_region
      %s706 = ssub.s32 %s11, 2
      // Predicated region
      $region49: #{unet_decoder_block_forward.11} parent=47 // pred_check
        %p707 = pneg %p150
      $region50: #{unet_decoder_block_forward.11} parent=47 // pred_check_branch
        %709 = sbr.rel (%p707) target = $region52
      $region51: #{unet_decoder_block_forward.11} parent=47 // pred_region
        %p710 = scmp.lt.s32.totalorder %s17, 1
        %s711 = scalar_select %p710, %s17, 1
        %s712 = smul.addr %s711, 8
        %s713 = smul.addr %s712, 4
        %s714 = scalar_lea.vmem %s5, %s713
      $region52: #{unet_decoder_block_forward.11} parent=47 // pred_fallthru
        _
    $region48: #{unet_decoder_block_forward.11} parent=5 // pred_fallthru
      _
  $region6: #{unet_decoder_block_forward.11} parent=0 // loop_footer
    %s15 = sadd.s32 1, %s11
  $region7: #{unet_decoder_block_forward.11} parent=0 // loop_footer_branch
    %10 = sbr.rel target = $region3
  $region8: #{unet_decoder_block_forward.11} parent=0 // loop_exit
    _

// kernel: unet_decoder_block_forward.12
$region0: #{unet_decoder_block_forward.12}
  #allocation0 [shape = 'u32[]', space=smem, size = 0x4, offset = 0x4, fixed_abs, tag = 'smem constant byte address 0x4 - core index']
  #allocation1 [shape = 'u32[144,128]{1,0:T(1,128)}', space=vmem, size = 0x12000, scoped, tag = 'internal scratch']
  #allocation2 [shape = 'f32[64,128]{1,0:T(8,128)}', space=vmem, size = 0x8000, scoped, tag = 'scratch operand']
  %s0 = inlined_call_operand.vmem [shape: bf16[2,10,10,16], index: 0, kind: input, shape index: {}]
  %s1 = inlined_call_operand.vmem [shape: bf16[144,128], index: 1, kind: input, shape index: {}]
  %s2 = inlined_call_operand.vmem [shape: f32[1,128], index: 2, kind: input, shape index: {}]
  %s3 = inlined_call_operand.vmem [shape: f32[2,1,16], index: 3, kind: input, shape index: {}]
  %s4 = inlined_call_operand.vmem [shape: bf16[16,128], index: 4, kind: input, shape index: {}]
  %s5 = inlined_call_operand.vmem [shape: f32[1,128], index: 5, kind: input, shape index: {}]
  %s6 = inlined_call_operand.vmem [shape: bf16[2,64,128], index: 6, kind: output, shape index: {}]
  %s7 = sld [smem:[#allocation0]]
  $region57: #{unet_decoder_block_forward.12} parent=0
    _
  %s9 = ssub.s32 1, %s7
  %s10 = scalar_select 0, %s9, %s7
  loop: start=0, step=1, limit=4
  $region2: #{unet_decoder_block_forward.12} parent=0 // loop_pre_header
    _
  $region3: #{unet_decoder_block_forward.12} parent=0 // loop_header
    %s12 = sphi 0, %s16
    %p13 = scmp.ge.s32.totalorder %s12, 4
    %s19 = sphi 0, %s31
    %s20 = sphi 0, %s27
    %s21 = sphi 0, %s19
    %s22 = sphi 0, %s20
    %s23 = sphi 0, %s21
    %s24 = sphi 0, %s22
    %s34 = sphi 0, %s36
    %s37 = sphi 0, %s34
    %s38 = sphi 0, %s37
    %s54 = sphi 0, %s38
    %s60 = sphi 0, %s62
    %s63 = sphi 0, %s60
    %s64 = sphi 0, %s63
    %s80 = sphi 0, %s64
    %s86 = sphi 0, %s88
    %s89 = sphi 0, %s86
    %s90 = sphi 0, %s89
    %s106 = sphi 0, %s90
    %s112 = sphi 0, %s114
    %s115 = sphi 0, %s112
    %s116 = sphi 0, %s115
    %s132 = sphi 0, %s116
    %s138 = sphi 0, %s140
    %s141 = sphi 0, %s138
    %s142 = sphi 0, %s141
    %s158 = sphi 0, %s142
    %s164 = sphi 0, %s166
    %s167 = sphi 0, %s164
    %s168 = sphi 0, %s167
    %s184 = sphi 0, %s168
    %s192 = sphi 0, %s194
    %s195 = sphi 0, %s192
    %s196 = sphi 0, %s195
    %s212 = sphi 0, %s196
  $region4: #{unet_decoder_block_forward.12} parent=0 // loop_header_branch
    %15 = sbr.rel (%p13) target = $region8
  $region5: #{unet_decoder_block_forward.12} parent=0 // loop_body
    %s17 = ssub.s32 %s12, 1
    %s18 = ssub.s32 %s12, 2
    %s25 = sadd.s32 1, %s20
    %p26 = scmp.ge.s32.totalorder %s25, 1
    %s27 = scalar_select %p26, 0, %s25
    %s28 = sadd.s32 1, %s19
    %s29 = scalar_select %p26, %s28, %s19
    %p30 = scmp.ge.s32.totalorder %s29, 2
    %s31 = scalar_select %p30, 0, %s29
    %s32 = ssub.s32 %s19, %s31
    %p33 = scmp.eq.s32.totalorder %s32, 0
    %s35 = sadd.s32 %s34, 1
    %s36 = scalar_select %p33, %s34, %s35
    %p39 = pneg %p33
    %p40 = scmp.eq.s32.totalorder %s12, 1
    %p41 = por %p39, %p40
    %p42 = scmp.ne.s32.totalorder %s34, %s37
    %p43 = scmp.eq.s32.totalorder %s12, 0
    %p44 = por %p42, %p43
    %p45 = scmp.ne.s32.totalorder %s34, %s37
    %p46 = scmp.eq.s32.totalorder %s17, 1
    %p47 = por %p45, %p46
    %p48 = scmp.ne.s32.totalorder %s37, %s38
    %p49 = scmp.eq.s32.totalorder %s17, 0
    %p50 = por %p48, %p49
    %p51 = scmp.ne.s32.totalorder %s37, %s38
    %p52 = scmp.eq.s32.totalorder %s18, 1
    %p53 = por %p51, %p52
    %p55 = scmp.ne.s32.totalorder %s38, %s54
    %p56 = scmp.eq.s32.totalorder %s18, 0
    %p57 = por %p55, %p56
    %s58 = ssub.s32 %s20, %s27
    %p59 = scmp.eq.s32.totalorder %s58, 0
    %s61 = sadd.s32 %s60, 1
    %s62 = scalar_select %p59, %s60, %s61
    %p65 = pneg %p59
    %p66 = scmp.eq.s32.totalorder %s12, 1
    %p67 = por %p65, %p66
    %p68 = scmp.ne.s32.totalorder %s60, %s63
    %p69 = scmp.eq.s32.totalorder %s12, 0
    %p70 = por %p68, %p69
    %p71 = scmp.ne.s32.totalorder %s60, %s63
    %p72 = scmp.eq.s32.totalorder %s17, 1
    %p73 = por %p71, %p72
    %p74 = scmp.ne.s32.totalorder %s63, %s64
    %p75 = scmp.eq.s32.totalorder %s17, 0
    %p76 = por %p74, %p75
    %p77 = scmp.ne.s32.totalorder %s63, %s64
    %p78 = scmp.eq.s32.totalorder %s18, 1
    %p79 = por %p77, %p78
    %p81 = scmp.ne.s32.totalorder %s64, %s80
    %p82 = scmp.eq.s32.totalorder %s18, 0
    %p83 = por %p81, %p82
    %s84 = ssub.s32 %s20, %s27
    %p85 = scmp.eq.s32.totalorder %s84, 0
    %s87 = sadd.s32 %s86, 1
    %s88 = scalar_select %p85, %s86, %s87
    %p91 = pneg %p85
    %p92 = scmp.eq.s32.totalorder %s12, 1
    %p93 = por %p91, %p92
    %p94 = scmp.ne.s32.totalorder %s86, %s89
    %p95 = scmp.eq.s32.totalorder %s12, 0
    %p96 = por %p94, %p95
    %p97 = scmp.ne.s32.totalorder %s86, %s89
    %p98 = scmp.eq.s32.totalorder %s17, 1
    %p99 = por %p97, %p98
    %p100 = scmp.ne.s32.totalorder %s89, %s90
    %p101 = scmp.eq.s32.totalorder %s17, 0
    %p102 = por %p100, %p101
    %p103 = scmp.ne.s32.totalorder %s89, %s90
    %p104 = scmp.eq.s32.totalorder %s18, 1
    %p105 = por %p103, %p104
    %p107 = scmp.ne.s32.totalorder %s90, %s106
    %p108 = scmp.eq.s32.totalorder %s18, 0
    %p109 = por %p107, %p108
    %s110 = ssub.s32 %s19, %s31
    %p111 = scmp.eq.s32.totalorder %s110, 0
    %s113 = sadd.s32 %s112, 1
    %s114 = scalar_select %p111, %s112, %s113
    %p117 = pneg %p111
    %p118 = scmp.eq.s32.totalorder %s12, 1
    %p119 = por %p117, %p118
    %p120 = scmp.ne.s32.totalorder %s112, %s115
    %p121 = scmp.eq.s32.totalorder %s12, 0
    %p122 = por %p120, %p121
    %p123 = scmp.ne.s32.totalorder %s112, %s115
    %p124 = scmp.eq.s32.totalorder %s17, 1
    %p125 = por %p123, %p124
    %p126 = scmp.ne.s32.totalorder %s115, %s116
    %p127 = scmp.eq.s32.totalorder %s17, 0
    %p128 = por %p126, %p127
    %p129 = scmp.ne.s32.totalorder %s115, %s116
    %p130 = scmp.eq.s32.totalorder %s18, 1
    %p131 = por %p129, %p130
    %p133 = scmp.ne.s32.totalorder %s116, %s132
    %p134 = scmp.eq.s32.totalorder %s18, 0
    %p135 = por %p133, %p134
    %s136 = ssub.s32 %s20, %s27
    %p137 = scmp.eq.s32.totalorder %s136, 0
    %s139 = sadd.s32 %s138, 1
    %s140 = scalar_select %p137, %s138, %s139
    %p143 = pneg %p137
    %p144 = scmp.eq.s32.totalorder %s12, 1
    %p145 = por %p143, %p144
    %p146 = scmp.ne.s32.totalorder %s138, %s141
    %p147 = scmp.eq.s32.totalorder %s12, 0
    %p148 = por %p146, %p147
    %p149 = scmp.ne.s32.totalorder %s138, %s141
    %p150 = scmp.eq.s32.totalorder %s17, 1
    %p151 = por %p149, %p150
    %p152 = scmp.ne.s32.totalorder %s141, %s142
    %p153 = scmp.eq.s32.totalorder %s17, 0
    %p154 = por %p152, %p153
    %p155 = scmp.ne.s32.totalorder %s141, %s142
    %p156 = scmp.eq.s32.totalorder %s18, 1
    %p157 = por %p155, %p156
    %p159 = scmp.ne.s32.totalorder %s142, %s158
    %p160 = scmp.eq.s32.totalorder %s18, 0
    %p161 = por %p159, %p160
    %s162 = ssub.s32 %s20, %s27
    %p163 = scmp.eq.s32.totalorder %s162, 0
    %s165 = sadd.s32 %s164, 1
    %s166 = scalar_select %p163, %s164, %s165
    %p169 = pneg %p163
    %p170 = scmp.eq.s32.totalorder %s12, 1
    %p171 = por %p169, %p170
    %p172 = scmp.ne.s32.totalorder %s164, %s167
    %p173 = scmp.eq.s32.totalorder %s12, 0
    %p174 = por %p172, %p173
    %p175 = scmp.ne.s32.totalorder %s164, %s167
    %p176 = scmp.eq.s32.totalorder %s17, 1
    %p177 = por %p175, %p176
    %p178 = scmp.ne.s32.totalorder %s167, %s168
    %p179 = scmp.eq.s32.totalorder %s17, 0
    %p180 = por %p178, %p179
    %p181 = scmp.ne.s32.totalorder %s167, %s168
    %p182 = scmp.eq.s32.totalorder %s18, 1
    %p183 = por %p181, %p182
    %p185 = scmp.ne.s32.totalorder %s168, %s184
    %p186 = scmp.eq.s32.totalorder %s18, 0
    %p187 = por %p185, %p186
    %s188 = ssub.s32 %s19, %s31
    %s189 = ssub.s32 %s20, %s27
    %s190 = sor.u32 %s188, %s189
    %p191 = scmp.eq.s32.totalorder %s190, 0
    %s193 = sadd.s32 %s192, 1
    %s194 = scalar_select %p191, %s192, %s193
    %p197 = pneg %p191
    %p198 = scmp.eq.s32.totalorder %s12, 1
    %p199 = por %p197, %p198
    %p200 = scmp.ne.s32.totalorder %s192, %s195
    %p201 = scmp.eq.s32.totalorder %s12, 0
    %p202 = por %p200, %p201
    %p203 = scmp.ne.s32.totalorder %s192, %s195
    %p204 = scmp.eq.s32.totalorder %s17, 1
    %p205 = por %p203, %p204
    %p206 = scmp.ne.s32.totalorder %s195, %s196
    %p207 = scmp.eq.s32.totalorder %s17, 0
    %p208 = por %p206, %p207
    %p209 = scmp.ne.s32.totalorder %s195, %s196
    %p210 = scmp.eq.s32.totalorder %s18, 1
    %p211 = por %p209, %p210
    %p213 = scmp.ne.s32.totalorder %s196, %s212
    %p214 = scmp.eq.s32.totalorder %s18, 0
    %p215 = por %p213, %p214
    %p216 = scmp.le.s32.totalorder 1, %s12
    %p217 = scmp.lt.s32.totalorder %s12, 3
    %p218 = pnand %p216, %p217
    %p219 = pneg %p218
    // Predicated region
    $region9: #{unet_decoder_block_forward.12} parent=5 // pred_check
      _
    $region10: #{unet_decoder_block_forward.12} parent=5 // pred_check_branch
      %221 = sbr.rel (%p218) target = $region12
    $region11: #{unet_decoder_block_forward.12} parent=5 // pred_region
      %s222 = ssub.s32 %s12, 1
      // Predicated region
      $region13: #{unet_decoder_block_forward.12} parent=11 // pred_check
        %p223 = pneg %p76
      $region14: #{unet_decoder_block_forward.12} parent=11 // pred_check_branch
        %225 = sbr.rel (%p223) target = $region16
      $region15: #{unet_decoder_block_forward.12} parent=11 // pred_region
        %p226 = scmp.lt.s32.totalorder %s22, 0
        %s227 = scalar_select %p226, %s22, 0
        %s228 = smul.addr %s227, 4
        %s229 = scalar_lea.vmem %s1, %s228
      $region16: #{unet_decoder_block_forward.12} parent=11 // pred_fallthru
        _
      // Predicated region
      $region17: #{unet_decoder_block_forward.12} parent=11 // pred_check
        %p230 = pneg %p102
      $region18: #{unet_decoder_block_forward.12} parent=11 // pred_check_branch
        %232 = sbr.rel (%p230) target = $region20
      $region19: #{unet_decoder_block_forward.12} parent=11 // pred_region
        %p233 = scmp.lt.s32.totalorder %s22, 0
        %s234 = scalar_select %p233, %s22, 0
        %s235 = scalar_lea.vmem %s2, %s234
      $region20: #{unet_decoder_block_forward.12} parent=11 // pred_fallthru
        _
      // Predicated region
      $region21: #{unet_decoder_block_forward.12} parent=11 // pred_check
        %p236 = pneg %p154
      $region22: #{unet_decoder_block_forward.12} parent=11 // pred_check_branch
        %238 = sbr.rel (%p236) target = $region24
      $region23: #{unet_decoder_block_forward.12} parent=11 // pred_region
        %p239 = scmp.lt.s32.totalorder %s22, 0
        %s240 = scalar_select %p239, %s22, 0
        %s241 = smul.addr %s240, 4
        %s242 = scalar_lea.vmem %s4, %s241
      $region24: #{unet_decoder_block_forward.12} parent=11 // pred_fallthru
        _
      // Predicated region
      $region25: #{unet_decoder_block_forward.12} parent=11 // pred_check
        %p243 = pneg %p180
      $region26: #{unet_decoder_block_forward.12} parent=11 // pred_check_branch
        %245 = sbr.rel (%p243) target = $region28
      $region27: #{unet_decoder_block_forward.12} parent=11 // pred_region
        %p246 = scmp.lt.s32.totalorder %s22, 0
        %s247 = scalar_select %p246, %s22, 0
        %s248 = scalar_lea.vmem %s5, %s247
      $region28: #{unet_decoder_block_forward.12} parent=11 // pred_fallthru
        _
    $region12: #{unet_decoder_block_forward.12} parent=5 // pred_fallthru
      _
    %p249 = scmp.lt.s32.totalorder %s12, 2
    // Predicated region
    $region29: #{unet_decoder_block_forward.12} parent=5 // pred_check
      %p250 = pneg %p249
    $region30: #{unet_decoder_block_forward.12} parent=5 // pred_check_branch
      %252 = sbr.rel (%p250) target = $region32
    $region31: #{unet_decoder_block_forward.12} parent=5 // pred_region
      // Predicated region
      $region33: #{unet_decoder_block_forward.12} parent=31 // pred_check
        %p253 = pneg %p44
      $region34: #{unet_decoder_block_forward.12} parent=31 // pred_check_branch
        %255 = sbr.rel (%p253) target = $region36
      $region35: #{unet_decoder_block_forward.12} parent=31 // pred_region
        %p256 = scmp.lt.s32.totalorder %s19, 1
        %s257 = scalar_select %p256, %s19, 1
        %s258 = smul.addr %s257, 20
        %s259 = smul.addr %s258, 4
        %s260 = scalar_lea.vmem %s0, %s259
      $region36: #{unet_decoder_block_forward.12} parent=31 // pred_fallthru
        _
      // Predicated region
      $region37: #{unet_decoder_block_forward.12} parent=31 // pred_check
        %p261 = pneg %p122
      $region38: #{unet_decoder_block_forward.12} parent=31 // pred_check_branch
        %263 = sbr.rel (%p261) target = $region40
      $region39: #{unet_decoder_block_forward.12} parent=31 // pred_region
        %p264 = scmp.lt.s32.totalorder %s19, 1
        %s265 = scalar_select %p264, %s19, 1
        %s266 = scalar_lea.vmem %s3, %s265
      $region40: #{unet_decoder_block_forward.12} parent=31 // pred_fallthru
        _
    $region32: #{unet_decoder_block_forward.12} parent=5 // pred_fallthru
      _
    %p267 = scmp.le.s32.totalorder 1, %s12
    %p268 = scmp.lt.s32.totalorder %s12, 3
    %p269 = pnand %p267, %p268
    %p270 = pneg %p269
    // Predicated region
    $region41: #{unet_decoder_block_forward.12} parent=5 // pred_check
      _
    $region42: #{unet_decoder_block_forward.12} parent=5 // pred_check_branch
      %272 = sbr.rel (%p269) target = $region44
    $region43: #{unet_decoder_block_forward.12} parent=5 // pred_region
      %s273 = ssub.s32 %s12, 1
      %p274 = scmp.lt.s32.totalorder %s21, 1
      %s275 = scalar_select %p274, %s21, 1
      %s276 = smul.addr %s275, 20
      %s277 = smul.addr %s276, 4
      %s278 = scalar_lea.vmem %s0, %s277
      %p279 = pneg %p50
      %p280 = pneg %p47
      %p281 = scmp.lt.s32.totalorder %s22, 0
      %s282 = scalar_select %p281, %s22, 0
      %s283 = smul.addr %s282, 4
      %s284 = scalar_lea.vmem %s1, %s283
      %p285 = pneg %p76
      %p286 = pneg %p73
      %p287 = scmp.lt.s32.totalorder %s22, 0
      %s288 = scalar_select %p287, %s22, 0
      %s289 = scalar_lea.vmem %s2, %s288
      %p290 = pneg %p102
      %p291 = pneg %p99
      %p292 = scmp.lt.s32.totalorder %s21, 1
      %s293 = scalar_select %p292, %s21, 1
      %s294 = scalar_lea.vmem %s3, %s293
      %p295 = pneg %p128
      %p296 = pneg %p125
      %p297 = scmp.lt.s32.totalorder %s22, 0
      %s298 = scalar_select %p297, %s22, 0
      %s299 = smul.addr %s298, 4
      %s300 = scalar_lea.vmem %s4, %s299
      %p301 = pneg %p154
      %p302 = pneg %p151
      %p303 = scmp.lt.s32.totalorder %s22, 0
      %s304 = scalar_select %p303, %s22, 0
      %s305 = scalar_lea.vmem %s5, %s304
      %p306 = pneg %p180
      %p307 = pneg %p177
      %p308 = pneg %p208
      %p309 = pneg %p205
      %p310 = scmp.lt.s32.totalorder %s21, 1
      %s311 = scalar_select %p310, %s21, 1
      %p312 = scmp.lt.s32.totalorder %s22, 0
      %s313 = scalar_select %p312, %s22, 0
      %s314 = smul.addr %s311, 8
      %s315 = sadd.s32 %s313, %s314
      %s316 = smul.addr %s315, 4
      %s317 = scalar_lea.vmem %s6, %s316
      %p318 = scmp.lt.s32.totalorder %s21, 1
      %s319 = scalar_select %p318, %s21, 1
      %s320 = smul.addr %s319, 20
      %s321 = smul.addr %s320, 4
      %s322 = scalar_lea.vmem %s0, %s321
      %p323 = scmp.lt.s32.totalorder %s22, 0
      %s324 = scalar_select %p323, %s22, 0
      %s325 = smul.addr %s324, 4
      %s326 = scalar_lea.vmem %s1, %s325
      %p327 = scmp.lt.s32.totalorder %s22, 0
      %s328 = scalar_select %p327, %s22, 0
      %s329 = scalar_lea.vmem %s2, %s328
      %p330 = scmp.lt.s32.totalorder %s21, 1
      %s331 = scalar_select %p330, %s21, 1
      %s332 = scalar_lea.vmem %s3, %s331
      %p333 = scmp.lt.s32.totalorder %s22, 0
      %s334 = scalar_select %p333, %s22, 0
      %s335 = smul.addr %s334, 4
      %s336 = scalar_lea.vmem %s4, %s335
      %p337 = scmp.lt.s32.totalorder %s22, 0
      %s338 = scalar_select %p337, %s22, 0
      %s339 = scalar_lea.vmem %s5, %s338
      %p340 = scmp.lt.s32.totalorder %s21, 1
      %s341 = scalar_select %p340, %s21, 1
      %p342 = scmp.lt.s32.totalorder %s22, 0
      %s343 = scalar_select %p342, %s22, 0
      %s344 = smul.addr %s341, 8
      %s345 = sadd.s32 %s343, %s344
      %s346 = smul.addr %s345, 4
      %s347 = scalar_lea.vmem %s6, %s346
      %v349 = vld [vmem:[%s322] sm:$0xf]
      %v350 = vld [vmem:[%s322 + $0x4] sm:$0x1]
      %v351 = vld [vmem:[%s322 + $0x8] sm:$0xf]
      %v352 = vld [vmem:[%s322 + $0xc] sm:$0x1]
      %v353 = vld [vmem:[%s322 + $0x10] sm:$0xf]
      %v354 = vld [vmem:[%s322 + $0x14] sm:$0x1]
      %v355 = vld [vmem:[%s322 + $0x18] sm:$0xf]
      %v356 = vld [vmem:[%s322 + $0x1c] sm:$0x1]
      %v357 = vld [vmem:[%s322 + $0x20] sm:$0xf]
      %v358 = vld [vmem:[%s322 + $0x24] sm:$0x1]
      %v359 = vld [vmem:[%s322 + $0x28] sm:$0xf]
      %v360 = vld [vmem:[%s322 + $0x2c] sm:$0x1]
      %v361 = vld [vmem:[%s322 + $0x30] sm:$0xf]
      %v362 = vld [vmem:[%s322 + $0x34] sm:$0x1]
      %v363 = vld [vmem:[%s322 + $0x38] sm:$0xf]
      %v364 = vld [vmem:[%s322 + $0x3c] sm:$0x1]
      %v365 = vld [vmem:[%s322 + $0x40] sm:$0xf]
      %v366 = vld [vmem:[%s322 + $0x44] sm:$0x1]
      %v367 = vld [vmem:[%s322 + $0x48] sm:$0xf]
      %v368 = vld [vmem:[%s322 + $0x4c] sm:$0x1]
      %v385 = vunpack.c.l.b16 %v349
      %v386 = vunpack.c.l.b16 %v350
      %v387 = vunpack.c.l.b16 %v351
      %v388 = vunpack.c.l.b16 %v352
      %v389 = vunpack.c.l.b16 %v353
      %v390 = vunpack.c.l.b16 %v354
      %v391 = vunpack.c.l.b16 %v355
      %v392 = vunpack.c.l.b16 %v356
      %v393 = vunpack.c.l.b16 %v357
      %v394 = vunpack.c.l.b16 %v358
      %v395 = vunpack.c.l.b16 %v359
      %v396 = vunpack.c.l.b16 %v360
      %v397 = vunpack.c.l.b16 %v361
      %v398 = vunpack.c.l.b16 %v362
      %v399 = vunpack.c.l.b16 %v363
      %v400 = vunpack.c.l.b16 %v364
      %v401 = vpack.c.b16 %v386, %v385
      %v402 = vpack.c.b16 %v388, %v387
      %v403 = vpack.c.b16 %v390, %v389
      %v404 = vpack.c.b16 %v392, %v391
      %v405 = vpack.c.b16 %v394, %v393
      %v406 = vpack.c.b16 %v396, %v395
      %v407 = vpack.c.b16 %v398, %v397
      %v408 = vpack.c.b16 %v400, %v399
      %v410 = vshrl.u32 %v401, 16
      %v412 = vshll.u32 %v401, 16
      %v414 = vrot.slane %v412, 1
      %v415 = vor.u32 %v410, %v414
      %v417 = vshrl.u32 %v402, 16
      %v419 = vshll.u32 %v402, 16
      %v421 = vrot.slane %v419, 1
      %v422 = vor.u32 %v417, %v421
      %v424 = vshrl.u32 %v403, 16
      %v426 = vshll.u32 %v403, 16
      %v428 = vrot.slane %v426, 1
      %v429 = vor.u32 %v424, %v428
      %v431 = vshrl.u32 %v404, 16
      %v433 = vshll.u32 %v404, 16
      %v435 = vrot.slane %v433, 1
      %v436 = vor.u32 %v431, %v435
      %v438 = vshrl.u32 %v405, 16
      %v440 = vshll.u32 %v405, 16
      %v442 = vrot.slane %v440, 1
      %v443 = vor.u32 %v438, %v442
      %v445 = vshrl.u32 %v406, 16
      %v447 = vshll.u32 %v406, 16
      %v449 = vrot.slane %v447, 1
      %v450 = vor.u32 %v445, %v449
      %v452 = vshrl.u32 %v407, 16
      %v454 = vshll.u32 %v407, 16
      %v456 = vrot.slane %v454, 1
      %v457 = vor.u32 %v452, %v456
      %v459 = vshrl.u32 %v408, 16
      %v461 = vshll.u32 %v408, 16
      %v463 = vrot.slane %v461, 1
      %v464 = vor.u32 %v459, %v463
      %465 = vrot.lane.b32.xlu0 %v415, 16
      %v466 = vpop.permute.xlu0 %465
      %467 = vrot.lane.b32.xlu0 %v422, 16
      %v468 = vpop.permute.xlu0 %467
      %469 = vrot.lane.b32.xlu0 %v429, 16
      %v470 = vpop.permute.xlu0 %469
      %471 = vrot.lane.b32.xlu0 %v436, 16
      %v472 = vpop.permute.xlu0 %471
      %473 = vrot.lane.b32.xlu0 %v443, 16
      %v474 = vpop.permute.xlu0 %473
      %475 = vrot.lane.b32.xlu0 %v450, 16
      %v476 = vpop.permute.xlu0 %475
      %477 = vrot.lane.b32.xlu0 %v457, 16
      %v478 = vpop.permute.xlu0 %477
      %479 = vrot.lane.b32.xlu0 %v464, 16
      %v480 = vpop.permute.xlu0 %479
      %v481 = vrot.slane %v401, 1
      %v482 = vrot.slane %v402, 1
      %v483 = vrot.slane %v403, 1
      %v484 = vrot.slane %v404, 1
      %v485 = vrot.slane %v405, 1
      %v486 = vrot.slane %v406, 1
      %v487 = vrot.slane %v407, 1
      %v488 = vrot.slane %v408, 1
      %489 = vrot.lane.b32.xlu0 %v481, 32
      %v490 = vpop.permute.xlu0 %489
      %491 = vrot.lane.b32.xlu0 %v482, 32
      %v492 = vpop.permute.xlu0 %491
      %493 = vrot.lane.b32.xlu0 %v483, 32
      %v494 = vpop.permute.xlu0 %493
      %495 = vrot.lane.b32.xlu0 %v484, 32
      %v496 = vpop.permute.xlu0 %495
      %497 = vrot.lane.b32.xlu0 %v485, 32
      %v498 = vpop.permute.xlu0 %497
      %499 = vrot.lane.b32.xlu0 %v486, 32
      %v500 = vpop.permute.xlu0 %499
      %501 = vrot.lane.b32.xlu0 %v487, 32
      %v502 = vpop.permute.xlu0 %501
      %503 = vrot.lane.b32.xlu0 %v488, 32
      %v504 = vpop.permute.xlu0 %503
      %vm505 = vcmask 130048
      %v508 = vsel %vm505, %v349, %v466
      %v511 = vsel %vm505, %v351, %v468
      %v514 = vsel %vm505, %v353, %v470
      %v517 = vsel %vm505, %v355, %v472
      %v520 = vsel %vm505, %v357, %v474
      %v523 = vsel %vm505, %v359, %v476
      %v526 = vsel %vm505, %v361, %v478
      %v529 = vsel %vm505, %v363, %v480
      %vm530 = vcmask 261120
      %v532 = vsel %vm530, %v508, %v490
      %v534 = vsel %vm530, %v511, %v492
      %v536 = vsel %vm530, %v514, %v494
      %v538 = vsel %vm530, %v517, %v496
      %v540 = vsel %vm530, %v520, %v498
      %v542 = vsel %vm530, %v523, %v500
      %v544 = vsel %vm530, %v526, %v502
      %v546 = vsel %vm530, %v529, %v504
      %v547 = vld [vmem:[%s326] sm:$0xf]
      %v548 = vld [vmem:[%s326 + $0x4] sm:$0xf]
      %v549 = vld [vmem:[%s326 + $0x8] sm:$0xf]
      %v550 = vld [vmem:[%s326 + $0xc] sm:$0xf]
      %v551 = vld [vmem:[%s326 + $0x10] sm:$0xf]
      %v552 = vld [vmem:[%s326 + $0x14] sm:$0xf]
      %v561 = vunpack.c.l.b16 %v532
      %v562 = vunpack.c.l.b16 %v534
      %v563 = vunpack.c.l.b16 %v536
      %v564 = vunpack.c.l.b16 %v538
      %v565 = vunpack.c.l.b16 %v540
      %v566 = vunpack.c.l.b16 %v542
      %v567 = vunpack.c.l.b16 %v544
      %v568 = vunpack.c.l.b16 %v546
      %v569 = vpack.c.b16 %v562, %v561
      %v570 = vpack.c.b16 %v564, %v563
      %v571 = vpack.c.b16 %v566, %v565
      %v572 = vpack.c.b16 %v568, %v567
      %v579 = vunpack.c.l.b16 %v547
      %v580 = vunpack.c.l.b16 %v548
      %v581 = vunpack.c.l.b16 %v549
      %v582 = vunpack.c.l.b16 %v550
      %v583 = vunpack.c.l.b16 %v551
      %v584 = vunpack.c.l.b16 %v552
      %v585 = vpack.c.b16 %v580, %v579
      %v586 = vpack.c.b16 %v582, %v581
      %v587 = vpack.c.b16 %v584, %v583
      %vm591 = vcmask 392192
      %v593 = vsel %vm591, %v569, 0
      %v596 = vsel %vm591, %v570, 0
      %v599 = vsel %vm591, %v571, 0
      %v602 = vsel %vm591, %v572, 0
      %604 = vmatprep.subr.bf16.mxu0 0
      %605 = vmatpush1.bf16.msra.mxu0 %v585
      %606 = vmatprep.subr.bf16.mxu0 0
      %607 = vmatpush1.bf16.msra.mxu0 %v586
      %608 = vmatprep.subr.bf16.mxu0 0
      %609 = vmatpush1.bf16.msra.mxu0 %v587
      %610 = vmatprep.subr.bf16.mxu0 0
      %611 = vmatpush1.bf16.msra.mxu0 0
      %612 = vmatprep.subr.bf16.mxu0 0
      %613 = vmatpush1.bf16.msra.mxu0 0
      %614 = vmatprep.subr.bf16.mxu0 0
      %615 = vmatpush1.bf16.msra.mxu0 0
      %616 = vmatprep.subr.bf16.mxu0 0
      %617 = vmatpush1.bf16.msra.mxu0 0
      %618 = vmatprep.subr.bf16.mxu0 0
      %619 = vmatpush1.bf16.msra.mxu0 0
      %620 = vmatprep.subr.bf16.mxu0 0
      %621 = vmatpush1.bf16.msra.mxu0 0
      %622 = vmatprep.subr.bf16.mxu0 0
      %623 = vmatpush1.bf16.msra.mxu0 0
      %624 = vmatprep.subr.bf16.mxu0 0
      %625 = vmatpush1.bf16.msra.mxu0 0
      %626 = vmatprep.subr.bf16.mxu0 0
      %627 = vmatpush1.bf16.msra.mxu0 0
      %628 = vmatprep.subr.bf16.mxu0 0
      %629 = vmatpush1.bf16.msra.mxu0 0
      %630 = vmatprep.subr.bf16.mxu0 0
      %631 = vmatpush1.bf16.msra.mxu0 0
      %632 = vmatprep.subr.bf16.mxu0 0
      %633 = vmatpush1.bf16.msra.mxu0 0
      %634 = vmatprep.subr.bf16.mxu0 0
      %635 = vmatpush1.bf16.msra.mxu0 0
      %636 = vmatprep.mubr.bf16.mxu0 0
      %637 = vmatmul.mubr.bf16.gmra.mrb[0].mxu0 %v593
      %v638 = vpop.f32.mrb[0].mxu0
      %v639 = vadd.f32 0.0, %v638
      %v640 = vpop.f32.mrb[0].mxu0
      %v641 = vpop.f32.mrb[0].mxu0
      %v642 = vadd.f32 0.0, %v641
      %v643 = vpop.f32.mrb[0].mxu0
      %644 = vmatprep.mubr.bf16.mxu0 0
      %645 = vmatmul.mubr.bf16.gmra.mrb[0].mxu0 %v596
      %v646 = vpop.f32.mrb[0].mxu0
      %v647 = vadd.f32 0.0, %v646
      %v648 = vpop.f32.mrb[0].mxu0
      %v649 = vpop.f32.mrb[0].mxu0
      %v650 = vadd.f32 0.0, %v649
      %v651 = vpop.f32.mrb[0].mxu0
      %652 = vmatprep.mubr.bf16.mxu0 0
      %653 = vmatmul.mubr.bf16.gmra.mrb[0].mxu0 %v599
      %v654 = vpop.f32.mrb[0].mxu0
      %v655 = vadd.f32 0.0, %v654
      %v656 = vpop.f32.mrb[0].mxu0
      %v657 = vpop.f32.mrb[0].mxu0
      %v658 = vadd.f32 0.0, %v657
      %v659 = vpop.f32.mrb[0].mxu0
      %660 = vmatprep.mubr.bf16.mxu0 0
      %661 = vmatmul.mubr.bf16.gmra.mrb[0].mxu0 %v602
      %v662 = vpop.f32.mrb[0].mxu0
      %v663 = vadd.f32 0.0, %v662
      %v664 = vpop.f32.mrb[0].mxu0
      %v665 = vpop.f32.mrb[0].mxu0
      %v666 = vadd.f32 0.0, %v665
      %v667 = vpop.f32.mrb[0].mxu0
      %668 = vdwg.mxu0
      %669 = vst [vmem:[#allocation2] sm:$0xff] %v639
      %670 = vst [vmem:[#allocation2 + $0x8] sm:$0xff] %v642
      %671 = vst [vmem:[#allocation2 + $0x10] sm:$0xff] %v647
      %672 = vst [vmem:[#allocation2 + $0x18] sm:$0xff] %v650
      %673 = vst [vmem:[#allocation2 + $0x20] sm:$0xff] %v655
      %674 = vst [vmem:[#allocation2 + $0x28] sm:$0xff] %v658
      %675 = vst [vmem:[#allocation2 + $0x30] sm:$0xff] %v663
      %676 = vst [vmem:[#allocation2 + $0x38] sm:$0xff] %v666
      %v679 = vunpack.c.l.b16 %v365
      %v680 = vunpack.c.l.b16 %v366
      %v681 = vpack.c.b16 %v680, %v679
      %v683 = vshrl.u32 %v681, 16
      %v685 = vshll.u32 %v681, 16
      %v687 = vrot.slane %v685, 1
      %v688 = vor.u32 %v683, %v687
      %689 = vrot.lane.b32.xlu0 %v688, 16
      %v690 = vpop.permute.xlu0 %689
      %v691 = vrot.slane %v681, 1
      %692 = vrot.lane.b32.xlu0 %v691, 32
      %v693 = vpop.permute.xlu0 %692
      %v696 = vsel %vm505, %v365, %v690
      %v698 = vsel %vm530, %v696, %v693
      %v699 = vld [vmem:[%s326 + $0x18] sm:$0xf]
      %v700 = vld [vmem:[%s326 + $0x1c] sm:$0xf]
      %v701 = vld [vmem:[%s326 + $0x20] sm:$0xf]
      %v702 = vld [vmem:[%s326 + $0x24] sm:$0xf]
      %v703 = vld [vmem:[%s326 + $0x28] sm:$0xf]
      %v704 = vld [vmem:[%s326 + $0x2c] sm:$0xf]
      %v706 = vunpack.c.l.b16 %v698
      %v707 = vpack.c.b16 %v563, %v562
      %v708 = vpack.c.b16 %v565, %v564
      %v709 = vpack.c.b16 %v567, %v566
      %v710 = vpack.c.b16 %v706, %v568
      %v717 = vunpack.c.l.b16 %v699
      %v718 = vunpack.c.l.b16 %v700
      %v719 = vunpack.c.l.b16 %v701
      %v720 = vunpack.c.l.b16 %v702
      %v721 = vunpack.c.l.b16 %v703
      %v722 = vunpack.c.l.b16 %v704
      %v723 = vpack.c.b16 %v718, %v717
      %v724 = vpack.c.b16 %v720, %v719
      %v725 = vpack.c.b16 %v722, %v721
      %v730 = vsel %vm591, %v707, 0
      %v733 = vsel %vm591, %v708, 0
      %v736 = vsel %vm591, %v709, 0
      %v739 = vsel %vm591, %v710, 0
      %741 = vmatprep.subr.bf16.mxu0 0
      %742 = vmatpush1.bf16.msra.mxu0 %v723
      %743 = vmatprep.subr.bf16.mxu0 0
      %744 = vmatpush1.bf16.msra.mxu0 %v724
      %745 = vmatprep.subr.bf16.mxu0 0
      %746 = vmatpush1.bf16.msra.mxu0 %v725
      %747 = vmatprep.subr.bf16.mxu0 0
      %748 = vmatpush1.bf16.msra.mxu0 0
      %749 = vmatprep.subr.bf16.mxu0 0
      %750 = vmatpush1.bf16.msra.mxu0 0
      %751 = vmatprep.subr.bf16.mxu0 0
      %752 = vmatpush1.bf16.msra.mxu0 0
      %753 = vmatprep.subr.bf16.mxu0 0
      %754 = vmatpush1.bf16.msra.mxu0 0
      %755 = vmatprep.subr.bf16.mxu0 0
      %756 = vmatpush1.bf16.msra.mxu0 0
      %757 = vmatprep.subr.bf16.mxu0 0
      %758 = vmatpush1.bf16.msra.mxu0 0
      %759 = vmatprep.subr.bf16.mxu0 0
      %760 = vmatpush1.bf16.msra.mxu0 0
      %761 = vmatprep.subr.bf16.mxu0 0
      %762 = vmatpush1.bf16.msra.mxu0 0
      %763 = vmatprep.subr.bf16.mxu0 0
      %764 = vmatpush1.bf16.msra.mxu0 0
      %765 = vmatprep.subr.bf16.mxu0 0
      %766 = vmatpush1.bf16.msra.mxu0 0
      %767 = vmatprep.subr.bf16.mxu0 0
      %768 = vmatpush1.bf16.msra.mxu0 0
      %769 = vmatprep.subr.bf16.mxu0 0
      %770 = vmatpush1.bf16.msra.mxu0 0
      %771 = vmatprep.subr.bf16.mxu0 0
      %772 = vmatpush1.bf16.msra.mxu0 0
      %773 = vmatprep.mubr.bf16.mxu0 0
      %774 = vmatmul.mubr.bf16.gmra.mrb[0].mxu0 %v730
      %v775 = vpop.f32.mrb[0].mxu0
      %v776 = vadd.f32 0.0, %v775
      %v777 = vpop.f32.mrb[0].mxu0
      %v778 = vpop.f32.mrb[0].mxu0
      %v779 = vadd.f32 0.0, %v778
      %v780 = vpop.f32.mrb[0].mxu0
      %781 = vmatprep.mubr.bf16.mxu0 0
      %782 = vmatmul.mubr.bf16.gmra.mrb[0].mxu0 %v733
      %v783 = vpop.f32.mrb[0].mxu0
      %v784 = vadd.f32 0.0, %v783
      %v785 = vpop.f32.mrb[0].mxu0
      %v786 = vpop.f32.mrb[0].mxu0
      %v787 = vadd.f32 0.0, %v786
      %v788 = vpop.f32.mrb[0].mxu0
      %789 = vmatprep.mubr.bf16.mxu0 0
      %790 = vmatmul.mubr.bf16.gmra.mrb[0].mxu0 %v736
      %v791 = vpop.f32.mrb[0].mxu0
      %v792 = vadd.f32 0.0, %v791
      %v793 = vpop.f32.mrb[0].mxu0
      %v794 = vpop.f32.mrb[0].mxu0
      %v795 = vadd.f32 0.0, %v794
      %v796 = vpop.f32.mrb[0].mxu0
      %797 = vmatprep.mubr.bf16.mxu0 0
      %798 = vmatmul.mubr.bf16.gmra.mrb[0].mxu0 %v739
      %v799 = vpop.f32.mrb[0].mxu0
      %v800 = vadd.f32 0.0, %v799
      %v801 = vpop.f32.mrb[0].mxu0
      %v802 = vpop.f32.mrb[0].mxu0
      %v803 = vadd.f32 0.0, %v802
      %v804 = vpop.f32.mrb[0].mxu0
      %805 = vdwg.mxu0
      %v806 = vld [vmem:[#allocation2] sm:$0xff]
      %v807 = vld [vmem:[#allocation2 + $0x8] sm:$0xff]
      %v808 = vld [vmem:[#allocation2 + $0x10] sm:$0xff]
      %v809 = vld [vmem:[#allocation2 + $0x18] sm:$0xff]
      %v810 = vld [vmem:[#allocation2 + $0x20] sm:$0xff]
      %v811 = vld [vmem:[#allocation2 + $0x28] sm:$0xff]
      %v812 = vld [vmem:[#allocation2 + $0x30] sm:$0xff]
      %v813 = vld [vmem:[#allocation2 + $0x38] sm:$0xff]
      %v814 = vadd.f32 %v806, %v776
      %v815 = vadd.f32 %v807, %v779
      %v816 = vadd.f32 %v808, %v784
      %v817 = vadd.f32 %v809, %v787
      %v818 = vadd.f32 %v810, %v792
      %v819 = vadd.f32 %v811, %v795
      %v820 = vadd.f32 %v812, %v800
      %v821 = vadd.f32 %v813, %v803
      %822 = vst [vmem:[#allocation2] sm:$0xff] %v814
      %823 = vst [vmem:[#allocation2 + $0x8] sm:$0xff] %v815
      %824 = vst [vmem:[#allocation2 + $0x10] sm:$0xff] %v816
      %825 = vst [vmem:[#allocation2 + $0x18] sm:$0xff] %v817
      %826 = vst [vmem:[#allocation2 + $0x20] sm:$0xff] %v818
      %827 = vst [vmem:[#allocation2 + $0x28] sm:$0xff] %v819
      %828 = vst [vmem:[#allocation2 + $0x30] sm:$0xff] %v820
      %829 = vst [vmem:[#allocation2 + $0x38] sm:$0xff] %v821
      %v832 = vunpack.c.l.b16 %v367
      %v833 = vunpack.c.l.b16 %v368
      %v834 = vpack.c.b16 %v833, %v832
      %v836 = vshrl.u32 %v834, 16
      %v838 = vshll.u32 %v834, 16
      %v840 = vrot.slane %v838, 1
      %v841 = vor.u32 %v836, %v840
      %842 = vrot.lane.b32.xlu0 %v841, 16
      %v843 = vpop.permute.xlu0 %842
      %v844 = vrot.slane %v834, 1
      %845 = vrot.lane.b32.xlu0 %v844, 32
      %v846 = vpop.permute.xlu0 %845
      %v849 = vsel %vm505, %v367, %v843
      %v851 = vsel %vm530, %v849, %v846
      %v852 = vld [vmem:[%s326 + $0x30] sm:$0xf]
      %v853 = vld [vmem:[%s326 + $0x34] sm:$0xf]
      %v854 = vld [vmem:[%s326 + $0x38] sm:$0xf]
      %v855 = vld [vmem:[%s326 + $0x3c] sm:$0xf]
      %v856 = vld [vmem:[%s326 + $0x40] sm:$0xf]
      %v857 = vld [vmem:[%s326 + $0x44] sm:$0xf]
      %v859 = vunpack.c.l.b16 %v851
      %v860 = vpack.c.b16 %v859, %v706
      %v867 = vunpack.c.l.b16 %v852
      %v868 = vunpack.c.l.b16 %v853
      %v869 = vunpack.c.l.b16 %v854
      %v870 = vunpack.c.l.b16 %v855
      %v871 = vunpack.c.l.b16 %v856
      %v872 = vunpack.c.l.b16 %v857
      %v873 = vpack.c.b16 %v868, %v867
      %v874 = vpack.c.b16 %v870, %v869
      %v875 = vpack.c.b16 %v872, %v871
      %v880 = vsel %vm591, %v860, 0
      %882 = vmatprep.subr.bf16.mxu0 0
      %883 = vmatpush1.bf16.msra.mxu0 %v873
      %884 = vmatprep.subr.bf16.mxu0 0
      %885 = vmatpush1.bf16.msra.mxu0 %v874
      %886 = vmatprep.subr.bf16.mxu0 0
      %887 = vmatpush1.bf16.msra.mxu0 %v875
      %888 = vmatprep.subr.bf16.mxu0 0
      %889 = vmatpush1.bf16.msra.mxu0 0
      %890 = vmatprep.subr.bf16.mxu0 0
      %891 = vmatpush1.bf16.msra.mxu0 0
      %892 = vmatprep.subr.bf16.mxu0 0
      %893 = vmatpush1.bf16.msra.mxu0 0
      %894 = vmatprep.subr.bf16.mxu0 0
      %895 = vmatpush1.bf16.msra.mxu0 0
      %896 = vmatprep.subr.bf16.mxu0 0
      %897 = vmatpush1.bf16.msra.mxu0 0
      %898 = vmatprep.subr.bf16.mxu0 0
      %899 = vmatpush1.bf16.msra.mxu0 0
      %900 = vmatprep.subr.bf16.mxu0 0
      %901 = vmatpush1.bf16.msra.mxu0 0
      %902 = vmatprep.subr.bf16.mxu0 0
      %903 = vmatpush1.bf16.msra.mxu0 0
      %904 = vmatprep.subr.bf16.mxu0 0
      %905 = vmatpush1.bf16.msra.mxu0 0
      %906 = vmatprep.subr.bf16.mxu0 0
      %907 = vmatpush1.bf16.msra.mxu0 0
      %908 = vmatprep.subr.bf16.mxu0 0
      %909 = vmatpush1.bf16.msra.mxu0 0
      %910 = vmatprep.subr.bf16.mxu0 0
      %911 = vmatpush1.bf16.msra.mxu0 0
      %912 = vmatprep.subr.bf16.mxu0 0
      %913 = vmatpush1.bf16.msra.mxu0 0
      %914 = vmatprep.mubr.bf16.mxu0 0
      %915 = vmatmul.mubr.bf16.gmra.mrb[0].mxu0 %v596
      %v916 = vpop.f32.mrb[0].mxu0
      %v917 = vadd.f32 0.0, %v916
      %v918 = vpop.f32.mrb[0].mxu0
      %v919 = vpop.f32.mrb[0].mxu0
      %v920 = vadd.f32 0.0, %v919
      %v921 = vpop.f32.mrb[0].mxu0
      %922 = vmatprep.mubr.bf16.mxu0 0
      %923 = vmatmul.mubr.bf16.gmra.mrb[0].mxu0 %v599
      %v924 = vpop.f32.mrb[0].mxu0
      %v925 = vadd.f32 0.0, %v924
      %v926 = vpop.f32.mrb[0].mxu0
      %v927 = vpop.f32.mrb[0].mxu0
      %v928 = vadd.f32 0.0, %v927
      %v929 = vpop.f32.mrb[0].mxu0
      %930 = vmatprep.mubr.bf16.mxu0 0
      %931 = vmatmul.mubr.bf16.gmra.mrb[0].mxu0 %v602
      %v932 = vpop.f32.mrb[0].mxu0
      %v933 = vadd.f32 0.0, %v932
      %v934 = vpop.f32.mrb[0].mxu0
      %v935 = vpop.f32.mrb[0].mxu0
      %v936 = vadd.f32 0.0, %v935
      %v937 = vpop.f32.mrb[0].mxu0
      %938 = vmatprep.mubr.bf16.mxu0 0
      %939 = vmatmul.mubr.bf16.gmra.mrb[0].mxu0 %v880
      %v940 = vpop.f32.mrb[0].mxu0
      %v941 = vadd.f32 0.0, %v940
      %v942 = vpop.f32.mrb[0].mxu0
      %v943 = vpop.f32.mrb[0].mxu0
      %v944 = vadd.f32 0.0, %v943
      %v945 = vpop.f32.mrb[0].mxu0
      %946 = vdwg.mxu0
      %v947 = vld [vmem:[#allocation2] sm:$0xff]
      %v948 = vld [vmem:[#allocation2 + $0x8] sm:$0xff]
      %v949 = vld [vmem:[#allocation2 + $0x10] sm:$0xff]
      %v950 = vld [vmem:[#allocation2 + $0x18] sm:$0xff]
      %v951 = vld [vmem:[#allocation2 + $0x20] sm:$0xff]
      %v952 = vld [vmem:[#allocation2 + $0x28] sm:$0xff]
      %v953 = vld [vmem:[#allocation2 + $0x30] sm:$0xff]
      %v954 = vld [vmem:[#allocation2 + $0x38] sm:$0xff]
      %v955 = vadd.f32 %v947, %v917
      %v956 = vadd.f32 %v948, %v920
      %v957 = vadd.f32 %v949, %v925
      %v958 = vadd.f32 %v950, %v928
      %v959 = vadd.f32 %v951, %v933
      %v960 = vadd.f32 %v952, %v936
      %v961 = vadd.f32 %v953, %v941
      %v962 = vadd.f32 %v954, %v944
      %963 = vst [vmem:[#allocation2] sm:$0xff] %v955
      %964 = vst [vmem:[#allocation2 + $0x8] sm:$0xff] %v956
      %965 = vst [vmem:[#allocation2 + $0x10] sm:$0xff] %v957
      %966 = vst [vmem:[#allocation2 + $0x18] sm:$0xff] %v958
      %967 = vst [vmem:[#allocation2 + $0x20] sm:$0xff] %v959
      %968 = vst [vmem:[#allocation2 + $0x28] sm:$0xff] %v960
      %969 = vst [vmem:[#allocation2 + $0x30] sm:$0xff] %v961
      %970 = vst [vmem:[#allocation2 + $0x38] sm:$0xff] %v962
      %v971 = vld [vmem:[#allocation2] sm:$0xff]
      %v972 = vld [vmem:[#allocation2 + $0x8] sm:$0xff]
      %v973 = vld [vmem:[#allocation2 + $0x10] sm:$0xff]
      %v974 = vld [vmem:[#allocation2 + $0x18] sm:$0xff]
      %v975 = vld [vmem:[#allocation2 + $0x20] sm:$0xff]
      %v976 = vld [vmem:[#allocation2 + $0x28] sm:$0xff]
      %v977 = vld [vmem:[#allocation2 + $0x30] sm:$0xff]
      %v978 = vld [vmem:[#allocation2 + $0x38] sm:$0xff]
      %v979 = vld [vmem:[%s329] sm:$0x1]
      %v981 = vlaneseq
      %v982 = vshrl.u32 %v981, 7
      %v983 = vsub.s32 0, %v982
      %v984 = vrot.slane %v979, %v983
      %v986 = vadd.f32 %v971, %v984
      %v987 = vadd.f32 %v972, %v984
      %v988 = vadd.f32 %v973, %v984
      %v989 = vadd.f32 %v974, %v984
      %v990 = vadd.f32 %v975, %v984
      %v991 = vadd.f32 %v976, %v984
      %v992 = vadd.f32 %v977, %v984
      %v993 = vadd.f32 %v978, %v984
      %v994 = vld [vmem:[%s332] sm:$0x1]
      %v995 = vxor.u32 %v994, 2147483648
      %v996 = vmul.f32 %v995, 1.442695
      %v997 = vpow.pop %v996
      %v998 = vadd.f32 %v997, 1.0
      %v999 = vrcp.pop %v998
      %v1000 = vmul.f32 1.0, %v999
      %v1001 = vmul.f32 %v994, %v1000
      %v1002 = vpack.c.bf16 %v1001, %v1001
      %v1003 = vld [vmem:[%s336] sm:$0xf]
      %v1004 = vld [vmem:[%s336 + $0x4] sm:$0xf]
      %v1007 = vunpack.c.l.b16 %v1003
      %v1008 = vunpack.c.l.b16 %v1004
      %v1009 = vpack.c.b16 %v1008, %v1007
      %v1012 = vsel %vm505, %v1002, 0
      %1014 = vmatprep.subr.bf16.mxu0 0
      %1015 = vmatpush1.bf16.msra.mxu0 %v1009
      %1016 = vmatprep.subr.bf16.mxu0 0
      %1017 = vmatpush1.bf16.msra.mxu0 0
      %1018 = vmatprep.subr.bf16.mxu0 0
      %1019 = vmatpush1.bf16.msra.mxu0 0
      %1020 = vmatprep.subr.bf16.mxu0 0
      %1021 = vmatpush1.bf16.msra.mxu0 0
      %1022 = vmatprep.subr.bf16.mxu0 0
      %1023 = vmatpush1.bf16.msra.mxu0 0
      %1024 = vmatprep.subr.bf16.mxu0 0
      %1025 = vmatpush1.bf16.msra.mxu0 0
      %1026 = vmatprep.subr.bf16.mxu0 0
      %1027 = vmatpush1.bf16.msra.mxu0 0
      %1028 = vmatprep.subr.bf16.mxu0 0
      %1029 = vmatpush1.bf16.msra.mxu0 0
      %1030 = vmatprep.subr.bf16.mxu0 0
      %1031 = vmatpush1.bf16.msra.mxu0 0
      %1032 = vmatprep.subr.bf16.mxu0 0
      %1033 = vmatpush1.bf16.msra.mxu0 0
      %1034 = vmatprep.subr.bf16.mxu0 0
      %1035 = vmatpush1.bf16.msra.mxu0 0
      %1036 = vmatprep.subr.bf16.mxu0 0
      %1037 = vmatpush1.bf16.msra.mxu0 0
      %1038 = vmatprep.subr.bf16.mxu0 0
      %1039 = vmatpush1.bf16.msra.mxu0 0
      %1040 = vmatprep.subr.bf16.mxu0 0
      %1041 = vmatpush1.bf16.msra.mxu0 0
      %1042 = vmatprep.subr.bf16.mxu0 0
      %1043 = vmatpush1.bf16.msra.mxu0 0
      %1044 = vmatprep.subr.bf16.mxu0 0
      %1045 = vmatpush1.bf16.msra.mxu0 0
      %1046 = vmatprep.mubr.bf16.mxu0 0
      %1047 = vmatmul.mubr.bf16.gmra.mrb[0].mxu0 %v1012
      %v1048 = vpop.f32.mrb[0].mxu0
      %v1049 = vadd.f32 0.0, %v1048
      %v1050 = vpop.f32.mrb[0].mxu0
      %v1051 = vpop.f32.mrb[0].mxu0
      %v1052 = vpop.f32.mrb[0].mxu0
      %1053 = vdwg.mxu0
      %v1054 = vlaneseq
      %v1055 = vshrl.u32 %v1054, 7
      %v1056 = vsub.s32 0, %v1055
      %v1057 = vrot.slane %v1049, %v1056
      %v1058 = vadd.f32 %v986, %v1057
      %v1059 = vadd.f32 %v987, %v1057
      %v1060 = vadd.f32 %v988, %v1057
      %v1061 = vadd.f32 %v989, %v1057
      %v1062 = vadd.f32 %v990, %v1057
      %v1063 = vadd.f32 %v991, %v1057
      %v1064 = vadd.f32 %v992, %v1057
      %v1065 = vadd.f32 %v993, %v1057
      %v1066 = vld [vmem:[%s339] sm:$0x1]
      %v1068 = vlaneseq
      %v1069 = vshrl.u32 %v1068, 7
      %v1070 = vsub.s32 0, %v1069
      %v1071 = vrot.slane %v1066, %v1070
      %v1073 = vadd.f32 %v1058, %v1071
      %v1074 = vadd.f32 %v1059, %v1071
      %v1075 = vadd.f32 %v1060, %v1071
      %v1076 = vadd.f32 %v1061, %v1071
      %v1077 = vadd.f32 %v1062, %v1071
      %v1078 = vadd.f32 %v1063, %v1071
      %v1079 = vadd.f32 %v1064, %v1071
      %v1080 = vadd.f32 %v1065, %v1071
      %v1081 = vpack.c.bf16 %v1074, %v1073
      %v1082 = vpack.c.bf16 %v1076, %v1075
      %v1083 = vpack.c.bf16 %v1078, %v1077
      %v1084 = vpack.c.bf16 %v1080, %v1079
      %v1089 = vunpack.c.l.b16 %v1081
      %v1090 = vunpack.c.h.b16 %v1081
      %v1091 = vunpack.c.l.b16 %v1082
      %v1092 = vunpack.c.h.b16 %v1082
      %v1093 = vunpack.c.l.b16 %v1083
      %v1094 = vunpack.c.h.b16 %v1083
      %v1095 = vunpack.c.l.b16 %v1084
      %v1096 = vunpack.c.h.b16 %v1084
      %v1097 = vpack.c.b16 %v1089, %v1089
      %v1098 = vpack.c.b16 %v1090, %v1090
      %v1099 = vpack.c.b16 %v1091, %v1091
      %v1100 = vpack.c.b16 %v1092, %v1092
      %v1101 = vpack.c.b16 %v1093, %v1093
      %v1102 = vpack.c.b16 %v1094, %v1094
      %v1103 = vpack.c.b16 %v1095, %v1095
      %v1104 = vpack.c.b16 %v1096, %v1096
      %1113 = vst [vmem:[%s347] sm:$0xf] %v1097
      %1114 = vst [vmem:[%s347 + $0x4] sm:$0xf] %v1098
      %1115 = vst [vmem:[%s347 + $0x8] sm:$0xf] %v1099
      %1116 = vst [vmem:[%s347 + $0xc] sm:$0xf] %v1100
      %1117 = vst [vmem:[%s347 + $0x10] sm:$0xf] %v1101
      %1118 = vst [vmem:[%s347 + $0x14] sm:$0xf] %v1102
      %1119 = vst [vmem:[%s347 + $0x18] sm:$0xf] %v1103
      %1120 = vst [vmem:[%s347 + $0x1c] sm:$0xf] %v1104
      %p1121 = scmp.lt.s32.totalorder %s21, 1
      %s1122 = scalar_select %p1121, %s21, 1
      %p1123 = scmp.lt.s32.totalorder %s22, 0
      %s1124 = scalar_select %p1123, %s22, 0
      %s1125 = smul.addr %s1122, 8
      %s1126 = sadd.s32 %s1124, %s1125
      %s1127 = smul.addr %s1126, 4
      %s1128 = scalar_lea.vmem %s6, %s1127
      // Predicated region
      $region45: #{unet_decoder_block_forward.12} parent=43 // pred_check
        %p1129 = pneg %p205
      $region46: #{unet_decoder_block_forward.12} parent=43 // pred_check_branch
        %1131 = sbr.rel (%p1129) target = $region48
      $region47: #{unet_decoder_block_forward.12} parent=43 // pred_region
        _
      $region48: #{unet_decoder_block_forward.12} parent=43 // pred_fallthru
        _
    $region44: #{unet_decoder_block_forward.12} parent=5 // pred_fallthru
      _
    %p1132 = scmp.le.s32.totalorder 2, %s12
    // Predicated region
    $region49: #{unet_decoder_block_forward.12} parent=5 // pred_check
      %p1133 = pneg %p1132
    $region50: #{unet_decoder_block_forward.12} parent=5 // pred_check_branch
      %1135 = sbr.rel (%p1133) target = $region52
    $region51: #{unet_decoder_block_forward.12} parent=5 // pred_region
      %s1136 = ssub.s32 %s12, 2
      // Predicated region
      $region53: #{unet_decoder_block_forward.12} parent=51 // pred_check
        %p1137 = pneg %p211
      $region54: #{unet_decoder_block_forward.12} parent=51 // pred_check_branch
        %1139 = sbr.rel (%p1137) target = $region56
      $region55: #{unet_decoder_block_forward.12} parent=51 // pred_region
        %p1140 = scmp.lt.s32.totalorder %s23, 1
        %s1141 = scalar_select %p1140, %s23, 1
        %p1142 = scmp.lt.s32.totalorder %s24, 0
        %s1143 = scalar_select %p1142, %s24, 0
        %s1144 = smul.addr %s1141, 8
        %s1145 = sadd.s32 %s1143, %s1144
        %s1146 = smul.addr %s1145, 4
        %s1147 = scalar_lea.vmem %s6, %s1146
      $region56: #{unet_decoder_block_forward.12} parent=51 // pred_fallthru
        _
    $region52: #{unet_decoder_block_forward.12} parent=5 // pred_fallthru
      _
  $region6: #{unet_decoder_block_forward.12} parent=0 // loop_footer
    %s16 = sadd.s32 1, %s12
  $region7: #{unet_decoder_block_forward.12} parent=0 // loop_footer_branch
    %11 = sbr.rel target = $region3
  $region8: #{unet_decoder_block_forward.12} parent=0 // loop_exit
    _

// kernel: unet_decoder_block_forward.14
$region0: #{unet_decoder_block_forward.14}
  #allocation0 [shape = 'u32[]', space=smem, size = 0x4, offset = 0x4, fixed_abs, tag = 'smem constant byte address 0x4 - core index']
  #allocation1 [shape = 'u32[144,128]{1,0:T(1,128)}', space=vmem, size = 0x12000, scoped, tag = 'internal scratch']
  #allocation2 [shape = 'f32[64,128]{1,0:T(8,128)}', space=vmem, size = 0x8000, scoped, tag = 'scratch operand']
  %s0 = inlined_call_operand.vmem [shape: bf16[2,10,10,8], index: 0, kind: input, shape index: {}]
  %s1 = inlined_call_operand.vmem [shape: bf16[72,128], index: 1, kind: input, shape index: {}]
  %s2 = inlined_call_operand.vmem [shape: f32[1,128], index: 2, kind: input, shape index: {}]
  %s3 = inlined_call_operand.vmem [shape: bf16[2,64,16], index: 3, kind: input, shape index: {}]
  %s4 = inlined_call_operand.vmem [shape: bf16[16,128], index: 4, kind: input, shape index: {}]
  %s5 = inlined_call_operand.vmem [shape: f32[1,128], index: 5, kind: input, shape index: {}]
  %s6 = inlined_call_operand.vmem [shape: bf16[2,64,128], index: 6, kind: output, shape index: {}]
  %s7 = sld [smem:[#allocation0]]
  $region57: #{unet_decoder_block_forward.14} parent=0
    _
  %s9 = ssub.s32 1, %s7
  %s10 = scalar_select 0, %s9, %s7
  loop: start=0, step=1, limit=4
  $region2: #{unet_decoder_block_forward.14} parent=0 // loop_pre_header
    _
  $region3: #{unet_decoder_block_forward.14} parent=0 // loop_header
    %s12 = sphi 0, %s16
    %p13 = scmp.ge.s32.totalorder %s12, 4
    %s19 = sphi 0, %s31
    %s20 = sphi 0, %s27
    %s21 = sphi 0, %s19
    %s22 = sphi 0, %s20
    %s23 = sphi 0, %s21
    %s24 = sphi 0, %s22
    %s34 = sphi 0, %s36
    %s37 = sphi 0, %s34
    %s38 = sphi 0, %s37
    %s54 = sphi 0, %s38
    %s60 = sphi 0, %s62
    %s63 = sphi 0, %s60
    %s64 = sphi 0, %s63
    %s80 = sphi 0, %s64
    %s86 = sphi 0, %s88
    %s89 = sphi 0, %s86
    %s90 = sphi 0, %s89
    %s106 = sphi 0, %s90
    %s112 = sphi 0, %s114
    %s115 = sphi 0, %s112
    %s116 = sphi 0, %s115
    %s132 = sphi 0, %s116
    %s138 = sphi 0, %s140
    %s141 = sphi 0, %s138
    %s142 = sphi 0, %s141
    %s158 = sphi 0, %s142
    %s164 = sphi 0, %s166
    %s167 = sphi 0, %s164
    %s168 = sphi 0, %s167
    %s184 = sphi 0, %s168
    %s192 = sphi 0, %s194
    %s195 = sphi 0, %s192
    %s196 = sphi 0, %s195
    %s212 = sphi 0, %s196
  $region4: #{unet_decoder_block_forward.14} parent=0 // loop_header_branch
    %15 = sbr.rel (%p13) target = $region8
  $region5: #{unet_decoder_block_forward.14} parent=0 // loop_body
    %s17 = ssub.s32 %s12, 1
    %s18 = ssub.s32 %s12, 2
    %s25 = sadd.s32 1, %s20
    %p26 = scmp.ge.s32.totalorder %s25, 1
    %s27 = scalar_select %p26, 0, %s25
    %s28 = sadd.s32 1, %s19
    %s29 = scalar_select %p26, %s28, %s19
    %p30 = scmp.ge.s32.totalorder %s29, 2
    %s31 = scalar_select %p30, 0, %s29
    %s32 = ssub.s32 %s19, %s31
    %p33 = scmp.eq.s32.totalorder %s32, 0
    %s35 = sadd.s32 %s34, 1
    %s36 = scalar_select %p33, %s34, %s35
    %p39 = pneg %p33
    %p40 = scmp.eq.s32.totalorder %s12, 1
    %p41 = por %p39, %p40
    %p42 = scmp.ne.s32.totalorder %s34, %s37
    %p43 = scmp.eq.s32.totalorder %s12, 0
    %p44 = por %p42, %p43
    %p45 = scmp.ne.s32.totalorder %s34, %s37
    %p46 = scmp.eq.s32.totalorder %s17, 1
    %p47 = por %p45, %p46
    %p48 = scmp.ne.s32.totalorder %s37, %s38
    %p49 = scmp.eq.s32.totalorder %s17, 0
    %p50 = por %p48, %p49
    %p51 = scmp.ne.s32.totalorder %s37, %s38
    %p52 = scmp.eq.s32.totalorder %s18, 1
    %p53 = por %p51, %p52
    %p55 = scmp.ne.s32.totalorder %s38, %s54
    %p56 = scmp.eq.s32.totalorder %s18, 0
    %p57 = por %p55, %p56
    %s58 = ssub.s32 %s20, %s27
    %p59 = scmp.eq.s32.totalorder %s58, 0
    %s61 = sadd.s32 %s60, 1
    %s62 = scalar_select %p59, %s60, %s61
    %p65 = pneg %p59
    %p66 = scmp.eq.s32.totalorder %s12, 1
    %p67 = por %p65, %p66
    %p68 = scmp.ne.s32.totalorder %s60, %s63
    %p69 = scmp.eq.s32.totalorder %s12, 0
    %p70 = por %p68, %p69
    %p71 = scmp.ne.s32.totalorder %s60, %s63
    %p72 = scmp.eq.s32.totalorder %s17, 1
    %p73 = por %p71, %p72
    %p74 = scmp.ne.s32.totalorder %s63, %s64
    %p75 = scmp.eq.s32.totalorder %s17, 0
    %p76 = por %p74, %p75
    %p77 = scmp.ne.s32.totalorder %s63, %s64
    %p78 = scmp.eq.s32.totalorder %s18, 1
    %p79 = por %p77, %p78
    %p81 = scmp.ne.s32.totalorder %s64, %s80
    %p82 = scmp.eq.s32.totalorder %s18, 0
    %p83 = por %p81, %p82
    %s84 = ssub.s32 %s20, %s27
    %p85 = scmp.eq.s32.totalorder %s84, 0
    %s87 = sadd.s32 %s86, 1
    %s88 = scalar_select %p85, %s86, %s87
    %p91 = pneg %p85
    %p92 = scmp.eq.s32.totalorder %s12, 1
    %p93 = por %p91, %p92
    %p94 = scmp.ne.s32.totalorder %s86, %s89
    %p95 = scmp.eq.s32.totalorder %s12, 0
    %p96 = por %p94, %p95
    %p97 = scmp.ne.s32.totalorder %s86, %s89
    %p98 = scmp.eq.s32.totalorder %s17, 1
    %p99 = por %p97, %p98
    %p100 = scmp.ne.s32.totalorder %s89, %s90
    %p101 = scmp.eq.s32.totalorder %s17, 0
    %p102 = por %p100, %p101
    %p103 = scmp.ne.s32.totalorder %s89, %s90
    %p104 = scmp.eq.s32.totalorder %s18, 1
    %p105 = por %p103, %p104
    %p107 = scmp.ne.s32.totalorder %s90, %s106
    %p108 = scmp.eq.s32.totalorder %s18, 0
    %p109 = por %p107, %p108
    %s110 = ssub.s32 %s19, %s31
    %p111 = scmp.eq.s32.totalorder %s110, 0
    %s113 = sadd.s32 %s112, 1
    %s114 = scalar_select %p111, %s112, %s113
    %p117 = pneg %p111
    %p118 = scmp.eq.s32.totalorder %s12, 1
    %p119 = por %p117, %p118
    %p120 = scmp.ne.s32.totalorder %s112, %s115
    %p121 = scmp.eq.s32.totalorder %s12, 0
    %p122 = por %p120, %p121
    %p123 = scmp.ne.s32.totalorder %s112, %s115
    %p124 = scmp.eq.s32.totalorder %s17, 1
    %p125 = por %p123, %p124
    %p126 = scmp.ne.s32.totalorder %s115, %s116
    %p127 = scmp.eq.s32.totalorder %s17, 0
    %p128 = por %p126, %p127
    %p129 = scmp.ne.s32.totalorder %s115, %s116
    %p130 = scmp.eq.s32.totalorder %s18, 1
    %p131 = por %p129, %p130
    %p133 = scmp.ne.s32.totalorder %s116, %s132
    %p134 = scmp.eq.s32.totalorder %s18, 0
    %p135 = por %p133, %p134
    %s136 = ssub.s32 %s20, %s27
    %p137 = scmp.eq.s32.totalorder %s136, 0
    %s139 = sadd.s32 %s138, 1
    %s140 = scalar_select %p137, %s138, %s139
    %p143 = pneg %p137
    %p144 = scmp.eq.s32.totalorder %s12, 1
    %p145 = por %p143, %p144
    %p146 = scmp.ne.s32.totalorder %s138, %s141
    %p147 = scmp.eq.s32.totalorder %s12, 0
    %p148 = por %p146, %p147
    %p149 = scmp.ne.s32.totalorder %s138, %s141
    %p150 = scmp.eq.s32.totalorder %s17, 1
    %p151 = por %p149, %p150
    %p152 = scmp.ne.s32.totalorder %s141, %s142
    %p153 = scmp.eq.s32.totalorder %s17, 0
    %p154 = por %p152, %p153
    %p155 = scmp.ne.s32.totalorder %s141, %s142
    %p156 = scmp.eq.s32.totalorder %s18, 1
    %p157 = por %p155, %p156
    %p159 = scmp.ne.s32.totalorder %s142, %s158
    %p160 = scmp.eq.s32.totalorder %s18, 0
    %p161 = por %p159, %p160
    %s162 = ssub.s32 %s20, %s27
    %p163 = scmp.eq.s32.totalorder %s162, 0
    %s165 = sadd.s32 %s164, 1
    %s166 = scalar_select %p163, %s164, %s165
    %p169 = pneg %p163
    %p170 = scmp.eq.s32.totalorder %s12, 1
    %p171 = por %p169, %p170
    %p172 = scmp.ne.s32.totalorder %s164, %s167
    %p173 = scmp.eq.s32.totalorder %s12, 0
    %p174 = por %p172, %p173
    %p175 = scmp.ne.s32.totalorder %s164, %s167
    %p176 = scmp.eq.s32.totalorder %s17, 1
    %p177 = por %p175, %p176
    %p178 = scmp.ne.s32.totalorder %s167, %s168
    %p179 = scmp.eq.s32.totalorder %s17, 0
    %p180 = por %p178, %p179
    %p181 = scmp.ne.s32.totalorder %s167, %s168
    %p182 = scmp.eq.s32.totalorder %s18, 1
    %p183 = por %p181, %p182
    %p185 = scmp.ne.s32.totalorder %s168, %s184
    %p186 = scmp.eq.s32.totalorder %s18, 0
    %p187 = por %p185, %p186
    %s188 = ssub.s32 %s19, %s31
    %s189 = ssub.s32 %s20, %s27
    %s190 = sor.u32 %s188, %s189
    %p191 = scmp.eq.s32.totalorder %s190, 0
    %s193 = sadd.s32 %s192, 1
    %s194 = scalar_select %p191, %s192, %s193
    %p197 = pneg %p191
    %p198 = scmp.eq.s32.totalorder %s12, 1
    %p199 = por %p197, %p198
    %p200 = scmp.ne.s32.totalorder %s192, %s195
    %p201 = scmp.eq.s32.totalorder %s12, 0
    %p202 = por %p200, %p201
    %p203 = scmp.ne.s32.totalorder %s192, %s195
    %p204 = scmp.eq.s32.totalorder %s17, 1
    %p205 = por %p203, %p204
    %p206 = scmp.ne.s32.totalorder %s195, %s196
    %p207 = scmp.eq.s32.totalorder %s17, 0
    %p208 = por %p206, %p207
    %p209 = scmp.ne.s32.totalorder %s195, %s196
    %p210 = scmp.eq.s32.totalorder %s18, 1
    %p211 = por %p209, %p210
    %p213 = scmp.ne.s32.totalorder %s196, %s212
    %p214 = scmp.eq.s32.totalorder %s18, 0
    %p215 = por %p213, %p214
    %p216 = scmp.le.s32.totalorder 1, %s12
    %p217 = scmp.lt.s32.totalorder %s12, 3
    %p218 = pnand %p216, %p217
    %p219 = pneg %p218
    // Predicated region
    $region9: #{unet_decoder_block_forward.14} parent=5 // pred_check
      _
    $region10: #{unet_decoder_block_forward.14} parent=5 // pred_check_branch
      %221 = sbr.rel (%p218) target = $region12
    $region11: #{unet_decoder_block_forward.14} parent=5 // pred_region
      %s222 = ssub.s32 %s12, 1
      // Predicated region
      $region13: #{unet_decoder_block_forward.14} parent=11 // pred_check
        %p223 = pneg %p76
      $region14: #{unet_decoder_block_forward.14} parent=11 // pred_check_branch
        %225 = sbr.rel (%p223) target = $region16
      $region15: #{unet_decoder_block_forward.14} parent=11 // pred_region
        %p226 = scmp.lt.s32.totalorder %s22, 0
        %s227 = scalar_select %p226, %s22, 0
        %s228 = smul.addr %s227, 4
        %s229 = scalar_lea.vmem %s1, %s228
      $region16: #{unet_decoder_block_forward.14} parent=11 // pred_fallthru
        _
      // Predicated region
      $region17: #{unet_decoder_block_forward.14} parent=11 // pred_check
        %p230 = pneg %p102
      $region18: #{unet_decoder_block_forward.14} parent=11 // pred_check_branch
        %232 = sbr.rel (%p230) target = $region20
      $region19: #{unet_decoder_block_forward.14} parent=11 // pred_region
        %p233 = scmp.lt.s32.totalorder %s22, 0
        %s234 = scalar_select %p233, %s22, 0
        %s235 = scalar_lea.vmem %s2, %s234
      $region20: #{unet_decoder_block_forward.14} parent=11 // pred_fallthru
        _
      // Predicated region
      $region21: #{unet_decoder_block_forward.14} parent=11 // pred_check
        %p236 = pneg %p154
      $region22: #{unet_decoder_block_forward.14} parent=11 // pred_check_branch
        %238 = sbr.rel (%p236) target = $region24
      $region23: #{unet_decoder_block_forward.14} parent=11 // pred_region
        %p239 = scmp.lt.s32.totalorder %s22, 0
        %s240 = scalar_select %p239, %s22, 0
        %s241 = smul.addr %s240, 4
        %s242 = scalar_lea.vmem %s4, %s241
      $region24: #{unet_decoder_block_forward.14} parent=11 // pred_fallthru
        _
      // Predicated region
      $region25: #{unet_decoder_block_forward.14} parent=11 // pred_check
        %p243 = pneg %p180
      $region26: #{unet_decoder_block_forward.14} parent=11 // pred_check_branch
        %245 = sbr.rel (%p243) target = $region28
      $region27: #{unet_decoder_block_forward.14} parent=11 // pred_region
        %p246 = scmp.lt.s32.totalorder %s22, 0
        %s247 = scalar_select %p246, %s22, 0
        %s248 = scalar_lea.vmem %s5, %s247
      $region28: #{unet_decoder_block_forward.14} parent=11 // pred_fallthru
        _
    $region12: #{unet_decoder_block_forward.14} parent=5 // pred_fallthru
      _
    %p249 = scmp.lt.s32.totalorder %s12, 2
    // Predicated region
    $region29: #{unet_decoder_block_forward.14} parent=5 // pred_check
      %p250 = pneg %p249
    $region30: #{unet_decoder_block_forward.14} parent=5 // pred_check_branch
      %252 = sbr.rel (%p250) target = $region32
    $region31: #{unet_decoder_block_forward.14} parent=5 // pred_region
      // Predicated region
      $region33: #{unet_decoder_block_forward.14} parent=31 // pred_check
        %p253 = pneg %p44
      $region34: #{unet_decoder_block_forward.14} parent=31 // pred_check_branch
        %255 = sbr.rel (%p253) target = $region36
      $region35: #{unet_decoder_block_forward.14} parent=31 // pred_region
        %p256 = scmp.lt.s32.totalorder %s19, 1
        %s257 = scalar_select %p256, %s19, 1
        %s258 = smul.addr %s257, 20
        %s259 = smul.addr %s258, 4
        %s260 = scalar_lea.vmem %s0, %s259
      $region36: #{unet_decoder_block_forward.14} parent=31 // pred_fallthru
        _
      // Predicated region
      $region37: #{unet_decoder_block_forward.14} parent=31 // pred_check
        %p261 = pneg %p122
      $region38: #{unet_decoder_block_forward.14} parent=31 // pred_check_branch
        %263 = sbr.rel (%p261) target = $region40
      $region39: #{unet_decoder_block_forward.14} parent=31 // pred_region
        %p264 = scmp.lt.s32.totalorder %s19, 1
        %s265 = scalar_select %p264, %s19, 1
        %s266 = smul.addr %s265, 8
        %s267 = smul.addr %s266, 4
        %s268 = scalar_lea.vmem %s3, %s267
      $region40: #{unet_decoder_block_forward.14} parent=31 // pred_fallthru
        _
    $region32: #{unet_decoder_block_forward.14} parent=5 // pred_fallthru
      _
    %p269 = scmp.le.s32.totalorder 1, %s12
    %p270 = scmp.lt.s32.totalorder %s12, 3
    %p271 = pnand %p269, %p270
    %p272 = pneg %p271
    // Predicated region
    $region41: #{unet_decoder_block_forward.14} parent=5 // pred_check
      _
    $region42: #{unet_decoder_block_forward.14} parent=5 // pred_check_branch
      %274 = sbr.rel (%p271) target = $region44
    $region43: #{unet_decoder_block_forward.14} parent=5 // pred_region
      %s275 = ssub.s32 %s12, 1
      %p276 = scmp.lt.s32.totalorder %s21, 1
      %s277 = scalar_select %p276, %s21, 1
      %s278 = smul.addr %s277, 20
      %s279 = smul.addr %s278, 4
      %s280 = scalar_lea.vmem %s0, %s279
      %p281 = pneg %p50
      %p282 = pneg %p47
      %p283 = scmp.lt.s32.totalorder %s22, 0
      %s284 = scalar_select %p283, %s22, 0
      %s285 = smul.addr %s284, 4
      %s286 = scalar_lea.vmem %s1, %s285
      %p287 = pneg %p76
      %p288 = pneg %p73
      %p289 = scmp.lt.s32.totalorder %s22, 0
      %s290 = scalar_select %p289, %s22, 0
      %s291 = scalar_lea.vmem %s2, %s290
      %p292 = pneg %p102
      %p293 = pneg %p99
      %p294 = scmp.lt.s32.totalorder %s21, 1
      %s295 = scalar_select %p294, %s21, 1
      %s296 = smul.addr %s295, 8
      %s297 = smul.addr %s296, 4
      %s298 = scalar_lea.vmem %s3, %s297
      %p299 = pneg %p128
      %p300 = pneg %p125
      %p301 = scmp.lt.s32.totalorder %s22, 0
      %s302 = scalar_select %p301, %s22, 0
      %s303 = smul.addr %s302, 4
      %s304 = scalar_lea.vmem %s4, %s303
      %p305 = pneg %p154
      %p306 = pneg %p151
      %p307 = scmp.lt.s32.totalorder %s22, 0
      %s308 = scalar_select %p307, %s22, 0
      %s309 = scalar_lea.vmem %s5, %s308
      %p310 = pneg %p180
      %p311 = pneg %p177
      %p312 = pneg %p208
      %p313 = pneg %p205
      %p314 = scmp.lt.s32.totalorder %s21, 1
      %s315 = scalar_select %p314, %s21, 1
      %p316 = scmp.lt.s32.totalorder %s22, 0
      %s317 = scalar_select %p316, %s22, 0
      %s318 = smul.addr %s315, 8
      %s319 = sadd.s32 %s317, %s318
      %s320 = smul.addr %s319, 4
      %s321 = scalar_lea.vmem %s6, %s320
      %p322 = scmp.lt.s32.totalorder %s21, 1
      %s323 = scalar_select %p322, %s21, 1
      %s324 = smul.addr %s323, 20
      %s325 = smul.addr %s324, 4
      %s326 = scalar_lea.vmem %s0, %s325
      %p327 = scmp.lt.s32.totalorder %s22, 0
      %s328 = scalar_select %p327, %s22, 0
      %s329 = smul.addr %s328, 4
      %s330 = scalar_lea.vmem %s1, %s329
      %p331 = scmp.lt.s32.totalorder %s22, 0
      %s332 = scalar_select %p331, %s22, 0
      %s333 = scalar_lea.vmem %s2, %s332
      %p334 = scmp.lt.s32.totalorder %s21, 1
      %s335 = scalar_select %p334, %s21, 1
      %s336 = smul.addr %s335, 8
      %s337 = smul.addr %s336, 4
      %s338 = scalar_lea.vmem %s3, %s337
      %p339 = scmp.lt.s32.totalorder %s22, 0
      %s340 = scalar_select %p339, %s22, 0
      %s341 = smul.addr %s340, 4
      %s342 = scalar_lea.vmem %s4, %s341
      %p343 = scmp.lt.s32.totalorder %s22, 0
      %s344 = scalar_select %p343, %s22, 0
      %s345 = scalar_lea.vmem %s5, %s344
      %p346 = scmp.lt.s32.totalorder %s21, 1
      %s347 = scalar_select %p346, %s21, 1
      %p348 = scmp.lt.s32.totalorder %s22, 0
      %s349 = scalar_select %p348, %s22, 0
      %s350 = smul.addr %s347, 8
      %s351 = sadd.s32 %s349, %s350
      %s352 = smul.addr %s351, 4
      %s353 = scalar_lea.vmem %s6, %s352
      %v355 = vld [vmem:[%s326] sm:$0xf]
      %v356 = vld [vmem:[%s326 + $0x4] sm:$0x1]
      %v357 = vld [vmem:[%s326 + $0x8] sm:$0xf]
      %v358 = vld [vmem:[%s326 + $0xc] sm:$0x1]
      %v359 = vld [vmem:[%s326 + $0x10] sm:$0xf]
      %v360 = vld [vmem:[%s326 + $0x14] sm:$0x1]
      %v361 = vld [vmem:[%s326 + $0x18] sm:$0xf]
      %v362 = vld [vmem:[%s326 + $0x1c] sm:$0x1]
      %v363 = vld [vmem:[%s326 + $0x20] sm:$0xf]
      %v364 = vld [vmem:[%s326 + $0x24] sm:$0x1]
      %v365 = vld [vmem:[%s326 + $0x28] sm:$0xf]
      %v366 = vld [vmem:[%s326 + $0x2c] sm:$0x1]
      %v367 = vld [vmem:[%s326 + $0x30] sm:$0xf]
      %v368 = vld [vmem:[%s326 + $0x34] sm:$0x1]
      %v369 = vld [vmem:[%s326 + $0x38] sm:$0xf]
      %v370 = vld [vmem:[%s326 + $0x3c] sm:$0x1]
      %v371 = vld [vmem:[%s326 + $0x40] sm:$0xf]
      %v372 = vld [vmem:[%s326 + $0x44] sm:$0x1]
      %v373 = vld [vmem:[%s326 + $0x48] sm:$0xf]
      %v374 = vld [vmem:[%s326 + $0x4c] sm:$0x1]
      %v391 = vunpack.c.l.b16 %v355
      %v392 = vunpack.c.l.b16 %v356
      %v393 = vunpack.c.l.b16 %v357
      %v394 = vunpack.c.l.b16 %v358
      %v395 = vunpack.c.l.b16 %v359
      %v396 = vunpack.c.l.b16 %v360
      %v397 = vunpack.c.l.b16 %v361
      %v398 = vunpack.c.l.b16 %v362
      %v399 = vunpack.c.l.b16 %v363
      %v400 = vunpack.c.l.b16 %v364
      %v401 = vunpack.c.l.b16 %v365
      %v402 = vunpack.c.l.b16 %v366
      %v403 = vunpack.c.l.b16 %v367
      %v404 = vunpack.c.l.b16 %v368
      %v405 = vunpack.c.l.b16 %v369
      %v406 = vunpack.c.l.b16 %v370
      %v407 = vpack.c.b16 %v392, %v391
      %v408 = vpack.c.b16 %v394, %v393
      %v409 = vpack.c.b16 %v396, %v395
      %v410 = vpack.c.b16 %v398, %v397
      %v411 = vpack.c.b16 %v400, %v399
      %v412 = vpack.c.b16 %v402, %v401
      %v413 = vpack.c.b16 %v404, %v403
      %v414 = vpack.c.b16 %v406, %v405
      %v416 = vshrl.u32 %v407, 16
      %v418 = vshll.u32 %v407, 16
      %v420 = vrot.slane %v418, 1
      %v421 = vor.u32 %v416, %v420
      %v423 = vshrl.u32 %v408, 16
      %v425 = vshll.u32 %v408, 16
      %v427 = vrot.slane %v425, 1
      %v428 = vor.u32 %v423, %v427
      %v430 = vshrl.u32 %v409, 16
      %v432 = vshll.u32 %v409, 16
      %v434 = vrot.slane %v432, 1
      %v435 = vor.u32 %v430, %v434
      %v437 = vshrl.u32 %v410, 16
      %v439 = vshll.u32 %v410, 16
      %v441 = vrot.slane %v439, 1
      %v442 = vor.u32 %v437, %v441
      %v444 = vshrl.u32 %v411, 16
      %v446 = vshll.u32 %v411, 16
      %v448 = vrot.slane %v446, 1
      %v449 = vor.u32 %v444, %v448
      %v451 = vshrl.u32 %v412, 16
      %v453 = vshll.u32 %v412, 16
      %v455 = vrot.slane %v453, 1
      %v456 = vor.u32 %v451, %v455
      %v458 = vshrl.u32 %v413, 16
      %v460 = vshll.u32 %v413, 16
      %v462 = vrot.slane %v460, 1
      %v463 = vor.u32 %v458, %v462
      %v465 = vshrl.u32 %v414, 16
      %v467 = vshll.u32 %v414, 16
      %v469 = vrot.slane %v467, 1
      %v470 = vor.u32 %v465, %v469
      %471 = vrot.lane.b32.xlu0 %v421, 8
      %v472 = vpop.permute.xlu0 %471
      %473 = vrot.lane.b32.xlu0 %v428, 8
      %v474 = vpop.permute.xlu0 %473
      %475 = vrot.lane.b32.xlu0 %v435, 8
      %v476 = vpop.permute.xlu0 %475
      %477 = vrot.lane.b32.xlu0 %v442, 8
      %v478 = vpop.permute.xlu0 %477
      %479 = vrot.lane.b32.xlu0 %v449, 8
      %v480 = vpop.permute.xlu0 %479
      %481 = vrot.lane.b32.xlu0 %v456, 8
      %v482 = vpop.permute.xlu0 %481
      %483 = vrot.lane.b32.xlu0 %v463, 8
      %v484 = vpop.permute.xlu0 %483
      %485 = vrot.lane.b32.xlu0 %v470, 8
      %v486 = vpop.permute.xlu0 %485
      %v487 = vrot.slane %v407, 1
      %v488 = vrot.slane %v408, 1
      %v489 = vrot.slane %v409, 1
      %v490 = vrot.slane %v410, 1
      %v491 = vrot.slane %v411, 1
      %v492 = vrot.slane %v412, 1
      %v493 = vrot.slane %v413, 1
      %v494 = vrot.slane %v414, 1
      %495 = vrot.lane.b32.xlu0 %v487, 16
      %v496 = vpop.permute.xlu0 %495
      %497 = vrot.lane.b32.xlu0 %v488, 16
      %v498 = vpop.permute.xlu0 %497
      %499 = vrot.lane.b32.xlu0 %v489, 16
      %v500 = vpop.permute.xlu0 %499
      %501 = vrot.lane.b32.xlu0 %v490, 16
      %v502 = vpop.permute.xlu0 %501
      %503 = vrot.lane.b32.xlu0 %v491, 16
      %v504 = vpop.permute.xlu0 %503
      %505 = vrot.lane.b32.xlu0 %v492, 16
      %v506 = vpop.permute.xlu0 %505
      %507 = vrot.lane.b32.xlu0 %v493, 16
      %v508 = vpop.permute.xlu0 %507
      %509 = vrot.lane.b32.xlu0 %v494, 16
      %v510 = vpop.permute.xlu0 %509
      %vm511 = vcmask 64512
      %v514 = vsel %vm511, %v355, %v472
      %v517 = vsel %vm511, %v357, %v474
      %v520 = vsel %vm511, %v359, %v476
      %v523 = vsel %vm511, %v361, %v478
      %v526 = vsel %vm511, %v363, %v480
      %v529 = vsel %vm511, %v365, %v482
      %v532 = vsel %vm511, %v367, %v484
      %v535 = vsel %vm511, %v369, %v486
      %vm536 = vcmask 130048
      %v538 = vsel %vm536, %v514, %v496
      %v540 = vsel %vm536, %v517, %v498
      %v542 = vsel %vm536, %v520, %v500
      %v544 = vsel %vm536, %v523, %v502
      %v546 = vsel %vm536, %v526, %v504
      %v548 = vsel %vm536, %v529, %v506
      %v550 = vsel %vm536, %v532, %v508
      %v552 = vsel %vm536, %v535, %v510
      %v553 = vld [vmem:[%s330] sm:$0xf]
      %v554 = vld [vmem:[%s330 + $0x4] sm:$0xf]
      %v555 = vld [vmem:[%s330 + $0x8] sm:$0xf]
      %v564 = vunpack.c.l.b16 %v538
      %v565 = vunpack.c.l.b16 %v540
      %v566 = vunpack.c.l.b16 %v542
      %v567 = vunpack.c.l.b16 %v544
      %v568 = vunpack.c.l.b16 %v546
      %v569 = vunpack.c.l.b16 %v548
      %v570 = vunpack.c.l.b16 %v550
      %v571 = vunpack.c.l.b16 %v552
      %v572 = vpack.c.b16 %v565, %v564
      %v573 = vpack.c.b16 %v567, %v566
      %v574 = vpack.c.b16 %v569, %v568
      %v575 = vpack.c.b16 %v571, %v570
      %v579 = vunpack.c.l.b16 %v553
      %v580 = vunpack.c.l.b16 %v554
      %v581 = vunpack.c.l.b16 %v555
      %v582 = vpack.c.b16 %v580, %v579
      %v583 = vpack.c.b16 %v581, %v581
      %vm585 = vcmask 195584
      %v587 = vsel %vm585, %v572, 0
      %v590 = vsel %vm585, %v573, 0
      %v593 = vsel %vm585, %v574, 0
      %v596 = vsel %vm585, %v575, 0
      %vm598 = vcmask 1043456
      %v600 = vsel %vm598, %v583, 0
      %602 = vmatprep.subr.bf16.mxu0 0
      %603 = vmatpush1.bf16.msra.mxu0 %v582
      %604 = vmatprep.subr.bf16.mxu0 0
      %605 = vmatpush1.bf16.msra.mxu0 %v600
      %606 = vmatprep.subr.bf16.mxu0 0
      %607 = vmatpush1.bf16.msra.mxu0 0
      %608 = vmatprep.subr.bf16.mxu0 0
      %609 = vmatpush1.bf16.msra.mxu0 0
      %610 = vmatprep.subr.bf16.mxu0 0
      %611 = vmatpush1.bf16.msra.mxu0 0
      %612 = vmatprep.subr.bf16.mxu0 0
      %613 = vmatpush1.bf16.msra.mxu0 0
      %614 = vmatprep.subr.bf16.mxu0 0
      %615 = vmatpush1.bf16.msra.mxu0 0
      %616 = vmatprep.subr.bf16.mxu0 0
      %617 = vmatpush1.bf16.msra.mxu0 0
      %618 = vmatprep.subr.bf16.mxu0 0
      %619 = vmatpush1.bf16.msra.mxu0 0
      %620 = vmatprep.subr.bf16.mxu0 0
      %621 = vmatpush1.bf16.msra.mxu0 0
      %622 = vmatprep.subr.bf16.mxu0 0
      %623 = vmatpush1.bf16.msra.mxu0 0
      %624 = vmatprep.subr.bf16.mxu0 0
      %625 = vmatpush1.bf16.msra.mxu0 0
      %626 = vmatprep.subr.bf16.mxu0 0
      %627 = vmatpush1.bf16.msra.mxu0 0
      %628 = vmatprep.subr.bf16.mxu0 0
      %629 = vmatpush1.bf16.msra.mxu0 0
      %630 = vmatprep.subr.bf16.mxu0 0
      %631 = vmatpush1.bf16.msra.mxu0 0
      %632 = vmatprep.subr.bf16.mxu0 0
      %633 = vmatpush1.bf16.msra.mxu0 0
      %634 = vmatprep.mubr.bf16.mxu0 0
      %635 = vmatmul.mubr.bf16.gmra.mrb[0].mxu0 %v587
      %v636 = vpop.f32.mrb[0].mxu0
      %v637 = vadd.f32 0.0, %v636
      %v638 = vpop.f32.mrb[0].mxu0
      %v639 = vpop.f32.mrb[0].mxu0
      %v640 = vadd.f32 0.0, %v639
      %v641 = vpop.f32.mrb[0].mxu0
      %642 = vmatprep.mubr.bf16.mxu0 0
      %643 = vmatmul.mubr.bf16.gmra.mrb[0].mxu0 %v590
      %v644 = vpop.f32.mrb[0].mxu0
      %v645 = vadd.f32 0.0, %v644
      %v646 = vpop.f32.mrb[0].mxu0
      %v647 = vpop.f32.mrb[0].mxu0
      %v648 = vadd.f32 0.0, %v647
      %v649 = vpop.f32.mrb[0].mxu0
      %650 = vmatprep.mubr.bf16.mxu0 0
      %651 = vmatmul.mubr.bf16.gmra.mrb[0].mxu0 %v593
      %v652 = vpop.f32.mrb[0].mxu0
      %v653 = vadd.f32 0.0, %v652
      %v654 = vpop.f32.mrb[0].mxu0
      %v655 = vpop.f32.mrb[0].mxu0
      %v656 = vadd.f32 0.0, %v655
      %v657 = vpop.f32.mrb[0].mxu0
      %658 = vmatprep.mubr.bf16.mxu0 0
      %659 = vmatmul.mubr.bf16.gmra.mrb[0].mxu0 %v596
      %v660 = vpop.f32.mrb[0].mxu0
      %v661 = vadd.f32 0.0, %v660
      %v662 = vpop.f32.mrb[0].mxu0
      %v663 = vpop.f32.mrb[0].mxu0
      %v664 = vadd.f32 0.0, %v663
      %v665 = vpop.f32.mrb[0].mxu0
      %666 = vdwg.mxu0
      %667 = vst [vmem:[#allocation2] sm:$0xff] %v637
      %668 = vst [vmem:[#allocation2 + $0x8] sm:$0xff] %v640
      %669 = vst [vmem:[#allocation2 + $0x10] sm:$0xff] %v645
      %670 = vst [vmem:[#allocation2 + $0x18] sm:$0xff] %v648
      %671 = vst [vmem:[#allocation2 + $0x20] sm:$0xff] %v653
      %672 = vst [vmem:[#allocation2 + $0x28] sm:$0xff] %v656
      %673 = vst [vmem:[#allocation2 + $0x30] sm:$0xff] %v661
      %674 = vst [vmem:[#allocation2 + $0x38] sm:$0xff] %v664
      %v677 = vunpack.c.l.b16 %v371
      %v678 = vunpack.c.l.b16 %v372
      %v679 = vpack.c.b16 %v678, %v677
      %v681 = vshrl.u32 %v679, 16
      %v683 = vshll.u32 %v679, 16
      %v685 = vrot.slane %v683, 1
      %v686 = vor.u32 %v681, %v685
      %687 = vrot.lane.b32.xlu0 %v686, 8
      %v688 = vpop.permute.xlu0 %687
      %v689 = vrot.slane %v679, 1
      %690 = vrot.lane.b32.xlu0 %v689, 16
      %v691 = vpop.permute.xlu0 %690
      %v694 = vsel %vm511, %v371, %v688
      %v696 = vsel %vm536, %v694, %v691
      %v697 = vld [vmem:[%s330 + $0xc] sm:$0xf]
      %v698 = vld [vmem:[%s330 + $0x10] sm:$0xf]
      %v699 = vld [vmem:[%s330 + $0x14] sm:$0xf]
      %v701 = vunpack.c.l.b16 %v696
      %v702 = vpack.c.b16 %v566, %v565
      %v703 = vpack.c.b16 %v568, %v567
      %v704 = vpack.c.b16 %v570, %v569
      %v705 = vpack.c.b16 %v701, %v571
      %v709 = vunpack.c.l.b16 %v697
      %v710 = vunpack.c.l.b16 %v698
      %v711 = vunpack.c.l.b16 %v699
      %v712 = vpack.c.b16 %v710, %v709
      %v713 = vpack.c.b16 %v711, %v711
      %v716 = vsel %vm585, %v702, 0
      %v719 = vsel %vm585, %v703, 0
      %v722 = vsel %vm585, %v704, 0
      %v725 = vsel %vm585, %v705, 0
      %v728 = vsel %vm598, %v713, 0
      %730 = vmatprep.subr.bf16.mxu0 0
      %731 = vmatpush1.bf16.msra.mxu0 %v712
      %732 = vmatprep.subr.bf16.mxu0 0
      %733 = vmatpush1.bf16.msra.mxu0 %v728
      %734 = vmatprep.subr.bf16.mxu0 0
      %735 = vmatpush1.bf16.msra.mxu0 0
      %736 = vmatprep.subr.bf16.mxu0 0
      %737 = vmatpush1.bf16.msra.mxu0 0
      %738 = vmatprep.subr.bf16.mxu0 0
      %739 = vmatpush1.bf16.msra.mxu0 0
      %740 = vmatprep.subr.bf16.mxu0 0
      %741 = vmatpush1.bf16.msra.mxu0 0
      %742 = vmatprep.subr.bf16.mxu0 0
      %743 = vmatpush1.bf16.msra.mxu0 0
      %744 = vmatprep.subr.bf16.mxu0 0
      %745 = vmatpush1.bf16.msra.mxu0 0
      %746 = vmatprep.subr.bf16.mxu0 0
      %747 = vmatpush1.bf16.msra.mxu0 0
      %748 = vmatprep.subr.bf16.mxu0 0
      %749 = vmatpush1.bf16.msra.mxu0 0
      %750 = vmatprep.subr.bf16.mxu0 0
      %751 = vmatpush1.bf16.msra.mxu0 0
      %752 = vmatprep.subr.bf16.mxu0 0
      %753 = vmatpush1.bf16.msra.mxu0 0
      %754 = vmatprep.subr.bf16.mxu0 0
      %755 = vmatpush1.bf16.msra.mxu0 0
      %756 = vmatprep.subr.bf16.mxu0 0
      %757 = vmatpush1.bf16.msra.mxu0 0
      %758 = vmatprep.subr.bf16.mxu0 0
      %759 = vmatpush1.bf16.msra.mxu0 0
      %760 = vmatprep.subr.bf16.mxu0 0
      %761 = vmatpush1.bf16.msra.mxu0 0
      %762 = vmatprep.mubr.bf16.mxu0 0
      %763 = vmatmul.mubr.bf16.gmra.mrb[0].mxu0 %v716
      %v764 = vpop.f32.mrb[0].mxu0
      %v765 = vadd.f32 0.0, %v764
      %v766 = vpop.f32.mrb[0].mxu0
      %v767 = vpop.f32.mrb[0].mxu0
      %v768 = vadd.f32 0.0, %v767
      %v769 = vpop.f32.mrb[0].mxu0
      %770 = vmatprep.mubr.bf16.mxu0 0
      %771 = vmatmul.mubr.bf16.gmra.mrb[0].mxu0 %v719
      %v772 = vpop.f32.mrb[0].mxu0
      %v773 = vadd.f32 0.0, %v772
      %v774 = vpop.f32.mrb[0].mxu0
      %v775 = vpop.f32.mrb[0].mxu0
      %v776 = vadd.f32 0.0, %v775
      %v777 = vpop.f32.mrb[0].mxu0
      %778 = vmatprep.mubr.bf16.mxu0 0
      %779 = vmatmul.mubr.bf16.gmra.mrb[0].mxu0 %v722
      %v780 = vpop.f32.mrb[0].mxu0
      %v781 = vadd.f32 0.0, %v780
      %v782 = vpop.f32.mrb[0].mxu0
      %v783 = vpop.f32.mrb[0].mxu0
      %v784 = vadd.f32 0.0, %v783
      %v785 = vpop.f32.mrb[0].mxu0
      %786 = vmatprep.mubr.bf16.mxu0 0
      %787 = vmatmul.mubr.bf16.gmra.mrb[0].mxu0 %v725
      %v788 = vpop.f32.mrb[0].mxu0
      %v789 = vadd.f32 0.0, %v788
      %v790 = vpop.f32.mrb[0].mxu0
      %v791 = vpop.f32.mrb[0].mxu0
      %v792 = vadd.f32 0.0, %v791
      %v793 = vpop.f32.mrb[0].mxu0
      %794 = vdwg.mxu0
      %v795 = vld [vmem:[#allocation2] sm:$0xff]
      %v796 = vld [vmem:[#allocation2 + $0x8] sm:$0xff]
      %v797 = vld [vmem:[#allocation2 + $0x10] sm:$0xff]
      %v798 = vld [vmem:[#allocation2 + $0x18] sm:$0xff]
      %v799 = vld [vmem:[#allocation2 + $0x20] sm:$0xff]
      %v800 = vld [vmem:[#allocation2 + $0x28] sm:$0xff]
      %v801 = vld [vmem:[#allocation2 + $0x30] sm:$0xff]
      %v802 = vld [vmem:[#allocation2 + $0x38] sm:$0xff]
      %v803 = vadd.f32 %v795, %v765
      %v804 = vadd.f32 %v796, %v768
      %v805 = vadd.f32 %v797, %v773
      %v806 = vadd.f32 %v798, %v776
      %v807 = vadd.f32 %v799, %v781
      %v808 = vadd.f32 %v800, %v784
      %v809 = vadd.f32 %v801, %v789
      %v810 = vadd.f32 %v802, %v792
      %811 = vst [vmem:[#allocation2] sm:$0xff] %v803
      %812 = vst [vmem:[#allocation2 + $0x8] sm:$0xff] %v804
      %813 = vst [vmem:[#allocation2 + $0x10] sm:$0xff] %v805
      %814 = vst [vmem:[#allocation2 + $0x18] sm:$0xff] %v806
      %815 = vst [vmem:[#allocation2 + $0x20] sm:$0xff] %v807
      %816 = vst [vmem:[#allocation2 + $0x28] sm:$0xff] %v808
      %817 = vst [vmem:[#allocation2 + $0x30] sm:$0xff] %v809
      %818 = vst [vmem:[#allocation2 + $0x38] sm:$0xff] %v810
      %v821 = vunpack.c.l.b16 %v373
      %v822 = vunpack.c.l.b16 %v374
      %v823 = vpack.c.b16 %v822, %v821
      %v825 = vshrl.u32 %v823, 16
      %v827 = vshll.u32 %v823, 16
      %v829 = vrot.slane %v827, 1
      %v830 = vor.u32 %v825, %v829
      %831 = vrot.lane.b32.xlu0 %v830, 8
      %v832 = vpop.permute.xlu0 %831
      %v833 = vrot.slane %v823, 1
      %834 = vrot.lane.b32.xlu0 %v833, 16
      %v835 = vpop.permute.xlu0 %834
      %v838 = vsel %vm511, %v373, %v832
      %v840 = vsel %vm536, %v838, %v835
      %v841 = vld [vmem:[%s330 + $0x18] sm:$0xf]
      %v842 = vld [vmem:[%s330 + $0x1c] sm:$0xf]
      %v843 = vld [vmem:[%s330 + $0x20] sm:$0xf]
      %v845 = vunpack.c.l.b16 %v840
      %v846 = vpack.c.b16 %v845, %v701
      %v850 = vunpack.c.l.b16 %v841
      %v851 = vunpack.c.l.b16 %v842
      %v852 = vunpack.c.l.b16 %v843
      %v853 = vpack.c.b16 %v851, %v850
      %v854 = vpack.c.b16 %v852, %v852
      %v857 = vsel %vm585, %v846, 0
      %v860 = vsel %vm598, %v854, 0
      %862 = vmatprep.subr.bf16.mxu0 0
      %863 = vmatpush1.bf16.msra.mxu0 %v853
      %864 = vmatprep.subr.bf16.mxu0 0
      %865 = vmatpush1.bf16.msra.mxu0 %v860
      %866 = vmatprep.subr.bf16.mxu0 0
      %867 = vmatpush1.bf16.msra.mxu0 0
      %868 = vmatprep.subr.bf16.mxu0 0
      %869 = vmatpush1.bf16.msra.mxu0 0
      %870 = vmatprep.subr.bf16.mxu0 0
      %871 = vmatpush1.bf16.msra.mxu0 0
      %872 = vmatprep.subr.bf16.mxu0 0
      %873 = vmatpush1.bf16.msra.mxu0 0
      %874 = vmatprep.subr.bf16.mxu0 0
      %875 = vmatpush1.bf16.msra.mxu0 0
      %876 = vmatprep.subr.bf16.mxu0 0
      %877 = vmatpush1.bf16.msra.mxu0 0
      %878 = vmatprep.subr.bf16.mxu0 0
      %879 = vmatpush1.bf16.msra.mxu0 0
      %880 = vmatprep.subr.bf16.mxu0 0
      %881 = vmatpush1.bf16.msra.mxu0 0
      %882 = vmatprep.subr.bf16.mxu0 0
      %883 = vmatpush1.bf16.msra.mxu0 0
      %884 = vmatprep.subr.bf16.mxu0 0
      %885 = vmatpush1.bf16.msra.mxu0 0
      %886 = vmatprep.subr.bf16.mxu0 0
      %887 = vmatpush1.bf16.msra.mxu0 0
      %888 = vmatprep.subr.bf16.mxu0 0
      %889 = vmatpush1.bf16.msra.mxu0 0
      %890 = vmatprep.subr.bf16.mxu0 0
      %891 = vmatpush1.bf16.msra.mxu0 0
      %892 = vmatprep.subr.bf16.mxu0 0
      %893 = vmatpush1.bf16.msra.mxu0 0
      %894 = vmatprep.mubr.bf16.mxu0 0
      %895 = vmatmul.mubr.bf16.gmra.mrb[0].mxu0 %v590
      %v896 = vpop.f32.mrb[0].mxu0
      %v897 = vadd.f32 0.0, %v896
      %v898 = vpop.f32.mrb[0].mxu0
      %v899 = vpop.f32.mrb[0].mxu0
      %v900 = vadd.f32 0.0, %v899
      %v901 = vpop.f32.mrb[0].mxu0
      %902 = vmatprep.mubr.bf16.mxu0 0
      %903 = vmatmul.mubr.bf16.gmra.mrb[0].mxu0 %v593
      %v904 = vpop.f32.mrb[0].mxu0
      %v905 = vadd.f32 0.0, %v904
      %v906 = vpop.f32.mrb[0].mxu0
      %v907 = vpop.f32.mrb[0].mxu0
      %v908 = vadd.f32 0.0, %v907
      %v909 = vpop.f32.mrb[0].mxu0
      %910 = vmatprep.mubr.bf16.mxu0 0
      %911 = vmatmul.mubr.bf16.gmra.mrb[0].mxu0 %v596
      %v912 = vpop.f32.mrb[0].mxu0
      %v913 = vadd.f32 0.0, %v912
      %v914 = vpop.f32.mrb[0].mxu0
      %v915 = vpop.f32.mrb[0].mxu0
      %v916 = vadd.f32 0.0, %v915
      %v917 = vpop.f32.mrb[0].mxu0
      %918 = vmatprep.mubr.bf16.mxu0 0
      %919 = vmatmul.mubr.bf16.gmra.mrb[0].mxu0 %v857
      %v920 = vpop.f32.mrb[0].mxu0
      %v921 = vadd.f32 0.0, %v920
      %v922 = vpop.f32.mrb[0].mxu0
      %v923 = vpop.f32.mrb[0].mxu0
      %v924 = vadd.f32 0.0, %v923
      %v925 = vpop.f32.mrb[0].mxu0
      %926 = vdwg.mxu0
      %v927 = vld [vmem:[#allocation2] sm:$0xff]
      %v928 = vld [vmem:[#allocation2 + $0x8] sm:$0xff]
      %v929 = vld [vmem:[#allocation2 + $0x10] sm:$0xff]
      %v930 = vld [vmem:[#allocation2 + $0x18] sm:$0xff]
      %v931 = vld [vmem:[#allocation2 + $0x20] sm:$0xff]
      %v932 = vld [vmem:[#allocation2 + $0x28] sm:$0xff]
      %v933 = vld [vmem:[#allocation2 + $0x30] sm:$0xff]
      %v934 = vld [vmem:[#allocation2 + $0x38] sm:$0xff]
      %v935 = vadd.f32 %v927, %v897
      %v936 = vadd.f32 %v928, %v900
      %v937 = vadd.f32 %v929, %v905
      %v938 = vadd.f32 %v930, %v908
      %v939 = vadd.f32 %v931, %v913
      %v940 = vadd.f32 %v932, %v916
      %v941 = vadd.f32 %v933, %v921
      %v942 = vadd.f32 %v934, %v924
      %943 = vst [vmem:[#allocation2] sm:$0xff] %v935
      %944 = vst [vmem:[#allocation2 + $0x8] sm:$0xff] %v936
      %945 = vst [vmem:[#allocation2 + $0x10] sm:$0xff] %v937
      %946 = vst [vmem:[#allocation2 + $0x18] sm:$0xff] %v938
      %947 = vst [vmem:[#allocation2 + $0x20] sm:$0xff] %v939
      %948 = vst [vmem:[#allocation2 + $0x28] sm:$0xff] %v940
      %949 = vst [vmem:[#allocation2 + $0x30] sm:$0xff] %v941
      %950 = vst [vmem:[#allocation2 + $0x38] sm:$0xff] %v942
      %v951 = vld [vmem:[#allocation2] sm:$0xff]
      %v952 = vld [vmem:[#allocation2 + $0x8] sm:$0xff]
      %v953 = vld [vmem:[#allocation2 + $0x10] sm:$0xff]
      %v954 = vld [vmem:[#allocation2 + $0x18] sm:$0xff]
      %v955 = vld [vmem:[#allocation2 + $0x20] sm:$0xff]
      %v956 = vld [vmem:[#allocation2 + $0x28] sm:$0xff]
      %v957 = vld [vmem:[#allocation2 + $0x30] sm:$0xff]
      %v958 = vld [vmem:[#allocation2 + $0x38] sm:$0xff]
      %v959 = vld [vmem:[%s333] sm:$0x1]
      %v961 = vlaneseq
      %v962 = vshrl.u32 %v961, 7
      %v963 = vsub.s32 0, %v962
      %v964 = vrot.slane %v959, %v963
      %v966 = vadd.f32 %v951, %v964
      %v967 = vadd.f32 %v952, %v964
      %v968 = vadd.f32 %v953, %v964
      %v969 = vadd.f32 %v954, %v964
      %v970 = vadd.f32 %v955, %v964
      %v971 = vadd.f32 %v956, %v964
      %v972 = vadd.f32 %v957, %v964
      %v973 = vadd.f32 %v958, %v964
      %v974 = vld [vmem:[%s338] sm:$0xf]
      %v975 = vld [vmem:[%s338 + $0x4] sm:$0xf]
      %v976 = vld [vmem:[%s338 + $0x8] sm:$0xf]
      %v977 = vld [vmem:[%s338 + $0xc] sm:$0xf]
      %v978 = vld [vmem:[%s338 + $0x10] sm:$0xf]
      %v979 = vld [vmem:[%s338 + $0x14] sm:$0xf]
      %v980 = vld [vmem:[%s338 + $0x18] sm:$0xf]
      %v981 = vld [vmem:[%s338 + $0x1c] sm:$0xf]
      %v982 = vld [vmem:[%s342] sm:$0xf]
      %v983 = vld [vmem:[%s342 + $0x4] sm:$0xf]
      %v992 = vunpack.c.l.b16 %v974
      %v993 = vunpack.c.l.b16 %v975
      %v994 = vunpack.c.l.b16 %v976
      %v995 = vunpack.c.l.b16 %v977
      %v996 = vunpack.c.l.b16 %v978
      %v997 = vunpack.c.l.b16 %v979
      %v998 = vunpack.c.l.b16 %v980
      %v999 = vunpack.c.l.b16 %v981
      %v1000 = vpack.c.b16 %v993, %v992
      %v1001 = vpack.c.b16 %v995, %v994
      %v1002 = vpack.c.b16 %v997, %v996
      %v1003 = vpack.c.b16 %v999, %v998
      %v1006 = vunpack.c.l.b16 %v982
      %v1007 = vunpack.c.l.b16 %v983
      %v1008 = vpack.c.b16 %v1007, %v1006
      %v1011 = vsel %vm536, %v1000, 0
      %v1014 = vsel %vm536, %v1001, 0
      %v1017 = vsel %vm536, %v1002, 0
      %v1020 = vsel %vm536, %v1003, 0
      %1022 = vmatprep.subr.bf16.mxu0 0
      %1023 = vmatpush1.bf16.msra.mxu0 %v1008
      %1024 = vmatprep.subr.bf16.mxu0 0
      %1025 = vmatpush1.bf16.msra.mxu0 0
      %1026 = vmatprep.subr.bf16.mxu0 0
      %1027 = vmatpush1.bf16.msra.mxu0 0
      %1028 = vmatprep.subr.bf16.mxu0 0
      %1029 = vmatpush1.bf16.msra.mxu0 0
      %1030 = vmatprep.subr.bf16.mxu0 0
      %1031 = vmatpush1.bf16.msra.mxu0 0
      %1032 = vmatprep.subr.bf16.mxu0 0
      %1033 = vmatpush1.bf16.msra.mxu0 0
      %1034 = vmatprep.subr.bf16.mxu0 0
      %1035 = vmatpush1.bf16.msra.mxu0 0
      %1036 = vmatprep.subr.bf16.mxu0 0
      %1037 = vmatpush1.bf16.msra.mxu0 0
      %1038 = vmatprep.subr.bf16.mxu0 0
      %1039 = vmatpush1.bf16.msra.mxu0 0
      %1040 = vmatprep.subr.bf16.mxu0 0
      %1041 = vmatpush1.bf16.msra.mxu0 0
      %1042 = vmatprep.subr.bf16.mxu0 0
      %1043 = vmatpush1.bf16.msra.mxu0 0
      %1044 = vmatprep.subr.bf16.mxu0 0
      %1045 = vmatpush1.bf16.msra.mxu0 0
      %1046 = vmatprep.subr.bf16.mxu0 0
      %1047 = vmatpush1.bf16.msra.mxu0 0
      %1048 = vmatprep.subr.bf16.mxu0 0
      %1049 = vmatpush1.bf16.msra.mxu0 0
      %1050 = vmatprep.subr.bf16.mxu0 0
      %1051 = vmatpush1.bf16.msra.mxu0 0
      %1052 = vmatprep.subr.bf16.mxu0 0
      %1053 = vmatpush1.bf16.msra.mxu0 0
      %1054 = vmatprep.mubr.bf16.mxu0 0
      %1055 = vmatmul.mubr.bf16.gmra.mrb[0].mxu0 %v1011
      %v1056 = vpop.f32.mrb[0].mxu0
      %v1057 = vadd.f32 0.0, %v1056
      %v1058 = vpop.f32.mrb[0].mxu0
      %v1059 = vpop.f32.mrb[0].mxu0
      %v1060 = vadd.f32 0.0, %v1059
      %v1061 = vpop.f32.mrb[0].mxu0
      %1062 = vmatprep.mubr.bf16.mxu0 0
      %1063 = vmatmul.mubr.bf16.gmra.mrb[0].mxu0 %v1014
      %v1064 = vpop.f32.mrb[0].mxu0
      %v1065 = vadd.f32 0.0, %v1064
      %v1066 = vpop.f32.mrb[0].mxu0
      %v1067 = vpop.f32.mrb[0].mxu0
      %v1068 = vadd.f32 0.0, %v1067
      %v1069 = vpop.f32.mrb[0].mxu0
      %1070 = vmatprep.mubr.bf16.mxu0 0
      %1071 = vmatmul.mubr.bf16.gmra.mrb[0].mxu0 %v1017
      %v1072 = vpop.f32.mrb[0].mxu0
      %v1073 = vadd.f32 0.0, %v1072
      %v1074 = vpop.f32.mrb[0].mxu0
      %v1075 = vpop.f32.mrb[0].mxu0
      %v1076 = vadd.f32 0.0, %v1075
      %v1077 = vpop.f32.mrb[0].mxu0
      %1078 = vmatprep.mubr.bf16.mxu0 0
      %1079 = vmatmul.mubr.bf16.gmra.mrb[0].mxu0 %v1020
      %v1080 = vpop.f32.mrb[0].mxu0
      %v1081 = vadd.f32 0.0, %v1080
      %v1082 = vpop.f32.mrb[0].mxu0
      %v1083 = vpop.f32.mrb[0].mxu0
      %v1084 = vadd.f32 0.0, %v1083
      %v1085 = vpop.f32.mrb[0].mxu0
      %1086 = vdwg.mxu0
      %v1087 = vadd.f32 %v966, %v1057
      %v1088 = vadd.f32 %v967, %v1060
      %v1089 = vadd.f32 %v968, %v1065
      %v1090 = vadd.f32 %v969, %v1068
      %v1091 = vadd.f32 %v970, %v1073
      %v1092 = vadd.f32 %v971, %v1076
      %v1093 = vadd.f32 %v972, %v1081
      %v1094 = vadd.f32 %v973, %v1084
      %v1095 = vld [vmem:[%s345] sm:$0x1]
      %v1097 = vlaneseq
      %v1098 = vshrl.u32 %v1097, 7
      %v1099 = vsub.s32 0, %v1098
      %v1100 = vrot.slane %v1095, %v1099
      %v1102 = vadd.f32 %v1087, %v1100
      %v1103 = vadd.f32 %v1088, %v1100
      %v1104 = vadd.f32 %v1089, %v1100
      %v1105 = vadd.f32 %v1090, %v1100
      %v1106 = vadd.f32 %v1091, %v1100
      %v1107 = vadd.f32 %v1092, %v1100
      %v1108 = vadd.f32 %v1093, %v1100
      %v1109 = vadd.f32 %v1094, %v1100
      %v1110 = vpack.c.bf16 %v1103, %v1102
      %v1111 = vpack.c.bf16 %v1105, %v1104
      %v1112 = vpack.c.bf16 %v1107, %v1106
      %v1113 = vpack.c.bf16 %v1109, %v1108
      %v1118 = vunpack.c.l.b16 %v1110
      %v1119 = vunpack.c.h.b16 %v1110
      %v1120 = vunpack.c.l.b16 %v1111
      %v1121 = vunpack.c.h.b16 %v1111
      %v1122 = vunpack.c.l.b16 %v1112
      %v1123 = vunpack.c.h.b16 %v1112
      %v1124 = vunpack.c.l.b16 %v1113
      %v1125 = vunpack.c.h.b16 %v1113
      %v1126 = vpack.c.b16 %v1118, %v1118
      %v1127 = vpack.c.b16 %v1119, %v1119
      %v1128 = vpack.c.b16 %v1120, %v1120
      %v1129 = vpack.c.b16 %v1121, %v1121
      %v1130 = vpack.c.b16 %v1122, %v1122
      %v1131 = vpack.c.b16 %v1123, %v1123
      %v1132 = vpack.c.b16 %v1124, %v1124
      %v1133 = vpack.c.b16 %v1125, %v1125
      %1142 = vst [vmem:[%s353] sm:$0xf] %v1126
      %1143 = vst [vmem:[%s353 + $0x4] sm:$0xf] %v1127
      %1144 = vst [vmem:[%s353 + $0x8] sm:$0xf] %v1128
      %1145 = vst [vmem:[%s353 + $0xc] sm:$0xf] %v1129
      %1146 = vst [vmem:[%s353 + $0x10] sm:$0xf] %v1130
      %1147 = vst [vmem:[%s353 + $0x14] sm:$0xf] %v1131
      %1148 = vst [vmem:[%s353 + $0x18] sm:$0xf] %v1132
      %1149 = vst [vmem:[%s353 + $0x1c] sm:$0xf] %v1133
      %p1150 = scmp.lt.s32.totalorder %s21, 1
      %s1151 = scalar_select %p1150, %s21, 1
      %p1152 = scmp.lt.s32.totalorder %s22, 0
      %s1153 = scalar_select %p1152, %s22, 0
      %s1154 = smul.addr %s1151, 8
      %s1155 = sadd.s32 %s1153, %s1154
      %s1156 = smul.addr %s1155, 4
      %s1157 = scalar_lea.vmem %s6, %s1156
      // Predicated region
      $region45: #{unet_decoder_block_forward.14} parent=43 // pred_check
        %p1158 = pneg %p205
      $region46: #{unet_decoder_block_forward.14} parent=43 // pred_check_branch
        %1160 = sbr.rel (%p1158) target = $region48
      $region47: #{unet_decoder_block_forward.14} parent=43 // pred_region
        _
      $region48: #{unet_decoder_block_forward.14} parent=43 // pred_fallthru
        _
    $region44: #{unet_decoder_block_forward.14} parent=5 // pred_fallthru
      _
    %p1161 = scmp.le.s32.totalorder 2, %s12
    // Predicated region
    $region49: #{unet_decoder_block_forward.14} parent=5 // pred_check
      %p1162 = pneg %p1161
    $region50: #{unet_decoder_block_forward.14} parent=5 // pred_check_branch
      %1164 = sbr.rel (%p1162) target = $region52
    $region51: #{unet_decoder_block_forward.14} parent=5 // pred_region
      %s1165 = ssub.s32 %s12, 2
      // Predicated region
      $region53: #{unet_decoder_block_forward.14} parent=51 // pred_check
        %p1166 = pneg %p211
      $region54: #{unet_decoder_block_forward.14} parent=51 // pred_check_branch
        %1168 = sbr.rel (%p1166) target = $region56
      $region55: #{unet_decoder_block_forward.14} parent=51 // pred_region
        %p1169 = scmp.lt.s32.totalorder %s23, 1
        %s1170 = scalar_select %p1169, %s23, 1
        %p1171 = scmp.lt.s32.totalorder %s24, 0
        %s1172 = scalar_select %p1171, %s24, 0
        %s1173 = smul.addr %s1170, 8
        %s1174 = sadd.s32 %s1172, %s1173
        %s1175 = smul.addr %s1174, 4
        %s1176 = scalar_lea.vmem %s6, %s1175
      $region56: #{unet_decoder_block_forward.14} parent=51 // pred_fallthru
        _
    $region52: #{unet_decoder_block_forward.14} parent=5 // pred_fallthru
      _
  $region6: #{unet_decoder_block_forward.14} parent=0 // loop_footer
    %s16 = sadd.s32 1, %s12
  $region7: #{unet_decoder_block_forward.14} parent=0 // loop_footer_branch
    %11 = sbr.rel target = $region3
  $region8: #{unet_decoder_block_forward.14} parent=0 // loop_exit
    _

// kernel: unet_decoder_block_forward.15
$region0: #{unet_decoder_block_forward.15}
  #allocation0 [shape = 'u32[]', space=smem, size = 0x4, offset = 0x4, fixed_abs, tag = 'smem constant byte address 0x4 - core index']
  #allocation1 [shape = 'u32[144,128]{1,0:T(1,128)}', space=vmem, size = 0x12000, scoped, tag = 'internal scratch']
  %s0 = inlined_call_operand.vmem [shape: bf16[2,64,8], index: 0, kind: input, shape index: {}]
  %s1 = inlined_call_operand.vmem [shape: f32[1,8], index: 1, kind: input, shape index: {}]
  %s2 = inlined_call_operand.vmem [shape: f32[1,8], index: 2, kind: input, shape index: {}]
  %s3 = inlined_call_operand.vmem [shape: f32[16,8], index: 3, kind: input, shape index: {}]
  %s4 = inlined_call_operand.vmem [shape: f32[4,8], index: 4, kind: input, shape index: {}]
  %s5 = inlined_call_operand.vmem [shape: bf16[8,24], index: 5, kind: input, shape index: {}]
  %s6 = inlined_call_operand.vmem [shape: f32[1,24], index: 6, kind: input, shape index: {}]
  %s7 = inlined_call_operand.vmem [shape: bf16[8,8], index: 7, kind: input, shape index: {}]
  %s8 = inlined_call_operand.vmem [shape: f32[1,8], index: 8, kind: input, shape index: {}]
  %s9 = inlined_call_operand.vmem [shape: bf16[2,64,8], index: 9, kind: output, shape index: {}]
  %s10 = sld [smem:[#allocation0]]
  $region69: #{unet_decoder_block_forward.15} parent=0
    _
  %s12 = ssub.s32 1, %s10
  %s13 = scalar_select 0, %s12, %s10
  loop: start=0, step=1, limit=4
  $region2: #{unet_decoder_block_forward.15} parent=0 // loop_pre_header
    _
  $region3: #{unet_decoder_block_forward.15} parent=0 // loop_header
    %s15 = sphi 0, %s19
    %p16 = scmp.ge.s32.totalorder %s15, 4
    %s25 = sphi 0, %s27
    %s28 = sphi 0, %s25
    %s29 = sphi 0, %s28
    %s45 = sphi 0, %s29
    %s49 = sphi 0, %s49
    %s51 = sphi 0, %s49
    %s52 = sphi 0, %s51
    %s66 = sphi 0, %s52
    %s70 = sphi 0, %s70
    %s72 = sphi 0, %s70
    %s73 = sphi 0, %s72
    %s87 = sphi 0, %s73
    %s91 = sphi 0, %s91
    %s93 = sphi 0, %s91
    %s94 = sphi 0, %s93
    %s108 = sphi 0, %s94
    %s112 = sphi 0, %s112
    %s114 = sphi 0, %s112
    %s115 = sphi 0, %s114
    %s129 = sphi 0, %s115
    %s133 = sphi 0, %s133
    %s135 = sphi 0, %s133
    %s136 = sphi 0, %s135
    %s150 = sphi 0, %s136
    %s154 = sphi 0, %s154
    %s156 = sphi 0, %s154
    %s157 = sphi 0, %s156
    %s171 = sphi 0, %s157
    %s175 = sphi 0, %s175
    %s177 = sphi 0, %s175
    %s178 = sphi 0, %s177
    %s192 = sphi 0, %s178
    %s196 = sphi 0, %s196
    %s198 = sphi 0, %s196
    %s199 = sphi 0, %s198
    %s213 = sphi 0, %s199
    %s219 = sphi 0, %s221
    %s222 = sphi 0, %s219
    %s223 = sphi 0, %s222
    %s239 = sphi 0, %s223
  $region4: #{unet_decoder_block_forward.15} parent=0 // loop_header_branch
    %18 = sbr.rel (%p16) target = $region8
  $region5: #{unet_decoder_block_forward.15} parent=0 // loop_body
    %s20 = ssub.s32 %s15, 1
    %s21 = ssub.s32 %s15, 2
    %s22 = sadd.s32 %s15, 1
    %s23 = ssub.s32 %s15, %s22
    %p24 = scmp.eq.s32.totalorder %s23, 0
    %s26 = sadd.s32 %s25, 1
    %s27 = scalar_select %p24, %s25, %s26
    %p30 = pneg %p24
    %p31 = scmp.eq.s32.totalorder %s15, 1
    %p32 = por %p30, %p31
    %p33 = scmp.ne.s32.totalorder %s25, %s28
    %p34 = scmp.eq.s32.totalorder %s15, 0
    %p35 = por %p33, %p34
    %p36 = scmp.ne.s32.totalorder %s25, %s28
    %p37 = scmp.eq.s32.totalorder %s20, 1
    %p38 = por %p36, %p37
    %p39 = scmp.ne.s32.totalorder %s28, %s29
    %p40 = scmp.eq.s32.totalorder %s20, 0
    %p41 = por %p39, %p40
    %p42 = scmp.ne.s32.totalorder %s28, %s29
    %p43 = scmp.eq.s32.totalorder %s21, 1
    %p44 = por %p42, %p43
    %p46 = scmp.ne.s32.totalorder %s29, %s45
    %p47 = scmp.eq.s32.totalorder %s21, 0
    %p48 = por %p46, %p47
    %s50 = sadd.s32 %s49, 1
    %p53 = scmp.eq.s32.totalorder %s15, 1
    %p54 = scmp.ne.s32.totalorder %s49, %s51
    %p55 = scmp.eq.s32.totalorder %s15, 0
    %p56 = por %p54, %p55
    %p57 = scmp.ne.s32.totalorder %s49, %s51
    %p58 = scmp.eq.s32.totalorder %s20, 1
    %p59 = por %p57, %p58
    %p60 = scmp.ne.s32.totalorder %s51, %s52
    %p61 = scmp.eq.s32.totalorder %s20, 0
    %p62 = por %p60, %p61
    %p63 = scmp.ne.s32.totalorder %s51, %s52
    %p64 = scmp.eq.s32.totalorder %s21, 1
    %p65 = por %p63, %p64
    %p67 = scmp.ne.s32.totalorder %s52, %s66
    %p68 = scmp.eq.s32.totalorder %s21, 0
    %p69 = por %p67, %p68
    %s71 = sadd.s32 %s70, 1
    %p74 = scmp.eq.s32.totalorder %s15, 1
    %p75 = scmp.ne.s32.totalorder %s70, %s72
    %p76 = scmp.eq.s32.totalorder %s15, 0
    %p77 = por %p75, %p76
    %p78 = scmp.ne.s32.totalorder %s70, %s72
    %p79 = scmp.eq.s32.totalorder %s20, 1
    %p80 = por %p78, %p79
    %p81 = scmp.ne.s32.totalorder %s72, %s73
    %p82 = scmp.eq.s32.totalorder %s20, 0
    %p83 = por %p81, %p82
    %p84 = scmp.ne.s32.totalorder %s72, %s73
    %p85 = scmp.eq.s32.totalorder %s21, 1
    %p86 = por %p84, %p85
    %p88 = scmp.ne.s32.totalorder %s73, %s87
    %p89 = scmp.eq.s32.totalorder %s21, 0
    %p90 = por %p88, %p89
    %s92 = sadd.s32 %s91, 1
    %p95 = scmp.eq.s32.totalorder %s15, 1
    %p96 = scmp.ne.s32.totalorder %s91, %s93
    %p97 = scmp.eq.s32.totalorder %s15, 0
    %p98 = por %p96, %p97
    %p99 = scmp.ne.s32.totalorder %s91, %s93
    %p100 = scmp.eq.s32.totalorder %s20, 1
    %p101 = por %p99, %p100
    %p102 = scmp.ne.s32.totalorder %s93, %s94
    %p103 = scmp.eq.s32.totalorder %s20, 0
    %p104 = por %p102, %p103
    %p105 = scmp.ne.s32.totalorder %s93, %s94
    %p106 = scmp.eq.s32.totalorder %s21, 1
    %p107 = por %p105, %p106
    %p109 = scmp.ne.s32.totalorder %s94, %s108
    %p110 = scmp.eq.s32.totalorder %s21, 0
    %p111 = por %p109, %p110
    %s113 = sadd.s32 %s112, 1
    %p116 = scmp.eq.s32.totalorder %s15, 1
    %p117 = scmp.ne.s32.totalorder %s112, %s114
    %p118 = scmp.eq.s32.totalorder %s15, 0
    %p119 = por %p117, %p118
    %p120 = scmp.ne.s32.totalorder %s112, %s114
    %p121 = scmp.eq.s32.totalorder %s20, 1
    %p122 = por %p120, %p121
    %p123 = scmp.ne.s32.totalorder %s114, %s115
    %p124 = scmp.eq.s32.totalorder %s20, 0
    %p125 = por %p123, %p124
    %p126 = scmp.ne.s32.totalorder %s114, %s115
    %p127 = scmp.eq.s32.totalorder %s21, 1
    %p128 = por %p126, %p127
    %p130 = scmp.ne.s32.totalorder %s115, %s129
    %p131 = scmp.eq.s32.totalorder %s21, 0
    %p132 = por %p130, %p131
    %s134 = sadd.s32 %s133, 1
    %p137 = scmp.eq.s32.totalorder %s15, 1
    %p138 = scmp.ne.s32.totalorder %s133, %s135
    %p139 = scmp.eq.s32.totalorder %s15, 0
    %p140 = por %p138, %p139
    %p141 = scmp.ne.s32.totalorder %s133, %s135
    %p142 = scmp.eq.s32.totalorder %s20, 1
    %p143 = por %p141, %p142
    %p144 = scmp.ne.s32.totalorder %s135, %s136
    %p145 = scmp.eq.s32.totalorder %s20, 0
    %p146 = por %p144, %p145
    %p147 = scmp.ne.s32.totalorder %s135, %s136
    %p148 = scmp.eq.s32.totalorder %s21, 1
    %p149 = por %p147, %p148
    %p151 = scmp.ne.s32.totalorder %s136, %s150
    %p152 = scmp.eq.s32.totalorder %s21, 0
    %p153 = por %p151, %p152
    %s155 = sadd.s32 %s154, 1
    %p158 = scmp.eq.s32.totalorder %s15, 1
    %p159 = scmp.ne.s32.totalorder %s154, %s156
    %p160 = scmp.eq.s32.totalorder %s15, 0
    %p161 = por %p159, %p160
    %p162 = scmp.ne.s32.totalorder %s154, %s156
    %p163 = scmp.eq.s32.totalorder %s20, 1
    %p164 = por %p162, %p163
    %p165 = scmp.ne.s32.totalorder %s156, %s157
    %p166 = scmp.eq.s32.totalorder %s20, 0
    %p167 = por %p165, %p166
    %p168 = scmp.ne.s32.totalorder %s156, %s157
    %p169 = scmp.eq.s32.totalorder %s21, 1
    %p170 = por %p168, %p169
    %p172 = scmp.ne.s32.totalorder %s157, %s171
    %p173 = scmp.eq.s32.totalorder %s21, 0
    %p174 = por %p172, %p173
    %s176 = sadd.s32 %s175, 1
    %p179 = scmp.eq.s32.totalorder %s15, 1
    %p180 = scmp.ne.s32.totalorder %s175, %s177
    %p181 = scmp.eq.s32.totalorder %s15, 0
    %p182 = por %p180, %p181
    %p183 = scmp.ne.s32.totalorder %s175, %s177
    %p184 = scmp.eq.s32.totalorder %s20, 1
    %p185 = por %p183, %p184
    %p186 = scmp.ne.s32.totalorder %s177, %s178
    %p187 = scmp.eq.s32.totalorder %s20, 0
    %p188 = por %p186, %p187
    %p189 = scmp.ne.s32.totalorder %s177, %s178
    %p190 = scmp.eq.s32.totalorder %s21, 1
    %p191 = por %p189, %p190
    %p193 = scmp.ne.s32.totalorder %s178, %s192
    %p194 = scmp.eq.s32.totalorder %s21, 0
    %p195 = por %p193, %p194
    %s197 = sadd.s32 %s196, 1
    %p200 = scmp.eq.s32.totalorder %s15, 1
    %p201 = scmp.ne.s32.totalorder %s196, %s198
    %p202 = scmp.eq.s32.totalorder %s15, 0
    %p203 = por %p201, %p202
    %p204 = scmp.ne.s32.totalorder %s196, %s198
    %p205 = scmp.eq.s32.totalorder %s20, 1
    %p206 = por %p204, %p205
    %p207 = scmp.ne.s32.totalorder %s198, %s199
    %p208 = scmp.eq.s32.totalorder %s20, 0
    %p209 = por %p207, %p208
    %p210 = scmp.ne.s32.totalorder %s198, %s199
    %p211 = scmp.eq.s32.totalorder %s21, 1
    %p212 = por %p210, %p211
    %p214 = scmp.ne.s32.totalorder %s199, %s213
    %p215 = scmp.eq.s32.totalorder %s21, 0
    %p216 = por %p214, %p215
    %s217 = ssub.s32 %s15, %s22
    %p218 = scmp.eq.s32.totalorder %s217, 0
    %s220 = sadd.s32 %s219, 1
    %s221 = scalar_select %p218, %s219, %s220
    %p224 = pneg %p218
    %p225 = scmp.eq.s32.totalorder %s15, 1
    %p226 = por %p224, %p225
    %p227 = scmp.ne.s32.totalorder %s219, %s222
    %p228 = scmp.eq.s32.totalorder %s15, 0
    %p229 = por %p227, %p228
    %p230 = scmp.ne.s32.totalorder %s219, %s222
    %p231 = scmp.eq.s32.totalorder %s20, 1
    %p232 = por %p230, %p231
    %p233 = scmp.ne.s32.totalorder %s222, %s223
    %p234 = scmp.eq.s32.totalorder %s20, 0
    %p235 = por %p233, %p234
    %p236 = scmp.ne.s32.totalorder %s222, %s223
    %p237 = scmp.eq.s32.totalorder %s21, 1
    %p238 = por %p236, %p237
    %p240 = scmp.ne.s32.totalorder %s223, %s239
    %p241 = scmp.eq.s32.totalorder %s21, 0
    %p242 = por %p240, %p241
    %p243 = scmp.le.s32.totalorder 1, %s15
    %p244 = scmp.lt.s32.totalorder %s15, 3
    %p245 = pnand %p243, %p244
    %p246 = pneg %p245
    // Predicated region
    $region9: #{unet_decoder_block_forward.15} parent=5 // pred_check
      _
    $region10: #{unet_decoder_block_forward.15} parent=5 // pred_check_branch
      %248 = sbr.rel (%p245) target = $region12
    $region11: #{unet_decoder_block_forward.15} parent=5 // pred_region
      %s249 = ssub.s32 %s15, 1
      // Predicated region
      $region13: #{unet_decoder_block_forward.15} parent=11 // pred_check
        %p250 = pneg %p62
      $region14: #{unet_decoder_block_forward.15} parent=11 // pred_check_branch
        %252 = sbr.rel (%p250) target = $region16
      $region15: #{unet_decoder_block_forward.15} parent=11 // pred_region
        _
      $region16: #{unet_decoder_block_forward.15} parent=11 // pred_fallthru
        _
      // Predicated region
      $region17: #{unet_decoder_block_forward.15} parent=11 // pred_check
        %p253 = pneg %p83
      $region18: #{unet_decoder_block_forward.15} parent=11 // pred_check_branch
        %255 = sbr.rel (%p253) target = $region20
      $region19: #{unet_decoder_block_forward.15} parent=11 // pred_region
        _
      $region20: #{unet_decoder_block_forward.15} parent=11 // pred_fallthru
        _
      // Predicated region
      $region21: #{unet_decoder_block_forward.15} parent=11 // pred_check
        %p256 = pneg %p104
      $region22: #{unet_decoder_block_forward.15} parent=11 // pred_check_branch
        %258 = sbr.rel (%p256) target = $region24
      $region23: #{unet_decoder_block_forward.15} parent=11 // pred_region
        _
      $region24: #{unet_decoder_block_forward.15} parent=11 // pred_fallthru
        _
      // Predicated region
      $region25: #{unet_decoder_block_forward.15} parent=11 // pred_check
        %p259 = pneg %p125
      $region26: #{unet_decoder_block_forward.15} parent=11 // pred_check_branch
        %261 = sbr.rel (%p259) target = $region28
      $region27: #{unet_decoder_block_forward.15} parent=11 // pred_region
        _
      $region28: #{unet_decoder_block_forward.15} parent=11 // pred_fallthru
        _
      // Predicated region
      $region29: #{unet_decoder_block_forward.15} parent=11 // pred_check
        %p262 = pneg %p146
      $region30: #{unet_decoder_block_forward.15} parent=11 // pred_check_branch
        %264 = sbr.rel (%p262) target = $region32
      $region31: #{unet_decoder_block_forward.15} parent=11 // pred_region
        _
      $region32: #{unet_decoder_block_forward.15} parent=11 // pred_fallthru
        _
      // Predicated region
      $region33: #{unet_decoder_block_forward.15} parent=11 // pred_check
        %p265 = pneg %p167
      $region34: #{unet_decoder_block_forward.15} parent=11 // pred_check_branch
        %267 = sbr.rel (%p265) target = $region36
      $region35: #{unet_decoder_block_forward.15} parent=11 // pred_region
        _
      $region36: #{unet_decoder_block_forward.15} parent=11 // pred_fallthru
        _
      // Predicated region
      $region37: #{unet_decoder_block_forward.15} parent=11 // pred_check
        %p268 = pneg %p188
      $region38: #{unet_decoder_block_forward.15} parent=11 // pred_check_branch
        %270 = sbr.rel (%p268) target = $region40
      $region39: #{unet_decoder_block_forward.15} parent=11 // pred_region
        _
      $region40: #{unet_decoder_block_forward.15} parent=11 // pred_fallthru
        _
      // Predicated region
      $region41: #{unet_decoder_block_forward.15} parent=11 // pred_check
        %p271 = pneg %p209
      $region42: #{unet_decoder_block_forward.15} parent=11 // pred_check_branch
        %273 = sbr.rel (%p271) target = $region44
      $region43: #{unet_decoder_block_forward.15} parent=11 // pred_region
        _
      $region44: #{unet_decoder_block_forward.15} parent=11 // pred_fallthru
        _
    $region12: #{unet_decoder_block_forward.15} parent=5 // pred_fallthru
      _
    %p274 = scmp.lt.s32.totalorder %s15, 2
    // Predicated region
    $region45: #{unet_decoder_block_forward.15} parent=5 // pred_check
      %p275 = pneg %p274
    $region46: #{unet_decoder_block_forward.15} parent=5 // pred_check_branch
      %277 = sbr.rel (%p275) target = $region48
    $region47: #{unet_decoder_block_forward.15} parent=5 // pred_region
      // Predicated region
      $region49: #{unet_decoder_block_forward.15} parent=47 // pred_check
        %p278 = pneg %p35
      $region50: #{unet_decoder_block_forward.15} parent=47 // pred_check_branch
        %280 = sbr.rel (%p278) target = $region52
      $region51: #{unet_decoder_block_forward.15} parent=47 // pred_region
        %p281 = scmp.lt.s32.totalorder %s15, 1
        %s282 = scalar_select %p281, %s15, 1
        %s283 = smul.addr %s282, 8
        %s284 = smul.addr %s283, 4
        %s285 = scalar_lea.vmem %s0, %s284
      $region52: #{unet_decoder_block_forward.15} parent=47 // pred_fallthru
        _
    $region48: #{unet_decoder_block_forward.15} parent=5 // pred_fallthru
      _
    %p286 = scmp.le.s32.totalorder 1, %s15
    %p287 = scmp.lt.s32.totalorder %s15, 3
    %p288 = pnand %p286, %p287
    %p289 = pneg %p288
    // Predicated region
    $region53: #{unet_decoder_block_forward.15} parent=5 // pred_check
      _
    $region54: #{unet_decoder_block_forward.15} parent=5 // pred_check_branch
      %291 = sbr.rel (%p288) target = $region56
    $region55: #{unet_decoder_block_forward.15} parent=5 // pred_region
      %s292 = ssub.s32 %s15, 1
      %p293 = scmp.lt.s32.totalorder %s20, 1
      %s294 = scalar_select %p293, %s20, 1
      %s295 = smul.addr %s294, 8
      %s296 = smul.addr %s295, 4
      %s297 = scalar_lea.vmem %s0, %s296
      %p298 = pneg %p41
      %p299 = pneg %p38
      %p300 = pneg %p62
      %p301 = pneg %p59
      %p302 = pneg %p83
      %p303 = pneg %p80
      %p304 = pneg %p104
      %p305 = pneg %p101
      %p306 = pneg %p125
      %p307 = pneg %p122
      %p308 = pneg %p146
      %p309 = pneg %p143
      %p310 = pneg %p167
      %p311 = pneg %p164
      %p312 = pneg %p188
      %p313 = pneg %p185
      %p314 = pneg %p209
      %p315 = pneg %p206
      %p316 = pneg %p235
      %p317 = pneg %p232
      %p318 = scmp.lt.s32.totalorder %s20, 1
      %s319 = scalar_select %p318, %s20, 1
      %s320 = smul.addr %s319, 8
      %s321 = smul.addr %s320, 4
      %s322 = scalar_lea.vmem %s9, %s321
      %p323 = scmp.lt.s32.totalorder %s20, 1
      %s324 = scalar_select %p323, %s20, 1
      %s325 = smul.addr %s324, 8
      %s326 = smul.addr %s325, 4
      %s327 = scalar_lea.vmem %s0, %s326
      %p328 = scmp.lt.s32.totalorder %s20, 1
      %s329 = scalar_select %p328, %s20, 1
      %s330 = smul.addr %s329, 8
      %s331 = smul.addr %s330, 4
      %s332 = scalar_lea.vmem %s9, %s331
      %v334 = vld [vmem:[%s327] sm:$0xf]
      %v335 = vld [vmem:[%s327 + $0x4] sm:$0xf]
      %v336 = vld [vmem:[%s327 + $0x8] sm:$0xf]
      %v337 = vld [vmem:[%s327 + $0xc] sm:$0xf]
      %v338 = vld [vmem:[%s327 + $0x10] sm:$0xf]
      %v339 = vld [vmem:[%s327 + $0x14] sm:$0xf]
      %v340 = vld [vmem:[%s327 + $0x18] sm:$0xf]
      %v341 = vld [vmem:[%s327 + $0x1c] sm:$0xf]
      %v342 = vunpack.c.l.bf16 %v334
      %v343 = vunpack.c.l.bf16 %v335
      %v344 = vunpack.c.l.bf16 %v336
      %v345 = vunpack.c.l.bf16 %v337
      %v346 = vunpack.c.l.bf16 %v338
      %v347 = vunpack.c.l.bf16 %v339
      %v348 = vunpack.c.l.bf16 %v340
      %v349 = vunpack.c.l.bf16 %v341
      %v350 = vmul.f32 %v342, %v342
      %v351 = vmul.f32 %v343, %v343
      %v352 = vmul.f32 %v344, %v344
      %v353 = vmul.f32 %v345, %v345
      %v354 = vmul.f32 %v346, %v346
      %v355 = vmul.f32 %v347, %v347
      %v356 = vmul.f32 %v348, %v348
      %v357 = vmul.f32 %v349, %v349
      %366 = vrot.lane.b32.xlu0 %v350, 8
      %v367 = vpop.permute.xlu0 %366
      %368 = vrot.lane.b32.xlu0 %v351, 8
      %v369 = vpop.permute.xlu0 %368
      %370 = vrot.lane.b32.xlu0 %v352, 8
      %v371 = vpop.permute.xlu0 %370
      %372 = vrot.lane.b32.xlu0 %v353, 8
      %v373 = vpop.permute.xlu0 %372
      %374 = vrot.lane.b32.xlu0 %v354, 8
      %v375 = vpop.permute.xlu0 %374
      %376 = vrot.lane.b32.xlu0 %v355, 8
      %v377 = vpop.permute.xlu0 %376
      %378 = vrot.lane.b32.xlu0 %v356, 8
      %v379 = vpop.permute.xlu0 %378
      %380 = vrot.lane.b32.xlu0 %v357, 8
      %v381 = vpop.permute.xlu0 %380
      %vm390 = vcmask 64512
      %v391 = vsel %vm390, %v342, %v367
      %v392 = vsel %vm390, %v343, %v369
      %v393 = vsel %vm390, %v344, %v371
      %v394 = vsel %vm390, %v345, %v373
      %v395 = vsel %vm390, %v346, %v375
      %v396 = vsel %vm390, %v347, %v377
      %v397 = vsel %vm390, %v348, %v379
      %v398 = vsel %vm390, %v349, %v381
      %v399 = vld [vmem:[%s3] sm:$0xff]
      %v400 = vld [vmem:[%s3 + $0x8] sm:$0xff]
      %vm401 = vcmask 130048
      %v403 = vsel %vm401, %v391, 0
      %v406 = vsel %vm401, %v392, 0
      %v409 = vsel %vm401, %v393, 0
      %v412 = vsel %vm401, %v394, 0
      %v415 = vsel %vm401, %v395, 0
      %v418 = vsel %vm401, %v396, 0
      %v421 = vsel %vm401, %v397, 0
      %v424 = vsel %vm401, %v398, 0
      %426 = vmatprep.subr.mxu0 0.0
      %427 = vmatpush1.msra.mxu0 %v399
      %428 = vmatprep.subr.mxu0 0.0
      %429 = vmatpush1.msra.mxu0 %v400
      %430 = vmatprep.subr.mxu0 0.0
      %431 = vmatpush1.msra.mxu0 0.0
      %432 = vmatprep.subr.mxu0 0.0
      %433 = vmatpush1.msra.mxu0 0.0
      %434 = vmatprep.subr.mxu0 0.0
      %435 = vmatpush1.msra.mxu0 0.0
      %436 = vmatprep.subr.mxu0 0.0
      %437 = vmatpush1.msra.mxu0 0.0
      %438 = vmatprep.subr.mxu0 0.0
      %439 = vmatpush1.msra.mxu0 0.0
      %440 = vmatprep.subr.mxu0 0.0
      %441 = vmatpush1.msra.mxu0 0.0
      %442 = vmatprep.subr.mxu0 0.0
      %443 = vmatpush1.msra.mxu0 0.0
      %444 = vmatprep.subr.mxu0 0.0
      %445 = vmatpush1.msra.mxu0 0.0
      %446 = vmatprep.subr.mxu0 0.0
      %447 = vmatpush1.msra.mxu0 0.0
      %448 = vmatprep.subr.mxu0 0.0
      %449 = vmatpush1.msra.mxu0 0.0
      %450 = vmatprep.subr.mxu0 0.0
      %451 = vmatpush1.msra.mxu0 0.0
      %452 = vmatprep.subr.mxu0 0.0
      %453 = vmatpush1.msra.mxu0 0.0
      %454 = vmatprep.subr.mxu0 0.0
      %455 = vmatpush1.msra.mxu0 0.0
      %456 = vmatprep.subr.mxu0 0.0
      %457 = vmatpush1.msra.mxu0 0.0
      %458 = vmatprep.subr.mxu0 0.0
      %459 = vmatpush1.msra.mxu0 0.0
      %460 = vmatprep.subr.mxu0 0.0
      %461 = vmatpush1.msra.mxu0 0.0
      %462 = vmatprep.subr.mxu0 0.0
      %463 = vmatpush1.msra.mxu0 0.0
      %464 = vmatprep.subr.mxu0 0.0
      %465 = vmatpush1.msra.mxu0 0.0
      %466 = vmatprep.subr.mxu0 0.0
      %467 = vmatpush1.msra.mxu0 0.0
      %468 = vmatprep.subr.mxu0 0.0
      %469 = vmatpush1.msra.mxu0 0.0
      %470 = vmatprep.subr.mxu0 0.0
      %471 = vmatpush1.msra.mxu0 0.0
      %472 = vmatprep.subr.mxu0 0.0
      %473 = vmatpush1.msra.mxu0 0.0
      %474 = vmatprep.subr.mxu0 0.0
      %475 = vmatpush1.msra.mxu0 0.0
      %476 = vmatprep.subr.mxu0 0.0
      %477 = vmatpush1.msra.mxu0 0.0
      %478 = vmatprep.subr.mxu0 0.0
      %479 = vmatpush1.msra.mxu0 0.0
      %480 = vmatprep.subr.mxu0 0.0
      %481 = vmatpush1.msra.mxu0 0.0
      %482 = vmatprep.subr.mxu0 0.0
      %483 = vmatpush1.msra.mxu0 0.0
      %484 = vmatprep.subr.mxu0 0.0
      %485 = vmatpush1.msra.mxu0 0.0
      %486 = vmatprep.subr.mxu0 0.0
      %487 = vmatpush1.msra.mxu0 0.0
      %488 = vmatprep.subr.mxu0 0.0
      %489 = vmatpush1.msra.mxu0 0.0
      %490 = vmatprep.mubr.f32.mxu0 0.0
      %491 = vmatmul.mubr.f32.gmra.mrb[0].mxu0 %v403
      %v492 = vpop.f32.mrb[0].mxu0
      %v493 = vadd.f32 0.0, %v492
      %v494 = vpop.f32.mrb[0].mxu0
      %495 = vmatprep.mubr.f32.mxu0 0.0
      %496 = vmatmul.mubr.f32.gmra.mrb[0].mxu0 %v406
      %v497 = vpop.f32.mrb[0].mxu0
      %v498 = vadd.f32 0.0, %v497
      %v499 = vpop.f32.mrb[0].mxu0
      %500 = vmatprep.mubr.f32.mxu0 0.0
      %501 = vmatmul.mubr.f32.gmra.mrb[0].mxu0 %v409
      %v502 = vpop.f32.mrb[0].mxu0
      %v503 = vadd.f32 0.0, %v502
      %v504 = vpop.f32.mrb[0].mxu0
      %505 = vmatprep.mubr.f32.mxu0 0.0
      %506 = vmatmul.mubr.f32.gmra.mrb[0].mxu0 %v412
      %v507 = vpop.f32.mrb[0].mxu0
      %v508 = vadd.f32 0.0, %v507
      %v509 = vpop.f32.mrb[0].mxu0
      %510 = vmatprep.mubr.f32.mxu0 0.0
      %511 = vmatmul.mubr.f32.gmra.mrb[0].mxu0 %v415
      %v512 = vpop.f32.mrb[0].mxu0
      %v513 = vadd.f32 0.0, %v512
      %v514 = vpop.f32.mrb[0].mxu0
      %515 = vmatprep.mubr.f32.mxu0 0.0
      %516 = vmatmul.mubr.f32.gmra.mrb[0].mxu0 %v418
      %v517 = vpop.f32.mrb[0].mxu0
      %v518 = vadd.f32 0.0, %v517
      %v519 = vpop.f32.mrb[0].mxu0
      %520 = vmatprep.mubr.f32.mxu0 0.0
      %521 = vmatmul.mubr.f32.gmra.mrb[0].mxu0 %v421
      %v522 = vpop.f32.mrb[0].mxu0
      %v523 = vadd.f32 0.0, %v522
      %v524 = vpop.f32.mrb[0].mxu0
      %525 = vmatprep.mubr.f32.mxu0 0.0
      %526 = vmatmul.mubr.f32.gmra.mrb[0].mxu0 %v424
      %v527 = vpop.f32.mrb[0].mxu0
      %v528 = vadd.f32 0.0, %v527
      %v529 = vpop.f32.mrb[0].mxu0
      %530 = vdwg.mxu0
      %v531 = vsel %vm390, %v493, 0.0
      %v532 = vsel %vm390, %v498, 0.0
      %v533 = vadd.f32 %v531, %v532
      %v534 = vsel %vm390, %v503, 0.0
      %v535 = vadd.f32 %v533, %v534
      %v536 = vsel %vm390, %v508, 0.0
      %v537 = vadd.f32 %v535, %v536
      %v538 = vsel %vm390, %v513, 0.0
      %v539 = vadd.f32 %v537, %v538
      %v540 = vsel %vm390, %v518, 0.0
      %v541 = vadd.f32 %v539, %v540
      %v542 = vsel %vm390, %v523, 0.0
      %v543 = vadd.f32 %v541, %v542
      %v544 = vsel %vm390, %v528, 0.0
      %v545 = vadd.f32 %v543, %v544
      %v546 = vrot.slane %v545, 4
      %v547 = vadd.f32 %v545, %v546
      %v548 = vrot.slane %v547, 2
      %v549 = vadd.f32 %v547, %v548
      %v550 = vrot.slane %v549, 1
      %v551 = vadd.f32 %v549, %v550
      %v552 = vrcp.pop 128.0
      %v553 = vmul.f32 %v551, %v552
      %v554 = vmul.f32 %v553, %v553
      %556 = vrot.lane.b32.xlu0 %v554, 4
      %v557 = vpop.permute.xlu0 %556
      %v559 = vsub.f32 %v553, %v557
      %v560 = vmax.f32 %v559, 0.0
      %v561 = vadd.f32 %v560, 1e-05
      %v562 = vrsqrt.pop %v561
      %v564 = vrot.slane %v562, 7
      %565 = vrot.lane.b32.xlu0 %v564, 124
      %v566 = vpop.permute.xlu0 %565
      %vm568 = vcmask 1040384
      %v569 = vsel %vm568, %v553, %v566
      %v570 = vld [vmem:[%s4] sm:$0xf]
      %vm571 = vcmask 31744
      %v573 = vsel %vm571, %v569, 0
      %vm575 = vcmask 1043456
      %v577 = vsel %vm575, %v570, 0
      %579 = vmatprep.subr.mxu0 0.0
      %580 = vmatpush1.msra.mxu0 %v577
      %581 = vmatprep.subr.mxu0 0.0
      %582 = vmatpush1.msra.mxu0 0.0
      %583 = vmatprep.subr.mxu0 0.0
      %584 = vmatpush1.msra.mxu0 0.0
      %585 = vmatprep.subr.mxu0 0.0
      %586 = vmatpush1.msra.mxu0 0.0
      %587 = vmatprep.subr.mxu0 0.0
      %588 = vmatpush1.msra.mxu0 0.0
      %589 = vmatprep.subr.mxu0 0.0
      %590 = vmatpush1.msra.mxu0 0.0
      %591 = vmatprep.subr.mxu0 0.0
      %592 = vmatpush1.msra.mxu0 0.0
      %593 = vmatprep.subr.mxu0 0.0
      %594 = vmatpush1.msra.mxu0 0.0
      %595 = vmatprep.subr.mxu0 0.0
      %596 = vmatpush1.msra.mxu0 0.0
      %597 = vmatprep.subr.mxu0 0.0
      %598 = vmatpush1.msra.mxu0 0.0
      %599 = vmatprep.subr.mxu0 0.0
      %600 = vmatpush1.msra.mxu0 0.0
      %601 = vmatprep.subr.mxu0 0.0
      %602 = vmatpush1.msra.mxu0 0.0
      %603 = vmatprep.subr.mxu0 0.0
      %604 = vmatpush1.msra.mxu0 0.0
      %605 = vmatprep.subr.mxu0 0.0
      %606 = vmatpush1.msra.mxu0 0.0
      %607 = vmatprep.subr.mxu0 0.0
      %608 = vmatpush1.msra.mxu0 0.0
      %609 = vmatprep.subr.mxu0 0.0
      %610 = vmatpush1.msra.mxu0 0.0
      %611 = vmatprep.subr.mxu0 0.0
      %612 = vmatpush1.msra.mxu0 0.0
      %613 = vmatprep.subr.mxu0 0.0
      %614 = vmatpush1.msra.mxu0 0.0
      %615 = vmatprep.subr.mxu0 0.0
      %616 = vmatpush1.msra.mxu0 0.0
      %617 = vmatprep.subr.mxu0 0.0
      %618 = vmatpush1.msra.mxu0 0.0
      %619 = vmatprep.subr.mxu0 0.0
      %620 = vmatpush1.msra.mxu0 0.0
      %621 = vmatprep.subr.mxu0 0.0
      %622 = vmatpush1.msra.mxu0 0.0
      %623 = vmatprep.subr.mxu0 0.0
      %624 = vmatpush1.msra.mxu0 0.0
      %625 = vmatprep.subr.mxu0 0.0
      %626 = vmatpush1.msra.mxu0 0.0
      %627 = vmatprep.subr.mxu0 0.0
      %628 = vmatpush1.msra.mxu0 0.0
      %629 = vmatprep.subr.mxu0 0.0
      %630 = vmatpush1.msra.mxu0 0.0
      %631 = vmatprep.subr.mxu0 0.0
      %632 = vmatpush1.msra.mxu0 0.0
      %633 = vmatprep.subr.mxu0 0.0
      %634 = vmatpush1.msra.mxu0 0.0
      %635 = vmatprep.subr.mxu0 0.0
      %636 = vmatpush1.msra.mxu0 0.0
      %637 = vmatprep.subr.mxu0 0.0
      %638 = vmatpush1.msra.mxu0 0.0
      %639 = vmatprep.subr.mxu0 0.0
      %640 = vmatpush1.msra.mxu0 0.0
      %641 = vmatprep.subr.mxu0 0.0
      %642 = vmatpush1.msra.mxu0 0.0
      %643 = vmatprep.mubr.f32.mxu0 0.0
      %644 = vmatmul.mubr.f32.gmra.mrb[0].mxu0 %v573
      %v645 = vpop.f32.mrb[0].mxu0
      %v646 = vadd.f32 0.0, %v645
      %v647 = vpop.f32.mrb[0].mxu0
      %648 = vdwg.mxu0
      %v649 = vlaneseq
      %v650 = vshrl.u32 %v649, 7
      %v651 = vsub.s32 0, %v650
      %v652 = vrot.slane %v646, %v651
      %v653 = vsub.f32 %v342, %v652
      %v654 = vsub.f32 %v343, %v652
      %v655 = vsub.f32 %v344, %v652
      %v656 = vsub.f32 %v345, %v652
      %v657 = vsub.f32 %v346, %v652
      %v658 = vsub.f32 %v347, %v652
      %v659 = vsub.f32 %v348, %v652
      %v660 = vsub.f32 %v349, %v652
      %v661 = vlaneseq
      %v662 = vshrl.u32 %v661, 7
      %v663 = vsub.s32 1, %v662
      %v664 = vrot.slane %v646, %v663
      %v665 = vmul.f32 %v653, %v664
      %v666 = vmul.f32 %v654, %v664
      %v667 = vmul.f32 %v655, %v664
      %v668 = vmul.f32 %v656, %v664
      %v669 = vmul.f32 %v657, %v664
      %v670 = vmul.f32 %v658, %v664
      %v671 = vmul.f32 %v659, %v664
      %v672 = vmul.f32 %v660, %v664
      %v673 = vld [vmem:[%s1] sm:$0x1]
      %v675 = vlaneseq
      %v676 = vshrl.u32 %v675, 7
      %v677 = vsub.s32 0, %v676
      %v678 = vrot.slane %v673, %v677
      %v680 = vmul.f32 %v665, %v678
      %v681 = vmul.f32 %v666, %v678
      %v682 = vmul.f32 %v667, %v678
      %v683 = vmul.f32 %v668, %v678
      %v684 = vmul.f32 %v669, %v678
      %v685 = vmul.f32 %v670, %v678
      %v686 = vmul.f32 %v671, %v678
      %v687 = vmul.f32 %v672, %v678
      %v688 = vld [vmem:[%s2] sm:$0x1]
      %v690 = vlaneseq
      %v691 = vshrl.u32 %v690, 7
      %v692 = vsub.s32 0, %v691
      %v693 = vrot.slane %v688, %v692
      %v695 = vadd.f32 %v680, %v693
      %v696 = vadd.f32 %v681, %v693
      %v697 = vadd.f32 %v682, %v693
      %v698 = vadd.f32 %v683, %v693
      %v699 = vadd.f32 %v684, %v693
      %v700 = vadd.f32 %v685, %v693
      %v701 = vadd.f32 %v686, %v693
      %v702 = vadd.f32 %v687, %v693
      %v703 = vpack.c.bf16 %v696, %v695
      %v704 = vpack.c.bf16 %v698, %v697
      %v705 = vpack.c.bf16 %v700, %v699
      %v706 = vpack.c.bf16 %v702, %v701
      %v707 = vld [vmem:[%s5] sm:$0xf]
      %v708 = vld [vmem:[%s6] sm:$0x1]
      %v710 = vlaneseq
      %v711 = vshrl.u32 %v710, 7
      %v712 = vsub.s32 0, %v711
      %v713 = vrot.slane %v708, %v712
      %v716 = vsel %vm390, %v703, 0
      %v719 = vsel %vm390, %v704, 0
      %v722 = vsel %vm390, %v705, 0
      %v725 = vsel %vm390, %v706, 0
      %v728 = vsel %vm575, %v707, 0
      %730 = vmatprep.subr.bf16.mxu0 0
      %731 = vmatpush1.bf16.msra.mxu0 %v728
      %732 = vmatprep.subr.bf16.mxu0 0
      %733 = vmatpush1.bf16.msra.mxu0 0
      %734 = vmatprep.subr.bf16.mxu0 0
      %735 = vmatpush1.bf16.msra.mxu0 0
      %736 = vmatprep.subr.bf16.mxu0 0
      %737 = vmatpush1.bf16.msra.mxu0 0
      %738 = vmatprep.subr.bf16.mxu0 0
      %739 = vmatpush1.bf16.msra.mxu0 0
      %740 = vmatprep.subr.bf16.mxu0 0
      %741 = vmatpush1.bf16.msra.mxu0 0
      %742 = vmatprep.subr.bf16.mxu0 0
      %743 = vmatpush1.bf16.msra.mxu0 0
      %744 = vmatprep.subr.bf16.mxu0 0
      %745 = vmatpush1.bf16.msra.mxu0 0
      %746 = vmatprep.subr.bf16.mxu0 0
      %747 = vmatpush1.bf16.msra.mxu0 0
      %748 = vmatprep.subr.bf16.mxu0 0
      %749 = vmatpush1.bf16.msra.mxu0 0
      %750 = vmatprep.subr.bf16.mxu0 0
      %751 = vmatpush1.bf16.msra.mxu0 0
      %752 = vmatprep.subr.bf16.mxu0 0
      %753 = vmatpush1.bf16.msra.mxu0 0
      %754 = vmatprep.subr.bf16.mxu0 0
      %755 = vmatpush1.bf16.msra.mxu0 0
      %756 = vmatprep.subr.bf16.mxu0 0
      %757 = vmatpush1.bf16.msra.mxu0 0
      %758 = vmatprep.subr.bf16.mxu0 0
      %759 = vmatpush1.bf16.msra.mxu0 0
      %760 = vmatprep.subr.bf16.mxu0 0
      %761 = vmatpush1.bf16.msra.mxu0 0
      %762 = vmatprep.mubr.bf16.mxu0 0
      %763 = vmatmul.mubr.bf16.gmra.mrb[0].mxu0 %v716
      %v764 = vpop.f32.mrb[0].mxu0
      %v765 = vadd.f32 %v713, %v764
      %v766 = vpop.f32.mrb[0].mxu0
      %v767 = vpop.f32.mrb[0].mxu0
      %v768 = vadd.f32 %v713, %v767
      %v769 = vpop.f32.mrb[0].mxu0
      %770 = vmatprep.mubr.bf16.mxu0 0
      %771 = vmatmul.mubr.bf16.gmra.mrb[0].mxu0 %v719
      %v772 = vpop.f32.mrb[0].mxu0
      %v773 = vadd.f32 %v713, %v772
      %v774 = vpop.f32.mrb[0].mxu0
      %v775 = vpop.f32.mrb[0].mxu0
      %v776 = vadd.f32 %v713, %v775
      %v777 = vpop.f32.mrb[0].mxu0
      %778 = vmatprep.mubr.bf16.mxu0 0
      %779 = vmatmul.mubr.bf16.gmra.mrb[0].mxu0 %v722
      %v780 = vpop.f32.mrb[0].mxu0
      %v781 = vadd.f32 %v713, %v780
      %v782 = vpop.f32.mrb[0].mxu0
      %v783 = vpop.f32.mrb[0].mxu0
      %v784 = vadd.f32 %v713, %v783
      %v785 = vpop.f32.mrb[0].mxu0
      %786 = vmatprep.mubr.bf16.mxu0 0
      %787 = vmatmul.mubr.bf16.gmra.mrb[0].mxu0 %v725
      %v788 = vpop.f32.mrb[0].mxu0
      %v789 = vadd.f32 %v713, %v788
      %v790 = vpop.f32.mrb[0].mxu0
      %v791 = vpop.f32.mrb[0].mxu0
      %v792 = vadd.f32 %v713, %v791
      %v793 = vpop.f32.mrb[0].mxu0
      %794 = vdwg.mxu0
      %v795 = vld [vmem:[%s8] sm:$0x1]
      %v797 = vlaneseq
      %v798 = vshrl.u32 %v797, 7
      %v799 = vsub.s32 0, %v798
      %v800 = vrot.slane %v795, %v799
      %v802 = vadd.f32 %v342, %v800
      %v803 = vadd.f32 %v343, %v800
      %v804 = vadd.f32 %v344, %v800
      %v805 = vadd.f32 %v345, %v800
      %v806 = vadd.f32 %v346, %v800
      %v807 = vadd.f32 %v347, %v800
      %v808 = vadd.f32 %v348, %v800
      %v809 = vadd.f32 %v349, %v800
      %v810 = vpack.c.bf16 %v768, %v765
      %v811 = vpack.c.bf16 %v776, %v773
      %v812 = vpack.c.bf16 %v784, %v781
      %v813 = vpack.c.bf16 %v792, %v789
      %818 = vrot.lane.b32.xlu0 %v810, 120
      %v819 = vpop.permute.xlu0 %818
      %820 = vrot.lane.b32.xlu0 %v811, 120
      %v821 = vpop.permute.xlu0 %820
      %822 = vrot.lane.b32.xlu0 %v812, 120
      %v823 = vpop.permute.xlu0 %822
      %824 = vrot.lane.b32.xlu0 %v813, 120
      %v825 = vpop.permute.xlu0 %824
      %v827 = vsel %vm571, %v810, 0
      %v830 = vsel %vm571, %v811, 0
      %v833 = vsel %vm571, %v812, 0
      %v836 = vsel %vm571, %v813, 0
      %v839 = vsel %vm571, %v819, 0
      %v842 = vsel %vm571, %v821, 0
      %v845 = vsel %vm571, %v823, 0
      %v848 = vsel %vm571, %v825, 0
      %850 = vmatprep.subr.bf16.mxu0 0
      %851 = vmatpush1.bf16.xpose.msra.mxu0 %v839
      %852 = vmatprep.subr.bf16.mxu0 0
      %853 = vmatpush1.bf16.xpose.msra.mxu0 %v842
      %854 = vmatprep.subr.bf16.mxu0 0
      %855 = vmatpush1.bf16.xpose.msra.mxu0 %v845
      %856 = vmatprep.subr.bf16.mxu0 0
      %857 = vmatpush1.bf16.xpose.msra.mxu0 %v848
      %858 = vmatprep.subr.bf16.mxu0 0
      %859 = vmatpush1.bf16.xpose.msra.mxu0 0
      %860 = vmatprep.subr.bf16.mxu0 0
      %861 = vmatpush1.bf16.xpose.msra.mxu0 0
      %862 = vmatprep.subr.bf16.mxu0 0
      %863 = vmatpush1.bf16.xpose.msra.mxu0 0
      %864 = vmatprep.subr.bf16.mxu0 0
      %865 = vmatpush1.bf16.xpose.msra.mxu0 0
      %866 = vmatprep.subr.bf16.mxu0 0
      %867 = vmatpush1.bf16.xpose.msra.mxu0 0
      %868 = vmatprep.subr.bf16.mxu0 0
      %869 = vmatpush1.bf16.xpose.msra.mxu0 0
      %870 = vmatprep.subr.bf16.mxu0 0
      %871 = vmatpush1.bf16.xpose.msra.mxu0 0
      %872 = vmatprep.subr.bf16.mxu0 0
      %873 = vmatpush1.bf16.xpose.msra.mxu0 0
      %874 = vmatprep.subr.bf16.mxu0 0
      %875 = vmatpush1.bf16.xpose.msra.mxu0 0
      %876 = vmatprep.subr.bf16.mxu0 0
      %877 = vmatpush1.bf16.xpose.msra.mxu0 0
      %878 = vmatprep.subr.bf16.mxu0 0
      %879 = vmatpush1.bf16.xpose.msra.mxu0 0
      %880 = vmatprep.subr.bf16.mxu0 0
      %881 = vmatpush1.bf16.xpose.msra.mxu0 0
      %882 = vmatprep.mubr.bf16.mxu0 0
      %883 = vmatmul.mubr.bf16.gmra.mrb[0].mxu0 %v827
      %v884 = vpop.f32.mrb[0].mxu0
      %v885 = vadd.f32 0.0, %v884
      %v886 = vpop.f32.mrb[0].mxu0
      %v887 = vpop.f32.mrb[0].mxu0
      %v888 = vadd.f32 0.0, %v887
      %v889 = vpop.f32.mrb[0].mxu0
      %890 = vmatprep.mubr.bf16.mxu0 0
      %891 = vmatmul.mubr.bf16.gmra.mrb[0].mxu0 %v830
      %v892 = vpop.f32.mrb[0].mxu0
      %v893 = vadd.f32 0.0, %v892
      %v894 = vpop.f32.mrb[0].mxu0
      %v895 = vpop.f32.mrb[0].mxu0
      %v896 = vadd.f32 0.0, %v895
      %v897 = vpop.f32.mrb[0].mxu0
      %898 = vmatprep.mubr.bf16.mxu0 0
      %899 = vmatmul.mubr.bf16.gmra.mrb[0].mxu0 %v833
      %v900 = vpop.f32.mrb[0].mxu0
      %v901 = vadd.f32 0.0, %v900
      %v902 = vpop.f32.mrb[0].mxu0
      %v903 = vpop.f32.mrb[0].mxu0
      %v904 = vadd.f32 0.0, %v903
      %v905 = vpop.f32.mrb[0].mxu0
      %906 = vmatprep.mubr.bf16.mxu0 0
      %907 = vmatmul.mubr.bf16.gmra.mrb[0].mxu0 %v836
      %v908 = vpop.f32.mrb[0].mxu0
      %v909 = vadd.f32 0.0, %v908
      %v910 = vpop.f32.mrb[0].mxu0
      %v911 = vpop.f32.mrb[0].mxu0
      %v912 = vadd.f32 0.0, %v911
      %v913 = vpop.f32.mrb[0].mxu0
      %914 = vdwg.mxu0
      %v915 = vmul.f32 %v885, 0.5
      %v916 = vmul.f32 %v888, 0.5
      %v917 = vmul.f32 %v893, 0.5
      %v918 = vmul.f32 %v896, 0.5
      %v919 = vmul.f32 %v901, 0.5
      %v920 = vmul.f32 %v904, 0.5
      %v921 = vmul.f32 %v909, 0.5
      %v922 = vmul.f32 %v912, 0.5
      %vm923 = vcmask 523264
      %v924 = vsel %vm923, %v915, -inf
      %925 = vmax.xlane.f32.xlu0 %v924
      %v926 = vpop.xlane.xlu0 %925
      %v927 = vsel %vm923, %v916, -inf
      %928 = vmax.xlane.f32.xlu0 %v927
      %v929 = vpop.xlane.xlu0 %928
      %v930 = vsel %vm923, %v917, -inf
      %931 = vmax.xlane.f32.xlu0 %v930
      %v932 = vpop.xlane.xlu0 %931
      %v933 = vsel %vm923, %v918, -inf
      %934 = vmax.xlane.f32.xlu0 %v933
      %v935 = vpop.xlane.xlu0 %934
      %v936 = vsel %vm923, %v919, -inf
      %937 = vmax.xlane.f32.xlu0 %v936
      %v938 = vpop.xlane.xlu0 %937
      %v939 = vsel %vm923, %v920, -inf
      %940 = vmax.xlane.f32.xlu0 %v939
      %v941 = vpop.xlane.xlu0 %940
      %v942 = vsel %vm923, %v921, -inf
      %943 = vmax.xlane.f32.xlu0 %v942
      %v944 = vpop.xlane.xlu0 %943
      %v945 = vsel %vm923, %v922, -inf
      %946 = vmax.xlane.f32.xlu0 %v945
      %v947 = vpop.xlane.xlu0 %946
      %v948 = vsub.f32 %v915, %v926
      %v949 = vsub.f32 %v916, %v929
      %v950 = vsub.f32 %v917, %v932
      %v951 = vsub.f32 %v918, %v935
      %v952 = vsub.f32 %v919, %v938
      %v953 = vsub.f32 %v920, %v941
      %v954 = vsub.f32 %v921, %v944
      %v955 = vsub.f32 %v922, %v947
      %v956 = vmul.f32 %v948, 1.442695
      %v957 = vpow.pop %v956
      %v958 = vmul.f32 %v949, 1.442695
      %v959 = vpow.pop %v958
      %v960 = vmul.f32 %v950, 1.442695
      %v961 = vpow.pop %v960
      %v962 = vmul.f32 %v951, 1.442695
      %v963 = vpow.pop %v962
      %v964 = vmul.f32 %v952, 1.442695
      %v965 = vpow.pop %v964
      %v966 = vmul.f32 %v953, 1.442695
      %v967 = vpow.pop %v966
      %v968 = vmul.f32 %v954, 1.442695
      %v969 = vpow.pop %v968
      %v970 = vmul.f32 %v955, 1.442695
      %v971 = vpow.pop %v970
      %v972 = vsel %vm923, %v957, 0.0
      %973 = vadd.xlane.f32.xlu0 %v972
      %v974 = vpop.xlane.xlu0 %973
      %v975 = vsel %vm923, %v959, 0.0
      %976 = vadd.xlane.f32.xlu0 %v975
      %v977 = vpop.xlane.xlu0 %976
      %v978 = vsel %vm923, %v961, 0.0
      %979 = vadd.xlane.f32.xlu0 %v978
      %v980 = vpop.xlane.xlu0 %979
      %v981 = vsel %vm923, %v963, 0.0
      %982 = vadd.xlane.f32.xlu0 %v981
      %v983 = vpop.xlane.xlu0 %982
      %v984 = vsel %vm923, %v965, 0.0
      %985 = vadd.xlane.f32.xlu0 %v984
      %v986 = vpop.xlane.xlu0 %985
      %v987 = vsel %vm923, %v967, 0.0
      %988 = vadd.xlane.f32.xlu0 %v987
      %v989 = vpop.xlane.xlu0 %988
      %v990 = vsel %vm923, %v969, 0.0
      %991 = vadd.xlane.f32.xlu0 %v990
      %v992 = vpop.xlane.xlu0 %991
      %v993 = vsel %vm923, %v971, 0.0
      %994 = vadd.xlane.f32.xlu0 %v993
      %v995 = vpop.xlane.xlu0 %994
      %v996 = vrcp.pop %v974
      %v997 = vrcp.pop %v977
      %v998 = vrcp.pop %v980
      %v999 = vrcp.pop %v983
      %v1000 = vrcp.pop %v986
      %v1001 = vrcp.pop %v989
      %v1002 = vrcp.pop %v992
      %v1003 = vrcp.pop %v995
      %v1004 = vmul.f32 %v957, %v996
      %v1005 = vmul.f32 %v959, %v997
      %v1006 = vmul.f32 %v961, %v998
      %v1007 = vmul.f32 %v963, %v999
      %v1008 = vmul.f32 %v965, %v1000
      %v1009 = vmul.f32 %v967, %v1001
      %v1010 = vmul.f32 %v969, %v1002
      %v1011 = vmul.f32 %v971, %v1003
      %v1012 = vpack.c.bf16 %v1005, %v1004
      %v1013 = vpack.c.bf16 %v1007, %v1006
      %v1014 = vpack.c.bf16 %v1009, %v1008
      %v1015 = vpack.c.bf16 %v1011, %v1010
      %1016 = vrot.lane.b32.xlu0 %v810, 112
      %v1017 = vpop.permute.xlu0 %1016
      %1018 = vrot.lane.b32.xlu0 %v811, 112
      %v1019 = vpop.permute.xlu0 %1018
      %1020 = vrot.lane.b32.xlu0 %v812, 112
      %v1021 = vpop.permute.xlu0 %1020
      %1022 = vrot.lane.b32.xlu0 %v813, 112
      %v1023 = vpop.permute.xlu0 %1022
      %v1029 = vsel %vm923, %v1012, 0
      %v1032 = vsel %vm923, %v1013, 0
      %v1035 = vsel %vm923, %v1014, 0
      %v1038 = vsel %vm923, %v1015, 0
      %1040 = vmatprep.subr.bf16.mxu0 0
      %1041 = vmatpush1.bf16.msra.mxu0 %v1017
      %1042 = vmatprep.subr.bf16.mxu0 0
      %1043 = vmatpush1.bf16.msra.mxu0 %v1019
      %1044 = vmatprep.subr.bf16.mxu0 0
      %1045 = vmatpush1.bf16.msra.mxu0 %v1021
      %1046 = vmatprep.subr.bf16.mxu0 0
      %1047 = vmatpush1.bf16.msra.mxu0 %v1023
      %1048 = vmatprep.subr.bf16.mxu0 0
      %1049 = vmatpush1.bf16.msra.mxu0 0
      %1050 = vmatprep.subr.bf16.mxu0 0
      %1051 = vmatpush1.bf16.msra.mxu0 0
      %1052 = vmatprep.subr.bf16.mxu0 0
      %1053 = vmatpush1.bf16.msra.mxu0 0
      %1054 = vmatprep.subr.bf16.mxu0 0
      %1055 = vmatpush1.bf16.msra.mxu0 0
      %1056 = vmatprep.subr.bf16.mxu0 0
      %1057 = vmatpush1.bf16.msra.mxu0 0
      %1058 = vmatprep.subr.bf16.mxu0 0
      %1059 = vmatpush1.bf16.msra.mxu0 0
      %1060 = vmatprep.subr.bf16.mxu0 0
      %1061 = vmatpush1.bf16.msra.mxu0 0
      %1062 = vmatprep.subr.bf16.mxu0 0
      %1063 = vmatpush1.bf16.msra.mxu0 0
      %1064 = vmatprep.subr.bf16.mxu0 0
      %1065 = vmatpush1.bf16.msra.mxu0 0
      %1066 = vmatprep.subr.bf16.mxu0 0
      %1067 = vmatpush1.bf16.msra.mxu0 0
      %1068 = vmatprep.subr.bf16.mxu0 0
      %1069 = vmatpush1.bf16.msra.mxu0 0
      %1070 = vmatprep.subr.bf16.mxu0 0
      %1071 = vmatpush1.bf16.msra.mxu0 0
      %1072 = vmatprep.mubr.bf16.mxu0 0
      %1073 = vmatmul.mubr.bf16.gmra.mrb[0].mxu0 %v1029
      %v1074 = vpop.f32.mrb[0].mxu0
      %v1075 = vadd.f32 0.0, %v1074
      %v1076 = vpop.f32.mrb[0].mxu0
      %v1077 = vpop.f32.mrb[0].mxu0
      %v1078 = vadd.f32 0.0, %v1077
      %v1079 = vpop.f32.mrb[0].mxu0
      %1080 = vmatprep.mubr.bf16.mxu0 0
      %1081 = vmatmul.mubr.bf16.gmra.mrb[0].mxu0 %v1032
      %v1082 = vpop.f32.mrb[0].mxu0
      %v1083 = vadd.f32 0.0, %v1082
      %v1084 = vpop.f32.mrb[0].mxu0
      %v1085 = vpop.f32.mrb[0].mxu0
      %v1086 = vadd.f32 0.0, %v1085
      %v1087 = vpop.f32.mrb[0].mxu0
      %1088 = vmatprep.mubr.bf16.mxu0 0
      %1089 = vmatmul.mubr.bf16.gmra.mrb[0].mxu0 %v1035
      %v1090 = vpop.f32.mrb[0].mxu0
      %v1091 = vadd.f32 0.0, %v1090
      %v1092 = vpop.f32.mrb[0].mxu0
      %v1093 = vpop.f32.mrb[0].mxu0
      %v1094 = vadd.f32 0.0, %v1093
      %v1095 = vpop.f32.mrb[0].mxu0
      %1096 = vmatprep.mubr.bf16.mxu0 0
      %1097 = vmatmul.mubr.bf16.gmra.mrb[0].mxu0 %v1038
      %v1098 = vpop.f32.mrb[0].mxu0
      %v1099 = vadd.f32 0.0, %v1098
      %v1100 = vpop.f32.mrb[0].mxu0
      %v1101 = vpop.f32.mrb[0].mxu0
      %v1102 = vadd.f32 0.0, %v1101
      %v1103 = vpop.f32.mrb[0].mxu0
      %1104 = vdwg.mxu0
      %v1105 = vpack.c.bf16 %v1078, %v1075
      %v1106 = vpack.c.bf16 %v1086, %v1083
      %v1107 = vpack.c.bf16 %v1094, %v1091
      %v1108 = vpack.c.bf16 %v1102, %v1099
      %v1109 = vld [vmem:[%s7] sm:$0x3]
      %v1111 = vsel %vm571, %v1105, 0
      %v1114 = vsel %vm571, %v1106, 0
      %v1117 = vsel %vm571, %v1107, 0
      %v1120 = vsel %vm571, %v1108, 0
      %vm1122 = vcmask 1041408
      %v1124 = vsel %vm1122, %v1109, 0
      %1126 = vmatprep.subr.bf16.mxu0 0
      %1127 = vmatpush1.bf16.msra.mxu0 %v1124
      %1128 = vmatprep.subr.bf16.mxu0 0
      %1129 = vmatpush1.bf16.msra.mxu0 0
      %1130 = vmatprep.subr.bf16.mxu0 0
      %1131 = vmatpush1.bf16.msra.mxu0 0
      %1132 = vmatprep.subr.bf16.mxu0 0
      %1133 = vmatpush1.bf16.msra.mxu0 0
      %1134 = vmatprep.subr.bf16.mxu0 0
      %1135 = vmatpush1.bf16.msra.mxu0 0
      %1136 = vmatprep.subr.bf16.mxu0 0
      %1137 = vmatpush1.bf16.msra.mxu0 0
      %1138 = vmatprep.subr.bf16.mxu0 0
      %1139 = vmatpush1.bf16.msra.mxu0 0
      %1140 = vmatprep.subr.bf16.mxu0 0
      %1141 = vmatpush1.bf16.msra.mxu0 0
      %1142 = vmatprep.subr.bf16.mxu0 0
      %1143 = vmatpush1.bf16.msra.mxu0 0
      %1144 = vmatprep.subr.bf16.mxu0 0
      %1145 = vmatpush1.bf16.msra.mxu0 0
      %1146 = vmatprep.subr.bf16.mxu0 0
      %1147 = vmatpush1.bf16.msra.mxu0 0
      %1148 = vmatprep.subr.bf16.mxu0 0
      %1149 = vmatpush1.bf16.msra.mxu0 0
      %1150 = vmatprep.subr.bf16.mxu0 0
      %1151 = vmatpush1.bf16.msra.mxu0 0
      %1152 = vmatprep.subr.bf16.mxu0 0
      %1153 = vmatpush1.bf16.msra.mxu0 0
      %1154 = vmatprep.subr.bf16.mxu0 0
      %1155 = vmatpush1.bf16.msra.mxu0 0
      %1156 = vmatprep.subr.bf16.mxu0 0
      %1157 = vmatpush1.bf16.msra.mxu0 0
      %1158 = vmatprep.mubr.bf16.mxu0 0
      %1159 = vmatmul.mubr.bf16.gmra.mrb[0].mxu0 %v1111
      %v1160 = vpop.f32.mrb[0].mxu0
      %v1161 = vadd.f32 0.0, %v1160
      %v1162 = vpop.f32.mrb[0].mxu0
      %v1163 = vpop.f32.mrb[0].mxu0
      %v1164 = vadd.f32 0.0, %v1163
      %v1165 = vpop.f32.mrb[0].mxu0
      %1166 = vmatprep.mubr.bf16.mxu0 0
      %1167 = vmatmul.mubr.bf16.gmra.mrb[0].mxu0 %v1114
      %v1168 = vpop.f32.mrb[0].mxu0
      %v1169 = vadd.f32 0.0, %v1168
      %v1170 = vpop.f32.mrb[0].mxu0
      %v1171 = vpop.f32.mrb[0].mxu0
      %v1172 = vadd.f32 0.0, %v1171
      %v1173 = vpop.f32.mrb[0].mxu0
      %1174 = vmatprep.mubr.bf16.mxu0 0
      %1175 = vmatmul.mubr.bf16.gmra.mrb[0].mxu0 %v1117
      %v1176 = vpop.f32.mrb[0].mxu0
      %v1177 = vadd.f32 0.0, %v1176
      %v1178 = vpop.f32.mrb[0].mxu0
      %v1179 = vpop.f32.mrb[0].mxu0
      %v1180 = vadd.f32 0.0, %v1179
      %v1181 = vpop.f32.mrb[0].mxu0
      %1182 = vmatprep.mubr.bf16.mxu0 0
      %1183 = vmatmul.mubr.bf16.gmra.mrb[0].mxu0 %v1120
      %v1184 = vpop.f32.mrb[0].mxu0
      %v1185 = vadd.f32 0.0, %v1184
      %v1186 = vpop.f32.mrb[0].mxu0
      %v1187 = vpop.f32.mrb[0].mxu0
      %v1188 = vadd.f32 0.0, %v1187
      %v1189 = vpop.f32.mrb[0].mxu0
      %1190 = vdwg.mxu0
      %v1191 = vadd.f32 %v802, %v1161
      %v1192 = vadd.f32 %v803, %v1164
      %v1193 = vadd.f32 %v804, %v1169
      %v1194 = vadd.f32 %v805, %v1172
      %v1195 = vadd.f32 %v806, %v1177
      %v1196 = vadd.f32 %v807, %v1180
      %v1197 = vadd.f32 %v808, %v1185
      %v1198 = vadd.f32 %v809, %v1188
      %1199 = vrot.lane.b32.xlu0 %v810, 124
      %v1200 = vpop.permute.xlu0 %1199
      %1201 = vrot.lane.b32.xlu0 %v811, 124
      %v1202 = vpop.permute.xlu0 %1201
      %1203 = vrot.lane.b32.xlu0 %v812, 124
      %v1204 = vpop.permute.xlu0 %1203
      %1205 = vrot.lane.b32.xlu0 %v813, 124
      %v1206 = vpop.permute.xlu0 %1205
      %1207 = vrot.lane.b32.xlu0 %v810, 116
      %v1208 = vpop.permute.xlu0 %1207
      %1209 = vrot.lane.b32.xlu0 %v811, 116
      %v1210 = vpop.permute.xlu0 %1209
      %1211 = vrot.lane.b32.xlu0 %v812, 116
      %v1212 = vpop.permute.xlu0 %1211
      %1213 = vrot.lane.b32.xlu0 %v813, 116
      %v1214 = vpop.permute.xlu0 %1213
      %v1216 = vsel %vm571, %v1200, 0
      %v1219 = vsel %vm571, %v1202, 0
      %v1222 = vsel %vm571, %v1204, 0
      %v1225 = vsel %vm571, %v1206, 0
      %v1228 = vsel %vm571, %v1208, 0
      %v1231 = vsel %vm571, %v1210, 0
      %v1234 = vsel %vm571, %v1212, 0
      %v1237 = vsel %vm571, %v1214, 0
      %1239 = vmatprep.subr.bf16.mxu0 0
      %1240 = vmatpush1.bf16.xpose.msra.mxu0 %v1228
      %1241 = vmatprep.subr.bf16.mxu0 0
      %1242 = vmatpush1.bf16.xpose.msra.mxu0 %v1231
      %1243 = vmatprep.subr.bf16.mxu0 0
      %1244 = vmatpush1.bf16.xpose.msra.mxu0 %v1234
      %1245 = vmatprep.subr.bf16.mxu0 0
      %1246 = vmatpush1.bf16.xpose.msra.mxu0 %v1237
      %1247 = vmatprep.subr.bf16.mxu0 0
      %1248 = vmatpush1.bf16.xpose.msra.mxu0 0
      %1249 = vmatprep.subr.bf16.mxu0 0
      %1250 = vmatpush1.bf16.xpose.msra.mxu0 0
      %1251 = vmatprep.subr.bf16.mxu0 0
      %1252 = vmatpush1.bf16.xpose.msra.mxu0 0
      %1253 = vmatprep.subr.bf16.mxu0 0
      %1254 = vmatpush1.bf16.xpose.msra.mxu0 0
      %1255 = vmatprep.subr.bf16.mxu0 0
      %1256 = vmatpush1.bf16.xpose.msra.mxu0 0
      %1257 = vmatprep.subr.bf16.mxu0 0
      %1258 = vmatpush1.bf16.xpose.msra.mxu0 0
      %1259 = vmatprep.subr.bf16.mxu0 0
      %1260 = vmatpush1.bf16.xpose.msra.mxu0 0
      %1261 = vmatprep.subr.bf16.mxu0 0
      %1262 = vmatpush1.bf16.xpose.msra.mxu0 0
      %1263 = vmatprep.subr.bf16.mxu0 0
      %1264 = vmatpush1.bf16.xpose.msra.mxu0 0
      %1265 = vmatprep.subr.bf16.mxu0 0
      %1266 = vmatpush1.bf16.xpose.msra.mxu0 0
      %1267 = vmatprep.subr.bf16.mxu0 0
      %1268 = vmatpush1.bf16.xpose.msra.mxu0 0
      %1269 = vmatprep.subr.bf16.mxu0 0
      %1270 = vmatpush1.bf16.xpose.msra.mxu0 0
      %1271 = vmatprep.mubr.bf16.mxu0 0
      %1272 = vmatmul.mubr.bf16.gmra.mrb[0].mxu0 %v1216
      %v1273 = vpop.f32.mrb[0].mxu0
      %v1274 = vadd.f32 0.0, %v1273
      %v1275 = vpop.f32.mrb[0].mxu0
      %v1276 = vpop.f32.mrb[0].mxu0
      %v1277 = vadd.f32 0.0, %v1276
      %v1278 = vpop.f32.mrb[0].mxu0
      %1279 = vmatprep.mubr.bf16.mxu0 0
      %1280 = vmatmul.mubr.bf16.gmra.mrb[0].mxu0 %v1219
      %v1281 = vpop.f32.mrb[0].mxu0
      %v1282 = vadd.f32 0.0, %v1281
      %v1283 = vpop.f32.mrb[0].mxu0
      %v1284 = vpop.f32.mrb[0].mxu0
      %v1285 = vadd.f32 0.0, %v1284
      %v1286 = vpop.f32.mrb[0].mxu0
      %1287 = vmatprep.mubr.bf16.mxu0 0
      %1288 = vmatmul.mubr.bf16.gmra.mrb[0].mxu0 %v1222
      %v1289 = vpop.f32.mrb[0].mxu0
      %v1290 = vadd.f32 0.0, %v1289
      %v1291 = vpop.f32.mrb[0].mxu0
      %v1292 = vpop.f32.mrb[0].mxu0
      %v1293 = vadd.f32 0.0, %v1292
      %v1294 = vpop.f32.mrb[0].mxu0
      %1295 = vmatprep.mubr.bf16.mxu0 0
      %1296 = vmatmul.mubr.bf16.gmra.mrb[0].mxu0 %v1225
      %v1297 = vpop.f32.mrb[0].mxu0
      %v1298 = vadd.f32 0.0, %v1297
      %v1299 = vpop.f32.mrb[0].mxu0
      %v1300 = vpop.f32.mrb[0].mxu0
      %v1301 = vadd.f32 0.0, %v1300
      %v1302 = vpop.f32.mrb[0].mxu0
      %1303 = vdwg.mxu0
      %v1304 = vmul.f32 %v1274, 0.5
      %v1305 = vmul.f32 %v1277, 0.5
      %v1306 = vmul.f32 %v1282, 0.5
      %v1307 = vmul.f32 %v1285, 0.5
      %v1308 = vmul.f32 %v1290, 0.5
      %v1309 = vmul.f32 %v1293, 0.5
      %v1310 = vmul.f32 %v1298, 0.5
      %v1311 = vmul.f32 %v1301, 0.5
      %v1312 = vsel %vm923, %v1304, -inf
      %1313 = vmax.xlane.f32.xlu0 %v1312
      %v1314 = vpop.xlane.xlu0 %1313
      %v1315 = vsel %vm923, %v1305, -inf
      %1316 = vmax.xlane.f32.xlu0 %v1315
      %v1317 = vpop.xlane.xlu0 %1316
      %v1318 = vsel %vm923, %v1306, -inf
      %1319 = vmax.xlane.f32.xlu0 %v1318
      %v1320 = vpop.xlane.xlu0 %1319
      %v1321 = vsel %vm923, %v1307, -inf
      %1322 = vmax.xlane.f32.xlu0 %v1321
      %v1323 = vpop.xlane.xlu0 %1322
      %v1324 = vsel %vm923, %v1308, -inf
      %1325 = vmax.xlane.f32.xlu0 %v1324
      %v1326 = vpop.xlane.xlu0 %1325
      %v1327 = vsel %vm923, %v1309, -inf
      %1328 = vmax.xlane.f32.xlu0 %v1327
      %v1329 = vpop.xlane.xlu0 %1328
      %v1330 = vsel %vm923, %v1310, -inf
      %1331 = vmax.xlane.f32.xlu0 %v1330
      %v1332 = vpop.xlane.xlu0 %1331
      %v1333 = vsel %vm923, %v1311, -inf
      %1334 = vmax.xlane.f32.xlu0 %v1333
      %v1335 = vpop.xlane.xlu0 %1334
      %v1336 = vsub.f32 %v1304, %v1314
      %v1337 = vsub.f32 %v1305, %v1317
      %v1338 = vsub.f32 %v1306, %v1320
      %v1339 = vsub.f32 %v1307, %v1323
      %v1340 = vsub.f32 %v1308, %v1326
      %v1341 = vsub.f32 %v1309, %v1329
      %v1342 = vsub.f32 %v1310, %v1332
      %v1343 = vsub.f32 %v1311, %v1335
      %v1344 = vmul.f32 %v1336, 1.442695
      %v1345 = vpow.pop %v1344
      %v1346 = vmul.f32 %v1337, 1.442695
      %v1347 = vpow.pop %v1346
      %v1348 = vmul.f32 %v1338, 1.442695
      %v1349 = vpow.pop %v1348
      %v1350 = vmul.f32 %v1339, 1.442695
      %v1351 = vpow.pop %v1350
      %v1352 = vmul.f32 %v1340, 1.442695
      %v1353 = vpow.pop %v1352
      %v1354 = vmul.f32 %v1341, 1.442695
      %v1355 = vpow.pop %v1354
      %v1356 = vmul.f32 %v1342, 1.442695
      %v1357 = vpow.pop %v1356
      %v1358 = vmul.f32 %v1343, 1.442695
      %v1359 = vpow.pop %v1358
      %v1360 = vsel %vm923, %v1345, 0.0
      %1361 = vadd.xlane.f32.xlu0 %v1360
      %v1362 = vpop.xlane.xlu0 %1361
      %v1363 = vsel %vm923, %v1347, 0.0
      %1364 = vadd.xlane.f32.xlu0 %v1363
      %v1365 = vpop.xlane.xlu0 %1364
      %v1366 = vsel %vm923, %v1349, 0.0
      %1367 = vadd.xlane.f32.xlu0 %v1366
      %v1368 = vpop.xlane.xlu0 %1367
      %v1369 = vsel %vm923, %v1351, 0.0
      %1370 = vadd.xlane.f32.xlu0 %v1369
      %v1371 = vpop.xlane.xlu0 %1370
      %v1372 = vsel %vm923, %v1353, 0.0
      %1373 = vadd.xlane.f32.xlu0 %v1372
      %v1374 = vpop.xlane.xlu0 %1373
      %v1375 = vsel %vm923, %v1355, 0.0
      %1376 = vadd.xlane.f32.xlu0 %v1375
      %v1377 = vpop.xlane.xlu0 %1376
      %v1378 = vsel %vm923, %v1357, 0.0
      %1379 = vadd.xlane.f32.xlu0 %v1378
      %v1380 = vpop.xlane.xlu0 %1379
      %v1381 = vsel %vm923, %v1359, 0.0
      %1382 = vadd.xlane.f32.xlu0 %v1381
      %v1383 = vpop.xlane.xlu0 %1382
      %v1384 = vrcp.pop %v1362
      %v1385 = vrcp.pop %v1365
      %v1386 = vrcp.pop %v1368
      %v1387 = vrcp.pop %v1371
      %v1388 = vrcp.pop %v1374
      %v1389 = vrcp.pop %v1377
      %v1390 = vrcp.pop %v1380
      %v1391 = vrcp.pop %v1383
      %v1392 = vmul.f32 %v1345, %v1384
      %v1393 = vmul.f32 %v1347, %v1385
      %v1394 = vmul.f32 %v1349, %v1386
      %v1395 = vmul.f32 %v1351, %v1387
      %v1396 = vmul.f32 %v1353, %v1388
      %v1397 = vmul.f32 %v1355, %v1389
      %v1398 = vmul.f32 %v1357, %v1390
      %v1399 = vmul.f32 %v1359, %v1391
      %v1400 = vpack.c.bf16 %v1393, %v1392
      %v1401 = vpack.c.bf16 %v1395, %v1394
      %v1402 = vpack.c.bf16 %v1397, %v1396
      %v1403 = vpack.c.bf16 %v1399, %v1398
      %1404 = vrot.lane.b32.xlu0 %v810, 108
      %v1405 = vpop.permute.xlu0 %1404
      %1406 = vrot.lane.b32.xlu0 %v811, 108
      %v1407 = vpop.permute.xlu0 %1406
      %1408 = vrot.lane.b32.xlu0 %v812, 108
      %v1409 = vpop.permute.xlu0 %1408
      %1410 = vrot.lane.b32.xlu0 %v813, 108
      %v1411 = vpop.permute.xlu0 %1410
      %v1417 = vsel %vm923, %v1400, 0
      %v1420 = vsel %vm923, %v1401, 0
      %v1423 = vsel %vm923, %v1402, 0
      %v1426 = vsel %vm923, %v1403, 0
      %1428 = vmatprep.subr.bf16.mxu0 0
      %1429 = vmatpush1.bf16.msra.mxu0 %v1405
      %1430 = vmatprep.subr.bf16.mxu0 0
      %1431 = vmatpush1.bf16.msra.mxu0 %v1407
      %1432 = vmatprep.subr.bf16.mxu0 0
      %1433 = vmatpush1.bf16.msra.mxu0 %v1409
      %1434 = vmatprep.subr.bf16.mxu0 0
      %1435 = vmatpush1.bf16.msra.mxu0 %v1411
      %1436 = vmatprep.subr.bf16.mxu0 0
      %1437 = vmatpush1.bf16.msra.mxu0 0
      %1438 = vmatprep.subr.bf16.mxu0 0
      %1439 = vmatpush1.bf16.msra.mxu0 0
      %1440 = vmatprep.subr.bf16.mxu0 0
      %1441 = vmatpush1.bf16.msra.mxu0 0
      %1442 = vmatprep.subr.bf16.mxu0 0
      %1443 = vmatpush1.bf16.msra.mxu0 0
      %1444 = vmatprep.subr.bf16.mxu0 0
      %1445 = vmatpush1.bf16.msra.mxu0 0
      %1446 = vmatprep.subr.bf16.mxu0 0
      %1447 = vmatpush1.bf16.msra.mxu0 0
      %1448 = vmatprep.subr.bf16.mxu0 0
      %1449 = vmatpush1.bf16.msra.mxu0 0
      %1450 = vmatprep.subr.bf16.mxu0 0
      %1451 = vmatpush1.bf16.msra.mxu0 0
      %1452 = vmatprep.subr.bf16.mxu0 0
      %1453 = vmatpush1.bf16.msra.mxu0 0
      %1454 = vmatprep.subr.bf16.mxu0 0
      %1455 = vmatpush1.bf16.msra.mxu0 0
      %1456 = vmatprep.subr.bf16.mxu0 0
      %1457 = vmatpush1.bf16.msra.mxu0 0
      %1458 = vmatprep.subr.bf16.mxu0 0
      %1459 = vmatpush1.bf16.msra.mxu0 0
      %1460 = vmatprep.mubr.bf16.mxu0 0
      %1461 = vmatmul.mubr.bf16.gmra.mrb[0].mxu0 %v1417
      %v1462 = vpop.f32.mrb[0].mxu0
      %v1463 = vadd.f32 0.0, %v1462
      %v1464 = vpop.f32.mrb[0].mxu0
      %v1465 = vpop.f32.mrb[0].mxu0
      %v1466 = vadd.f32 0.0, %v1465
      %v1467 = vpop.f32.mrb[0].mxu0
      %1468 = vmatprep.mubr.bf16.mxu0 0
      %1469 = vmatmul.mubr.bf16.gmra.mrb[0].mxu0 %v1420
      %v1470 = vpop.f32.mrb[0].mxu0
      %v1471 = vadd.f32 0.0, %v1470
      %v1472 = vpop.f32.mrb[0].mxu0
      %v1473 = vpop.f32.mrb[0].mxu0
      %v1474 = vadd.f32 0.0, %v1473
      %v1475 = vpop.f32.mrb[0].mxu0
      %1476 = vmatprep.mubr.bf16.mxu0 0
      %1477 = vmatmul.mubr.bf16.gmra.mrb[0].mxu0 %v1423
      %v1478 = vpop.f32.mrb[0].mxu0
      %v1479 = vadd.f32 0.0, %v1478
      %v1480 = vpop.f32.mrb[0].mxu0
      %v1481 = vpop.f32.mrb[0].mxu0
      %v1482 = vadd.f32 0.0, %v1481
      %v1483 = vpop.f32.mrb[0].mxu0
      %1484 = vmatprep.mubr.bf16.mxu0 0
      %1485 = vmatmul.mubr.bf16.gmra.mrb[0].mxu0 %v1426
      %v1486 = vpop.f32.mrb[0].mxu0
      %v1487 = vadd.f32 0.0, %v1486
      %v1488 = vpop.f32.mrb[0].mxu0
      %v1489 = vpop.f32.mrb[0].mxu0
      %v1490 = vadd.f32 0.0, %v1489
      %v1491 = vpop.f32.mrb[0].mxu0
      %1492 = vdwg.mxu0
      %v1493 = vpack.c.bf16 %v1466, %v1463
      %v1494 = vpack.c.bf16 %v1474, %v1471
      %v1495 = vpack.c.bf16 %v1482, %v1479
      %v1496 = vpack.c.bf16 %v1490, %v1487
      %v1497 = vld [vmem:[%s7] sm:$0xc]
      %v1499 = vunpack.c.l.b16 %v1497
      %v1500 = vpack.c.b16 %v1499, %v1499
      %v1501 = vrot.slane %v1500, 2
      %v1503 = vsel %vm571, %v1493, 0
      %v1506 = vsel %vm571, %v1494, 0
      %v1509 = vsel %vm571, %v1495, 0
      %v1512 = vsel %vm571, %v1496, 0
      %v1515 = vsel %vm1122, %v1501, 0
      %1517 = vmatprep.subr.bf16.mxu0 0
      %1518 = vmatpush1.bf16.msra.mxu0 %v1515
      %1519 = vmatprep.subr.bf16.mxu0 0
      %1520 = vmatpush1.bf16.msra.mxu0 0
      %1521 = vmatprep.subr.bf16.mxu0 0
      %1522 = vmatpush1.bf16.msra.mxu0 0
      %1523 = vmatprep.subr.bf16.mxu0 0
      %1524 = vmatpush1.bf16.msra.mxu0 0
      %1525 = vmatprep.subr.bf16.mxu0 0
      %1526 = vmatpush1.bf16.msra.mxu0 0
      %1527 = vmatprep.subr.bf16.mxu0 0
      %1528 = vmatpush1.bf16.msra.mxu0 0
      %1529 = vmatprep.subr.bf16.mxu0 0
      %1530 = vmatpush1.bf16.msra.mxu0 0
      %1531 = vmatprep.subr.bf16.mxu0 0
      %1532 = vmatpush1.bf16.msra.mxu0 0
      %1533 = vmatprep.subr.bf16.mxu0 0
      %1534 = vmatpush1.bf16.msra.mxu0 0
      %1535 = vmatprep.subr.bf16.mxu0 0
      %1536 = vmatpush1.bf16.msra.mxu0 0
      %1537 = vmatprep.subr.bf16.mxu0 0
      %1538 = vmatpush1.bf16.msra.mxu0 0
      %1539 = vmatprep.subr.bf16.mxu0 0
      %1540 = vmatpush1.bf16.msra.mxu0 0
      %1541 = vmatprep.subr.bf16.mxu0 0
      %1542 = vmatpush1.bf16.msra.mxu0 0
      %1543 = vmatprep.subr.bf16.mxu0 0
      %1544 = vmatpush1.bf16.msra.mxu0 0
      %1545 = vmatprep.subr.bf16.mxu0 0
      %1546 = vmatpush1.bf16.msra.mxu0 0
      %1547 = vmatprep.subr.bf16.mxu0 0
      %1548 = vmatpush1.bf16.msra.mxu0 0
      %1549 = vmatprep.mubr.bf16.mxu0 0
      %1550 = vmatmul.mubr.bf16.gmra.mrb[0].mxu0 %v1503
      %v1551 = vpop.f32.mrb[0].mxu0
      %v1552 = vadd.f32 0.0, %v1551
      %v1553 = vpop.f32.mrb[0].mxu0
      %v1554 = vpop.f32.mrb[0].mxu0
      %v1555 = vadd.f32 0.0, %v1554
      %v1556 = vpop.f32.mrb[0].mxu0
      %1557 = vmatprep.mubr.bf16.mxu0 0
      %1558 = vmatmul.mubr.bf16.gmra.mrb[0].mxu0 %v1506
      %v1559 = vpop.f32.mrb[0].mxu0
      %v1560 = vadd.f32 0.0, %v1559
      %v1561 = vpop.f32.mrb[0].mxu0
      %v1562 = vpop.f32.mrb[0].mxu0
      %v1563 = vadd.f32 0.0, %v1562
      %v1564 = vpop.f32.mrb[0].mxu0
      %1565 = vmatprep.mubr.bf16.mxu0 0
      %1566 = vmatmul.mubr.bf16.gmra.mrb[0].mxu0 %v1509
      %v1567 = vpop.f32.mrb[0].mxu0
      %v1568 = vadd.f32 0.0, %v1567
      %v1569 = vpop.f32.mrb[0].mxu0
      %v1570 = vpop.f32.mrb[0].mxu0
      %v1571 = vadd.f32 0.0, %v1570
      %v1572 = vpop.f32.mrb[0].mxu0
      %1573 = vmatprep.mubr.bf16.mxu0 0
      %1574 = vmatmul.mubr.bf16.gmra.mrb[0].mxu0 %v1512
      %v1575 = vpop.f32.mrb[0].mxu0
      %v1576 = vadd.f32 0.0, %v1575
      %v1577 = vpop.f32.mrb[0].mxu0
      %v1578 = vpop.f32.mrb[0].mxu0
      %v1579 = vadd.f32 0.0, %v1578
      %v1580 = vpop.f32.mrb[0].mxu0
      %1581 = vdwg.mxu0
      %v1582 = vadd.f32 %v1191, %v1552
      %v1583 = vadd.f32 %v1192, %v1555
      %v1584 = vadd.f32 %v1193, %v1560
      %v1585 = vadd.f32 %v1194, %v1563
      %v1586 = vadd.f32 %v1195, %v1568
      %v1587 = vadd.f32 %v1196, %v1571
      %v1588 = vadd.f32 %v1197, %v1576
      %v1589 = vadd.f32 %v1198, %v1579
      %v1590 = vpack.c.bf16 %v1583, %v1582
      %v1591 = vpack.c.bf16 %v1585, %v1584
      %v1592 = vpack.c.bf16 %v1587, %v1586
      %v1593 = vpack.c.bf16 %v1589, %v1588
      %v1598 = vunpack.c.l.b16 %v1590
      %v1599 = vunpack.c.h.b16 %v1590
      %v1600 = vunpack.c.l.b16 %v1591
      %v1601 = vunpack.c.h.b16 %v1591
      %v1602 = vunpack.c.l.b16 %v1592
      %v1603 = vunpack.c.h.b16 %v1592
      %v1604 = vunpack.c.l.b16 %v1593
      %v1605 = vunpack.c.h.b16 %v1593
      %v1606 = vpack.c.b16 %v1598, %v1598
      %v1607 = vpack.c.b16 %v1599, %v1599
      %v1608 = vpack.c.b16 %v1600, %v1600
      %v1609 = vpack.c.b16 %v1601, %v1601
      %v1610 = vpack.c.b16 %v1602, %v1602
      %v1611 = vpack.c.b16 %v1603, %v1603
      %v1612 = vpack.c.b16 %v1604, %v1604
      %v1613 = vpack.c.b16 %v1605, %v1605
      %vm1622 = vcmask 60416
      %1623 = vst.msk [vmem:[%s332] sm:$0xf] %vm1622, %v1606
      %1624 = vst.msk [vmem:[%s332 + $0x4] sm:$0xf] %vm1622, %v1607
      %1625 = vst.msk [vmem:[%s332 + $0x8] sm:$0xf] %vm1622, %v1608
      %1626 = vst.msk [vmem:[%s332 + $0xc] sm:$0xf] %vm1622, %v1609
      %1627 = vst.msk [vmem:[%s332 + $0x10] sm:$0xf] %vm1622, %v1610
      %1628 = vst.msk [vmem:[%s332 + $0x14] sm:$0xf] %vm1622, %v1611
      %1629 = vst.msk [vmem:[%s332 + $0x18] sm:$0xf] %vm1622, %v1612
      %1630 = vst.msk [vmem:[%s332 + $0x1c] sm:$0xf] %vm1622, %v1613
      %p1631 = scmp.lt.s32.totalorder %s20, 1
      %s1632 = scalar_select %p1631, %s20, 1
      %s1633 = smul.addr %s1632, 8
      %s1634 = smul.addr %s1633, 4
      %s1635 = scalar_lea.vmem %s9, %s1634
      // Predicated region
      $region57: #{unet_decoder_block_forward.15} parent=55 // pred_check
        %p1636 = pneg %p232
      $region58: #{unet_decoder_block_forward.15} parent=55 // pred_check_branch
        %1638 = sbr.rel (%p1636) target = $region60
      $region59: #{unet_decoder_block_forward.15} parent=55 // pred_region
        _
      $region60: #{unet_decoder_block_forward.15} parent=55 // pred_fallthru
        _
    $region56: #{unet_decoder_block_forward.15} parent=5 // pred_fallthru
      _
    %p1639 = scmp.le.s32.totalorder 2, %s15
    // Predicated region
    $region61: #{unet_decoder_block_forward.15} parent=5 // pred_check
      %p1640 = pneg %p1639
    $region62: #{unet_decoder_block_forward.15} parent=5 // pred_check_branch
      %1642 = sbr.rel (%p1640) target = $region64
    $region63: #{unet_decoder_block_forward.15} parent=5 // pred_region
      %s1643 = ssub.s32 %s15, 2
      // Predicated region
      $region65: #{unet_decoder_block_forward.15} parent=63 // pred_check
        %p1644 = pneg %p238
      $region66: #{unet_decoder_block_forward.15} parent=63 // pred_check_branch
        %1646 = sbr.rel (%p1644) target = $region68
      $region67: #{unet_decoder_block_forward.15} parent=63 // pred_region
        %p1647 = scmp.lt.s32.totalorder %s21, 1
        %s1648 = scalar_select %p1647, %s21, 1
        %s1649 = smul.addr %s1648, 8
        %s1650 = smul.addr %s1649, 4
        %s1651 = scalar_lea.vmem %s9, %s1650
      $region68: #{unet_decoder_block_forward.15} parent=63 // pred_fallthru
        _
    $region64: #{unet_decoder_block_forward.15} parent=5 // pred_fallthru
      _
  $region6: #{unet_decoder_block_forward.15} parent=0 // loop_footer
    %s19 = sadd.s32 1, %s15
  $region7: #{unet_decoder_block_forward.15} parent=0 // loop_footer_branch
    %14 = sbr.rel target = $region3
  $region8: #{unet_decoder_block_forward.15} parent=0 // loop_exit
    _

// kernel: unet_decoder_block_forward.21
$region0: #{unet_decoder_block_forward.21}
  #allocation0 [shape = 'u32[]', space=smem, size = 0x4, offset = 0x4, fixed_abs, tag = 'smem constant byte address 0x4 - core index']
  #allocation1 [shape = 'u32[144,128]{1,0:T(1,128)}', space=vmem, size = 0x12000, scoped, tag = 'internal scratch']
  %s0 = inlined_call_operand.vmem [shape: bf16[2,10,10,8], index: 0, kind: input, shape index: {}]
  %s1 = inlined_call_operand.vmem [shape: bf16[48,128], index: 1, kind: input, shape index: {}]
  %s2 = inlined_call_operand.vmem [shape: bf16[48,128], index: 2, kind: input, shape index: {}]
  %s3 = inlined_call_operand.vmem [shape: f32[1,128], index: 3, kind: input, shape index: {}]
  %s4 = inlined_call_operand.vmem [shape: bf16[2,2,128,128], index: 4, kind: output, shape index: {}]
  %s5 = sld [smem:[#allocation0]]
  $region49: #{unet_decoder_block_forward.21} parent=0
    _
  %s7 = ssub.s32 1, %s5
  %s8 = scalar_select 0, %s7, %s5
  loop: start=0, step=1, limit=4
  $region2: #{unet_decoder_block_forward.21} parent=0 // loop_pre_header
    _
  $region3: #{unet_decoder_block_forward.21} parent=0 // loop_header
    %s10 = sphi 0, %s14
    %p11 = scmp.ge.s32.totalorder %s10, 4
    %s17 = sphi 0, %s29
    %s18 = sphi 0, %s25
    %s19 = sphi 0, %s17
    %s20 = sphi 0, %s18
    %s21 = sphi 0, %s19
    %s22 = sphi 0, %s20
    %s32 = sphi 0, %s34
    %s35 = sphi 0, %s32
    %s36 = sphi 0, %s35
    %s52 = sphi 0, %s36
    %s58 = sphi 0, %s60
    %s61 = sphi 0, %s58
    %s62 = sphi 0, %s61
    %s78 = sphi 0, %s62
    %s84 = sphi 0, %s86
    %s87 = sphi 0, %s84
    %s88 = sphi 0, %s87
    %s104 = sphi 0, %s88
    %s110 = sphi 0, %s112
    %s113 = sphi 0, %s110
    %s114 = sphi 0, %s113
    %s130 = sphi 0, %s114
    %s138 = sphi 0, %s140
    %s141 = sphi 0, %s138
    %s142 = sphi 0, %s141
    %s158 = sphi 0, %s142
  $region4: #{unet_decoder_block_forward.21} parent=0 // loop_header_branch
    %13 = sbr.rel (%p11) target = $region8
  $region5: #{unet_decoder_block_forward.21} parent=0 // loop_body
    %s15 = ssub.s32 %s10, 1
    %s16 = ssub.s32 %s10, 2
    %s23 = sadd.s32 1, %s18
    %p24 = scmp.ge.s32.totalorder %s23, 1
    %s25 = scalar_select %p24, 0, %s23
    %s26 = sadd.s32 1, %s17
    %s27 = scalar_select %p24, %s26, %s17
    %p28 = scmp.ge.s32.totalorder %s27, 2
    %s29 = scalar_select %p28, 0, %s27
    %s30 = ssub.s32 %s17, %s29
    %p31 = scmp.eq.s32.totalorder %s30, 0
    %s33 = sadd.s32 %s32, 1
    %s34 = scalar_select %p31, %s32, %s33
    %p37 = pneg %p31
    %p38 = scmp.eq.s32.totalorder %s10, 1
    %p39 = por %p37, %p38
    %p40 = scmp.ne.s32.totalorder %s32, %s35
    %p41 = scmp.eq.s32.totalorder %s10, 0
    %p42 = por %p40, %p41
    %p43 = scmp.ne.s32.totalorder %s32, %s35
    %p44 = scmp.eq.s32.totalorder %s15, 1
    %p45 = por %p43, %p44
    %p46 = scmp.ne.s32.totalorder %s35, %s36
    %p47 = scmp.eq.s32.totalorder %s15, 0
    %p48 = por %p46, %p47
    %p49 = scmp.ne.s32.totalorder %s35, %s36
    %p50 = scmp.eq.s32.totalorder %s16, 1
    %p51 = por %p49, %p50
    %p53 = scmp.ne.s32.totalorder %s36, %s52
    %p54 = scmp.eq.s32.totalorder %s16, 0
    %p55 = por %p53, %p54
    %s56 = ssub.s32 %s18, %s25
    %p57 = scmp.eq.s32.totalorder %s56, 0
    %s59 = sadd.s32 %s58, 1
    %s60 = scalar_select %p57, %s58, %s59
    %p63 = pneg %p57
    %p64 = scmp.eq.s32.totalorder %s10, 1
    %p65 = por %p63, %p64
    %p66 = scmp.ne.s32.totalorder %s58, %s61
    %p67 = scmp.eq.s32.totalorder %s10, 0
    %p68 = por %p66, %p67
    %p69 = scmp.ne.s32.totalorder %s58, %s61
    %p70 = scmp.eq.s32.totalorder %s15, 1
    %p71 = por %p69, %p70
    %p72 = scmp.ne.s32.totalorder %s61, %s62
    %p73 = scmp.eq.s32.totalorder %s15, 0
    %p74 = por %p72, %p73
    %p75 = scmp.ne.s32.totalorder %s61, %s62
    %p76 = scmp.eq.s32.totalorder %s16, 1
    %p77 = por %p75, %p76
    %p79 = scmp.ne.s32.totalorder %s62, %s78
    %p80 = scmp.eq.s32.totalorder %s16, 0
    %p81 = por %p79, %p80
    %s82 = ssub.s32 %s18, %s25
    %p83 = scmp.eq.s32.totalorder %s82, 0
    %s85 = sadd.s32 %s84, 1
    %s86 = scalar_select %p83, %s84, %s85
    %p89 = pneg %p83
    %p90 = scmp.eq.s32.totalorder %s10, 1
    %p91 = por %p89, %p90
    %p92 = scmp.ne.s32.totalorder %s84, %s87
    %p93 = scmp.eq.s32.totalorder %s10, 0
    %p94 = por %p92, %p93
    %p95 = scmp.ne.s32.totalorder %s84, %s87
    %p96 = scmp.eq.s32.totalorder %s15, 1
    %p97 = por %p95, %p96
    %p98 = scmp.ne.s32.totalorder %s87, %s88
    %p99 = scmp.eq.s32.totalorder %s15, 0
    %p100 = por %p98, %p99
    %p101 = scmp.ne.s32.totalorder %s87, %s88
    %p102 = scmp.eq.s32.totalorder %s16, 1
    %p103 = por %p101, %p102
    %p105 = scmp.ne.s32.totalorder %s88, %s104
    %p106 = scmp.eq.s32.totalorder %s16, 0
    %p107 = por %p105, %p106
    %s108 = ssub.s32 %s18, %s25
    %p109 = scmp.eq.s32.totalorder %s108, 0
    %s111 = sadd.s32 %s110, 1
    %s112 = scalar_select %p109, %s110, %s111
    %p115 = pneg %p109
    %p116 = scmp.eq.s32.totalorder %s10, 1
    %p117 = por %p115, %p116
    %p118 = scmp.ne.s32.totalorder %s110, %s113
    %p119 = scmp.eq.s32.totalorder %s10, 0
    %p120 = por %p118, %p119
    %p121 = scmp.ne.s32.totalorder %s110, %s113
    %p122 = scmp.eq.s32.totalorder %s15, 1
    %p123 = por %p121, %p122
    %p124 = scmp.ne.s32.totalorder %s113, %s114
    %p125 = scmp.eq.s32.totalorder %s15, 0
    %p126 = por %p124, %p125
    %p127 = scmp.ne.s32.totalorder %s113, %s114
    %p128 = scmp.eq.s32.totalorder %s16, 1
    %p129 = por %p127, %p128
    %p131 = scmp.ne.s32.totalorder %s114, %s130
    %p132 = scmp.eq.s32.totalorder %s16, 0
    %p133 = por %p131, %p132
    %s134 = ssub.s32 %s17, %s29
    %s135 = ssub.s32 %s18, %s25
    %s136 = sor.u32 %s134, %s135
    %p137 = scmp.eq.s32.totalorder %s136, 0
    %s139 = sadd.s32 %s138, 1
    %s140 = scalar_select %p137, %s138, %s139
    %p143 = pneg %p137
    %p144 = scmp.eq.s32.totalorder %s10, 1
    %p145 = por %p143, %p144
    %p146 = scmp.ne.s32.totalorder %s138, %s141
    %p147 = scmp.eq.s32.totalorder %s10, 0
    %p148 = por %p146, %p147
    %p149 = scmp.ne.s32.totalorder %s138, %s141
    %p150 = scmp.eq.s32.totalorder %s15, 1
    %p151 = por %p149, %p150
    %p152 = scmp.ne.s32.totalorder %s141, %s142
    %p153 = scmp.eq.s32.totalorder %s15, 0
    %p154 = por %p152, %p153
    %p155 = scmp.ne.s32.totalorder %s141, %s142
    %p156 = scmp.eq.s32.totalorder %s16, 1
    %p157 = por %p155, %p156
    %p159 = scmp.ne.s32.totalorder %s142, %s158
    %p160 = scmp.eq.s32.totalorder %s16, 0
    %p161 = por %p159, %p160
    %p162 = scmp.le.s32.totalorder 1, %s10
    %p163 = scmp.lt.s32.totalorder %s10, 3
    %p164 = pnand %p162, %p163
    %p165 = pneg %p164
    // Predicated region
    $region9: #{unet_decoder_block_forward.21} parent=5 // pred_check
      _
    $region10: #{unet_decoder_block_forward.21} parent=5 // pred_check_branch
      %167 = sbr.rel (%p164) target = $region12
    $region11: #{unet_decoder_block_forward.21} parent=5 // pred_region
      %s168 = ssub.s32 %s10, 1
      // Predicated region
      $region13: #{unet_decoder_block_forward.21} parent=11 // pred_check
        %p169 = pneg %p74
      $region14: #{unet_decoder_block_forward.21} parent=11 // pred_check_branch
        %171 = sbr.rel (%p169) target = $region16
      $region15: #{unet_decoder_block_forward.21} parent=11 // pred_region
        %p172 = scmp.lt.s32.totalorder %s20, 0
        %s173 = scalar_select %p172, %s20, 0
        %s174 = smul.addr %s173, 4
        %s175 = scalar_lea.vmem %s1, %s174
      $region16: #{unet_decoder_block_forward.21} parent=11 // pred_fallthru
        _
      // Predicated region
      $region17: #{unet_decoder_block_forward.21} parent=11 // pred_check
        %p176 = pneg %p100
      $region18: #{unet_decoder_block_forward.21} parent=11 // pred_check_branch
        %178 = sbr.rel (%p176) target = $region20
      $region19: #{unet_decoder_block_forward.21} parent=11 // pred_region
        %p179 = scmp.lt.s32.totalorder %s20, 0
        %s180 = scalar_select %p179, %s20, 0
        %s181 = smul.addr %s180, 4
        %s182 = scalar_lea.vmem %s2, %s181
      $region20: #{unet_decoder_block_forward.21} parent=11 // pred_fallthru
        _
      // Predicated region
      $region21: #{unet_decoder_block_forward.21} parent=11 // pred_check
        %p183 = pneg %p126
      $region22: #{unet_decoder_block_forward.21} parent=11 // pred_check_branch
        %185 = sbr.rel (%p183) target = $region24
      $region23: #{unet_decoder_block_forward.21} parent=11 // pred_region
        %p186 = scmp.lt.s32.totalorder %s20, 0
        %s187 = scalar_select %p186, %s20, 0
        %s188 = scalar_lea.vmem %s3, %s187
      $region24: #{unet_decoder_block_forward.21} parent=11 // pred_fallthru
        _
    $region12: #{unet_decoder_block_forward.21} parent=5 // pred_fallthru
      _
    %p189 = scmp.lt.s32.totalorder %s10, 2
    // Predicated region
    $region25: #{unet_decoder_block_forward.21} parent=5 // pred_check
      %p190 = pneg %p189
    $region26: #{unet_decoder_block_forward.21} parent=5 // pred_check_branch
      %192 = sbr.rel (%p190) target = $region28
    $region27: #{unet_decoder_block_forward.21} parent=5 // pred_region
      // Predicated region
      $region29: #{unet_decoder_block_forward.21} parent=27 // pred_check
        %p193 = pneg %p42
      $region30: #{unet_decoder_block_forward.21} parent=27 // pred_check_branch
        %195 = sbr.rel (%p193) target = $region32
      $region31: #{unet_decoder_block_forward.21} parent=27 // pred_region
        %p196 = scmp.lt.s32.totalorder %s17, 1
        %s197 = scalar_select %p196, %s17, 1
        %s198 = smul.addr %s197, 20
        %s199 = smul.addr %s198, 4
        %s200 = scalar_lea.vmem %s0, %s199
      $region32: #{unet_decoder_block_forward.21} parent=27 // pred_fallthru
        _
    $region28: #{unet_decoder_block_forward.21} parent=5 // pred_fallthru
      _
    %p201 = scmp.le.s32.totalorder 1, %s10
    %p202 = scmp.lt.s32.totalorder %s10, 3
    %p203 = pnand %p201, %p202
    %p204 = pneg %p203
    // Predicated region
    $region33: #{unet_decoder_block_forward.21} parent=5 // pred_check
      _
    $region34: #{unet_decoder_block_forward.21} parent=5 // pred_check_branch
      %206 = sbr.rel (%p203) target = $region36
    $region35: #{unet_decoder_block_forward.21} parent=5 // pred_region
      %s207 = ssub.s32 %s10, 1
      %p208 = scmp.lt.s32.totalorder %s19, 1
      %s209 = scalar_select %p208, %s19, 1
      %s210 = smul.addr %s209, 20
      %s211 = smul.addr %s210, 4
      %s212 = scalar_lea.vmem %s0, %s211
      %p213 = pneg %p48
      %p214 = pneg %p45
      %p215 = scmp.lt.s32.totalorder %s20, 0
      %s216 = scalar_select %p215, %s20, 0
      %s217 = smul.addr %s216, 4
      %s218 = scalar_lea.vmem %s1, %s217
      %p219 = pneg %p74
      %p220 = pneg %p71
      %p221 = scmp.lt.s32.totalorder %s20, 0
      %s222 = scalar_select %p221, %s20, 0
      %s223 = smul.addr %s222, 4
      %s224 = scalar_lea.vmem %s2, %s223
      %p225 = pneg %p100
      %p226 = pneg %p97
      %p227 = scmp.lt.s32.totalorder %s20, 0
      %s228 = scalar_select %p227, %s20, 0
      %s229 = scalar_lea.vmem %s3, %s228
      %p230 = pneg %p126
      %p231 = pneg %p123
      %p232 = pneg %p154
      %p233 = pneg %p151
      %p234 = scmp.lt.s32.totalorder %s19, 1
      %s235 = scalar_select %p234, %s19, 1
      %p236 = scmp.lt.s32.totalorder %s20, 0
      %s237 = scalar_select %p236, %s20, 0
      %s238 = smul.addr %s235, 32
      %s239 = sadd.s32 %s237, %s238
      %s240 = smul.addr %s239, 4
      %s241 = scalar_lea.vmem %s4, %s240
      %p242 = scmp.lt.s32.totalorder %s19, 1
      %s243 = scalar_select %p242, %s19, 1
      %s244 = smul.addr %s243, 20
      %s245 = smul.addr %s244, 4
      %s246 = scalar_lea.vmem %s0, %s245
      %p247 = scmp.lt.s32.totalorder %s20, 0
      %s248 = scalar_select %p247, %s20, 0
      %s249 = smul.addr %s248, 4
      %s250 = scalar_lea.vmem %s1, %s249
      %p251 = scmp.lt.s32.totalorder %s20, 0
      %s252 = scalar_select %p251, %s20, 0
      %s253 = smul.addr %s252, 4
      %s254 = scalar_lea.vmem %s2, %s253
      %p255 = scmp.lt.s32.totalorder %s20, 0
      %s256 = scalar_select %p255, %s20, 0
      %s257 = scalar_lea.vmem %s3, %s256
      %p258 = scmp.lt.s32.totalorder %s19, 1
      %s259 = scalar_select %p258, %s19, 1
      %p260 = scmp.lt.s32.totalorder %s20, 0
      %s261 = scalar_select %p260, %s20, 0
      %s262 = smul.addr %s259, 32
      %s263 = sadd.s32 %s261, %s262
      %s264 = smul.addr %s263, 4
      %s265 = scalar_lea.vmem %s4, %s264
      %v267 = vld [vmem:[%s246] sm:$0xf]
      %v268 = vld [vmem:[%s246 + $0x4] sm:$0x1]
      %v269 = vld [vmem:[%s246 + $0x8] sm:$0xf]
      %v270 = vld [vmem:[%s246 + $0xc] sm:$0x1]
      %v271 = vld [vmem:[%s246 + $0x10] sm:$0xf]
      %v272 = vld [vmem:[%s246 + $0x14] sm:$0x1]
      %v273 = vld [vmem:[%s246 + $0x18] sm:$0xf]
      %v274 = vld [vmem:[%s246 + $0x1c] sm:$0x1]
      %v275 = vld [vmem:[%s246 + $0x20] sm:$0xf]
      %v276 = vld [vmem:[%s246 + $0x24] sm:$0x1]
      %v277 = vld [vmem:[%s246 + $0x28] sm:$0xf]
      %v278 = vld [vmem:[%s246 + $0x2c] sm:$0x1]
      %v279 = vld [vmem:[%s246 + $0x30] sm:$0xf]
      %v280 = vld [vmem:[%s246 + $0x34] sm:$0x1]
      %v281 = vld [vmem:[%s246 + $0x38] sm:$0xf]
      %v282 = vld [vmem:[%s246 + $0x3c] sm:$0x1]
      %v283 = vld [vmem:[%s246 + $0x40] sm:$0xf]
      %v284 = vld [vmem:[%s246 + $0x44] sm:$0x1]
      %v285 = vld [vmem:[%s246 + $0x48] sm:$0xf]
      %v286 = vld [vmem:[%s246 + $0x4c] sm:$0x1]
      %v305 = vunpack.c.l.b16 %v267
      %v306 = vunpack.c.l.b16 %v268
      %v307 = vunpack.c.l.b16 %v269
      %v308 = vunpack.c.l.b16 %v270
      %v309 = vunpack.c.l.b16 %v271
      %v310 = vunpack.c.l.b16 %v272
      %v311 = vunpack.c.l.b16 %v273
      %v312 = vunpack.c.l.b16 %v274
      %v313 = vunpack.c.l.b16 %v275
      %v314 = vunpack.c.l.b16 %v276
      %v315 = vunpack.c.l.b16 %v277
      %v316 = vunpack.c.l.b16 %v278
      %v317 = vunpack.c.l.b16 %v279
      %v318 = vunpack.c.l.b16 %v280
      %v319 = vunpack.c.l.b16 %v281
      %v320 = vunpack.c.l.b16 %v282
      %v321 = vunpack.c.l.b16 %v283
      %v322 = vunpack.c.l.b16 %v284
      %v323 = vpack.c.b16 %v306, %v305
      %v324 = vpack.c.b16 %v308, %v307
      %v325 = vpack.c.b16 %v310, %v309
      %v326 = vpack.c.b16 %v312, %v311
      %v327 = vpack.c.b16 %v314, %v313
      %v328 = vpack.c.b16 %v316, %v315
      %v329 = vpack.c.b16 %v318, %v317
      %v330 = vpack.c.b16 %v320, %v319
      %v331 = vpack.c.b16 %v322, %v321
      %v333 = vshrl.u32 %v323, 16
      %v335 = vshll.u32 %v323, 16
      %v337 = vrot.slane %v335, 1
      %v338 = vor.u32 %v333, %v337
      %v340 = vshrl.u32 %v324, 16
      %v342 = vshll.u32 %v324, 16
      %v344 = vrot.slane %v342, 1
      %v345 = vor.u32 %v340, %v344
      %v347 = vshrl.u32 %v325, 16
      %v349 = vshll.u32 %v325, 16
      %v351 = vrot.slane %v349, 1
      %v352 = vor.u32 %v347, %v351
      %v354 = vshrl.u32 %v326, 16
      %v356 = vshll.u32 %v326, 16
      %v358 = vrot.slane %v356, 1
      %v359 = vor.u32 %v354, %v358
      %v361 = vshrl.u32 %v327, 16
      %v363 = vshll.u32 %v327, 16
      %v365 = vrot.slane %v363, 1
      %v366 = vor.u32 %v361, %v365
      %v368 = vshrl.u32 %v328, 16
      %v370 = vshll.u32 %v328, 16
      %v372 = vrot.slane %v370, 1
      %v373 = vor.u32 %v368, %v372
      %v375 = vshrl.u32 %v329, 16
      %v377 = vshll.u32 %v329, 16
      %v379 = vrot.slane %v377, 1
      %v380 = vor.u32 %v375, %v379
      %v382 = vshrl.u32 %v330, 16
      %v384 = vshll.u32 %v330, 16
      %v386 = vrot.slane %v384, 1
      %v387 = vor.u32 %v382, %v386
      %v389 = vshrl.u32 %v331, 16
      %v391 = vshll.u32 %v331, 16
      %v393 = vrot.slane %v391, 1
      %v394 = vor.u32 %v389, %v393
      %395 = vrot.lane.b32.xlu0 %v338, 8
      %v396 = vpop.permute.xlu0 %395
      %397 = vrot.lane.b32.xlu0 %v345, 8
      %v398 = vpop.permute.xlu0 %397
      %399 = vrot.lane.b32.xlu0 %v352, 8
      %v400 = vpop.permute.xlu0 %399
      %401 = vrot.lane.b32.xlu0 %v359, 8
      %v402 = vpop.permute.xlu0 %401
      %403 = vrot.lane.b32.xlu0 %v366, 8
      %v404 = vpop.permute.xlu0 %403
      %405 = vrot.lane.b32.xlu0 %v373, 8
      %v406 = vpop.permute.xlu0 %405
      %407 = vrot.lane.b32.xlu0 %v380, 8
      %v408 = vpop.permute.xlu0 %407
      %409 = vrot.lane.b32.xlu0 %v387, 8
      %v410 = vpop.permute.xlu0 %409
      %411 = vrot.lane.b32.xlu0 %v394, 8
      %v412 = vpop.permute.xlu0 %411
      %v413 = vpack.c.b16 %v307, %v307
      %v414 = vpack.c.b16 %v309, %v309
      %v415 = vpack.c.b16 %v311, %v311
      %v416 = vpack.c.b16 %v313, %v313
      %v417 = vpack.c.b16 %v315, %v315
      %v418 = vpack.c.b16 %v317, %v317
      %v419 = vpack.c.b16 %v319, %v319
      %v420 = vpack.c.b16 %v321, %v321
      %421 = vrot.lane.b32.xlu0 %v413, 16
      %v422 = vpop.permute.xlu0 %421
      %423 = vrot.lane.b32.xlu0 %v414, 16
      %v424 = vpop.permute.xlu0 %423
      %425 = vrot.lane.b32.xlu0 %v415, 16
      %v426 = vpop.permute.xlu0 %425
      %427 = vrot.lane.b32.xlu0 %v416, 16
      %v428 = vpop.permute.xlu0 %427
      %429 = vrot.lane.b32.xlu0 %v417, 16
      %v430 = vpop.permute.xlu0 %429
      %431 = vrot.lane.b32.xlu0 %v418, 16
      %v432 = vpop.permute.xlu0 %431
      %433 = vrot.lane.b32.xlu0 %v419, 16
      %v434 = vpop.permute.xlu0 %433
      %435 = vrot.lane.b32.xlu0 %v420, 16
      %v436 = vpop.permute.xlu0 %435
      %437 = vrot.lane.b32.xlu0 %v345, 24
      %v438 = vpop.permute.xlu0 %437
      %439 = vrot.lane.b32.xlu0 %v352, 24
      %v440 = vpop.permute.xlu0 %439
      %441 = vrot.lane.b32.xlu0 %v359, 24
      %v442 = vpop.permute.xlu0 %441
      %443 = vrot.lane.b32.xlu0 %v366, 24
      %v444 = vpop.permute.xlu0 %443
      %445 = vrot.lane.b32.xlu0 %v373, 24
      %v446 = vpop.permute.xlu0 %445
      %447 = vrot.lane.b32.xlu0 %v380, 24
      %v448 = vpop.permute.xlu0 %447
      %449 = vrot.lane.b32.xlu0 %v387, 24
      %v450 = vpop.permute.xlu0 %449
      %451 = vrot.lane.b32.xlu0 %v394, 24
      %v452 = vpop.permute.xlu0 %451
      %v454 = vunpack.c.l.b16 %v285
      %v455 = vpack.c.b16 %v454, %v454
      %456 = vrot.lane.b32.xlu0 %v413, 32
      %v457 = vpop.permute.xlu0 %456
      %458 = vrot.lane.b32.xlu0 %v414, 32
      %v459 = vpop.permute.xlu0 %458
      %460 = vrot.lane.b32.xlu0 %v415, 32
      %v461 = vpop.permute.xlu0 %460
      %462 = vrot.lane.b32.xlu0 %v416, 32
      %v463 = vpop.permute.xlu0 %462
      %464 = vrot.lane.b32.xlu0 %v417, 32
      %v465 = vpop.permute.xlu0 %464
      %466 = vrot.lane.b32.xlu0 %v418, 32
      %v467 = vpop.permute.xlu0 %466
      %468 = vrot.lane.b32.xlu0 %v419, 32
      %v469 = vpop.permute.xlu0 %468
      %470 = vrot.lane.b32.xlu0 %v420, 32
      %v471 = vpop.permute.xlu0 %470
      %472 = vrot.lane.b32.xlu0 %v455, 32
      %v473 = vpop.permute.xlu0 %472
      %v475 = vunpack.c.l.b16 %v286
      %v476 = vpack.c.b16 %v475, %v454
      %v478 = vshrl.u32 %v476, 16
      %v480 = vshll.u32 %v476, 16
      %v482 = vrot.slane %v480, 1
      %v483 = vor.u32 %v478, %v482
      %484 = vrot.lane.b32.xlu0 %v345, 40
      %v485 = vpop.permute.xlu0 %484
      %486 = vrot.lane.b32.xlu0 %v352, 40
      %v487 = vpop.permute.xlu0 %486
      %488 = vrot.lane.b32.xlu0 %v359, 40
      %v489 = vpop.permute.xlu0 %488
      %490 = vrot.lane.b32.xlu0 %v366, 40
      %v491 = vpop.permute.xlu0 %490
      %492 = vrot.lane.b32.xlu0 %v373, 40
      %v493 = vpop.permute.xlu0 %492
      %494 = vrot.lane.b32.xlu0 %v380, 40
      %v495 = vpop.permute.xlu0 %494
      %496 = vrot.lane.b32.xlu0 %v387, 40
      %v497 = vpop.permute.xlu0 %496
      %498 = vrot.lane.b32.xlu0 %v394, 40
      %v499 = vpop.permute.xlu0 %498
      %500 = vrot.lane.b32.xlu0 %v483, 40
      %v501 = vpop.permute.xlu0 %500
      %vm502 = vcmask 64512
      %v505 = vsel %vm502, %v267, %v396
      %v508 = vsel %vm502, %v269, %v398
      %v511 = vsel %vm502, %v271, %v400
      %v514 = vsel %vm502, %v273, %v402
      %v517 = vsel %vm502, %v275, %v404
      %v520 = vsel %vm502, %v277, %v406
      %v523 = vsel %vm502, %v279, %v408
      %v526 = vsel %vm502, %v281, %v410
      %v529 = vsel %vm502, %v283, %v412
      %vm530 = vcmask 130048
      %v532 = vsel %vm530, %v505, %v422
      %v533 = vsel %vm530, %v508, %v422
      %v535 = vsel %vm530, %v508, %v424
      %v536 = vsel %vm530, %v511, %v424
      %v538 = vsel %vm530, %v511, %v426
      %v539 = vsel %vm530, %v514, %v426
      %v541 = vsel %vm530, %v514, %v428
      %v542 = vsel %vm530, %v517, %v428
      %v544 = vsel %vm530, %v517, %v430
      %v545 = vsel %vm530, %v520, %v430
      %v547 = vsel %vm530, %v520, %v432
      %v548 = vsel %vm530, %v523, %v432
      %v550 = vsel %vm530, %v523, %v434
      %v551 = vsel %vm530, %v526, %v434
      %v553 = vsel %vm530, %v526, %v436
      %v554 = vsel %vm530, %v529, %v436
      %vm555 = vcmask 195584
      %v557 = vsel %vm555, %v532, %v438
      %v558 = vsel %vm555, %v533, %v438
      %v560 = vsel %vm555, %v535, %v440
      %v561 = vsel %vm555, %v536, %v440
      %v563 = vsel %vm555, %v538, %v442
      %v564 = vsel %vm555, %v539, %v442
      %v566 = vsel %vm555, %v541, %v444
      %v567 = vsel %vm555, %v542, %v444
      %v569 = vsel %vm555, %v544, %v446
      %v570 = vsel %vm555, %v545, %v446
      %v572 = vsel %vm555, %v547, %v448
      %v573 = vsel %vm555, %v548, %v448
      %v575 = vsel %vm555, %v550, %v450
      %v576 = vsel %vm555, %v551, %v450
      %v578 = vsel %vm555, %v553, %v452
      %v579 = vsel %vm555, %v554, %v452
      %vm580 = vcmask 261120
      %v582 = vsel %vm580, %v557, %v457
      %v584 = vsel %vm580, %v558, %v459
      %v585 = vsel %vm580, %v560, %v459
      %v587 = vsel %vm580, %v561, %v461
      %v588 = vsel %vm580, %v563, %v461
      %v590 = vsel %vm580, %v564, %v463
      %v591 = vsel %vm580, %v566, %v463
      %v593 = vsel %vm580, %v567, %v465
      %v594 = vsel %vm580, %v569, %v465
      %v596 = vsel %vm580, %v570, %v467
      %v597 = vsel %vm580, %v572, %v467
      %v599 = vsel %vm580, %v573, %v469
      %v600 = vsel %vm580, %v575, %v469
      %v602 = vsel %vm580, %v576, %v471
      %v603 = vsel %vm580, %v578, %v471
      %v605 = vsel %vm580, %v579, %v473
      %vm606 = vcmask 326656
      %v608 = vsel %vm606, %v582, %v485
      %v610 = vsel %vm606, %v584, %v487
      %v611 = vsel %vm606, %v585, %v487
      %v613 = vsel %vm606, %v587, %v489
      %v614 = vsel %vm606, %v588, %v489
      %v616 = vsel %vm606, %v590, %v491
      %v617 = vsel %vm606, %v591, %v491
      %v619 = vsel %vm606, %v593, %v493
      %v620 = vsel %vm606, %v594, %v493
      %v622 = vsel %vm606, %v596, %v495
      %v623 = vsel %vm606, %v597, %v495
      %v625 = vsel %vm606, %v599, %v497
      %v626 = vsel %vm606, %v600, %v497
      %v628 = vsel %vm606, %v602, %v499
      %v629 = vsel %vm606, %v603, %v499
      %v631 = vsel %vm606, %v605, %v501
      %v632 = vld [vmem:[%s250] sm:$0xf]
      %v633 = vld [vmem:[%s250 + $0x4] sm:$0xf]
      %v634 = vld [vmem:[%s250 + $0x8] sm:$0xf]
      %v635 = vld [vmem:[%s250 + $0xc] sm:$0xf]
      %v636 = vld [vmem:[%s250 + $0x10] sm:$0xf]
      %v637 = vld [vmem:[%s250 + $0x14] sm:$0xf]
      %v638 = vld [vmem:[%s257] sm:$0x1]
      %v640 = vlaneseq
      %v641 = vshrl.u32 %v640, 7
      %v642 = vsub.s32 0, %v641
      %v643 = vrot.slane %v638, %v642
      %v661 = vunpack.c.l.b16 %v608
      %v662 = vunpack.c.l.b16 %v610
      %v663 = vunpack.c.l.b16 %v611
      %v664 = vunpack.c.l.b16 %v613
      %v665 = vunpack.c.l.b16 %v614
      %v666 = vunpack.c.l.b16 %v616
      %v667 = vunpack.c.l.b16 %v617
      %v668 = vunpack.c.l.b16 %v619
      %v669 = vunpack.c.l.b16 %v620
      %v670 = vunpack.c.l.b16 %v622
      %v671 = vunpack.c.l.b16 %v623
      %v672 = vunpack.c.l.b16 %v625
      %v673 = vunpack.c.l.b16 %v626
      %v674 = vunpack.c.l.b16 %v628
      %v675 = vunpack.c.l.b16 %v629
      %v676 = vunpack.c.l.b16 %v631
      %v677 = vpack.c.b16 %v662, %v661
      %v678 = vpack.c.b16 %v664, %v663
      %v679 = vpack.c.b16 %v666, %v665
      %v680 = vpack.c.b16 %v668, %v667
      %v681 = vpack.c.b16 %v670, %v669
      %v682 = vpack.c.b16 %v672, %v671
      %v683 = vpack.c.b16 %v674, %v673
      %v684 = vpack.c.b16 %v676, %v675
      %v691 = vunpack.c.l.b16 %v632
      %v692 = vunpack.c.l.b16 %v633
      %v693 = vunpack.c.l.b16 %v634
      %v694 = vunpack.c.l.b16 %v635
      %v695 = vunpack.c.l.b16 %v636
      %v696 = vunpack.c.l.b16 %v637
      %v697 = vpack.c.b16 %v692, %v691
      %v698 = vpack.c.b16 %v694, %v693
      %v699 = vpack.c.b16 %v696, %v695
      %vm703 = vcmask 392192
      %v705 = vsel %vm703, %v677, 0
      %v708 = vsel %vm703, %v678, 0
      %v711 = vsel %vm703, %v679, 0
      %v714 = vsel %vm703, %v680, 0
      %v717 = vsel %vm703, %v681, 0
      %v720 = vsel %vm703, %v682, 0
      %v723 = vsel %vm703, %v683, 0
      %v726 = vsel %vm703, %v684, 0
      %728 = vmatprep.subr.bf16.mxu0 0
      %729 = vmatpush1.bf16.msra.mxu0 %v697
      %730 = vmatprep.subr.bf16.mxu0 0
      %731 = vmatpush1.bf16.msra.mxu0 %v698
      %732 = vmatprep.subr.bf16.mxu0 0
      %733 = vmatpush1.bf16.msra.mxu0 %v699
      %734 = vmatprep.subr.bf16.mxu0 0
      %735 = vmatpush1.bf16.msra.mxu0 0
      %736 = vmatprep.subr.bf16.mxu0 0
      %737 = vmatpush1.bf16.msra.mxu0 0
      %738 = vmatprep.subr.bf16.mxu0 0
      %739 = vmatpush1.bf16.msra.mxu0 0
      %740 = vmatprep.subr.bf16.mxu0 0
      %741 = vmatpush1.bf16.msra.mxu0 0
      %742 = vmatprep.subr.bf16.mxu0 0
      %743 = vmatpush1.bf16.msra.mxu0 0
      %744 = vmatprep.subr.bf16.mxu0 0
      %745 = vmatpush1.bf16.msra.mxu0 0
      %746 = vmatprep.subr.bf16.mxu0 0
      %747 = vmatpush1.bf16.msra.mxu0 0
      %748 = vmatprep.subr.bf16.mxu0 0
      %749 = vmatpush1.bf16.msra.mxu0 0
      %750 = vmatprep.subr.bf16.mxu0 0
      %751 = vmatpush1.bf16.msra.mxu0 0
      %752 = vmatprep.subr.bf16.mxu0 0
      %753 = vmatpush1.bf16.msra.mxu0 0
      %754 = vmatprep.subr.bf16.mxu0 0
      %755 = vmatpush1.bf16.msra.mxu0 0
      %756 = vmatprep.subr.bf16.mxu0 0
      %757 = vmatpush1.bf16.msra.mxu0 0
      %758 = vmatprep.subr.bf16.mxu0 0
      %759 = vmatpush1.bf16.msra.mxu0 0
      %760 = vmatprep.mubr.bf16.mxu0 0
      %761 = vmatmul.mubr.bf16.gmra.mrb[0].mxu0 %v705
      %v762 = vpop.f32.mrb[0].mxu0
      %v763 = vadd.f32 %v643, %v762
      %v764 = vpop.f32.mrb[0].mxu0
      %v765 = vpop.f32.mrb[0].mxu0
      %v766 = vadd.f32 %v643, %v765
      %v767 = vpop.f32.mrb[0].mxu0
      %768 = vmatprep.mubr.bf16.mxu0 0
      %769 = vmatmul.mubr.bf16.gmra.mrb[0].mxu0 %v708
      %v770 = vpop.f32.mrb[0].mxu0
      %v771 = vadd.f32 %v643, %v770
      %v772 = vpop.f32.mrb[0].mxu0
      %v773 = vpop.f32.mrb[0].mxu0
      %v774 = vadd.f32 %v643, %v773
      %v775 = vpop.f32.mrb[0].mxu0
      %776 = vmatprep.mubr.bf16.mxu0 0
      %777 = vmatmul.mubr.bf16.gmra.mrb[0].mxu0 %v711
      %v778 = vpop.f32.mrb[0].mxu0
      %v779 = vadd.f32 %v643, %v778
      %v780 = vpop.f32.mrb[0].mxu0
      %v781 = vpop.f32.mrb[0].mxu0
      %v782 = vadd.f32 %v643, %v781
      %v783 = vpop.f32.mrb[0].mxu0
      %784 = vmatprep.mubr.bf16.mxu0 0
      %785 = vmatmul.mubr.bf16.gmra.mrb[0].mxu0 %v714
      %v786 = vpop.f32.mrb[0].mxu0
      %v787 = vadd.f32 %v643, %v786
      %v788 = vpop.f32.mrb[0].mxu0
      %v789 = vpop.f32.mrb[0].mxu0
      %v790 = vadd.f32 %v643, %v789
      %v791 = vpop.f32.mrb[0].mxu0
      %792 = vmatprep.mubr.bf16.mxu0 0
      %793 = vmatmul.mubr.bf16.gmra.mrb[0].mxu0 %v717
      %v794 = vpop.f32.mrb[0].mxu0
      %v795 = vadd.f32 %v643, %v794
      %v796 = vpop.f32.mrb[0].mxu0
      %v797 = vpop.f32.mrb[0].mxu0
      %v798 = vadd.f32 %v643, %v797
      %v799 = vpop.f32.mrb[0].mxu0
      %800 = vmatprep.mubr.bf16.mxu0 0
      %801 = vmatmul.mubr.bf16.gmra.mrb[0].mxu0 %v720
      %v802 = vpop.f32.mrb[0].mxu0
      %v803 = vadd.f32 %v643, %v802
      %v804 = vpop.f32.mrb[0].mxu0
      %v805 = vpop.f32.mrb[0].mxu0
      %v806 = vadd.f32 %v643, %v805
      %v807 = vpop.f32.mrb[0].mxu0
      %808 = vmatprep.mubr.bf16.mxu0 0
      %809 = vmatmul.mubr.bf16.gmra.mrb[0].mxu0 %v723
      %v810 = vpop.f32.mrb[0].mxu0
      %v811 = vadd.f32 %v643, %v810
      %v812 = vpop.f32.mrb[0].mxu0
      %v813 = vpop.f32.mrb[0].mxu0
      %v814 = vadd.f32 %v643, %v813
      %v815 = vpop.f32.mrb[0].mxu0
      %816 = vmatprep.mubr.bf16.mxu0 0
      %817 = vmatmul.mubr.bf16.gmra.mrb[0].mxu0 %v726
      %v818 = vpop.f32.mrb[0].mxu0
      %v819 = vadd.f32 %v643, %v818
      %v820 = vpop.f32.mrb[0].mxu0
      %v821 = vpop.f32.mrb[0].mxu0
      %v822 = vadd.f32 %v643, %v821
      %v823 = vpop.f32.mrb[0].mxu0
      %824 = vdwg.mxu0
      %v825 = vpack.c.bf16 %v766, %v763
      %v826 = vpack.c.bf16 %v774, %v771
      %v827 = vpack.c.bf16 %v782, %v779
      %v828 = vpack.c.bf16 %v790, %v787
      %v829 = vpack.c.bf16 %v798, %v795
      %v830 = vpack.c.bf16 %v806, %v803
      %v831 = vpack.c.bf16 %v814, %v811
      %v832 = vpack.c.bf16 %v822, %v819
      %v841 = vunpack.c.l.b16 %v825
      %v842 = vunpack.c.h.b16 %v825
      %v843 = vunpack.c.l.b16 %v826
      %v844 = vunpack.c.h.b16 %v826
      %v845 = vunpack.c.l.b16 %v827
      %v846 = vunpack.c.h.b16 %v827
      %v847 = vunpack.c.l.b16 %v828
      %v848 = vunpack.c.h.b16 %v828
      %v849 = vunpack.c.l.b16 %v829
      %v850 = vunpack.c.h.b16 %v829
      %v851 = vunpack.c.l.b16 %v830
      %v852 = vunpack.c.h.b16 %v830
      %v853 = vunpack.c.l.b16 %v831
      %v854 = vunpack.c.h.b16 %v831
      %v855 = vunpack.c.l.b16 %v832
      %v856 = vunpack.c.h.b16 %v832
      %v857 = vpack.c.b16 %v841, %v841
      %v858 = vpack.c.b16 %v842, %v842
      %v859 = vpack.c.b16 %v843, %v843
      %v860 = vpack.c.b16 %v844, %v844
      %v861 = vpack.c.b16 %v845, %v845
      %v862 = vpack.c.b16 %v846, %v846
      %v863 = vpack.c.b16 %v847, %v847
      %v864 = vpack.c.b16 %v848, %v848
      %v865 = vpack.c.b16 %v849, %v849
      %v866 = vpack.c.b16 %v850, %v850
      %v867 = vpack.c.b16 %v851, %v851
      %v868 = vpack.c.b16 %v852, %v852
      %v869 = vpack.c.b16 %v853, %v853
      %v870 = vpack.c.b16 %v854, %v854
      %v871 = vpack.c.b16 %v855, %v855
      %v872 = vpack.c.b16 %v856, %v856
      %889 = vst [vmem:[%s265] sm:$0xf] %v857
      %890 = vst [vmem:[%s265 + $0x4] sm:$0xf] %v858
      %891 = vst [vmem:[%s265 + $0x8] sm:$0xf] %v859
      %892 = vst [vmem:[%s265 + $0xc] sm:$0xf] %v860
      %893 = vst [vmem:[%s265 + $0x10] sm:$0xf] %v861
      %894 = vst [vmem:[%s265 + $0x14] sm:$0xf] %v862
      %895 = vst [vmem:[%s265 + $0x18] sm:$0xf] %v863
      %896 = vst [vmem:[%s265 + $0x1c] sm:$0xf] %v864
      %897 = vst [vmem:[%s265 + $0x20] sm:$0xf] %v865
      %898 = vst [vmem:[%s265 + $0x24] sm:$0xf] %v866
      %899 = vst [vmem:[%s265 + $0x28] sm:$0xf] %v867
      %900 = vst [vmem:[%s265 + $0x2c] sm:$0xf] %v868
      %901 = vst [vmem:[%s265 + $0x30] sm:$0xf] %v869
      %902 = vst [vmem:[%s265 + $0x34] sm:$0xf] %v870
      %903 = vst [vmem:[%s265 + $0x38] sm:$0xf] %v871
      %904 = vst [vmem:[%s265 + $0x3c] sm:$0xf] %v872
      %905 = vrot.lane.b32.xlu0 %v324, 16
      %v906 = vpop.permute.xlu0 %905
      %907 = vrot.lane.b32.xlu0 %v325, 16
      %v908 = vpop.permute.xlu0 %907
      %909 = vrot.lane.b32.xlu0 %v326, 16
      %v910 = vpop.permute.xlu0 %909
      %911 = vrot.lane.b32.xlu0 %v327, 16
      %v912 = vpop.permute.xlu0 %911
      %913 = vrot.lane.b32.xlu0 %v328, 16
      %v914 = vpop.permute.xlu0 %913
      %915 = vrot.lane.b32.xlu0 %v329, 16
      %v916 = vpop.permute.xlu0 %915
      %917 = vrot.lane.b32.xlu0 %v330, 16
      %v918 = vpop.permute.xlu0 %917
      %919 = vrot.lane.b32.xlu0 %v331, 16
      %v920 = vpop.permute.xlu0 %919
      %921 = vrot.lane.b32.xlu0 %v324, 32
      %v922 = vpop.permute.xlu0 %921
      %923 = vrot.lane.b32.xlu0 %v325, 32
      %v924 = vpop.permute.xlu0 %923
      %925 = vrot.lane.b32.xlu0 %v326, 32
      %v926 = vpop.permute.xlu0 %925
      %927 = vrot.lane.b32.xlu0 %v327, 32
      %v928 = vpop.permute.xlu0 %927
      %929 = vrot.lane.b32.xlu0 %v328, 32
      %v930 = vpop.permute.xlu0 %929
      %931 = vrot.lane.b32.xlu0 %v329, 32
      %v932 = vpop.permute.xlu0 %931
      %933 = vrot.lane.b32.xlu0 %v330, 32
      %v934 = vpop.permute.xlu0 %933
      %935 = vrot.lane.b32.xlu0 %v331, 32
      %v936 = vpop.permute.xlu0 %935
      %937 = vrot.lane.b32.xlu0 %v476, 32
      %v938 = vpop.permute.xlu0 %937
      %v939 = vsel %vm502, %v323, %v396
      %v940 = vsel %vm502, %v324, %v398
      %v941 = vsel %vm502, %v325, %v400
      %v942 = vsel %vm502, %v326, %v402
      %v943 = vsel %vm502, %v327, %v404
      %v944 = vsel %vm502, %v328, %v406
      %v945 = vsel %vm502, %v329, %v408
      %v946 = vsel %vm502, %v330, %v410
      %v947 = vsel %vm502, %v331, %v412
      %v949 = vsel %vm530, %v939, %v906
      %v950 = vsel %vm530, %v940, %v906
      %v952 = vsel %vm530, %v940, %v908
      %v953 = vsel %vm530, %v941, %v908
      %v955 = vsel %vm530, %v941, %v910
      %v956 = vsel %vm530, %v942, %v910
      %v958 = vsel %vm530, %v942, %v912
      %v959 = vsel %vm530, %v943, %v912
      %v961 = vsel %vm530, %v943, %v914
      %v962 = vsel %vm530, %v944, %v914
      %v964 = vsel %vm530, %v944, %v916
      %v965 = vsel %vm530, %v945, %v916
      %v967 = vsel %vm530, %v945, %v918
      %v968 = vsel %vm530, %v946, %v918
      %v970 = vsel %vm530, %v946, %v920
      %v971 = vsel %vm530, %v947, %v920
      %v972 = vsel %vm555, %v949, %v438
      %v973 = vsel %vm555, %v950, %v438
      %v974 = vsel %vm555, %v952, %v440
      %v975 = vsel %vm555, %v953, %v440
      %v976 = vsel %vm555, %v955, %v442
      %v977 = vsel %vm555, %v956, %v442
      %v978 = vsel %vm555, %v958, %v444
      %v979 = vsel %vm555, %v959, %v444
      %v980 = vsel %vm555, %v961, %v446
      %v981 = vsel %vm555, %v962, %v446
      %v982 = vsel %vm555, %v964, %v448
      %v983 = vsel %vm555, %v965, %v448
      %v984 = vsel %vm555, %v967, %v450
      %v985 = vsel %vm555, %v968, %v450
      %v986 = vsel %vm555, %v970, %v452
      %v987 = vsel %vm555, %v971, %v452
      %v989 = vsel %vm580, %v972, %v922
      %v991 = vsel %vm580, %v973, %v924
      %v992 = vsel %vm580, %v974, %v924
      %v994 = vsel %vm580, %v975, %v926
      %v995 = vsel %vm580, %v976, %v926
      %v997 = vsel %vm580, %v977, %v928
      %v998 = vsel %vm580, %v978, %v928
      %v1000 = vsel %vm580, %v979, %v930
      %v1001 = vsel %vm580, %v980, %v930
      %v1003 = vsel %vm580, %v981, %v932
      %v1004 = vsel %vm580, %v982, %v932
      %v1006 = vsel %vm580, %v983, %v934
      %v1007 = vsel %vm580, %v984, %v934
      %v1009 = vsel %vm580, %v985, %v936
      %v1010 = vsel %vm580, %v986, %v936
      %v1012 = vsel %vm580, %v987, %v938
      %v1013 = vsel %vm606, %v989, %v485
      %v1014 = vsel %vm606, %v991, %v487
      %v1015 = vsel %vm606, %v992, %v487
      %v1016 = vsel %vm606, %v994, %v489
      %v1017 = vsel %vm606, %v995, %v489
      %v1018 = vsel %vm606, %v997, %v491
      %v1019 = vsel %vm606, %v998, %v491
      %v1020 = vsel %vm606, %v1000, %v493
      %v1021 = vsel %vm606, %v1001, %v493
      %v1022 = vsel %vm606, %v1003, %v495
      %v1023 = vsel %vm606, %v1004, %v495
      %v1024 = vsel %vm606, %v1006, %v497
      %v1025 = vsel %vm606, %v1007, %v497
      %v1026 = vsel %vm606, %v1009, %v499
      %v1027 = vsel %vm606, %v1010, %v499
      %v1028 = vsel %vm606, %v1012, %v501
      %v1045 = vunpack.c.l.b16 %v1013
      %v1046 = vunpack.c.h.b16 %v1013
      %v1047 = vunpack.c.l.b16 %v1014
      %v1048 = vunpack.c.h.b16 %v1014
      %v1049 = vunpack.c.l.b16 %v1015
      %v1050 = vunpack.c.h.b16 %v1015
      %v1051 = vunpack.c.l.b16 %v1016
      %v1052 = vunpack.c.h.b16 %v1016
      %v1053 = vunpack.c.l.b16 %v1017
      %v1054 = vunpack.c.h.b16 %v1017
      %v1055 = vunpack.c.l.b16 %v1018
      %v1056 = vunpack.c.h.b16 %v1018
      %v1057 = vunpack.c.l.b16 %v1019
      %v1058 = vunpack.c.h.b16 %v1019
      %v1059 = vunpack.c.l.b16 %v1020
      %v1060 = vunpack.c.h.b16 %v1020
      %v1061 = vunpack.c.l.b16 %v1021
      %v1062 = vunpack.c.h.b16 %v1021
      %v1063 = vunpack.c.l.b16 %v1022
      %v1064 = vunpack.c.h.b16 %v1022
      %v1065 = vunpack.c.l.b16 %v1023
      %v1066 = vunpack.c.h.b16 %v1023
      %v1067 = vunpack.c.l.b16 %v1024
      %v1068 = vunpack.c.h.b16 %v1024
      %v1069 = vunpack.c.l.b16 %v1025
      %v1070 = vunpack.c.h.b16 %v1025
      %v1071 = vunpack.c.l.b16 %v1026
      %v1072 = vunpack.c.h.b16 %v1026
      %v1073 = vunpack.c.l.b16 %v1027
      %v1074 = vunpack.c.h.b16 %v1027
      %v1075 = vunpack.c.l.b16 %v1028
      %v1076 = vunpack.c.h.b16 %v1028
      %v1077 = vpack.c.b16 %v1045, %v1045
      %v1078 = vpack.c.b16 %v1046, %v1046
      %v1079 = vpack.c.b16 %v1047, %v1047
      %v1080 = vpack.c.b16 %v1048, %v1048
      %v1081 = vpack.c.b16 %v1049, %v1049
      %v1082 = vpack.c.b16 %v1050, %v1050
      %v1083 = vpack.c.b16 %v1051, %v1051
      %v1084 = vpack.c.b16 %v1052, %v1052
      %v1085 = vpack.c.b16 %v1053, %v1053
      %v1086 = vpack.c.b16 %v1054, %v1054
      %v1087 = vpack.c.b16 %v1055, %v1055
      %v1088 = vpack.c.b16 %v1056, %v1056
      %v1089 = vpack.c.b16 %v1057, %v1057
      %v1090 = vpack.c.b16 %v1058, %v1058
      %v1091 = vpack.c.b16 %v1059, %v1059
      %v1092 = vpack.c.b16 %v1060, %v1060
      %v1093 = vpack.c.b16 %v1061, %v1061
      %v1094 = vpack.c.b16 %v1062, %v1062
      %v1095 = vpack.c.b16 %v1063, %v1063
      %v1096 = vpack.c.b16 %v1064, %v1064
      %v1097 = vpack.c.b16 %v1065, %v1065
      %v1098 = vpack.c.b16 %v1066, %v1066
      %v1099 = vpack.c.b16 %v1067, %v1067
      %v1100 = vpack.c.b16 %v1068, %v1068
      %v1101 = vpack.c.b16 %v1069, %v1069
      %v1102 = vpack.c.b16 %v1070, %v1070
      %v1103 = vpack.c.b16 %v1071, %v1071
      %v1104 = vpack.c.b16 %v1072, %v1072
      %v1105 = vpack.c.b16 %v1073, %v1073
      %v1106 = vpack.c.b16 %v1074, %v1074
      %v1107 = vpack.c.b16 %v1075, %v1075
      %v1108 = vpack.c.b16 %v1076, %v1076
      %vm1109 = vsmask.f32 3328
      %vm1110 = vsmask.f32 7440
      %vm1111 = vmor %vm1109, %vm1110
      %v1113 = vshrl.u32 %v1077, 16
      %v1115 = vrot.slane %v1113, 4
      %v1116 = vshll.u32 %v1077, 16
      %v1118 = vrot.slane %v1116, 5
      %v1119 = vor.u32 %v1115, %v1118
      %v1120 = vrot.slane %v1119, 4
      %v1122 = vshll.u32 %v1078, 16
      %v1124 = vrot.slane %v1122, 5
      %v1125 = vsel %vm1111, %v1120, %v1124
      %v1127 = vshrl.u32 %v1079, 16
      %v1129 = vrot.slane %v1127, 4
      %v1130 = vshll.u32 %v1079, 16
      %v1132 = vrot.slane %v1130, 5
      %v1133 = vor.u32 %v1129, %v1132
      %v1134 = vrot.slane %v1133, 4
      %v1136 = vshll.u32 %v1080, 16
      %v1138 = vrot.slane %v1136, 5
      %v1139 = vsel %vm1111, %v1134, %v1138
      %v1141 = vshrl.u32 %v1081, 16
      %v1143 = vrot.slane %v1141, 4
      %v1144 = vshll.u32 %v1081, 16
      %v1146 = vrot.slane %v1144, 5
      %v1147 = vor.u32 %v1143, %v1146
      %v1148 = vrot.slane %v1147, 4
      %v1150 = vshll.u32 %v1082, 16
      %v1152 = vrot.slane %v1150, 5
      %v1153 = vsel %vm1111, %v1148, %v1152
      %v1155 = vshrl.u32 %v1083, 16
      %v1157 = vrot.slane %v1155, 4
      %v1158 = vshll.u32 %v1083, 16
      %v1160 = vrot.slane %v1158, 5
      %v1161 = vor.u32 %v1157, %v1160
      %v1162 = vrot.slane %v1161, 4
      %v1164 = vshll.u32 %v1084, 16
      %v1166 = vrot.slane %v1164, 5
      %v1167 = vsel %vm1111, %v1162, %v1166
      %v1169 = vshrl.u32 %v1085, 16
      %v1171 = vrot.slane %v1169, 4
      %v1172 = vshll.u32 %v1085, 16
      %v1174 = vrot.slane %v1172, 5
      %v1175 = vor.u32 %v1171, %v1174
      %v1176 = vrot.slane %v1175, 4
      %v1178 = vshll.u32 %v1086, 16
      %v1180 = vrot.slane %v1178, 5
      %v1181 = vsel %vm1111, %v1176, %v1180
      %v1183 = vshrl.u32 %v1087, 16
      %v1185 = vrot.slane %v1183, 4
      %v1186 = vshll.u32 %v1087, 16
      %v1188 = vrot.slane %v1186, 5
      %v1189 = vor.u32 %v1185, %v1188
      %v1190 = vrot.slane %v1189, 4
      %v1192 = vshll.u32 %v1088, 16
      %v1194 = vrot.slane %v1192, 5
      %v1195 = vsel %vm1111, %v1190, %v1194
      %v1197 = vshrl.u32 %v1089, 16
      %v1199 = vrot.slane %v1197, 4
      %v1200 = vshll.u32 %v1089, 16
      %v1202 = vrot.slane %v1200, 5
      %v1203 = vor.u32 %v1199, %v1202
      %v1204 = vrot.slane %v1203, 4
      %v1206 = vshll.u32 %v1090, 16
      %v1208 = vrot.slane %v1206, 5
      %v1209 = vsel %vm1111, %v1204, %v1208
      %v1211 = vshrl.u32 %v1091, 16
      %v1213 = vrot.slane %v1211, 4
      %v1214 = vshll.u32 %v1091, 16
      %v1216 = vrot.slane %v1214, 5
      %v1217 = vor.u32 %v1213, %v1216
      %v1218 = vrot.slane %v1217, 4
      %v1220 = vshll.u32 %v1092, 16
      %v1222 = vrot.slane %v1220, 5
      %v1223 = vsel %vm1111, %v1218, %v1222
      %v1225 = vshrl.u32 %v1093, 16
      %v1227 = vrot.slane %v1225, 4
      %v1228 = vshll.u32 %v1093, 16
      %v1230 = vrot.slane %v1228, 5
      %v1231 = vor.u32 %v1227, %v1230
      %v1232 = vrot.slane %v1231, 4
      %v1234 = vshll.u32 %v1094, 16
      %v1236 = vrot.slane %v1234, 5
      %v1237 = vsel %vm1111, %v1232, %v1236
      %v1239 = vshrl.u32 %v1095, 16
      %v1241 = vrot.slane %v1239, 4
      %v1242 = vshll.u32 %v1095, 16
      %v1244 = vrot.slane %v1242, 5
      %v1245 = vor.u32 %v1241, %v1244
      %v1246 = vrot.slane %v1245, 4
      %v1248 = vshll.u32 %v1096, 16
      %v1250 = vrot.slane %v1248, 5
      %v1251 = vsel %vm1111, %v1246, %v1250
      %v1253 = vshrl.u32 %v1097, 16
      %v1255 = vrot.slane %v1253, 4
      %v1256 = vshll.u32 %v1097, 16
      %v1258 = vrot.slane %v1256, 5
      %v1259 = vor.u32 %v1255, %v1258
      %v1260 = vrot.slane %v1259, 4
      %v1262 = vshll.u32 %v1098, 16
      %v1264 = vrot.slane %v1262, 5
      %v1265 = vsel %vm1111, %v1260, %v1264
      %v1267 = vshrl.u32 %v1099, 16
      %v1269 = vrot.slane %v1267, 4
      %v1270 = vshll.u32 %v1099, 16
      %v1272 = vrot.slane %v1270, 5
      %v1273 = vor.u32 %v1269, %v1272
      %v1274 = vrot.slane %v1273, 4
      %v1276 = vshll.u32 %v1100, 16
      %v1278 = vrot.slane %v1276, 5
      %v1279 = vsel %vm1111, %v1274, %v1278
      %v1281 = vshrl.u32 %v1101, 16
      %v1283 = vrot.slane %v1281, 4
      %v1284 = vshll.u32 %v1101, 16
      %v1286 = vrot.slane %v1284, 5
      %v1287 = vor.u32 %v1283, %v1286
      %v1288 = vrot.slane %v1287, 4
      %v1290 = vshll.u32 %v1102, 16
      %v1292 = vrot.slane %v1290, 5
      %v1293 = vsel %vm1111, %v1288, %v1292
      %v1295 = vshrl.u32 %v1103, 16
      %v1297 = vrot.slane %v1295, 4
      %v1298 = vshll.u32 %v1103, 16
      %v1300 = vrot.slane %v1298, 5
      %v1301 = vor.u32 %v1297, %v1300
      %v1302 = vrot.slane %v1301, 4
      %v1304 = vshll.u32 %v1104, 16
      %v1306 = vrot.slane %v1304, 5
      %v1307 = vsel %vm1111, %v1302, %v1306
      %v1309 = vshrl.u32 %v1105, 16
      %v1311 = vrot.slane %v1309, 4
      %v1312 = vshll.u32 %v1105, 16
      %v1314 = vrot.slane %v1312, 5
      %v1315 = vor.u32 %v1311, %v1314
      %v1316 = vrot.slane %v1315, 4
      %v1318 = vshll.u32 %v1106, 16
      %v1320 = vrot.slane %v1318, 5
      %v1321 = vsel %vm1111, %v1316, %v1320
      %v1323 = vshrl.u32 %v1107, 16
      %v1325 = vrot.slane %v1323, 4
      %v1326 = vshll.u32 %v1107, 16
      %v1328 = vrot.slane %v1326, 5
      %v1329 = vor.u32 %v1325, %v1328
      %v1330 = vrot.slane %v1329, 4
      %v1332 = vshll.u32 %v1108, 16
      %v1334 = vrot.slane %v1332, 5
      %v1335 = vsel %vm1111, %v1330, %v1334
      %v1336 = vld [vmem:[%s254] sm:$0xf]
      %v1337 = vld [vmem:[%s254 + $0x4] sm:$0xf]
      %v1338 = vld [vmem:[%s254 + $0x8] sm:$0xf]
      %v1339 = vld [vmem:[%s254 + $0xc] sm:$0xf]
      %v1340 = vld [vmem:[%s254 + $0x10] sm:$0xf]
      %v1341 = vld [vmem:[%s254 + $0x14] sm:$0xf]
      %v1342 = vld [vmem:[%s257] sm:$0x1]
      %v1344 = vlaneseq
      %v1345 = vshrl.u32 %v1344, 7
      %v1346 = vsub.s32 0, %v1345
      %v1347 = vrot.slane %v1342, %v1346
      %v1349 = vunpack.c.l.b16 %v1125
      %v1350 = vunpack.c.l.b16 %v1139
      %v1351 = vunpack.c.l.b16 %v1153
      %v1352 = vunpack.c.l.b16 %v1167
      %v1353 = vunpack.c.l.b16 %v1181
      %v1354 = vunpack.c.l.b16 %v1195
      %v1355 = vunpack.c.l.b16 %v1209
      %v1356 = vunpack.c.l.b16 %v1223
      %v1357 = vunpack.c.l.b16 %v1237
      %v1358 = vunpack.c.l.b16 %v1251
      %v1359 = vunpack.c.l.b16 %v1265
      %v1360 = vunpack.c.l.b16 %v1279
      %v1361 = vunpack.c.l.b16 %v1293
      %v1362 = vunpack.c.l.b16 %v1307
      %v1363 = vunpack.c.l.b16 %v1321
      %v1364 = vunpack.c.l.b16 %v1335
      %v1365 = vpack.c.b16 %v1350, %v1349
      %v1366 = vpack.c.b16 %v1352, %v1351
      %v1367 = vpack.c.b16 %v1354, %v1353
      %v1368 = vpack.c.b16 %v1356, %v1355
      %v1369 = vpack.c.b16 %v1358, %v1357
      %v1370 = vpack.c.b16 %v1360, %v1359
      %v1371 = vpack.c.b16 %v1362, %v1361
      %v1372 = vpack.c.b16 %v1364, %v1363
      %v1379 = vunpack.c.l.b16 %v1336
      %v1380 = vunpack.c.l.b16 %v1337
      %v1381 = vunpack.c.l.b16 %v1338
      %v1382 = vunpack.c.l.b16 %v1339
      %v1383 = vunpack.c.l.b16 %v1340
      %v1384 = vunpack.c.l.b16 %v1341
      %v1385 = vpack.c.b16 %v1380, %v1379
      %v1386 = vpack.c.b16 %v1382, %v1381
      %v1387 = vpack.c.b16 %v1384, %v1383
      %v1392 = vsel %vm703, %v1365, 0
      %v1395 = vsel %vm703, %v1366, 0
      %v1398 = vsel %vm703, %v1367, 0
      %v1401 = vsel %vm703, %v1368, 0
      %v1404 = vsel %vm703, %v1369, 0
      %v1407 = vsel %vm703, %v1370, 0
      %v1410 = vsel %vm703, %v1371, 0
      %v1413 = vsel %vm703, %v1372, 0
      %1415 = vmatprep.subr.bf16.mxu0 0
      %1416 = vmatpush1.bf16.msra.mxu0 %v1385
      %1417 = vmatprep.subr.bf16.mxu0 0
      %1418 = vmatpush1.bf16.msra.mxu0 %v1386
      %1419 = vmatprep.subr.bf16.mxu0 0
      %1420 = vmatpush1.bf16.msra.mxu0 %v1387
      %1421 = vmatprep.subr.bf16.mxu0 0
      %1422 = vmatpush1.bf16.msra.mxu0 0
      %1423 = vmatprep.subr.bf16.mxu0 0
      %1424 = vmatpush1.bf16.msra.mxu0 0
      %1425 = vmatprep.subr.bf16.mxu0 0
      %1426 = vmatpush1.bf16.msra.mxu0 0
      %1427 = vmatprep.subr.bf16.mxu0 0
      %1428 = vmatpush1.bf16.msra.mxu0 0
      %1429 = vmatprep.subr.bf16.mxu0 0
      %1430 = vmatpush1.bf16.msra.mxu0 0
      %1431 = vmatprep.subr.bf16.mxu0 0
      %1432 = vmatpush1.bf16.msra.mxu0 0
      %1433 = vmatprep.subr.bf16.mxu0 0
      %1434 = vmatpush1.bf16.msra.mxu0 0
      %1435 = vmatprep.subr.bf16.mxu0 0
      %1436 = vmatpush1.bf16.msra.mxu0 0
      %1437 = vmatprep.subr.bf16.mxu0 0
      %1438 = vmatpush1.bf16.msra.mxu0 0
      %1439 = vmatprep.subr.bf16.mxu0 0
      %1440 = vmatpush1.bf16.msra.mxu0 0
      %1441 = vmatprep.subr.bf16.mxu0 0
      %1442 = vmatpush1.bf16.msra.mxu0 0
      %1443 = vmatprep.subr.bf16.mxu0 0
      %1444 = vmatpush1.bf16.msra.mxu0 0
      %1445 = vmatprep.subr.bf16.mxu0 0
      %1446 = vmatpush1.bf16.msra.mxu0 0
      %1447 = vmatprep.mubr.bf16.mxu0 0
      %1448 = vmatmul.mubr.bf16.gmra.mrb[0].mxu0 %v1392
      %v1449 = vpop.f32.mrb[0].mxu0
      %v1450 = vadd.f32 %v1347, %v1449
      %v1451 = vpop.f32.mrb[0].mxu0
      %v1452 = vpop.f32.mrb[0].mxu0
      %v1453 = vadd.f32 %v1347, %v1452
      %v1454 = vpop.f32.mrb[0].mxu0
      %1455 = vmatprep.mubr.bf16.mxu0 0
      %1456 = vmatmul.mubr.bf16.gmra.mrb[0].mxu0 %v1395
      %v1457 = vpop.f32.mrb[0].mxu0
      %v1458 = vadd.f32 %v1347, %v1457
      %v1459 = vpop.f32.mrb[0].mxu0
      %v1460 = vpop.f32.mrb[0].mxu0
      %v1461 = vadd.f32 %v1347, %v1460
      %v1462 = vpop.f32.mrb[0].mxu0
      %1463 = vmatprep.mubr.bf16.mxu0 0
      %1464 = vmatmul.mubr.bf16.gmra.mrb[0].mxu0 %v1398
      %v1465 = vpop.f32.mrb[0].mxu0
      %v1466 = vadd.f32 %v1347, %v1465
      %v1467 = vpop.f32.mrb[0].mxu0
      %v1468 = vpop.f32.mrb[0].mxu0
      %v1469 = vadd.f32 %v1347, %v1468
      %v1470 = vpop.f32.mrb[0].mxu0
      %1471 = vmatprep.mubr.bf16.mxu0 0
      %1472 = vmatmul.mubr.bf16.gmra.mrb[0].mxu0 %v1401
      %v1473 = vpop.f32.mrb[0].mxu0
      %v1474 = vadd.f32 %v1347, %v1473
      %v1475 = vpop.f32.mrb[0].mxu0
      %v1476 = vpop.f32.mrb[0].mxu0
      %v1477 = vadd.f32 %v1347, %v1476
      %v1478 = vpop.f32.mrb[0].mxu0
      %1479 = vmatprep.mubr.bf16.mxu0 0
      %1480 = vmatmul.mubr.bf16.gmra.mrb[0].mxu0 %v1404
      %v1481 = vpop.f32.mrb[0].mxu0
      %v1482 = vadd.f32 %v1347, %v1481
      %v1483 = vpop.f32.mrb[0].mxu0
      %v1484 = vpop.f32.mrb[0].mxu0
      %v1485 = vadd.f32 %v1347, %v1484
      %v1486 = vpop.f32.mrb[0].mxu0
      %1487 = vmatprep.mubr.bf16.mxu0 0
      %1488 = vmatmul.mubr.bf16.gmra.mrb[0].mxu0 %v1407
      %v1489 = vpop.f32.mrb[0].mxu0
      %v1490 = vadd.f32 %v1347, %v1489
      %v1491 = vpop.f32.mrb[0].mxu0
      %v1492 = vpop.f32.mrb[0].mxu0
      %v1493 = vadd.f32 %v1347, %v1492
      %v1494 = vpop.f32.mrb[0].mxu0
      %1495 = vmatprep.mubr.bf16.mxu0 0
      %1496 = vmatmul.mubr.bf16.gmra.mrb[0].mxu0 %v1410
      %v1497 = vpop.f32.mrb[0].mxu0
      %v1498 = vadd.f32 %v1347, %v1497
      %v1499 = vpop.f32.mrb[0].mxu0
      %v1500 = vpop.f32.mrb[0].mxu0
      %v1501 = vadd.f32 %v1347, %v1500
      %v1502 = vpop.f32.mrb[0].mxu0
      %1503 = vmatprep.mubr.bf16.mxu0 0
      %1504 = vmatmul.mubr.bf16.gmra.mrb[0].mxu0 %v1413
      %v1505 = vpop.f32.mrb[0].mxu0
      %v1506 = vadd.f32 %v1347, %v1505
      %v1507 = vpop.f32.mrb[0].mxu0
      %v1508 = vpop.f32.mrb[0].mxu0
      %v1509 = vadd.f32 %v1347, %v1508
      %v1510 = vpop.f32.mrb[0].mxu0
      %1511 = vdwg.mxu0
      %v1512 = vpack.c.bf16 %v1453, %v1450
      %v1513 = vpack.c.bf16 %v1461, %v1458
      %v1514 = vpack.c.bf16 %v1469, %v1466
      %v1515 = vpack.c.bf16 %v1477, %v1474
      %v1516 = vpack.c.bf16 %v1485, %v1482
      %v1517 = vpack.c.bf16 %v1493, %v1490
      %v1518 = vpack.c.bf16 %v1501, %v1498
      %v1519 = vpack.c.bf16 %v1509, %v1506
      %v1528 = vunpack.c.l.b16 %v1512
      %v1529 = vunpack.c.h.b16 %v1512
      %v1530 = vunpack.c.l.b16 %v1513
      %v1531 = vunpack.c.h.b16 %v1513
      %v1532 = vunpack.c.l.b16 %v1514
      %v1533 = vunpack.c.h.b16 %v1514
      %v1534 = vunpack.c.l.b16 %v1515
      %v1535 = vunpack.c.h.b16 %v1515
      %v1536 = vunpack.c.l.b16 %v1516
      %v1537 = vunpack.c.h.b16 %v1516
      %v1538 = vunpack.c.l.b16 %v1517
      %v1539 = vunpack.c.h.b16 %v1517
      %v1540 = vunpack.c.l.b16 %v1518
      %v1541 = vunpack.c.h.b16 %v1518
      %v1542 = vunpack.c.l.b16 %v1519
      %v1543 = vunpack.c.h.b16 %v1519
      %v1544 = vpack.c.b16 %v1528, %v1528
      %v1545 = vpack.c.b16 %v1529, %v1529
      %v1546 = vpack.c.b16 %v1530, %v1530
      %v1547 = vpack.c.b16 %v1531, %v1531
      %v1548 = vpack.c.b16 %v1532, %v1532
      %v1549 = vpack.c.b16 %v1533, %v1533
      %v1550 = vpack.c.b16 %v1534, %v1534
      %v1551 = vpack.c.b16 %v1535, %v1535
      %v1552 = vpack.c.b16 %v1536, %v1536
      %v1553 = vpack.c.b16 %v1537, %v1537
      %v1554 = vpack.c.b16 %v1538, %v1538
      %v1555 = vpack.c.b16 %v1539, %v1539
      %v1556 = vpack.c.b16 %v1540, %v1540
      %v1557 = vpack.c.b16 %v1541, %v1541
      %v1558 = vpack.c.b16 %v1542, %v1542
      %v1559 = vpack.c.b16 %v1543, %v1543
      %s1576 = scalar_lea.vmem %s265, 64
      %1577 = vst [vmem:[%s1576] sm:$0xf] %v1544
      %1578 = vst [vmem:[%s1576 + $0x4] sm:$0xf] %v1545
      %1579 = vst [vmem:[%s1576 + $0x8] sm:$0xf] %v1546
      %1580 = vst [vmem:[%s1576 + $0xc] sm:$0xf] %v1547
      %1581 = vst [vmem:[%s1576 + $0x10] sm:$0xf] %v1548
      %1582 = vst [vmem:[%s1576 + $0x14] sm:$0xf] %v1549
      %1583 = vst [vmem:[%s1576 + $0x18] sm:$0xf] %v1550
      %1584 = vst [vmem:[%s1576 + $0x1c] sm:$0xf] %v1551
      %1585 = vst [vmem:[%s1576 + $0x20] sm:$0xf] %v1552
      %1586 = vst [vmem:[%s1576 + $0x24] sm:$0xf] %v1553
      %1587 = vst [vmem:[%s1576 + $0x28] sm:$0xf] %v1554
      %1588 = vst [vmem:[%s1576 + $0x2c] sm:$0xf] %v1555
      %1589 = vst [vmem:[%s1576 + $0x30] sm:$0xf] %v1556
      %1590 = vst [vmem:[%s1576 + $0x34] sm:$0xf] %v1557
      %1591 = vst [vmem:[%s1576 + $0x38] sm:$0xf] %v1558
      %1592 = vst [vmem:[%s1576 + $0x3c] sm:$0xf] %v1559
      %p1593 = scmp.lt.s32.totalorder %s19, 1
      %s1594 = scalar_select %p1593, %s19, 1
      %p1595 = scmp.lt.s32.totalorder %s20, 0
      %s1596 = scalar_select %p1595, %s20, 0
      %s1597 = smul.addr %s1594, 32
      %s1598 = sadd.s32 %s1596, %s1597
      %s1599 = smul.addr %s1598, 4
      %s1600 = scalar_lea.vmem %s4, %s1599
      // Predicated region
      $region37: #{unet_decoder_block_forward.21} parent=35 // pred_check
        %p1601 = pneg %p151
      $region38: #{unet_decoder_block_forward.21} parent=35 // pred_check_branch
        %1603 = sbr.rel (%p1601) target = $region40
      $region39: #{unet_decoder_block_forward.21} parent=35 // pred_region
        _
      $region40: #{unet_decoder_block_forward.21} parent=35 // pred_fallthru
        _
    $region36: #{unet_decoder_block_forward.21} parent=5 // pred_fallthru
      _
    %p1604 = scmp.le.s32.totalorder 2, %s10
    // Predicated region
    $region41: #{unet_decoder_block_forward.21} parent=5 // pred_check
      %p1605 = pneg %p1604
    $region42: #{unet_decoder_block_forward.21} parent=5 // pred_check_branch
      %1607 = sbr.rel (%p1605) target = $region44
    $region43: #{unet_decoder_block_forward.21} parent=5 // pred_region
      %s1608 = ssub.s32 %s10, 2
      // Predicated region
      $region45: #{unet_decoder_block_forward.21} parent=43 // pred_check
        %p1609 = pneg %p157
      $region46: #{unet_decoder_block_forward.21} parent=43 // pred_check_branch
        %1611 = sbr.rel (%p1609) target = $region48
      $region47: #{unet_decoder_block_forward.21} parent=43 // pred_region
        %p1612 = scmp.lt.s32.totalorder %s21, 1
        %s1613 = scalar_select %p1612, %s21, 1
        %p1614 = scmp.lt.s32.totalorder %s22, 0
        %s1615 = scalar_select %p1614, %s22, 0
        %s1616 = smul.addr %s1613, 32
        %s1617 = sadd.s32 %s1615, %s1616
        %s1618 = smul.addr %s1617, 4
        %s1619 = scalar_lea.vmem %s4, %s1618
      $region48: #{unet_decoder_block_forward.21} parent=43 // pred_fallthru
        _
    $region44: #{unet_decoder_block_forward.21} parent=5 // pred_fallthru
      _
  $region6: #{unet_decoder_block_forward.21} parent=0 // loop_footer
    %s14 = sadd.s32 1, %s10
  $region7: #{unet_decoder_block_forward.21} parent=0 // loop_footer_branch
    %9 = sbr.rel target = $region3
  $region8: #{unet_decoder_block_forward.21} parent=0 // loop_exit
    _

</llo_original>
